<compile_context>
chip_gen: v6e
topology: v6e:2x2x1
jax: 0.10.0
libtpu: 0.0.40
codegen_flags: <defaults>
</compile_context>

<pallas_src>
import jax
import jax.numpy as jnp
from jax.experimental import pallas as pl
from jax.experimental.pallas import tpu as pltpu

N_FEATURES = 20          # conv1 input channels (fixed by the module)
H_T = 26                 # torch LSTM hidden size
HP = 32                  # padded per-direction hidden size
DH = 2 * HP              # 64: [fwd | bwd] hidden, padded
W_ALL = 4 * DH           # 256: 4 gates x (fwd|bwd) lanes
CP = 128                 # padded conv output channels (from 100)
N_LAYERS = 3

# Rows of the packed "misc" parameter table (f32, shape (16, 256)).
ROW_S0, ROW_T0 = 0, 1                       # bn0 scale / shift (20 lanes)
ROW_B1, ROW_S1, ROW_T1 = 2, 3, 4            # conv1 bias, conv1_bn scale/shift
ROW_B2, ROW_S2, ROW_T2 = 5, 6, 7            # conv2 bias, conv2_bn scale/shift
ROW_LB = 8                                  # rows 8..10: LSTM gate bias / layer
ROW_FCW, ROW_FCB = 11, 12                   # fc weight row (64 lanes), fc bias
MISC_ROWS = 16

VMEM_SPEC = pl.BlockSpec(memory_space=pltpu.MemorySpace.VMEM)


# ----------------------------------------------------------------------------
# In-kernel helpers (traced inside the single fused kernel).
# ----------------------------------------------------------------------------
def _conv_relu_pool_bn(x, w, b, scale, shift):
    """Conv1d(k=3, s=2, p=1) + bias + ReLU + MaxPool1d(2,2) + BN affine.

    x: (B, L, Cin) f32 channels-last.  w: (3*Cin, CP) bf16, rows [tap0;tap1;tap2].
    b/scale/shift: (1, CP) f32.  Returns (B, L//4, CP) f32.
    """
    B, L, Cin = x.shape
    Lout, Lp = L // 2, L // 4

    # Output j of the stride-2 conv uses x[2j-1], x[2j], x[2j+1] (zero pad).
    x4 = x.reshape(B, Lout, 2, Cin)
    x_even = x4[:, :, 0, :]                               # x[2j]    (tap 1)
    x_odd = x4[:, :, 1, :]                                # x[2j+1]  (tap 2)
    x_prev = jnp.concatenate(                             # x[2j-1]  (tap 0)
        [jnp.zeros((B, 1, Cin), jnp.float32), x_odd[:, :Lout - 1, :]], axis=1)

    # Single fused-taps matmul (K = 3*Cin) instead of three matmuls + adds.
    taps = jnp.concatenate([x_prev, x_even, x_odd], axis=-1)
    y = jnp.dot(taps.reshape(B * Lout, 3 * Cin).astype(jnp.bfloat16), w,
                preferred_element_type=jnp.float32) + b
    y = jnp.maximum(y, 0.0)                               # ReLU

    y4 = y.reshape(B, Lp, 2, CP)
    pooled = jnp.maximum(y4[:, :, 0, :], y4[:, :, 1, :])  # MaxPool1d(2, 2)
    return pooled * scale.reshape(1, 1, CP) + shift.reshape(1, 1, CP)


def net_kernel(x_ref, misc_ref, w1_ref, w2_ref, wih_ref, whh_ref,
               o_ref, xbuf_ref):
    B, L, _ = x_ref.shape
    T = L // 16

    # ---- bn0 (inference affine) applied before the conv's zero padding -----
    s0 = misc_ref[ROW_S0:ROW_S0 + 1, 0:N_FEATURES].reshape(1, 1, N_FEATURES)
    t0 = misc_ref[ROW_T0:ROW_T0 + 1, 0:N_FEATURES].reshape(1, 1, N_FEATURES)
    x = x_ref[...] * s0 + t0

    # ---- conv1 + relu + pool + conv1_bn (dropout == identity) --------------
    x = _conv_relu_pool_bn(x, w1_ref[...],
                           misc_ref[ROW_B1:ROW_B1 + 1, 0:CP],
                           misc_ref[ROW_S1:ROW_S1 + 1, 0:CP],
                           misc_ref[ROW_T1:ROW_T1 + 1, 0:CP])
    # ---- conv2 + relu + pool + conv2_bn (dropout == identity) --------------
    x = _conv_relu_pool_bn(x, w2_ref[...],
                           misc_ref[ROW_B2:ROW_B2 + 1, 0:CP],
                           misc_ref[ROW_S2:ROW_S2 + 1, 0:CP],
                           misc_ref[ROW_T2:ROW_T2 + 1, 0:CP])
    # x: (B, T, CP) channels-last == torch's x.transpose_(2, 1)

    # ---- time-major staging into VMEM scratch (no concat chains) -----------
    for t in range(T):
        xbuf_ref[t * B:(t + 1) * B, :] = x[:, t, :]

    # Lane masks, built once and reused by every layer / step.
    col = jax.lax.broadcasted_iota(jnp.int32, (B, W_ALL), 1)
    fwd_cols = (col & (DH - 1)) < HP               # fwd half of every gate block
    g_cols = (col >= 2 * DH) & (col < 3 * DH)      # g-gate lanes (tanh)

    in_off = (0, CP, CP + DH)                      # row offsets into wih_ref
    in_dim = (CP, DH, DH)                          # input width per layer

    h = jnp.zeros((B, DH), jnp.float32)
    for layer in range(N_LAYERS):
        wih = wih_ref[in_off[layer]:in_off[layer] + in_dim[layer], :]
        whh = whh_ref[layer * DH:(layer + 1) * DH, :]
        bias = misc_ref[ROW_LB + layer:ROW_LB + layer + 1, :]

        # Hoisted input->hidden matmul: all T steps, both directions at once.
        xl = xbuf_ref[:, 0:in_dim[layer]]
        gih = jnp.dot(xl.astype(jnp.bfloat16), wih,
                      preferred_element_type=jnp.float32) + bias

        h = jnp.zeros((B, DH), jnp.float32)
        c = jnp.zeros((B, DH), jnp.float32)
        last = layer == N_LAYERS - 1
        for s in range(T):
            # fwd lanes take time s, bwd lanes take time T-1-s: one select,
            # no per-step row concat.
            gx = jnp.where(fwd_cols,
                           gih[s * B:(s + 1) * B, :],
                           gih[(T - 1 - s) * B:(T - s) * B, :])
            gates = gx + jnp.dot(h.astype(jnp.bfloat16), whh,
                                 preferred_element_type=jnp.float32)
            # Two full-width EUP passes + one select (instead of 4 per-gate ops).
            act = jnp.where(g_cols, jnp.tanh(gates), jax.nn.sigmoid(gates))
            i_g = act[:, 0 * DH:1 * DH]            # torch gate order i, f, g, o
            f_g = act[:, 1 * DH:2 * DH]
            g_g = act[:, 2 * DH:3 * DH]
            o_g = act[:, 3 * DH:4 * DH]
            c = f_g * c + i_g * g_g
            h = o_g * jnp.tanh(c)
            if not last:
                # Per-step stores build the next layer's time-major input in
                # the reused scratch; skipped entirely for the last layer.
                xbuf_ref[s * B:(s + 1) * B, 0:HP] = h[:, 0:HP]
                xbuf_ref[(T - 1 - s) * B:(T - s) * B, HP:DH] = h[:, HP:DH]

    # torch.cat((h[-2], h[-1]), dim=1) is exactly `h` in our [fwd | bwd] layout.
    fcw = misc_ref[ROW_FCW:ROW_FCW + 1, 0:DH]
    fcb = misc_ref[ROW_FCB:ROW_FCB + 1, 0:1]
    o_ref[...] = jnp.sum(h * fcw, axis=1, keepdims=True) + fcb


# ----------------------------------------------------------------------------
# Host-side ONE-TIME parameter packing from PyTorch layouts.
# ----------------------------------------------------------------------------
def fold_bn(gamma, beta, mean, var, eps=1e-5):
    scale = gamma * jax.lax.rsqrt(var + eps)
    return scale, beta - mean * scale


def _pack_conv_w(w, cin_pad):
    # torch (Cout, Cin, 3) -> (3*cin_pad, CP) bf16, rows [tap0; tap1; tap2].
    cout, cin, _ = w.shape
    blocks = [jnp.pad(w[:, :, k].T, ((0, cin_pad - cin), (0, CP - cout)))
              for k in range(3)]
    return jnp.concatenate(blocks, axis=0).astype(jnp.bfloat16)


def _pack_lstm_cols(w, d):
    # torch (4*H_T, in_t) rows [i;f;g;o] -> (in_t, 256) gate-major interleaved
    # columns: gate q, direction d lives at cols [q*64 + d*32, +26).
    in_t = w.shape[1]
    out = jnp.zeros((in_t, W_ALL), jnp.float32)
    for q in range(4):
        out = out.at[:, q * DH + d * HP:q * DH + d * HP + H_T].set(
            w[q * H_T:(q + 1) * H_T, :].T)
    return out


def _pack_lstm_bias(b, d):
    out = jnp.zeros((W_ALL,), jnp.float32)
    for q in range(4):
        out = out.at[q * DH + d * HP:q * DH + d * HP + H_T].set(
            b[q * H_T:(q + 1) * H_T])
    return out


def _expand_rows_bidir(w):
    # input rows [h_fwd(26); h_bwd(26)] -> rows [0:26] and [32:58] of 64.
    top = jnp.pad(w[:H_T, :], ((0, HP - H_T), (0, 0)))
    bot = jnp.pad(w[H_T:, :], ((0, HP - H_T), (0, 0)))
    return jnp.concatenate([top, bot], axis=0)


def pack_params(p):
    s0, t0 = fold_bn(p["bn0_gamma"], p["bn0_beta"], p["bn0_mean"], p["bn0_var"])
    s1, t1 = fold_bn(p["bn1_gamma"], p["bn1_beta"], p["bn1_mean"], p["bn1_var"])
    s2, t2 = fold_bn(p["bn2_gamma"], p["bn2_beta"], p["bn2_mean"], p["bn2_var"])

    misc = jnp.zeros((MISC_ROWS, W_ALL), jnp.float32)
    misc = misc.at[ROW_S0, :N_FEATURES].set(s0)
    misc = misc.at[ROW_T0, :N_FEATURES].set(t0)
    misc = misc.at[ROW_B1, :100].set(p["conv1_b"])
    misc = misc.at[ROW_S1, :100].set(s1)
    misc = misc.at[ROW_T1, :100].set(t1)
    misc = misc.at[ROW_B2, :100].set(p["conv2_b"])
    misc = misc.at[ROW_S2, :100].set(s2)
    misc = misc.at[ROW_T2, :100].set(t2)

    wih_rows, whh_rows = [], []
    for layer in range(N_LAYERS):
        wl = (_pack_lstm_cols(p["lstm"][layer][0]["w_ih"], 0)
              + _pack_lstm_cols(p["lstm"][layer][1]["w_ih"], 1))
        if layer == 0:
            wl = jnp.pad(wl, ((0, CP - wl.shape[0]), (0, 0)))      # (128, 256)
        else:
            wl = _expand_rows_bidir(wl)                            # (64, 256)
        wih_rows.append(wl)

        hl = jnp.zeros((DH, W_ALL), jnp.float32)
        for d in range(2):
            hl = hl.at[d * HP:d * HP + H_T, :].set(
                _pack_lstm_cols(p["lstm"][layer][d]["w_hh"], d))
        whh_rows.append(hl)                                        # (64, 256)

        bl = (_pack_lstm_bias(p["lstm"][layer][0]["b_ih"]
                              + p["lstm"][layer][0]["b_hh"], 0)
              + _pack_lstm_bias(p["lstm"][layer][1]["b_ih"]
                                + p["lstm"][layer][1]["b_hh"], 1))
        misc = misc.at[ROW_LB + layer, :].set(bl)

    fcw = jnp.zeros((DH,), jnp.float32)
    fcw = fcw.at[0:H_T].set(p["fc_w"][0, 0:H_T])
    fcw = fcw.at[HP:HP + H_T].set(p["fc_w"][0, H_T:2 * H_T])
    misc = misc.at[ROW_FCW, :DH].set(fcw)
    misc = misc.at[ROW_FCB, 0].set(p["fc_b"][0])

    return dict(
        misc=misc,
        w1=_pack_conv_w(p["conv1_w"], N_FEATURES),                 # (60, 128)
        w2=_pack_conv_w(p["conv2_w"], CP),                         # (384, 128)
        wih=jnp.concatenate(wih_rows, axis=0).astype(jnp.bfloat16),  # (256, 256)
        whh=jnp.concatenate(whh_rows, axis=0).astype(jnp.bfloat16),  # (192, 256)
    )


# ----------------------------------------------------------------------------
# Deterministic synthetic parameters (PyTorch layouts) and the forward pass.
# ----------------------------------------------------------------------------
def init_params(key):
    keys = iter(jax.random.split(key, 64))

    def rnd(shape, scale=0.1):
        return (scale * jax.random.normal(next(keys), shape)).astype(jnp.float32)

    p = {}
    for name, C in (("bn0", N_FEATURES), ("bn1", 100), ("bn2", 100)):
        p[f"{name}_gamma"] = 1.0 + rnd((C,), 0.05)
        p[f"{name}_beta"] = rnd((C,), 0.05)
        p[f"{name}_mean"] = rnd((C,), 0.05)
        p[f"{name}_var"] = (1.0 + 0.05 * jnp.abs(
            jax.random.normal(next(keys), (C,)))).astype(jnp.float32)

    p["conv1_w"] = rnd((100, N_FEATURES, 3))    # Conv1d(20->100, k=3, s=2, p=1)
    p["conv1_b"] = rnd((100,))
    p["conv2_w"] = rnd((100, 100, 3))           # Conv1d(100->100, k=3, s=2, p=1)
    p["conv2_b"] = rnd((100,))

    lstm = []
    for layer in range(N_LAYERS):
        in_dim = 100 if layer == 0 else 2 * H_T
        dirs = []
        for _d in range(2):
            dirs.append(dict(w_ih=rnd((4 * H_T, in_dim)),
                             w_hh=rnd((4 * H_T, H_T)),
                             b_ih=rnd((4 * H_T,)),
                             b_hh=rnd((4 * H_T,))))
        lstm.append(dirs)
    p["lstm"] = lstm

    p["fc_w"] = rnd((1, 2 * H_T))               # Linear(52 -> 1)
    p["fc_b"] = rnd((1,))
    return p


@jax.jit
def net_forward(x_ncl, packed):
    # x_ncl: (B, 20, L) exactly like the PyTorch module's input.
    x = jnp.transpose(x_ncl, (0, 2, 1)).astype(jnp.float32)   # (B, L, C)
    B, L, _ = x.shape
    assert L % 16 == 0, "L must be divisible by 16 (two stride-2 convs + two pools)"
    T = L // 16
    return pl.pallas_call(
        net_kernel,
        out_shape=jax.ShapeDtypeStruct((B, 1), jnp.float32),
        in_specs=[VMEM_SPEC] * 6,
        out_specs=VMEM_SPEC,
        scratch_shapes=[pltpu.VMEM((T * B, CP), jnp.float32)],
    )(x, packed["misc"], packed["w1"], packed["w2"],
      packed["wih"], packed["whh"])


if __name__ == "__main__":
    key = jax.random.PRNGKey(0)
    kx, kparam = jax.random.split(key)
    # B=8 fills the 8 sublanes (review item: batch >= 8 per invocation).
    B, C, L = 8, N_FEATURES, 64
    x = jax.random.normal(kx, (B, C, L), jnp.float32)
    params = init_params(kparam)
    packed = pack_params(params)        # packed ONCE, outside the jitted forward
    out = jax.block_until_ready(net_forward(x, packed))
    assert out.shape == (B, 1) and out.dtype == jnp.float32
    print("KERNEL_OK")
</pallas_src>

<mosaic_0001>
module attributes {stable_mosaic.version = 11 : i64} {
  func.func @net_kernel(%arg0: memref<8x64x20xf32, #tpu.memory_space<vmem>>, %arg1: memref<16x256xf32, #tpu.memory_space<vmem>>, %arg2: memref<60x128xbf16, #tpu.memory_space<vmem>>, %arg3: memref<384x128xbf16, #tpu.memory_space<vmem>>, %arg4: memref<256x256xbf16, #tpu.memory_space<vmem>>, %arg5: memref<192x256xbf16, #tpu.memory_space<vmem>>, %arg6: memref<8x1xf32, #tpu.memory_space<vmem>>, %arg7: memref<32x128xf32, #tpu.memory_space<vmem>>) attributes {dimension_semantics = [], scalar_prefetch = 0 : i64, scratch_operands = 1 : i64, tpu.core_type = #tpu.core_type<tc>} {
    %c0 = arith.constant 0 : index
    %c0_0 = arith.constant 0 : index
    %0 = vector.load %arg1[%c0, %c0_0] : memref<16x256xf32, #tpu.memory_space<vmem>>, vector<1x20xf32>
    %1 = vector.shape_cast %0 : vector<1x20xf32> to vector<1x1x20xf32>
    %c1 = arith.constant 1 : index
    %c0_1 = arith.constant 0 : index
    %2 = vector.load %arg1[%c1, %c0_1] : memref<16x256xf32, #tpu.memory_space<vmem>>, vector<1x20xf32>
    %3 = vector.shape_cast %2 : vector<1x20xf32> to vector<1x1x20xf32>
    %c0_2 = arith.constant 0 : index
    %c0_3 = arith.constant 0 : index
    %c0_4 = arith.constant 0 : index
    %4 = vector.load %arg0[%c0_2, %c0_3, %c0_4] : memref<8x64x20xf32, #tpu.memory_space<vmem>>, vector<8x64x20xf32>
    %5 = vector.broadcast %1 : vector<1x1x20xf32> to vector<8x64x20xf32>
    %6 = arith.mulf %4, %5 : vector<8x64x20xf32>
    %7 = vector.broadcast %3 : vector<1x1x20xf32> to vector<8x64x20xf32>
    %8 = arith.addf %6, %7 : vector<8x64x20xf32>
    %c0_5 = arith.constant 0 : index
    %c0_6 = arith.constant 0 : index
    %9 = vector.load %arg2[%c0_5, %c0_6] : memref<60x128xbf16, #tpu.memory_space<vmem>>, vector<60x128xbf16>
    %c2 = arith.constant 2 : index
    %c0_7 = arith.constant 0 : index
    %10 = vector.load %arg1[%c2, %c0_7] : memref<16x256xf32, #tpu.memory_space<vmem>>, vector<1x128xf32>
    %c3 = arith.constant 3 : index
    %c0_8 = arith.constant 0 : index
    %11 = vector.load %arg1[%c3, %c0_8] : memref<16x256xf32, #tpu.memory_space<vmem>>, vector<1x128xf32>
    %c4 = arith.constant 4 : index
    %c0_9 = arith.constant 0 : index
    %12 = vector.load %arg1[%c4, %c0_9] : memref<16x256xf32, #tpu.memory_space<vmem>>, vector<1x128xf32>
    %13 = vector.shape_cast %8 : vector<8x64x20xf32> to vector<8x32x2x20xf32>
    %14 = vector.extract_strided_slice %13 {offsets = [0, 0, 0, 0], sizes = [8, 32, 1, 20], strides = [1, 1, 1, 1]} : vector<8x32x2x20xf32> to vector<8x32x1x20xf32>
    %15 = vector.shape_cast %14 : vector<8x32x1x20xf32> to vector<8x32x20xf32>
    %16 = vector.extract_strided_slice %13 {offsets = [0, 0, 1, 0], sizes = [8, 32, 1, 20], strides = [1, 1, 1, 1]} : vector<8x32x2x20xf32> to vector<8x32x1x20xf32>
    %17 = vector.shape_cast %16 : vector<8x32x1x20xf32> to vector<8x32x20xf32>
    %cst = arith.constant 0.000000e+00 : f32
    %18 = vector.broadcast %cst : f32 to vector<8x1x20xf32>
    %19 = vector.extract_strided_slice %17 {offsets = [0, 0, 0], sizes = [8, 31, 20], strides = [1, 1, 1]} : vector<8x32x20xf32> to vector<8x31x20xf32>
    %20 = tpu.concatenate %18, %19 in 1 : vector<8x1x20xf32>, vector<8x31x20xf32> -> vector<8x32x20xf32>
    %21 = tpu.concatenate %20, %15, %17 in 2 : vector<8x32x20xf32>, vector<8x32x20xf32>, vector<8x32x20xf32> -> vector<8x32x60xf32>
    %22 = vector.shape_cast %21 : vector<8x32x60xf32> to vector<256x60xf32>
    %23 = arith.truncf %22 : vector<256x60xf32> to vector<256x60xbf16>
    %cst_10 = arith.constant dense<0.000000e+00> : vector<256x128xf32>
    %24 = tpu.matmul %23, %9, %cst_10 {dimension_numbers = #tpu.dot_dimension_numbers<[1], [0], [0], [1], [0, 0, 1, 1], [], []>} : vector<256x60xbf16>, vector<60x128xbf16>, vector<256x128xf32> -> vector<256x128xf32>
    %25 = vector.broadcast %10 : vector<1x128xf32> to vector<256x128xf32>
    %26 = arith.addf %24, %25 : vector<256x128xf32>
    %cst_11 = arith.constant 0.000000e+00 : f32
    %27 = vector.broadcast %cst_11 : f32 to vector<256x128xf32>
    %28 = arith.maximumf %26, %27 : vector<256x128xf32>
    %29 = vector.shape_cast %28 : vector<256x128xf32> to vector<8x16x2x128xf32>
    %30 = vector.extract_strided_slice %29 {offsets = [0, 0, 0, 0], sizes = [8, 16, 1, 128], strides = [1, 1, 1, 1]} : vector<8x16x2x128xf32> to vector<8x16x1x128xf32>
    %31 = vector.shape_cast %30 : vector<8x16x1x128xf32> to vector<8x16x128xf32>
    %32 = vector.extract_strided_slice %29 {offsets = [0, 0, 1, 0], sizes = [8, 16, 1, 128], strides = [1, 1, 1, 1]} : vector<8x16x2x128xf32> to vector<8x16x1x128xf32>
    %33 = vector.shape_cast %32 : vector<8x16x1x128xf32> to vector<8x16x128xf32>
    %34 = arith.maximumf %31, %33 : vector<8x16x128xf32>
    %35 = vector.shape_cast %11 : vector<1x128xf32> to vector<1x1x128xf32>
    %36 = vector.broadcast %35 : vector<1x1x128xf32> to vector<8x16x128xf32>
    %37 = arith.mulf %34, %36 : vector<8x16x128xf32>
    %38 = vector.shape_cast %12 : vector<1x128xf32> to vector<1x1x128xf32>
    %39 = vector.broadcast %38 : vector<1x1x128xf32> to vector<8x16x128xf32>
    %40 = arith.addf %37, %39 : vector<8x16x128xf32>
    %c0_12 = arith.constant 0 : index
    %c0_13 = arith.constant 0 : index
    %41 = vector.load %arg3[%c0_12, %c0_13] : memref<384x128xbf16, #tpu.memory_space<vmem>>, vector<384x128xbf16>
    %c5 = arith.constant 5 : index
    %c0_14 = arith.constant 0 : index
    %42 = vector.load %arg1[%c5, %c0_14] : memref<16x256xf32, #tpu.memory_space<vmem>>, vector<1x128xf32>
    %c6 = arith.constant 6 : index
    %c0_15 = arith.constant 0 : index
    %43 = vector.load %arg1[%c6, %c0_15] : memref<16x256xf32, #tpu.memory_space<vmem>>, vector<1x128xf32>
    %c7 = arith.constant 7 : index
    %c0_16 = arith.constant 0 : index
    %44 = vector.load %arg1[%c7, %c0_16] : memref<16x256xf32, #tpu.memory_space<vmem>>, vector<1x128xf32>
    %45 = vector.shape_cast %40 : vector<8x16x128xf32> to vector<8x8x2x128xf32>
    %46 = vector.extract_strided_slice %45 {offsets = [0, 0, 0, 0], sizes = [8, 8, 1, 128], strides = [1, 1, 1, 1]} : vector<8x8x2x128xf32> to vector<8x8x1x128xf32>
    %47 = vector.shape_cast %46 : vector<8x8x1x128xf32> to vector<8x8x128xf32>
    %48 = vector.extract_strided_slice %45 {offsets = [0, 0, 1, 0], sizes = [8, 8, 1, 128], strides = [1, 1, 1, 1]} : vector<8x8x2x128xf32> to vector<8x8x1x128xf32>
    %49 = vector.shape_cast %48 : vector<8x8x1x128xf32> to vector<8x8x128xf32>
    %cst_17 = arith.constant 0.000000e+00 : f32
    %50 = vector.broadcast %cst_17 : f32 to vector<8x1x128xf32>
    %51 = vector.extract_strided_slice %49 {offsets = [0, 0, 0], sizes = [8, 7, 128], strides = [1, 1, 1]} : vector<8x8x128xf32> to vector<8x7x128xf32>
    %52 = tpu.concatenate %50, %51 in 1 : vector<8x1x128xf32>, vector<8x7x128xf32> -> vector<8x8x128xf32>
    %53 = tpu.concatenate %52, %47, %49 in 2 : vector<8x8x128xf32>, vector<8x8x128xf32>, vector<8x8x128xf32> -> vector<8x8x384xf32>
    %54 = vector.shape_cast %53 : vector<8x8x384xf32> to vector<64x384xf32>
    %55 = arith.truncf %54 : vector<64x384xf32> to vector<64x384xbf16>
    %cst_18 = arith.constant dense<0.000000e+00> : vector<64x128xf32>
    %56 = tpu.matmul %55, %41, %cst_18 {dimension_numbers = #tpu.dot_dimension_numbers<[1], [0], [0], [1], [0, 0, 1, 1], [], []>} : vector<64x384xbf16>, vector<384x128xbf16>, vector<64x128xf32> -> vector<64x128xf32>
    %57 = vector.broadcast %42 : vector<1x128xf32> to vector<64x128xf32>
    %58 = arith.addf %56, %57 : vector<64x128xf32>
    %cst_19 = arith.constant 0.000000e+00 : f32
    %59 = vector.broadcast %cst_19 : f32 to vector<64x128xf32>
    %60 = arith.maximumf %58, %59 : vector<64x128xf32>
    %61 = vector.shape_cast %60 : vector<64x128xf32> to vector<8x4x2x128xf32>
    %62 = vector.extract_strided_slice %61 {offsets = [0, 0, 0, 0], sizes = [8, 4, 1, 128], strides = [1, 1, 1, 1]} : vector<8x4x2x128xf32> to vector<8x4x1x128xf32>
    %63 = vector.shape_cast %62 : vector<8x4x1x128xf32> to vector<8x4x128xf32>
    %64 = vector.extract_strided_slice %61 {offsets = [0, 0, 1, 0], sizes = [8, 4, 1, 128], strides = [1, 1, 1, 1]} : vector<8x4x2x128xf32> to vector<8x4x1x128xf32>
    %65 = vector.shape_cast %64 : vector<8x4x1x128xf32> to vector<8x4x128xf32>
    %66 = arith.maximumf %63, %65 : vector<8x4x128xf32>
    %67 = vector.shape_cast %43 : vector<1x128xf32> to vector<1x1x128xf32>
    %68 = vector.broadcast %67 : vector<1x1x128xf32> to vector<8x4x128xf32>
    %69 = arith.mulf %66, %68 : vector<8x4x128xf32>
    %70 = vector.shape_cast %44 : vector<1x128xf32> to vector<1x1x128xf32>
    %71 = vector.broadcast %70 : vector<1x1x128xf32> to vector<8x4x128xf32>
    %72 = arith.addf %69, %71 : vector<8x4x128xf32>
    %73 = vector.extract_strided_slice %72 {offsets = [0, 0, 0], sizes = [8, 1, 128], strides = [1, 1, 1]} : vector<8x4x128xf32> to vector<8x1x128xf32>
    %74 = vector.shape_cast %73 : vector<8x1x128xf32> to vector<8x128xf32>
    %c0_20 = arith.constant 0 : index
    %c0_21 = arith.constant 0 : index
    %75 = vector.load %arg7[%c0_20, %c0_21] : memref<32x128xf32, #tpu.memory_space<vmem>>, vector<8x128xf32>
    tpu.vector_store %arg7[%c0_20, %c0_21], %74 {strides = array<i32>} : memref<32x128xf32, #tpu.memory_space<vmem>>, vector<8x128xf32>,
    %76 = vector.extract_strided_slice %72 {offsets = [0, 1, 0], sizes = [8, 1, 128], strides = [1, 1, 1]} : vector<8x4x128xf32> to vector<8x1x128xf32>
    %77 = vector.shape_cast %76 : vector<8x1x128xf32> to vector<8x128xf32>
    %c8 = arith.constant 8 : index
    %c0_22 = arith.constant 0 : index
    %78 = vector.load %arg7[%c8, %c0_22] : memref<32x128xf32, #tpu.memory_space<vmem>>, vector<8x128xf32>
    tpu.vector_store %arg7[%c8, %c0_22], %77 {strides = array<i32>} : memref<32x128xf32, #tpu.memory_space<vmem>>, vector<8x128xf32>,
    %79 = vector.extract_strided_slice %72 {offsets = [0, 2, 0], sizes = [8, 1, 128], strides = [1, 1, 1]} : vector<8x4x128xf32> to vector<8x1x128xf32>
    %80 = vector.shape_cast %79 : vector<8x1x128xf32> to vector<8x128xf32>
    %c16 = arith.constant 16 : index
    %c0_23 = arith.constant 0 : index
    %81 = vector.load %arg7[%c16, %c0_23] : memref<32x128xf32, #tpu.memory_space<vmem>>, vector<8x128xf32>
    tpu.vector_store %arg7[%c16, %c0_23], %80 {strides = array<i32>} : memref<32x128xf32, #tpu.memory_space<vmem>>, vector<8x128xf32>,
    %82 = vector.extract_strided_slice %72 {offsets = [0, 3, 0], sizes = [8, 1, 128], strides = [1, 1, 1]} : vector<8x4x128xf32> to vector<8x1x128xf32>
    %83 = vector.shape_cast %82 : vector<8x1x128xf32> to vector<8x128xf32>
    %c24 = arith.constant 24 : index
    %c0_24 = arith.constant 0 : index
    %84 = vector.load %arg7[%c24, %c0_24] : memref<32x128xf32, #tpu.memory_space<vmem>>, vector<8x128xf32>
    tpu.vector_store %arg7[%c24, %c0_24], %83 {strides = array<i32>} : memref<32x128xf32, #tpu.memory_space<vmem>>, vector<8x128xf32>,
    %85 = tpu.iota {dimensions = array<i32: 1>} : vector<8x256xi32>
    %c63_i32 = arith.constant 63 : i32
    %86 = vector.broadcast %c63_i32 : i32 to vector<8x256xi32>
    %87 = arith.andi %85, %86 : vector<8x256xi32>
    %c32_i32 = arith.constant 32 : i32
    %88 = vector.broadcast %c32_i32 : i32 to vector<8x256xi32>
    %89 = arith.cmpi slt, %87, %88 : vector<8x256xi32>
    %c128_i32 = arith.constant 128 : i32
    %90 = vector.broadcast %c128_i32 : i32 to vector<8x256xi32>
    %91 = arith.cmpi sge, %85, %90 : vector<8x256xi32>
    %c192_i32 = arith.constant 192 : i32
    %92 = vector.broadcast %c192_i32 : i32 to vector<8x256xi32>
    %93 = arith.cmpi slt, %85, %92 : vector<8x256xi32>
    %94 = arith.andi %91, %93 : vector<8x256xi1>
    %c0_25 = arith.constant 0 : index
    %c0_26 = arith.constant 0 : index
    %95 = vector.load %arg4[%c0_25, %c0_26] : memref<256x256xbf16, #tpu.memory_space<vmem>>, vector<128x256xbf16>
    %c0_27 = arith.constant 0 : index
    %c0_28 = arith.constant 0 : index
    %96 = vector.load %arg5[%c0_27, %c0_28] : memref<192x256xbf16, #tpu.memory_space<vmem>>, vector<64x256xbf16>
    %c8_29 = arith.constant 8 : index
    %c0_30 = arith.constant 0 : index
    %97 = vector.load %arg1[%c8_29, %c0_30] : memref<16x256xf32, #tpu.memory_space<vmem>>, vector<1x256xf32>
    %c0_31 = arith.constant 0 : index
    %c0_32 = arith.constant 0 : index
    %98 = vector.load %arg7[%c0_31, %c0_32] : memref<32x128xf32, #tpu.memory_space<vmem>>, vector<32x128xf32>
    %99 = arith.truncf %98 : vector<32x128xf32> to vector<32x128xbf16>
    %cst_33 = arith.constant dense<0.000000e+00> : vector<32x256xf32>
    %100 = tpu.matmul %99, %95, %cst_33 {dimension_numbers = #tpu.dot_dimension_numbers<[1], [0], [0], [1], [0, 0, 1, 1], [], []>} : vector<32x128xbf16>, vector<128x256xbf16>, vector<32x256xf32> -> vector<32x256xf32>
    %101 = vector.broadcast %97 : vector<1x256xf32> to vector<32x256xf32>
    %102 = arith.addf %100, %101 : vector<32x256xf32>
    %cst_34 = arith.constant 0.000000e+00 : f32
    %103 = vector.broadcast %cst_34 : f32 to vector<8x64xf32>
    %cst_35 = arith.constant 0.000000e+00 : f32
    %104 = vector.broadcast %cst_35 : f32 to vector<8x64xf32>
    %105 = vector.extract_strided_slice %102 {offsets = [0, 0], sizes = [8, 256], strides = [1, 1]} : vector<32x256xf32> to vector<8x256xf32>
    %106 = vector.extract_strided_slice %102 {offsets = [24, 0], sizes = [8, 256], strides = [1, 1]} : vector<32x256xf32> to vector<8x256xf32>
    %107 = arith.select %89, %105, %106 : vector<8x256xi1>, vector<8x256xf32>
    %108 = arith.truncf %103 : vector<8x64xf32> to vector<8x64xbf16>
    %cst_36 = arith.constant dense<0.000000e+00> : vector<8x256xf32>
    %109 = tpu.matmul %108, %96, %cst_36 {dimension_numbers = #tpu.dot_dimension_numbers<[1], [0], [0], [1], [0, 0, 1, 1], [], []>} : vector<8x64xbf16>, vector<64x256xbf16>, vector<8x256xf32> -> vector<8x256xf32>
    %110 = arith.addf %107, %109 : vector<8x256xf32>
    %111 = math.tanh %110 : vector<8x256xf32>
    %112 = arith.negf %110 : vector<8x256xf32>
    %113 = math.exp %112 : vector<8x256xf32>
    %cst_37 = arith.constant 1.000000e+00 : f32
    %114 = vector.broadcast %cst_37 : f32 to vector<8x256xf32>
    %115 = arith.addf %114, %113 : vector<8x256xf32>
    %116 = arith.divf %114, %115 : vector<8x256xf32>
    %117 = arith.select %94, %111, %116 : vector<8x256xi1>, vector<8x256xf32>
    %118 = vector.extract_strided_slice %117 {offsets = [0, 0], sizes = [8, 64], strides = [1, 1]} : vector<8x256xf32> to vector<8x64xf32>
    %119 = vector.extract_strided_slice %117 {offsets = [0, 64], sizes = [8, 64], strides = [1, 1]} : vector<8x256xf32> to vector<8x64xf32>
    %120 = vector.extract_strided_slice %117 {offsets = [0, 128], sizes = [8, 64], strides = [1, 1]} : vector<8x256xf32> to vector<8x64xf32>
    %121 = vector.extract_strided_slice %117 {offsets = [0, 192], sizes = [8, 64], strides = [1, 1]} : vector<8x256xf32> to vector<8x64xf32>
    %122 = arith.mulf %119, %104 : vector<8x64xf32>
    %123 = arith.mulf %118, %120 : vector<8x64xf32>
    %124 = arith.addf %122, %123 : vector<8x64xf32>
    %125 = math.tanh %124 : vector<8x64xf32>
    %126 = arith.mulf %121, %125 : vector<8x64xf32>
    %127 = vector.extract_strided_slice %126 {offsets = [0, 0], sizes = [8, 32], strides = [1, 1]} : vector<8x64xf32> to vector<8x32xf32>
    %c0_38 = arith.constant 0 : index
    %c0_39 = arith.constant 0 : index
    %128 = vector.load %arg7[%c0_38, %c0_39] : memref<32x128xf32, #tpu.memory_space<vmem>>, vector<8x32xf32>
    tpu.vector_store %arg7[%c0_38, %c0_39], %127 {strides = array<i32>} : memref<32x128xf32, #tpu.memory_space<vmem>>, vector<8x32xf32>,
    %129 = vector.extract_strided_slice %126 {offsets = [0, 32], sizes = [8, 32], strides = [1, 1]} : vector<8x64xf32> to vector<8x32xf32>
    %c24_40 = arith.constant 24 : index
    %c32 = arith.constant 32 : index
    %130 = vector.load %arg7[%c24_40, %c32] : memref<32x128xf32, #tpu.memory_space<vmem>>, vector<8x32xf32>
    tpu.vector_store %arg7[%c24_40, %c32], %129 {strides = array<i32>} : memref<32x128xf32, #tpu.memory_space<vmem>>, vector<8x32xf32>,
    %131 = vector.extract_strided_slice %102 {offsets = [8, 0], sizes = [8, 256], strides = [1, 1]} : vector<32x256xf32> to vector<8x256xf32>
    %132 = vector.extract_strided_slice %102 {offsets = [16, 0], sizes = [8, 256], strides = [1, 1]} : vector<32x256xf32> to vector<8x256xf32>
    %133 = arith.select %89, %131, %132 : vector<8x256xi1>, vector<8x256xf32>
    %134 = arith.truncf %126 : vector<8x64xf32> to vector<8x64xbf16>
    %cst_41 = arith.constant dense<0.000000e+00> : vector<8x256xf32>
    %135 = tpu.matmul %134, %96, %cst_41 {dimension_numbers = #tpu.dot_dimension_numbers<[1], [0], [0], [1], [0, 0, 1, 1], [], []>} : vector<8x64xbf16>, vector<64x256xbf16>, vector<8x256xf32> -> vector<8x256xf32>
    %136 = arith.addf %133, %135 : vector<8x256xf32>
    %137 = math.tanh %136 : vector<8x256xf32>
    %138 = arith.negf %136 : vector<8x256xf32>
    %139 = math.exp %138 : vector<8x256xf32>
    %cst_42 = arith.constant 1.000000e+00 : f32
    %140 = vector.broadcast %cst_42 : f32 to vector<8x256xf32>
    %141 = arith.addf %140, %139 : vector<8x256xf32>
    %142 = arith.divf %140, %141 : vector<8x256xf32>
    %143 = arith.select %94, %137, %142 : vector<8x256xi1>, vector<8x256xf32>
    %144 = vector.extract_strided_slice %143 {offsets = [0, 0], sizes = [8, 64], strides = [1, 1]} : vector<8x256xf32> to vector<8x64xf32>
    %145 = vector.extract_strided_slice %143 {offsets = [0, 64], sizes = [8, 64], strides = [1, 1]} : vector<8x256xf32> to vector<8x64xf32>
    %146 = vector.extract_strided_slice %143 {offsets = [0, 128], sizes = [8, 64], strides = [1, 1]} : vector<8x256xf32> to vector<8x64xf32>
    %147 = vector.extract_strided_slice %143 {offsets = [0, 192], sizes = [8, 64], strides = [1, 1]} : vector<8x256xf32> to vector<8x64xf32>
    %148 = arith.mulf %145, %124 : vector<8x64xf32>
    %149 = arith.mulf %144, %146 : vector<8x64xf32>
    %150 = arith.addf %148, %149 : vector<8x64xf32>
    %151 = math.tanh %150 : vector<8x64xf32>
    %152 = arith.mulf %147, %151 : vector<8x64xf32>
    %153 = vector.extract_strided_slice %152 {offsets = [0, 0], sizes = [8, 32], strides = [1, 1]} : vector<8x64xf32> to vector<8x32xf32>
    %c8_43 = arith.constant 8 : index
    %c0_44 = arith.constant 0 : index
    %154 = vector.load %arg7[%c8_43, %c0_44] : memref<32x128xf32, #tpu.memory_space<vmem>>, vector<8x32xf32>
    tpu.vector_store %arg7[%c8_43, %c0_44], %153 {strides = array<i32>} : memref<32x128xf32, #tpu.memory_space<vmem>>, vector<8x32xf32>,
    %155 = vector.extract_strided_slice %152 {offsets = [0, 32], sizes = [8, 32], strides = [1, 1]} : vector<8x64xf32> to vector<8x32xf32>
    %c16_45 = arith.constant 16 : index
    %c32_46 = arith.constant 32 : index
    %156 = vector.load %arg7[%c16_45, %c32_46] : memref<32x128xf32, #tpu.memory_space<vmem>>, vector<8x32xf32>
    tpu.vector_store %arg7[%c16_45, %c32_46], %155 {strides = array<i32>} : memref<32x128xf32, #tpu.memory_space<vmem>>, vector<8x32xf32>,
    %157 = vector.extract_strided_slice %102 {offsets = [16, 0], sizes = [8, 256], strides = [1, 1]} : vector<32x256xf32> to vector<8x256xf32>
    %158 = vector.extract_strided_slice %102 {offsets = [8, 0], sizes = [8, 256], strides = [1, 1]} : vector<32x256xf32> to vector<8x256xf32>
    %159 = arith.select %89, %157, %158 : vector<8x256xi1>, vector<8x256xf32>
    %160 = arith.truncf %152 : vector<8x64xf32> to vector<8x64xbf16>
    %cst_47 = arith.constant dense<0.000000e+00> : vector<8x256xf32>
    %161 = tpu.matmul %160, %96, %cst_47 {dimension_numbers = #tpu.dot_dimension_numbers<[1], [0], [0], [1], [0, 0, 1, 1], [], []>} : vector<8x64xbf16>, vector<64x256xbf16>, vector<8x256xf32> -> vector<8x256xf32>
    %162 = arith.addf %159, %161 : vector<8x256xf32>
    %163 = math.tanh %162 : vector<8x256xf32>
    %164 = arith.negf %162 : vector<8x256xf32>
    %165 = math.exp %164 : vector<8x256xf32>
    %cst_48 = arith.constant 1.000000e+00 : f32
    %166 = vector.broadcast %cst_48 : f32 to vector<8x256xf32>
    %167 = arith.addf %166, %165 : vector<8x256xf32>
    %168 = arith.divf %166, %167 : vector<8x256xf32>
    %169 = arith.select %94, %163, %168 : vector<8x256xi1>, vector<8x256xf32>
    %170 = vector.extract_strided_slice %169 {offsets = [0, 0], sizes = [8, 64], strides = [1, 1]} : vector<8x256xf32> to vector<8x64xf32>
    %171 = vector.extract_strided_slice %169 {offsets = [0, 64], sizes = [8, 64], strides = [1, 1]} : vector<8x256xf32> to vector<8x64xf32>
    %172 = vector.extract_strided_slice %169 {offsets = [0, 128], sizes = [8, 64], strides = [1, 1]} : vector<8x256xf32> to vector<8x64xf32>
    %173 = vector.extract_strided_slice %169 {offsets = [0, 192], sizes = [8, 64], strides = [1, 1]} : vector<8x256xf32> to vector<8x64xf32>
    %174 = arith.mulf %171, %150 : vector<8x64xf32>
    %175 = arith.mulf %170, %172 : vector<8x64xf32>
    %176 = arith.addf %174, %175 : vector<8x64xf32>
    %177 = math.tanh %176 : vector<8x64xf32>
    %178 = arith.mulf %173, %177 : vector<8x64xf32>
    %179 = vector.extract_strided_slice %178 {offsets = [0, 0], sizes = [8, 32], strides = [1, 1]} : vector<8x64xf32> to vector<8x32xf32>
    %c16_49 = arith.constant 16 : index
    %c0_50 = arith.constant 0 : index
    %180 = vector.load %arg7[%c16_49, %c0_50] : memref<32x128xf32, #tpu.memory_space<vmem>>, vector<8x32xf32>
    tpu.vector_store %arg7[%c16_49, %c0_50], %179 {strides = array<i32>} : memref<32x128xf32, #tpu.memory_space<vmem>>, vector<8x32xf32>,
    %181 = vector.extract_strided_slice %178 {offsets = [0, 32], sizes = [8, 32], strides = [1, 1]} : vector<8x64xf32> to vector<8x32xf32>
    %c8_51 = arith.constant 8 : index
    %c32_52 = arith.constant 32 : index
    %182 = vector.load %arg7[%c8_51, %c32_52] : memref<32x128xf32, #tpu.memory_space<vmem>>, vector<8x32xf32>
    tpu.vector_store %arg7[%c8_51, %c32_52], %181 {strides = array<i32>} : memref<32x128xf32, #tpu.memory_space<vmem>>, vector<8x32xf32>,
    %183 = vector.extract_strided_slice %102 {offsets = [24, 0], sizes = [8, 256], strides = [1, 1]} : vector<32x256xf32> to vector<8x256xf32>
    %184 = vector.extract_strided_slice %102 {offsets = [0, 0], sizes = [8, 256], strides = [1, 1]} : vector<32x256xf32> to vector<8x256xf32>
    %185 = arith.select %89, %183, %184 : vector<8x256xi1>, vector<8x256xf32>
    %186 = arith.truncf %178 : vector<8x64xf32> to vector<8x64xbf16>
    %cst_53 = arith.constant dense<0.000000e+00> : vector<8x256xf32>
    %187 = tpu.matmul %186, %96, %cst_53 {dimension_numbers = #tpu.dot_dimension_numbers<[1], [0], [0], [1], [0, 0, 1, 1], [], []>} : vector<8x64xbf16>, vector<64x256xbf16>, vector<8x256xf32> -> vector<8x256xf32>
    %188 = arith.addf %185, %187 : vector<8x256xf32>
    %189 = math.tanh %188 : vector<8x256xf32>
    %190 = arith.negf %188 : vector<8x256xf32>
    %191 = math.exp %190 : vector<8x256xf32>
    %cst_54 = arith.constant 1.000000e+00 : f32
    %192 = vector.broadcast %cst_54 : f32 to vector<8x256xf32>
    %193 = arith.addf %192, %191 : vector<8x256xf32>
    %194 = arith.divf %192, %193 : vector<8x256xf32>
    %195 = arith.select %94, %189, %194 : vector<8x256xi1>, vector<8x256xf32>
    %196 = vector.extract_strided_slice %195 {offsets = [0, 0], sizes = [8, 64], strides = [1, 1]} : vector<8x256xf32> to vector<8x64xf32>
    %197 = vector.extract_strided_slice %195 {offsets = [0, 64], sizes = [8, 64], strides = [1, 1]} : vector<8x256xf32> to vector<8x64xf32>
    %198 = vector.extract_strided_slice %195 {offsets = [0, 128], sizes = [8, 64], strides = [1, 1]} : vector<8x256xf32> to vector<8x64xf32>
    %199 = vector.extract_strided_slice %195 {offsets = [0, 192], sizes = [8, 64], strides = [1, 1]} : vector<8x256xf32> to vector<8x64xf32>
    %200 = arith.mulf %197, %176 : vector<8x64xf32>
    %201 = arith.mulf %196, %198 : vector<8x64xf32>
    %202 = arith.addf %200, %201 : vector<8x64xf32>
    %203 = math.tanh %202 : vector<8x64xf32>
    %204 = arith.mulf %199, %203 : vector<8x64xf32>
    %205 = vector.extract_strided_slice %204 {offsets = [0, 0], sizes = [8, 32], strides = [1, 1]} : vector<8x64xf32> to vector<8x32xf32>
    %c24_55 = arith.constant 24 : index
    %c0_56 = arith.constant 0 : index
    %206 = vector.load %arg7[%c24_55, %c0_56] : memref<32x128xf32, #tpu.memory_space<vmem>>, vector<8x32xf32>
    tpu.vector_store %arg7[%c24_55, %c0_56], %205 {strides = array<i32>} : memref<32x128xf32, #tpu.memory_space<vmem>>, vector<8x32xf32>,
    %207 = vector.extract_strided_slice %204 {offsets = [0, 32], sizes = [8, 32], strides = [1, 1]} : vector<8x64xf32> to vector<8x32xf32>
    %c0_57 = arith.constant 0 : index
    %c32_58 = arith.constant 32 : index
    %208 = vector.load %arg7[%c0_57, %c32_58] : memref<32x128xf32, #tpu.memory_space<vmem>>, vector<8x32xf32>
    tpu.vector_store %arg7[%c0_57, %c32_58], %207 {strides = array<i32>} : memref<32x128xf32, #tpu.memory_space<vmem>>, vector<8x32xf32>,
    %c128 = arith.constant 128 : index
    %c0_59 = arith.constant 0 : index
    %209 = vector.load %arg4[%c128, %c0_59] : memref<256x256xbf16, #tpu.memory_space<vmem>>, vector<64x256xbf16>
    %c64 = arith.constant 64 : index
    %c0_60 = arith.constant 0 : index
    %210 = vector.load %arg5[%c64, %c0_60] : memref<192x256xbf16, #tpu.memory_space<vmem>>, vector<64x256xbf16>
    %c9 = arith.constant 9 : index
    %c0_61 = arith.constant 0 : index
    %211 = vector.load %arg1[%c9, %c0_61] : memref<16x256xf32, #tpu.memory_space<vmem>>, vector<1x256xf32>
    %c0_62 = arith.constant 0 : index
    %c0_63 = arith.constant 0 : index
    %212 = vector.load %arg7[%c0_62, %c0_63] : memref<32x128xf32, #tpu.memory_space<vmem>>, vector<32x64xf32>
    %213 = arith.truncf %212 : vector<32x64xf32> to vector<32x64xbf16>
    %cst_64 = arith.constant dense<0.000000e+00> : vector<32x256xf32>
    %214 = tpu.matmul %213, %209, %cst_64 {dimension_numbers = #tpu.dot_dimension_numbers<[1], [0], [0], [1], [0, 0, 1, 1], [], []>} : vector<32x64xbf16>, vector<64x256xbf16>, vector<32x256xf32> -> vector<32x256xf32>
    %215 = vector.broadcast %211 : vector<1x256xf32> to vector<32x256xf32>
    %216 = arith.addf %214, %215 : vector<32x256xf32>
    %cst_65 = arith.constant 0.000000e+00 : f32
    %217 = vector.broadcast %cst_65 : f32 to vector<8x64xf32>
    %cst_66 = arith.constant 0.000000e+00 : f32
    %218 = vector.broadcast %cst_66 : f32 to vector<8x64xf32>
    %219 = vector.extract_strided_slice %216 {offsets = [0, 0], sizes = [8, 256], strides = [1, 1]} : vector<32x256xf32> to vector<8x256xf32>
    %220 = vector.extract_strided_slice %216 {offsets = [24, 0], sizes = [8, 256], strides = [1, 1]} : vector<32x256xf32> to vector<8x256xf32>
    %221 = arith.select %89, %219, %220 : vector<8x256xi1>, vector<8x256xf32>
    %222 = arith.truncf %217 : vector<8x64xf32> to vector<8x64xbf16>
    %cst_67 = arith.constant dense<0.000000e+00> : vector<8x256xf32>
    %223 = tpu.matmul %222, %210, %cst_67 {dimension_numbers = #tpu.dot_dimension_numbers<[1], [0], [0], [1], [0, 0, 1, 1], [], []>} : vector<8x64xbf16>, vector<64x256xbf16>, vector<8x256xf32> -> vector<8x256xf32>
    %224 = arith.addf %221, %223 : vector<8x256xf32>
    %225 = math.tanh %224 : vector<8x256xf32>
    %226 = arith.negf %224 : vector<8x256xf32>
    %227 = math.exp %226 : vector<8x256xf32>
    %cst_68 = arith.constant 1.000000e+00 : f32
    %228 = vector.broadcast %cst_68 : f32 to vector<8x256xf32>
    %229 = arith.addf %228, %227 : vector<8x256xf32>
    %230 = arith.divf %228, %229 : vector<8x256xf32>
    %231 = arith.select %94, %225, %230 : vector<8x256xi1>, vector<8x256xf32>
    %232 = vector.extract_strided_slice %231 {offsets = [0, 0], sizes = [8, 64], strides = [1, 1]} : vector<8x256xf32> to vector<8x64xf32>
    %233 = vector.extract_strided_slice %231 {offsets = [0, 64], sizes = [8, 64], strides = [1, 1]} : vector<8x256xf32> to vector<8x64xf32>
    %234 = vector.extract_strided_slice %231 {offsets = [0, 128], sizes = [8, 64], strides = [1, 1]} : vector<8x256xf32> to vector<8x64xf32>
    %235 = vector.extract_strided_slice %231 {offsets = [0, 192], sizes = [8, 64], strides = [1, 1]} : vector<8x256xf32> to vector<8x64xf32>
    %236 = arith.mulf %233, %218 : vector<8x64xf32>
    %237 = arith.mulf %232, %234 : vector<8x64xf32>
    %238 = arith.addf %236, %237 : vector<8x64xf32>
    %239 = math.tanh %238 : vector<8x64xf32>
    %240 = arith.mulf %235, %239 : vector<8x64xf32>
    %241 = vector.extract_strided_slice %240 {offsets = [0, 0], sizes = [8, 32], strides = [1, 1]} : vector<8x64xf32> to vector<8x32xf32>
    %c0_69 = arith.constant 0 : index
    %c0_70 = arith.constant 0 : index
    %242 = vector.load %arg7[%c0_69, %c0_70] : memref<32x128xf32, #tpu.memory_space<vmem>>, vector<8x32xf32>
    tpu.vector_store %arg7[%c0_69, %c0_70], %241 {strides = array<i32>} : memref<32x128xf32, #tpu.memory_space<vmem>>, vector<8x32xf32>,
    %243 = vector.extract_strided_slice %240 {offsets = [0, 32], sizes = [8, 32], strides = [1, 1]} : vector<8x64xf32> to vector<8x32xf32>
    %c24_71 = arith.constant 24 : index
    %c32_72 = arith.constant 32 : index
    %244 = vector.load %arg7[%c24_71, %c32_72] : memref<32x128xf32, #tpu.memory_space<vmem>>, vector<8x32xf32>
    tpu.vector_store %arg7[%c24_71, %c32_72], %243 {strides = array<i32>} : memref<32x128xf32, #tpu.memory_space<vmem>>, vector<8x32xf32>,
    %245 = vector.extract_strided_slice %216 {offsets = [8, 0], sizes = [8, 256], strides = [1, 1]} : vector<32x256xf32> to vector<8x256xf32>
    %246 = vector.extract_strided_slice %216 {offsets = [16, 0], sizes = [8, 256], strides = [1, 1]} : vector<32x256xf32> to vector<8x256xf32>
    %247 = arith.select %89, %245, %246 : vector<8x256xi1>, vector<8x256xf32>
    %248 = arith.truncf %240 : vector<8x64xf32> to vector<8x64xbf16>
    %cst_73 = arith.constant dense<0.000000e+00> : vector<8x256xf32>
    %249 = tpu.matmul %248, %210, %cst_73 {dimension_numbers = #tpu.dot_dimension_numbers<[1], [0], [0], [1], [0, 0, 1, 1], [], []>} : vector<8x64xbf16>, vector<64x256xbf16>, vector<8x256xf32> -> vector<8x256xf32>
    %250 = arith.addf %247, %249 : vector<8x256xf32>
    %251 = math.tanh %250 : vector<8x256xf32>
    %252 = arith.negf %250 : vector<8x256xf32>
    %253 = math.exp %252 : vector<8x256xf32>
    %cst_74 = arith.constant 1.000000e+00 : f32
    %254 = vector.broadcast %cst_74 : f32 to vector<8x256xf32>
    %255 = arith.addf %254, %253 : vector<8x256xf32>
    %256 = arith.divf %254, %255 : vector<8x256xf32>
    %257 = arith.select %94, %251, %256 : vector<8x256xi1>, vector<8x256xf32>
    %258 = vector.extract_strided_slice %257 {offsets = [0, 0], sizes = [8, 64], strides = [1, 1]} : vector<8x256xf32> to vector<8x64xf32>
    %259 = vector.extract_strided_slice %257 {offsets = [0, 64], sizes = [8, 64], strides = [1, 1]} : vector<8x256xf32> to vector<8x64xf32>
    %260 = vector.extract_strided_slice %257 {offsets = [0, 128], sizes = [8, 64], strides = [1, 1]} : vector<8x256xf32> to vector<8x64xf32>
    %261 = vector.extract_strided_slice %257 {offsets = [0, 192], sizes = [8, 64], strides = [1, 1]} : vector<8x256xf32> to vector<8x64xf32>
    %262 = arith.mulf %259, %238 : vector<8x64xf32>
    %263 = arith.mulf %258, %260 : vector<8x64xf32>
    %264 = arith.addf %262, %263 : vector<8x64xf32>
    %265 = math.tanh %264 : vector<8x64xf32>
    %266 = arith.mulf %261, %265 : vector<8x64xf32>
    %267 = vector.extract_strided_slice %266 {offsets = [0, 0], sizes = [8, 32], strides = [1, 1]} : vector<8x64xf32> to vector<8x32xf32>
    %c8_75 = arith.constant 8 : index
    %c0_76 = arith.constant 0 : index
    %268 = vector.load %arg7[%c8_75, %c0_76] : memref<32x128xf32, #tpu.memory_space<vmem>>, vector<8x32xf32>
    tpu.vector_store %arg7[%c8_75, %c0_76], %267 {strides = array<i32>} : memref<32x128xf32, #tpu.memory_space<vmem>>, vector<8x32xf32>,
    %269 = vector.extract_strided_slice %266 {offsets = [0, 32], sizes = [8, 32], strides = [1, 1]} : vector<8x64xf32> to vector<8x32xf32>
    %c16_77 = arith.constant 16 : index
    %c32_78 = arith.constant 32 : index
    %270 = vector.load %arg7[%c16_77, %c32_78] : memref<32x128xf32, #tpu.memory_space<vmem>>, vector<8x32xf32>
    tpu.vector_store %arg7[%c16_77, %c32_78], %269 {strides = array<i32>} : memref<32x128xf32, #tpu.memory_space<vmem>>, vector<8x32xf32>,
    %271 = vector.extract_strided_slice %216 {offsets = [16, 0], sizes = [8, 256], strides = [1, 1]} : vector<32x256xf32> to vector<8x256xf32>
    %272 = vector.extract_strided_slice %216 {offsets = [8, 0], sizes = [8, 256], strides = [1, 1]} : vector<32x256xf32> to vector<8x256xf32>
    %273 = arith.select %89, %271, %272 : vector<8x256xi1>, vector<8x256xf32>
    %274 = arith.truncf %266 : vector<8x64xf32> to vector<8x64xbf16>
    %cst_79 = arith.constant dense<0.000000e+00> : vector<8x256xf32>
    %275 = tpu.matmul %274, %210, %cst_79 {dimension_numbers = #tpu.dot_dimension_numbers<[1], [0], [0], [1], [0, 0, 1, 1], [], []>} : vector<8x64xbf16>, vector<64x256xbf16>, vector<8x256xf32> -> vector<8x256xf32>
    %276 = arith.addf %273, %275 : vector<8x256xf32>
    %277 = math.tanh %276 : vector<8x256xf32>
    %278 = arith.negf %276 : vector<8x256xf32>
    %279 = math.exp %278 : vector<8x256xf32>
    %cst_80 = arith.constant 1.000000e+00 : f32
    %280 = vector.broadcast %cst_80 : f32 to vector<8x256xf32>
    %281 = arith.addf %280, %279 : vector<8x256xf32>
    %282 = arith.divf %280, %281 : vector<8x256xf32>
    %283 = arith.select %94, %277, %282 : vector<8x256xi1>, vector<8x256xf32>
    %284 = vector.extract_strided_slice %283 {offsets = [0, 0], sizes = [8, 64], strides = [1, 1]} : vector<8x256xf32> to vector<8x64xf32>
    %285 = vector.extract_strided_slice %283 {offsets = [0, 64], sizes = [8, 64], strides = [1, 1]} : vector<8x256xf32> to vector<8x64xf32>
    %286 = vector.extract_strided_slice %283 {offsets = [0, 128], sizes = [8, 64], strides = [1, 1]} : vector<8x256xf32> to vector<8x64xf32>
    %287 = vector.extract_strided_slice %283 {offsets = [0, 192], sizes = [8, 64], strides = [1, 1]} : vector<8x256xf32> to vector<8x64xf32>
    %288 = arith.mulf %285, %264 : vector<8x64xf32>
    %289 = arith.mulf %284, %286 : vector<8x64xf32>
    %290 = arith.addf %288, %289 : vector<8x64xf32>
    %291 = math.tanh %290 : vector<8x64xf32>
    %292 = arith.mulf %287, %291 : vector<8x64xf32>
    %293 = vector.extract_strided_slice %292 {offsets = [0, 0], sizes = [8, 32], strides = [1, 1]} : vector<8x64xf32> to vector<8x32xf32>
    %c16_81 = arith.constant 16 : index
    %c0_82 = arith.constant 0 : index
    %294 = vector.load %arg7[%c16_81, %c0_82] : memref<32x128xf32, #tpu.memory_space<vmem>>, vector<8x32xf32>
    tpu.vector_store %arg7[%c16_81, %c0_82], %293 {strides = array<i32>} : memref<32x128xf32, #tpu.memory_space<vmem>>, vector<8x32xf32>,
    %295 = vector.extract_strided_slice %292 {offsets = [0, 32], sizes = [8, 32], strides = [1, 1]} : vector<8x64xf32> to vector<8x32xf32>
    %c8_83 = arith.constant 8 : index
    %c32_84 = arith.constant 32 : index
    %296 = vector.load %arg7[%c8_83, %c32_84] : memref<32x128xf32, #tpu.memory_space<vmem>>, vector<8x32xf32>
    tpu.vector_store %arg7[%c8_83, %c32_84], %295 {strides = array<i32>} : memref<32x128xf32, #tpu.memory_space<vmem>>, vector<8x32xf32>,
    %297 = vector.extract_strided_slice %216 {offsets = [24, 0], sizes = [8, 256], strides = [1, 1]} : vector<32x256xf32> to vector<8x256xf32>
    %298 = vector.extract_strided_slice %216 {offsets = [0, 0], sizes = [8, 256], strides = [1, 1]} : vector<32x256xf32> to vector<8x256xf32>
    %299 = arith.select %89, %297, %298 : vector<8x256xi1>, vector<8x256xf32>
    %300 = arith.truncf %292 : vector<8x64xf32> to vector<8x64xbf16>
    %cst_85 = arith.constant dense<0.000000e+00> : vector<8x256xf32>
    %301 = tpu.matmul %300, %210, %cst_85 {dimension_numbers = #tpu.dot_dimension_numbers<[1], [0], [0], [1], [0, 0, 1, 1], [], []>} : vector<8x64xbf16>, vector<64x256xbf16>, vector<8x256xf32> -> vector<8x256xf32>
    %302 = arith.addf %299, %301 : vector<8x256xf32>
    %303 = math.tanh %302 : vector<8x256xf32>
    %304 = arith.negf %302 : vector<8x256xf32>
    %305 = math.exp %304 : vector<8x256xf32>
    %cst_86 = arith.constant 1.000000e+00 : f32
    %306 = vector.broadcast %cst_86 : f32 to vector<8x256xf32>
    %307 = arith.addf %306, %305 : vector<8x256xf32>
    %308 = arith.divf %306, %307 : vector<8x256xf32>
    %309 = arith.select %94, %303, %308 : vector<8x256xi1>, vector<8x256xf32>
    %310 = vector.extract_strided_slice %309 {offsets = [0, 0], sizes = [8, 64], strides = [1, 1]} : vector<8x256xf32> to vector<8x64xf32>
    %311 = vector.extract_strided_slice %309 {offsets = [0, 64], sizes = [8, 64], strides = [1, 1]} : vector<8x256xf32> to vector<8x64xf32>
    %312 = vector.extract_strided_slice %309 {offsets = [0, 128], sizes = [8, 64], strides = [1, 1]} : vector<8x256xf32> to vector<8x64xf32>
    %313 = vector.extract_strided_slice %309 {offsets = [0, 192], sizes = [8, 64], strides = [1, 1]} : vector<8x256xf32> to vector<8x64xf32>
    %314 = arith.mulf %311, %290 : vector<8x64xf32>
    %315 = arith.mulf %310, %312 : vector<8x64xf32>
    %316 = arith.addf %314, %315 : vector<8x64xf32>
    %317 = math.tanh %316 : vector<8x64xf32>
    %318 = arith.mulf %313, %317 : vector<8x64xf32>
    %319 = vector.extract_strided_slice %318 {offsets = [0, 0], sizes = [8, 32], strides = [1, 1]} : vector<8x64xf32> to vector<8x32xf32>
    %c24_87 = arith.constant 24 : index
    %c0_88 = arith.constant 0 : index
    %320 = vector.load %arg7[%c24_87, %c0_88] : memref<32x128xf32, #tpu.memory_space<vmem>>, vector<8x32xf32>
    tpu.vector_store %arg7[%c24_87, %c0_88], %319 {strides = array<i32>} : memref<32x128xf32, #tpu.memory_space<vmem>>, vector<8x32xf32>,
    %321 = vector.extract_strided_slice %318 {offsets = [0, 32], sizes = [8, 32], strides = [1, 1]} : vector<8x64xf32> to vector<8x32xf32>
    %c0_89 = arith.constant 0 : index
    %c32_90 = arith.constant 32 : index
    %322 = vector.load %arg7[%c0_89, %c32_90] : memref<32x128xf32, #tpu.memory_space<vmem>>, vector<8x32xf32>
    tpu.vector_store %arg7[%c0_89, %c32_90], %321 {strides = array<i32>} : memref<32x128xf32, #tpu.memory_space<vmem>>, vector<8x32xf32>,
    %c192 = arith.constant 192 : index
    %c0_91 = arith.constant 0 : index
    %323 = vector.load %arg4[%c192, %c0_91] : memref<256x256xbf16, #tpu.memory_space<vmem>>, vector<64x256xbf16>
    %c128_92 = arith.constant 128 : index
    %c0_93 = arith.constant 0 : index
    %324 = vector.load %arg5[%c128_92, %c0_93] : memref<192x256xbf16, #tpu.memory_space<vmem>>, vector<64x256xbf16>
    %c10 = arith.constant 10 : index
    %c0_94 = arith.constant 0 : index
    %325 = vector.load %arg1[%c10, %c0_94] : memref<16x256xf32, #tpu.memory_space<vmem>>, vector<1x256xf32>
    %c0_95 = arith.constant 0 : index
    %c0_96 = arith.constant 0 : index
    %326 = vector.load %arg7[%c0_95, %c0_96] : memref<32x128xf32, #tpu.memory_space<vmem>>, vector<32x64xf32>
    %327 = arith.truncf %326 : vector<32x64xf32> to vector<32x64xbf16>
    %cst_97 = arith.constant dense<0.000000e+00> : vector<32x256xf32>
    %328 = tpu.matmul %327, %323, %cst_97 {dimension_numbers = #tpu.dot_dimension_numbers<[1], [0], [0], [1], [0, 0, 1, 1], [], []>} : vector<32x64xbf16>, vector<64x256xbf16>, vector<32x256xf32> -> vector<32x256xf32>
    %329 = vector.broadcast %325 : vector<1x256xf32> to vector<32x256xf32>
    %330 = arith.addf %328, %329 : vector<32x256xf32>
    %cst_98 = arith.constant 0.000000e+00 : f32
    %331 = vector.broadcast %cst_98 : f32 to vector<8x64xf32>
    %cst_99 = arith.constant 0.000000e+00 : f32
    %332 = vector.broadcast %cst_99 : f32 to vector<8x64xf32>
    %333 = vector.extract_strided_slice %330 {offsets = [0, 0], sizes = [8, 256], strides = [1, 1]} : vector<32x256xf32> to vector<8x256xf32>
    %334 = vector.extract_strided_slice %330 {offsets = [24, 0], sizes = [8, 256], strides = [1, 1]} : vector<32x256xf32> to vector<8x256xf32>
    %335 = arith.select %89, %333, %334 : vector<8x256xi1>, vector<8x256xf32>
    %336 = arith.truncf %331 : vector<8x64xf32> to vector<8x64xbf16>
    %cst_100 = arith.constant dense<0.000000e+00> : vector<8x256xf32>
    %337 = tpu.matmul %336, %324, %cst_100 {dimension_numbers = #tpu.dot_dimension_numbers<[1], [0], [0], [1], [0, 0, 1, 1], [], []>} : vector<8x64xbf16>, vector<64x256xbf16>, vector<8x256xf32> -> vector<8x256xf32>
    %338 = arith.addf %335, %337 : vector<8x256xf32>
    %339 = math.tanh %338 : vector<8x256xf32>
    %340 = arith.negf %338 : vector<8x256xf32>
    %341 = math.exp %340 : vector<8x256xf32>
    %cst_101 = arith.constant 1.000000e+00 : f32
    %342 = vector.broadcast %cst_101 : f32 to vector<8x256xf32>
    %343 = arith.addf %342, %341 : vector<8x256xf32>
    %344 = arith.divf %342, %343 : vector<8x256xf32>
    %345 = arith.select %94, %339, %344 : vector<8x256xi1>, vector<8x256xf32>
    %346 = vector.extract_strided_slice %345 {offsets = [0, 0], sizes = [8, 64], strides = [1, 1]} : vector<8x256xf32> to vector<8x64xf32>
    %347 = vector.extract_strided_slice %345 {offsets = [0, 64], sizes = [8, 64], strides = [1, 1]} : vector<8x256xf32> to vector<8x64xf32>
    %348 = vector.extract_strided_slice %345 {offsets = [0, 128], sizes = [8, 64], strides = [1, 1]} : vector<8x256xf32> to vector<8x64xf32>
    %349 = vector.extract_strided_slice %345 {offsets = [0, 192], sizes = [8, 64], strides = [1, 1]} : vector<8x256xf32> to vector<8x64xf32>
    %350 = arith.mulf %347, %332 : vector<8x64xf32>
    %351 = arith.mulf %346, %348 : vector<8x64xf32>
    %352 = arith.addf %350, %351 : vector<8x64xf32>
    %353 = math.tanh %352 : vector<8x64xf32>
    %354 = arith.mulf %349, %353 : vector<8x64xf32>
    %355 = vector.extract_strided_slice %330 {offsets = [8, 0], sizes = [8, 256], strides = [1, 1]} : vector<32x256xf32> to vector<8x256xf32>
    %356 = vector.extract_strided_slice %330 {offsets = [16, 0], sizes = [8, 256], strides = [1, 1]} : vector<32x256xf32> to vector<8x256xf32>
    %357 = arith.select %89, %355, %356 : vector<8x256xi1>, vector<8x256xf32>
    %358 = arith.truncf %354 : vector<8x64xf32> to vector<8x64xbf16>
    %cst_102 = arith.constant dense<0.000000e+00> : vector<8x256xf32>
    %359 = tpu.matmul %358, %324, %cst_102 {dimension_numbers = #tpu.dot_dimension_numbers<[1], [0], [0], [1], [0, 0, 1, 1], [], []>} : vector<8x64xbf16>, vector<64x256xbf16>, vector<8x256xf32> -> vector<8x256xf32>
    %360 = arith.addf %357, %359 : vector<8x256xf32>
    %361 = math.tanh %360 : vector<8x256xf32>
    %362 = arith.negf %360 : vector<8x256xf32>
    %363 = math.exp %362 : vector<8x256xf32>
    %cst_103 = arith.constant 1.000000e+00 : f32
    %364 = vector.broadcast %cst_103 : f32 to vector<8x256xf32>
    %365 = arith.addf %364, %363 : vector<8x256xf32>
    %366 = arith.divf %364, %365 : vector<8x256xf32>
    %367 = arith.select %94, %361, %366 : vector<8x256xi1>, vector<8x256xf32>
    %368 = vector.extract_strided_slice %367 {offsets = [0, 0], sizes = [8, 64], strides = [1, 1]} : vector<8x256xf32> to vector<8x64xf32>
    %369 = vector.extract_strided_slice %367 {offsets = [0, 64], sizes = [8, 64], strides = [1, 1]} : vector<8x256xf32> to vector<8x64xf32>
    %370 = vector.extract_strided_slice %367 {offsets = [0, 128], sizes = [8, 64], strides = [1, 1]} : vector<8x256xf32> to vector<8x64xf32>
    %371 = vector.extract_strided_slice %367 {offsets = [0, 192], sizes = [8, 64], strides = [1, 1]} : vector<8x256xf32> to vector<8x64xf32>
    %372 = arith.mulf %369, %352 : vector<8x64xf32>
    %373 = arith.mulf %368, %370 : vector<8x64xf32>
    %374 = arith.addf %372, %373 : vector<8x64xf32>
    %375 = math.tanh %374 : vector<8x64xf32>
    %376 = arith.mulf %371, %375 : vector<8x64xf32>
    %377 = vector.extract_strided_slice %330 {offsets = [16, 0], sizes = [8, 256], strides = [1, 1]} : vector<32x256xf32> to vector<8x256xf32>
    %378 = vector.extract_strided_slice %330 {offsets = [8, 0], sizes = [8, 256], strides = [1, 1]} : vector<32x256xf32> to vector<8x256xf32>
    %379 = arith.select %89, %377, %378 : vector<8x256xi1>, vector<8x256xf32>
    %380 = arith.truncf %376 : vector<8x64xf32> to vector<8x64xbf16>
    %cst_104 = arith.constant dense<0.000000e+00> : vector<8x256xf32>
    %381 = tpu.matmul %380, %324, %cst_104 {dimension_numbers = #tpu.dot_dimension_numbers<[1], [0], [0], [1], [0, 0, 1, 1], [], []>} : vector<8x64xbf16>, vector<64x256xbf16>, vector<8x256xf32> -> vector<8x256xf32>
    %382 = arith.addf %379, %381 : vector<8x256xf32>
    %383 = math.tanh %382 : vector<8x256xf32>
    %384 = arith.negf %382 : vector<8x256xf32>
    %385 = math.exp %384 : vector<8x256xf32>
    %cst_105 = arith.constant 1.000000e+00 : f32
    %386 = vector.broadcast %cst_105 : f32 to vector<8x256xf32>
    %387 = arith.addf %386, %385 : vector<8x256xf32>
    %388 = arith.divf %386, %387 : vector<8x256xf32>
    %389 = arith.select %94, %383, %388 : vector<8x256xi1>, vector<8x256xf32>
    %390 = vector.extract_strided_slice %389 {offsets = [0, 0], sizes = [8, 64], strides = [1, 1]} : vector<8x256xf32> to vector<8x64xf32>
    %391 = vector.extract_strided_slice %389 {offsets = [0, 64], sizes = [8, 64], strides = [1, 1]} : vector<8x256xf32> to vector<8x64xf32>
    %392 = vector.extract_strided_slice %389 {offsets = [0, 128], sizes = [8, 64], strides = [1, 1]} : vector<8x256xf32> to vector<8x64xf32>
    %393 = vector.extract_strided_slice %389 {offsets = [0, 192], sizes = [8, 64], strides = [1, 1]} : vector<8x256xf32> to vector<8x64xf32>
    %394 = arith.mulf %391, %374 : vector<8x64xf32>
    %395 = arith.mulf %390, %392 : vector<8x64xf32>
    %396 = arith.addf %394, %395 : vector<8x64xf32>
    %397 = math.tanh %396 : vector<8x64xf32>
    %398 = arith.mulf %393, %397 : vector<8x64xf32>
    %399 = vector.extract_strided_slice %330 {offsets = [24, 0], sizes = [8, 256], strides = [1, 1]} : vector<32x256xf32> to vector<8x256xf32>
    %400 = vector.extract_strided_slice %330 {offsets = [0, 0], sizes = [8, 256], strides = [1, 1]} : vector<32x256xf32> to vector<8x256xf32>
    %401 = arith.select %89, %399, %400 : vector<8x256xi1>, vector<8x256xf32>
    %402 = arith.truncf %398 : vector<8x64xf32> to vector<8x64xbf16>
    %cst_106 = arith.constant dense<0.000000e+00> : vector<8x256xf32>
    %403 = tpu.matmul %402, %324, %cst_106 {dimension_numbers = #tpu.dot_dimension_numbers<[1], [0], [0], [1], [0, 0, 1, 1], [], []>} : vector<8x64xbf16>, vector<64x256xbf16>, vector<8x256xf32> -> vector<8x256xf32>
    %404 = arith.addf %401, %403 : vector<8x256xf32>
    %405 = math.tanh %404 : vector<8x256xf32>
    %406 = arith.negf %404 : vector<8x256xf32>
    %407 = math.exp %406 : vector<8x256xf32>
    %cst_107 = arith.constant 1.000000e+00 : f32
    %408 = vector.broadcast %cst_107 : f32 to vector<8x256xf32>
    %409 = arith.addf %408, %407 : vector<8x256xf32>
    %410 = arith.divf %408, %409 : vector<8x256xf32>
    %411 = arith.select %94, %405, %410 : vector<8x256xi1>, vector<8x256xf32>
    %412 = vector.extract_strided_slice %411 {offsets = [0, 0], sizes = [8, 64], strides = [1, 1]} : vector<8x256xf32> to vector<8x64xf32>
    %413 = vector.extract_strided_slice %411 {offsets = [0, 64], sizes = [8, 64], strides = [1, 1]} : vector<8x256xf32> to vector<8x64xf32>
    %414 = vector.extract_strided_slice %411 {offsets = [0, 128], sizes = [8, 64], strides = [1, 1]} : vector<8x256xf32> to vector<8x64xf32>
    %415 = vector.extract_strided_slice %411 {offsets = [0, 192], sizes = [8, 64], strides = [1, 1]} : vector<8x256xf32> to vector<8x64xf32>
    %416 = arith.mulf %413, %396 : vector<8x64xf32>
    %417 = arith.mulf %412, %414 : vector<8x64xf32>
    %418 = arith.addf %416, %417 : vector<8x64xf32>
    %419 = math.tanh %418 : vector<8x64xf32>
    %420 = arith.mulf %415, %419 : vector<8x64xf32>
    %c11 = arith.constant 11 : index
    %c0_108 = arith.constant 0 : index
    %421 = vector.load %arg1[%c11, %c0_108] : memref<16x256xf32, #tpu.memory_space<vmem>>, vector<1x64xf32>
    %c12 = arith.constant 12 : index
    %c0_109 = arith.constant 0 : index
    %422 = vector.load %arg1[%c12, %c0_109] : memref<16x256xf32, #tpu.memory_space<vmem>>, vector<1x1xf32>
    %423 = vector.broadcast %421 : vector<1x64xf32> to vector<8x64xf32>
    %424 = arith.mulf %420, %423 : vector<8x64xf32>
    %cst_110 = arith.constant dense<0.000000e+00> : vector<8xf32>
    %425 = vector.multi_reduction <add>, %424, %cst_110 [1] : vector<8x64xf32> to vector<8xf32>
    %426 = vector.shape_cast %425 : vector<8xf32> to vector<8x1xf32>
    %427 = vector.broadcast %422 : vector<1x1xf32> to vector<8x1xf32>
    %428 = arith.addf %426, %427 : vector<8x1xf32>
    %c0_111 = arith.constant 0 : index
    %c0_112 = arith.constant 0 : index
    %429 = vector.load %arg6[%c0_111, %c0_112] : memref<8x1xf32, #tpu.memory_space<vmem>>, vector<8x1xf32>
    tpu.vector_store %arg6[%c0_111, %c0_112], %428 {strides = array<i32>} : memref<8x1xf32, #tpu.memory_space<vmem>>, vector<8x1xf32>,
    return
  }
}

</mosaic_0001>

<llo_original>
// kernel: net_forward.1
$region0: #{net_forward.1}
  #allocation0 [shape = 'u32[]', space=smem, size = 0x4, offset = 0x4, fixed_abs, tag = 'smem constant byte address 0x4 - core index']
  #allocation1 [shape = 'u32[144,128]{1,0:T(1,128)}', space=vmem, size = 0x12000, scoped, tag = 'internal scratch']
  #allocation2 [shape = 'f32[32,128]{1,0:T(8,128)}', space=vmem, size = 0x4000, scoped, tag = 'scratch operand']
  %s0 = inlined_call_operand.vmem [shape: f32[8,64,20], index: 0, kind: input, shape index: {}]
  %s1 = inlined_call_operand.vmem [shape: f32[16,256], index: 1, kind: input, shape index: {}]
  %s2 = inlined_call_operand.hbm [shape: bf16[60,128], index: 2, kind: input, shape index: {}]
  %s3 = inlined_call_operand.vmem [shape: bf16[384,128], index: 3, kind: input, shape index: {}]
  %s4 = inlined_call_operand.vmem [shape: bf16[256,256], index: 4, kind: input, shape index: {}]
  %s5 = inlined_call_operand.vmem [shape: bf16[192,256], index: 5, kind: input, shape index: {}]
  %s6 = inlined_call_operand.vmem [shape: f32[8,1], index: 6, kind: output, shape index: {}]
  %s7 = sld [smem:[#allocation0]]
  $region38: #{net_forward.1} parent=0
    _
  %s9 = ssub.s32 1, %s7
  %s10 = scalar_select 0, %s9, %s7
  $region1: #{net_forward.1} parent=0
    #allocation3 [shape = 'u8[16384]{0}', space=vmem, size = 0x4000, scoped, tag = 'input window, operand 2, single buffered']
    #allocation4 [shape = 's32[1]{0}', space=sflag, size = 0x4, scoped, tag = 'scoped memory for net_forward.1']
    %11 = vsyncpa [#allocation4], 0
    // Predicated region
    $region2: #{net_forward.1} parent=1 // pred_check
      _
    $region3: #{net_forward.1} parent=1 // pred_check_branch
      %13 = sbr.rel (0) target = $region5
    $region4: #{net_forward.1} parent=1 // pred_region
      _
    $region5: #{net_forward.1} parent=1 // pred_fallthru
      _
    // Predicated region
    $region6: #{net_forward.1} parent=1 // pred_check
      _
    $region7: #{net_forward.1} parent=1 // pred_check_branch
      %15 = sbr.rel (0) target = $region9
    $region8: #{net_forward.1} parent=1 // pred_region
      _
    $region9: #{net_forward.1} parent=1 // pred_fallthru
      _
    // Predicated region
    $region10: #{net_forward.1} parent=1 // pred_check
      _
    $region11: #{net_forward.1} parent=1 // pred_check_branch
      %17 = sbr.rel (0) target = $region13
    $region12: #{net_forward.1} parent=1 // pred_region
      %s19 = ssub.s32 512, 512
      %20 = vsyncadd [#allocation4], %s19
      %s21 = sshll.u32 [#allocation3], 4
      %s22 = int_to_ptr.vmem [resolvable:$true] %s21
      %27 = dma.hbm_to_vmem [thread:$0]  %s2, 512, %s22, [#allocation4], 64, 64, 4
    $region13: #{net_forward.1} parent=1 // pred_fallthru
      _
    // Predicated region
    $region14: #{net_forward.1} parent=1 // pred_check
      _
    $region15: #{net_forward.1} parent=1 // pred_check_branch
      %29 = sbr.rel (0) target = $region17
    $region16: #{net_forward.1} parent=1 // pred_region
      _
    $region17: #{net_forward.1} parent=1 // pred_fallthru
      _
    // Predicated region
    $region18: #{net_forward.1} parent=1 // pred_check
      _
    $region19: #{net_forward.1} parent=1 // pred_check_branch
      %31 = sbr.rel (0) target = $region21
    $region20: #{net_forward.1} parent=1 // pred_region
      _
    $region21: #{net_forward.1} parent=1 // pred_fallthru
      _
    // Predicated region
    $region22: #{net_forward.1} parent=1 // pred_check
      _
    $region23: #{net_forward.1} parent=1 // pred_check_branch
      %33 = sbr.rel (0) target = $region25
    $region24: #{net_forward.1} parent=1 // pred_region
      _
    $region25: #{net_forward.1} parent=1 // pred_fallthru
      _
    // Predicated region
    $region26: #{net_forward.1} parent=1 // pred_check
      _
    $region27: #{net_forward.1} parent=1 // pred_check_branch
      %35 = sbr.rel (0) target = $region29
    $region28: #{net_forward.1} parent=1 // pred_region
      %36 = dma.done [#allocation4], 512
    $region29: #{net_forward.1} parent=1 // pred_fallthru
      _
    %v38 = vld [vmem:[%s1] ss:$0 sm:$0xff]
    %v39 = vld [vmem:[%s1 + $0x1] ss:$0 sm:$0xff]
    %v40 = vld [vmem:[%s0] sm:$0xff]
    %v41 = vld [vmem:[%s0 + $0x8] sm:$0xff]
    %v42 = vld [vmem:[%s0 + $0x10] sm:$0xff]
    %v43 = vld [vmem:[%s0 + $0x18] sm:$0xff]
    %v44 = vld [vmem:[%s0 + $0x20] sm:$0xff]
    %v45 = vld [vmem:[%s0 + $0x28] sm:$0xff]
    %v46 = vld [vmem:[%s0 + $0x30] sm:$0xff]
    %v47 = vld [vmem:[%s0 + $0x38] sm:$0xff]
    %v48 = vld [vmem:[%s0 + $0x40] sm:$0xff]
    %v49 = vld [vmem:[%s0 + $0x48] sm:$0xff]
    %v50 = vld [vmem:[%s0 + $0x50] sm:$0xff]
    %v51 = vld [vmem:[%s0 + $0x58] sm:$0xff]
    %v52 = vld [vmem:[%s0 + $0x60] sm:$0xff]
    %v53 = vld [vmem:[%s0 + $0x68] sm:$0xff]
    %v54 = vld [vmem:[%s0 + $0x70] sm:$0xff]
    %v55 = vld [vmem:[%s0 + $0x78] sm:$0xff]
    %v56 = vld [vmem:[%s0 + $0x80] sm:$0xff]
    %v57 = vld [vmem:[%s0 + $0x88] sm:$0xff]
    %v58 = vld [vmem:[%s0 + $0x90] sm:$0xff]
    %v59 = vld [vmem:[%s0 + $0x98] sm:$0xff]
    %v60 = vld [vmem:[%s0 + $0xa0] sm:$0xff]
    %v61 = vld [vmem:[%s0 + $0xa8] sm:$0xff]
    %v62 = vld [vmem:[%s0 + $0xb0] sm:$0xff]
    %v63 = vld [vmem:[%s0 + $0xb8] sm:$0xff]
    %v64 = vld [vmem:[%s0 + $0xc0] sm:$0xff]
    %v65 = vld [vmem:[%s0 + $0xc8] sm:$0xff]
    %v66 = vld [vmem:[%s0 + $0xd0] sm:$0xff]
    %v67 = vld [vmem:[%s0 + $0xd8] sm:$0xff]
    %v68 = vld [vmem:[%s0 + $0xe0] sm:$0xff]
    %v69 = vld [vmem:[%s0 + $0xe8] sm:$0xff]
    %v70 = vld [vmem:[%s0 + $0xf0] sm:$0xff]
    %v71 = vld [vmem:[%s0 + $0xf8] sm:$0xff]
    %v72 = vld [vmem:[%s0 + $0x100] sm:$0xff]
    %v73 = vld [vmem:[%s0 + $0x108] sm:$0xff]
    %v74 = vld [vmem:[%s0 + $0x110] sm:$0xff]
    %v75 = vld [vmem:[%s0 + $0x118] sm:$0xff]
    %v76 = vld [vmem:[%s0 + $0x120] sm:$0xff]
    %v77 = vld [vmem:[%s0 + $0x128] sm:$0xff]
    %v78 = vld [vmem:[%s0 + $0x130] sm:$0xff]
    %v79 = vld [vmem:[%s0 + $0x138] sm:$0xff]
    %v80 = vld [vmem:[%s0 + $0x140] sm:$0xff]
    %v81 = vld [vmem:[%s0 + $0x148] sm:$0xff]
    %v82 = vld [vmem:[%s0 + $0x150] sm:$0xff]
    %v83 = vld [vmem:[%s0 + $0x158] sm:$0xff]
    %v84 = vld [vmem:[%s0 + $0x160] sm:$0xff]
    %v85 = vld [vmem:[%s0 + $0x168] sm:$0xff]
    %v86 = vld [vmem:[%s0 + $0x170] sm:$0xff]
    %v87 = vld [vmem:[%s0 + $0x178] sm:$0xff]
    %v88 = vld [vmem:[%s0 + $0x180] sm:$0xff]
    %v89 = vld [vmem:[%s0 + $0x188] sm:$0xff]
    %v90 = vld [vmem:[%s0 + $0x190] sm:$0xff]
    %v91 = vld [vmem:[%s0 + $0x198] sm:$0xff]
    %v92 = vld [vmem:[%s0 + $0x1a0] sm:$0xff]
    %v93 = vld [vmem:[%s0 + $0x1a8] sm:$0xff]
    %v94 = vld [vmem:[%s0 + $0x1b0] sm:$0xff]
    %v95 = vld [vmem:[%s0 + $0x1b8] sm:$0xff]
    %v96 = vld [vmem:[%s0 + $0x1c0] sm:$0xff]
    %v97 = vld [vmem:[%s0 + $0x1c8] sm:$0xff]
    %v98 = vld [vmem:[%s0 + $0x1d0] sm:$0xff]
    %v99 = vld [vmem:[%s0 + $0x1d8] sm:$0xff]
    %v100 = vld [vmem:[%s0 + $0x1e0] sm:$0xff]
    %v101 = vld [vmem:[%s0 + $0x1e8] sm:$0xff]
    %v102 = vld [vmem:[%s0 + $0x1f0] sm:$0xff]
    %v103 = vld [vmem:[%s0 + $0x1f8] sm:$0xff]
    %v104 = vmul.f32 %v40, %v38
    %v105 = vmul.f32 %v41, %v38
    %v106 = vmul.f32 %v42, %v38
    %v107 = vmul.f32 %v43, %v38
    %v108 = vmul.f32 %v44, %v38
    %v109 = vmul.f32 %v45, %v38
    %v110 = vmul.f32 %v46, %v38
    %v111 = vmul.f32 %v47, %v38
    %v112 = vmul.f32 %v48, %v38
    %v113 = vmul.f32 %v49, %v38
    %v114 = vmul.f32 %v50, %v38
    %v115 = vmul.f32 %v51, %v38
    %v116 = vmul.f32 %v52, %v38
    %v117 = vmul.f32 %v53, %v38
    %v118 = vmul.f32 %v54, %v38
    %v119 = vmul.f32 %v55, %v38
    %v120 = vmul.f32 %v56, %v38
    %v121 = vmul.f32 %v57, %v38
    %v122 = vmul.f32 %v58, %v38
    %v123 = vmul.f32 %v59, %v38
    %v124 = vmul.f32 %v60, %v38
    %v125 = vmul.f32 %v61, %v38
    %v126 = vmul.f32 %v62, %v38
    %v127 = vmul.f32 %v63, %v38
    %v128 = vmul.f32 %v64, %v38
    %v129 = vmul.f32 %v65, %v38
    %v130 = vmul.f32 %v66, %v38
    %v131 = vmul.f32 %v67, %v38
    %v132 = vmul.f32 %v68, %v38
    %v133 = vmul.f32 %v69, %v38
    %v134 = vmul.f32 %v70, %v38
    %v135 = vmul.f32 %v71, %v38
    %v136 = vmul.f32 %v72, %v38
    %v137 = vmul.f32 %v73, %v38
    %v138 = vmul.f32 %v74, %v38
    %v139 = vmul.f32 %v75, %v38
    %v140 = vmul.f32 %v76, %v38
    %v141 = vmul.f32 %v77, %v38
    %v142 = vmul.f32 %v78, %v38
    %v143 = vmul.f32 %v79, %v38
    %v144 = vmul.f32 %v80, %v38
    %v145 = vmul.f32 %v81, %v38
    %v146 = vmul.f32 %v82, %v38
    %v147 = vmul.f32 %v83, %v38
    %v148 = vmul.f32 %v84, %v38
    %v149 = vmul.f32 %v85, %v38
    %v150 = vmul.f32 %v86, %v38
    %v151 = vmul.f32 %v87, %v38
    %v152 = vmul.f32 %v88, %v38
    %v153 = vmul.f32 %v89, %v38
    %v154 = vmul.f32 %v90, %v38
    %v155 = vmul.f32 %v91, %v38
    %v156 = vmul.f32 %v92, %v38
    %v157 = vmul.f32 %v93, %v38
    %v158 = vmul.f32 %v94, %v38
    %v159 = vmul.f32 %v95, %v38
    %v160 = vmul.f32 %v96, %v38
    %v161 = vmul.f32 %v97, %v38
    %v162 = vmul.f32 %v98, %v38
    %v163 = vmul.f32 %v99, %v38
    %v164 = vmul.f32 %v100, %v38
    %v165 = vmul.f32 %v101, %v38
    %v166 = vmul.f32 %v102, %v38
    %v167 = vmul.f32 %v103, %v38
    %v168 = vadd.f32 %v104, %v39
    %v169 = vadd.f32 %v105, %v39
    %v170 = vadd.f32 %v106, %v39
    %v171 = vadd.f32 %v107, %v39
    %v172 = vadd.f32 %v108, %v39
    %v173 = vadd.f32 %v109, %v39
    %v174 = vadd.f32 %v110, %v39
    %v175 = vadd.f32 %v111, %v39
    %v176 = vadd.f32 %v112, %v39
    %v177 = vadd.f32 %v113, %v39
    %v178 = vadd.f32 %v114, %v39
    %v179 = vadd.f32 %v115, %v39
    %v180 = vadd.f32 %v116, %v39
    %v181 = vadd.f32 %v117, %v39
    %v182 = vadd.f32 %v118, %v39
    %v183 = vadd.f32 %v119, %v39
    %v184 = vadd.f32 %v120, %v39
    %v185 = vadd.f32 %v121, %v39
    %v186 = vadd.f32 %v122, %v39
    %v187 = vadd.f32 %v123, %v39
    %v188 = vadd.f32 %v124, %v39
    %v189 = vadd.f32 %v125, %v39
    %v190 = vadd.f32 %v126, %v39
    %v191 = vadd.f32 %v127, %v39
    %v192 = vadd.f32 %v128, %v39
    %v193 = vadd.f32 %v129, %v39
    %v194 = vadd.f32 %v130, %v39
    %v195 = vadd.f32 %v131, %v39
    %v196 = vadd.f32 %v132, %v39
    %v197 = vadd.f32 %v133, %v39
    %v198 = vadd.f32 %v134, %v39
    %v199 = vadd.f32 %v135, %v39
    %v200 = vadd.f32 %v136, %v39
    %v201 = vadd.f32 %v137, %v39
    %v202 = vadd.f32 %v138, %v39
    %v203 = vadd.f32 %v139, %v39
    %v204 = vadd.f32 %v140, %v39
    %v205 = vadd.f32 %v141, %v39
    %v206 = vadd.f32 %v142, %v39
    %v207 = vadd.f32 %v143, %v39
    %v208 = vadd.f32 %v144, %v39
    %v209 = vadd.f32 %v145, %v39
    %v210 = vadd.f32 %v146, %v39
    %v211 = vadd.f32 %v147, %v39
    %v212 = vadd.f32 %v148, %v39
    %v213 = vadd.f32 %v149, %v39
    %v214 = vadd.f32 %v150, %v39
    %v215 = vadd.f32 %v151, %v39
    %v216 = vadd.f32 %v152, %v39
    %v217 = vadd.f32 %v153, %v39
    %v218 = vadd.f32 %v154, %v39
    %v219 = vadd.f32 %v155, %v39
    %v220 = vadd.f32 %v156, %v39
    %v221 = vadd.f32 %v157, %v39
    %v222 = vadd.f32 %v158, %v39
    %v223 = vadd.f32 %v159, %v39
    %v224 = vadd.f32 %v160, %v39
    %v225 = vadd.f32 %v161, %v39
    %v226 = vadd.f32 %v162, %v39
    %v227 = vadd.f32 %v163, %v39
    %v228 = vadd.f32 %v164, %v39
    %v229 = vadd.f32 %v165, %v39
    %v230 = vadd.f32 %v166, %v39
    %v231 = vadd.f32 %v167, %v39
    %v232 = vld [vmem:[#allocation3] sm:$0xf]
    %v233 = vld [vmem:[#allocation3 + $0x4] sm:$0xf]
    %v234 = vld [vmem:[#allocation3 + $0x8] sm:$0xf]
    %v235 = vld [vmem:[#allocation3 + $0xc] sm:$0xf]
    %v236 = vld [vmem:[#allocation3 + $0x10] sm:$0xf]
    %v237 = vld [vmem:[#allocation3 + $0x14] sm:$0xf]
    %v238 = vld [vmem:[#allocation3 + $0x18] sm:$0xf]
    %v239 = vld [vmem:[#allocation3 + $0x1c] sm:$0x3]
    %v240 = vld [vmem:[%s1 + $0x2] ss:$0 sm:$0xff]
    %v241 = vld [vmem:[%s1 + $0x3] ss:$0 sm:$0xff]
    %v242 = vld [vmem:[%s1 + $0x4] ss:$0 sm:$0xff]
    %v307 = vcombine.high %v168, %v168
    %v309 = vunpack.c.l.s4 1983009808
    %v310 = vunpack.c.0.s8 %v309
    %v311 = vlaneseq
    %v312 = vshrl.u32 %v311, 7
    %v313 = vsub.s32 %v310, %v312
    %v314 = vrot.slane %v168, %v313
    %v316 = vunpack.c.l.s4 1983009808
    %v317 = vunpack.c.0.s8 %v316
    %v318 = vlaneseq
    %v319 = vshrl.u32 %v318, 7
    %v320 = vsub.s32 %v317, %v319
    %v321 = vrot.slane %v307, %v320
    %v322 = vcombine.high %v314, %v314
    %v323 = vcombine.high %v321, %v321
    %v324 = vcombine.high %v169, %v169
    %v326 = vunpack.c.l.s4 1983009808
    %v327 = vunpack.c.0.s8 %v326
    %v328 = vlaneseq
    %v329 = vshrl.u32 %v328, 7
    %v330 = vsub.s32 %v327, %v329
    %v331 = vrot.slane %v169, %v330
    %v333 = vunpack.c.l.s4 1983009808
    %v334 = vunpack.c.0.s8 %v333
    %v335 = vlaneseq
    %v336 = vshrl.u32 %v335, 7
    %v337 = vsub.s32 %v334, %v336
    %v338 = vrot.slane %v324, %v337
    %v339 = vcombine.high %v331, %v331
    %v340 = vcombine.high %v338, %v338
    %v341 = vcombine.high %v170, %v170
    %v343 = vunpack.c.l.s4 1983009808
    %v344 = vunpack.c.0.s8 %v343
    %v345 = vlaneseq
    %v346 = vshrl.u32 %v345, 7
    %v347 = vsub.s32 %v344, %v346
    %v348 = vrot.slane %v170, %v347
    %v350 = vunpack.c.l.s4 1983009808
    %v351 = vunpack.c.0.s8 %v350
    %v352 = vlaneseq
    %v353 = vshrl.u32 %v352, 7
    %v354 = vsub.s32 %v351, %v353
    %v355 = vrot.slane %v341, %v354
    %v356 = vcombine.high %v348, %v348
    %v357 = vcombine.high %v355, %v355
    %v358 = vcombine.high %v171, %v171
    %v360 = vunpack.c.l.s4 1983009808
    %v361 = vunpack.c.0.s8 %v360
    %v362 = vlaneseq
    %v363 = vshrl.u32 %v362, 7
    %v364 = vsub.s32 %v361, %v363
    %v365 = vrot.slane %v171, %v364
    %v367 = vunpack.c.l.s4 1983009808
    %v368 = vunpack.c.0.s8 %v367
    %v369 = vlaneseq
    %v370 = vshrl.u32 %v369, 7
    %v371 = vsub.s32 %v368, %v370
    %v372 = vrot.slane %v358, %v371
    %v373 = vcombine.high %v365, %v365
    %v374 = vcombine.high %v372, %v372
    %v375 = vcombine.high %v172, %v172
    %v377 = vunpack.c.l.s4 1983009808
    %v378 = vunpack.c.0.s8 %v377
    %v379 = vlaneseq
    %v380 = vshrl.u32 %v379, 7
    %v381 = vsub.s32 %v378, %v380
    %v382 = vrot.slane %v172, %v381
    %v384 = vunpack.c.l.s4 1983009808
    %v385 = vunpack.c.0.s8 %v384
    %v386 = vlaneseq
    %v387 = vshrl.u32 %v386, 7
    %v388 = vsub.s32 %v385, %v387
    %v389 = vrot.slane %v375, %v388
    %v390 = vcombine.high %v382, %v382
    %v391 = vcombine.high %v389, %v389
    %v392 = vcombine.high %v173, %v173
    %v394 = vunpack.c.l.s4 1983009808
    %v395 = vunpack.c.0.s8 %v394
    %v396 = vlaneseq
    %v397 = vshrl.u32 %v396, 7
    %v398 = vsub.s32 %v395, %v397
    %v399 = vrot.slane %v173, %v398
    %v401 = vunpack.c.l.s4 1983009808
    %v402 = vunpack.c.0.s8 %v401
    %v403 = vlaneseq
    %v404 = vshrl.u32 %v403, 7
    %v405 = vsub.s32 %v402, %v404
    %v406 = vrot.slane %v392, %v405
    %v407 = vcombine.high %v399, %v399
    %v408 = vcombine.high %v406, %v406
    %v409 = vcombine.high %v174, %v174
    %v411 = vunpack.c.l.s4 1983009808
    %v412 = vunpack.c.0.s8 %v411
    %v413 = vlaneseq
    %v414 = vshrl.u32 %v413, 7
    %v415 = vsub.s32 %v412, %v414
    %v416 = vrot.slane %v174, %v415
    %v418 = vunpack.c.l.s4 1983009808
    %v419 = vunpack.c.0.s8 %v418
    %v420 = vlaneseq
    %v421 = vshrl.u32 %v420, 7
    %v422 = vsub.s32 %v419, %v421
    %v423 = vrot.slane %v409, %v422
    %v424 = vcombine.high %v416, %v416
    %v425 = vcombine.high %v423, %v423
    %v426 = vcombine.high %v175, %v175
    %v428 = vunpack.c.l.s4 1983009808
    %v429 = vunpack.c.0.s8 %v428
    %v430 = vlaneseq
    %v431 = vshrl.u32 %v430, 7
    %v432 = vsub.s32 %v429, %v431
    %v433 = vrot.slane %v175, %v432
    %v435 = vunpack.c.l.s4 1983009808
    %v436 = vunpack.c.0.s8 %v435
    %v437 = vlaneseq
    %v438 = vshrl.u32 %v437, 7
    %v439 = vsub.s32 %v436, %v438
    %v440 = vrot.slane %v426, %v439
    %v441 = vcombine.high %v433, %v433
    %v442 = vcombine.high %v440, %v440
    %v443 = vcombine.high %v176, %v176
    %v445 = vunpack.c.l.s4 1983009808
    %v446 = vunpack.c.0.s8 %v445
    %v447 = vlaneseq
    %v448 = vshrl.u32 %v447, 7
    %v449 = vsub.s32 %v446, %v448
    %v450 = vrot.slane %v176, %v449
    %v452 = vunpack.c.l.s4 1983009808
    %v453 = vunpack.c.0.s8 %v452
    %v454 = vlaneseq
    %v455 = vshrl.u32 %v454, 7
    %v456 = vsub.s32 %v453, %v455
    %v457 = vrot.slane %v443, %v456
    %v458 = vcombine.high %v450, %v450
    %v459 = vcombine.high %v457, %v457
    %v460 = vcombine.high %v177, %v177
    %v462 = vunpack.c.l.s4 1983009808
    %v463 = vunpack.c.0.s8 %v462
    %v464 = vlaneseq
    %v465 = vshrl.u32 %v464, 7
    %v466 = vsub.s32 %v463, %v465
    %v467 = vrot.slane %v177, %v466
    %v469 = vunpack.c.l.s4 1983009808
    %v470 = vunpack.c.0.s8 %v469
    %v471 = vlaneseq
    %v472 = vshrl.u32 %v471, 7
    %v473 = vsub.s32 %v470, %v472
    %v474 = vrot.slane %v460, %v473
    %v475 = vcombine.high %v467, %v467
    %v476 = vcombine.high %v474, %v474
    %v477 = vcombine.high %v178, %v178
    %v479 = vunpack.c.l.s4 1983009808
    %v480 = vunpack.c.0.s8 %v479
    %v481 = vlaneseq
    %v482 = vshrl.u32 %v481, 7
    %v483 = vsub.s32 %v480, %v482
    %v484 = vrot.slane %v178, %v483
    %v486 = vunpack.c.l.s4 1983009808
    %v487 = vunpack.c.0.s8 %v486
    %v488 = vlaneseq
    %v489 = vshrl.u32 %v488, 7
    %v490 = vsub.s32 %v487, %v489
    %v491 = vrot.slane %v477, %v490
    %v492 = vcombine.high %v484, %v484
    %v493 = vcombine.high %v491, %v491
    %v494 = vcombine.high %v179, %v179
    %v496 = vunpack.c.l.s4 1983009808
    %v497 = vunpack.c.0.s8 %v496
    %v498 = vlaneseq
    %v499 = vshrl.u32 %v498, 7
    %v500 = vsub.s32 %v497, %v499
    %v501 = vrot.slane %v179, %v500
    %v503 = vunpack.c.l.s4 1983009808
    %v504 = vunpack.c.0.s8 %v503
    %v505 = vlaneseq
    %v506 = vshrl.u32 %v505, 7
    %v507 = vsub.s32 %v504, %v506
    %v508 = vrot.slane %v494, %v507
    %v509 = vcombine.high %v501, %v501
    %v510 = vcombine.high %v508, %v508
    %v511 = vcombine.high %v180, %v180
    %v513 = vunpack.c.l.s4 1983009808
    %v514 = vunpack.c.0.s8 %v513
    %v515 = vlaneseq
    %v516 = vshrl.u32 %v515, 7
    %v517 = vsub.s32 %v514, %v516
    %v518 = vrot.slane %v180, %v517
    %v520 = vunpack.c.l.s4 1983009808
    %v521 = vunpack.c.0.s8 %v520
    %v522 = vlaneseq
    %v523 = vshrl.u32 %v522, 7
    %v524 = vsub.s32 %v521, %v523
    %v525 = vrot.slane %v511, %v524
    %v526 = vcombine.high %v518, %v518
    %v527 = vcombine.high %v525, %v525
    %v528 = vcombine.high %v181, %v181
    %v530 = vunpack.c.l.s4 1983009808
    %v531 = vunpack.c.0.s8 %v530
    %v532 = vlaneseq
    %v533 = vshrl.u32 %v532, 7
    %v534 = vsub.s32 %v531, %v533
    %v535 = vrot.slane %v181, %v534
    %v537 = vunpack.c.l.s4 1983009808
    %v538 = vunpack.c.0.s8 %v537
    %v539 = vlaneseq
    %v540 = vshrl.u32 %v539, 7
    %v541 = vsub.s32 %v538, %v540
    %v542 = vrot.slane %v528, %v541
    %v543 = vcombine.high %v535, %v535
    %v544 = vcombine.high %v542, %v542
    %v545 = vcombine.high %v182, %v182
    %v547 = vunpack.c.l.s4 1983009808
    %v548 = vunpack.c.0.s8 %v547
    %v549 = vlaneseq
    %v550 = vshrl.u32 %v549, 7
    %v551 = vsub.s32 %v548, %v550
    %v552 = vrot.slane %v182, %v551
    %v554 = vunpack.c.l.s4 1983009808
    %v555 = vunpack.c.0.s8 %v554
    %v556 = vlaneseq
    %v557 = vshrl.u32 %v556, 7
    %v558 = vsub.s32 %v555, %v557
    %v559 = vrot.slane %v545, %v558
    %v560 = vcombine.high %v552, %v552
    %v561 = vcombine.high %v559, %v559
    %v562 = vcombine.high %v183, %v183
    %v564 = vunpack.c.l.s4 1983009808
    %v565 = vunpack.c.0.s8 %v564
    %v566 = vlaneseq
    %v567 = vshrl.u32 %v566, 7
    %v568 = vsub.s32 %v565, %v567
    %v569 = vrot.slane %v183, %v568
    %v571 = vunpack.c.l.s4 1983009808
    %v572 = vunpack.c.0.s8 %v571
    %v573 = vlaneseq
    %v574 = vshrl.u32 %v573, 7
    %v575 = vsub.s32 %v572, %v574
    %v576 = vrot.slane %v562, %v575
    %v577 = vcombine.high %v569, %v569
    %v578 = vcombine.high %v576, %v576
    %v579 = vcombine.high %v184, %v184
    %v581 = vunpack.c.l.s4 1983009808
    %v582 = vunpack.c.0.s8 %v581
    %v583 = vlaneseq
    %v584 = vshrl.u32 %v583, 7
    %v585 = vsub.s32 %v582, %v584
    %v586 = vrot.slane %v184, %v585
    %v588 = vunpack.c.l.s4 1983009808
    %v589 = vunpack.c.0.s8 %v588
    %v590 = vlaneseq
    %v591 = vshrl.u32 %v590, 7
    %v592 = vsub.s32 %v589, %v591
    %v593 = vrot.slane %v579, %v592
    %v594 = vcombine.high %v586, %v586
    %v595 = vcombine.high %v593, %v593
    %v596 = vcombine.high %v185, %v185
    %v598 = vunpack.c.l.s4 1983009808
    %v599 = vunpack.c.0.s8 %v598
    %v600 = vlaneseq
    %v601 = vshrl.u32 %v600, 7
    %v602 = vsub.s32 %v599, %v601
    %v603 = vrot.slane %v185, %v602
    %v605 = vunpack.c.l.s4 1983009808
    %v606 = vunpack.c.0.s8 %v605
    %v607 = vlaneseq
    %v608 = vshrl.u32 %v607, 7
    %v609 = vsub.s32 %v606, %v608
    %v610 = vrot.slane %v596, %v609
    %v611 = vcombine.high %v603, %v603
    %v612 = vcombine.high %v610, %v610
    %v613 = vcombine.high %v186, %v186
    %v615 = vunpack.c.l.s4 1983009808
    %v616 = vunpack.c.0.s8 %v615
    %v617 = vlaneseq
    %v618 = vshrl.u32 %v617, 7
    %v619 = vsub.s32 %v616, %v618
    %v620 = vrot.slane %v186, %v619
    %v622 = vunpack.c.l.s4 1983009808
    %v623 = vunpack.c.0.s8 %v622
    %v624 = vlaneseq
    %v625 = vshrl.u32 %v624, 7
    %v626 = vsub.s32 %v623, %v625
    %v627 = vrot.slane %v613, %v626
    %v628 = vcombine.high %v620, %v620
    %v629 = vcombine.high %v627, %v627
    %v630 = vcombine.high %v187, %v187
    %v632 = vunpack.c.l.s4 1983009808
    %v633 = vunpack.c.0.s8 %v632
    %v634 = vlaneseq
    %v635 = vshrl.u32 %v634, 7
    %v636 = vsub.s32 %v633, %v635
    %v637 = vrot.slane %v187, %v636
    %v639 = vunpack.c.l.s4 1983009808
    %v640 = vunpack.c.0.s8 %v639
    %v641 = vlaneseq
    %v642 = vshrl.u32 %v641, 7
    %v643 = vsub.s32 %v640, %v642
    %v644 = vrot.slane %v630, %v643
    %v645 = vcombine.high %v637, %v637
    %v646 = vcombine.high %v644, %v644
    %v647 = vcombine.high %v188, %v188
    %v649 = vunpack.c.l.s4 1983009808
    %v650 = vunpack.c.0.s8 %v649
    %v651 = vlaneseq
    %v652 = vshrl.u32 %v651, 7
    %v653 = vsub.s32 %v650, %v652
    %v654 = vrot.slane %v188, %v653
    %v656 = vunpack.c.l.s4 1983009808
    %v657 = vunpack.c.0.s8 %v656
    %v658 = vlaneseq
    %v659 = vshrl.u32 %v658, 7
    %v660 = vsub.s32 %v657, %v659
    %v661 = vrot.slane %v647, %v660
    %v662 = vcombine.high %v654, %v654
    %v663 = vcombine.high %v661, %v661
    %v664 = vcombine.high %v189, %v189
    %v666 = vunpack.c.l.s4 1983009808
    %v667 = vunpack.c.0.s8 %v666
    %v668 = vlaneseq
    %v669 = vshrl.u32 %v668, 7
    %v670 = vsub.s32 %v667, %v669
    %v671 = vrot.slane %v189, %v670
    %v673 = vunpack.c.l.s4 1983009808
    %v674 = vunpack.c.0.s8 %v673
    %v675 = vlaneseq
    %v676 = vshrl.u32 %v675, 7
    %v677 = vsub.s32 %v674, %v676
    %v678 = vrot.slane %v664, %v677
    %v679 = vcombine.high %v671, %v671
    %v680 = vcombine.high %v678, %v678
    %v681 = vcombine.high %v190, %v190
    %v683 = vunpack.c.l.s4 1983009808
    %v684 = vunpack.c.0.s8 %v683
    %v685 = vlaneseq
    %v686 = vshrl.u32 %v685, 7
    %v687 = vsub.s32 %v684, %v686
    %v688 = vrot.slane %v190, %v687
    %v690 = vunpack.c.l.s4 1983009808
    %v691 = vunpack.c.0.s8 %v690
    %v692 = vlaneseq
    %v693 = vshrl.u32 %v692, 7
    %v694 = vsub.s32 %v691, %v693
    %v695 = vrot.slane %v681, %v694
    %v696 = vcombine.high %v688, %v688
    %v697 = vcombine.high %v695, %v695
    %v698 = vcombine.high %v191, %v191
    %v700 = vunpack.c.l.s4 1983009808
    %v701 = vunpack.c.0.s8 %v700
    %v702 = vlaneseq
    %v703 = vshrl.u32 %v702, 7
    %v704 = vsub.s32 %v701, %v703
    %v705 = vrot.slane %v191, %v704
    %v707 = vunpack.c.l.s4 1983009808
    %v708 = vunpack.c.0.s8 %v707
    %v709 = vlaneseq
    %v710 = vshrl.u32 %v709, 7
    %v711 = vsub.s32 %v708, %v710
    %v712 = vrot.slane %v698, %v711
    %v713 = vcombine.high %v705, %v705
    %v714 = vcombine.high %v712, %v712
    %v715 = vcombine.high %v192, %v192
    %v717 = vunpack.c.l.s4 1983009808
    %v718 = vunpack.c.0.s8 %v717
    %v719 = vlaneseq
    %v720 = vshrl.u32 %v719, 7
    %v721 = vsub.s32 %v718, %v720
    %v722 = vrot.slane %v192, %v721
    %v724 = vunpack.c.l.s4 1983009808
    %v725 = vunpack.c.0.s8 %v724
    %v726 = vlaneseq
    %v727 = vshrl.u32 %v726, 7
    %v728 = vsub.s32 %v725, %v727
    %v729 = vrot.slane %v715, %v728
    %v730 = vcombine.high %v722, %v722
    %v731 = vcombine.high %v729, %v729
    %v732 = vcombine.high %v193, %v193
    %v734 = vunpack.c.l.s4 1983009808
    %v735 = vunpack.c.0.s8 %v734
    %v736 = vlaneseq
    %v737 = vshrl.u32 %v736, 7
    %v738 = vsub.s32 %v735, %v737
    %v739 = vrot.slane %v193, %v738
    %v741 = vunpack.c.l.s4 1983009808
    %v742 = vunpack.c.0.s8 %v741
    %v743 = vlaneseq
    %v744 = vshrl.u32 %v743, 7
    %v745 = vsub.s32 %v742, %v744
    %v746 = vrot.slane %v732, %v745
    %v747 = vcombine.high %v739, %v739
    %v748 = vcombine.high %v746, %v746
    %v749 = vcombine.high %v194, %v194
    %v751 = vunpack.c.l.s4 1983009808
    %v752 = vunpack.c.0.s8 %v751
    %v753 = vlaneseq
    %v754 = vshrl.u32 %v753, 7
    %v755 = vsub.s32 %v752, %v754
    %v756 = vrot.slane %v194, %v755
    %v758 = vunpack.c.l.s4 1983009808
    %v759 = vunpack.c.0.s8 %v758
    %v760 = vlaneseq
    %v761 = vshrl.u32 %v760, 7
    %v762 = vsub.s32 %v759, %v761
    %v763 = vrot.slane %v749, %v762
    %v764 = vcombine.high %v756, %v756
    %v765 = vcombine.high %v763, %v763
    %v766 = vcombine.high %v195, %v195
    %v768 = vunpack.c.l.s4 1983009808
    %v769 = vunpack.c.0.s8 %v768
    %v770 = vlaneseq
    %v771 = vshrl.u32 %v770, 7
    %v772 = vsub.s32 %v769, %v771
    %v773 = vrot.slane %v195, %v772
    %v775 = vunpack.c.l.s4 1983009808
    %v776 = vunpack.c.0.s8 %v775
    %v777 = vlaneseq
    %v778 = vshrl.u32 %v777, 7
    %v779 = vsub.s32 %v776, %v778
    %v780 = vrot.slane %v766, %v779
    %v781 = vcombine.high %v773, %v773
    %v782 = vcombine.high %v780, %v780
    %v783 = vcombine.high %v196, %v196
    %v785 = vunpack.c.l.s4 1983009808
    %v786 = vunpack.c.0.s8 %v785
    %v787 = vlaneseq
    %v788 = vshrl.u32 %v787, 7
    %v789 = vsub.s32 %v786, %v788
    %v790 = vrot.slane %v196, %v789
    %v792 = vunpack.c.l.s4 1983009808
    %v793 = vunpack.c.0.s8 %v792
    %v794 = vlaneseq
    %v795 = vshrl.u32 %v794, 7
    %v796 = vsub.s32 %v793, %v795
    %v797 = vrot.slane %v783, %v796
    %v798 = vcombine.high %v790, %v790
    %v799 = vcombine.high %v797, %v797
    %v800 = vcombine.high %v197, %v197
    %v802 = vunpack.c.l.s4 1983009808
    %v803 = vunpack.c.0.s8 %v802
    %v804 = vlaneseq
    %v805 = vshrl.u32 %v804, 7
    %v806 = vsub.s32 %v803, %v805
    %v807 = vrot.slane %v197, %v806
    %v809 = vunpack.c.l.s4 1983009808
    %v810 = vunpack.c.0.s8 %v809
    %v811 = vlaneseq
    %v812 = vshrl.u32 %v811, 7
    %v813 = vsub.s32 %v810, %v812
    %v814 = vrot.slane %v800, %v813
    %v815 = vcombine.high %v807, %v807
    %v816 = vcombine.high %v814, %v814
    %v817 = vcombine.high %v198, %v198
    %v819 = vunpack.c.l.s4 1983009808
    %v820 = vunpack.c.0.s8 %v819
    %v821 = vlaneseq
    %v822 = vshrl.u32 %v821, 7
    %v823 = vsub.s32 %v820, %v822
    %v824 = vrot.slane %v198, %v823
    %v826 = vunpack.c.l.s4 1983009808
    %v827 = vunpack.c.0.s8 %v826
    %v828 = vlaneseq
    %v829 = vshrl.u32 %v828, 7
    %v830 = vsub.s32 %v827, %v829
    %v831 = vrot.slane %v817, %v830
    %v832 = vcombine.high %v824, %v824
    %v833 = vcombine.high %v831, %v831
    %v834 = vcombine.high %v199, %v199
    %v836 = vunpack.c.l.s4 1983009808
    %v837 = vunpack.c.0.s8 %v836
    %v838 = vlaneseq
    %v839 = vshrl.u32 %v838, 7
    %v840 = vsub.s32 %v837, %v839
    %v841 = vrot.slane %v199, %v840
    %v843 = vunpack.c.l.s4 1983009808
    %v844 = vunpack.c.0.s8 %v843
    %v845 = vlaneseq
    %v846 = vshrl.u32 %v845, 7
    %v847 = vsub.s32 %v844, %v846
    %v848 = vrot.slane %v834, %v847
    %v849 = vcombine.high %v841, %v841
    %v850 = vcombine.high %v848, %v848
    %v851 = vcombine.high %v200, %v200
    %v853 = vunpack.c.l.s4 1983009808
    %v854 = vunpack.c.0.s8 %v853
    %v855 = vlaneseq
    %v856 = vshrl.u32 %v855, 7
    %v857 = vsub.s32 %v854, %v856
    %v858 = vrot.slane %v200, %v857
    %v860 = vunpack.c.l.s4 1983009808
    %v861 = vunpack.c.0.s8 %v860
    %v862 = vlaneseq
    %v863 = vshrl.u32 %v862, 7
    %v864 = vsub.s32 %v861, %v863
    %v865 = vrot.slane %v851, %v864
    %v866 = vcombine.high %v858, %v858
    %v867 = vcombine.high %v865, %v865
    %v868 = vcombine.high %v201, %v201
    %v870 = vunpack.c.l.s4 1983009808
    %v871 = vunpack.c.0.s8 %v870
    %v872 = vlaneseq
    %v873 = vshrl.u32 %v872, 7
    %v874 = vsub.s32 %v871, %v873
    %v875 = vrot.slane %v201, %v874
    %v877 = vunpack.c.l.s4 1983009808
    %v878 = vunpack.c.0.s8 %v877
    %v879 = vlaneseq
    %v880 = vshrl.u32 %v879, 7
    %v881 = vsub.s32 %v878, %v880
    %v882 = vrot.slane %v868, %v881
    %v883 = vcombine.high %v875, %v875
    %v884 = vcombine.high %v882, %v882
    %v885 = vcombine.high %v202, %v202
    %v887 = vunpack.c.l.s4 1983009808
    %v888 = vunpack.c.0.s8 %v887
    %v889 = vlaneseq
    %v890 = vshrl.u32 %v889, 7
    %v891 = vsub.s32 %v888, %v890
    %v892 = vrot.slane %v202, %v891
    %v894 = vunpack.c.l.s4 1983009808
    %v895 = vunpack.c.0.s8 %v894
    %v896 = vlaneseq
    %v897 = vshrl.u32 %v896, 7
    %v898 = vsub.s32 %v895, %v897
    %v899 = vrot.slane %v885, %v898
    %v900 = vcombine.high %v892, %v892
    %v901 = vcombine.high %v899, %v899
    %v902 = vcombine.high %v203, %v203
    %v904 = vunpack.c.l.s4 1983009808
    %v905 = vunpack.c.0.s8 %v904
    %v906 = vlaneseq
    %v907 = vshrl.u32 %v906, 7
    %v908 = vsub.s32 %v905, %v907
    %v909 = vrot.slane %v203, %v908
    %v911 = vunpack.c.l.s4 1983009808
    %v912 = vunpack.c.0.s8 %v911
    %v913 = vlaneseq
    %v914 = vshrl.u32 %v913, 7
    %v915 = vsub.s32 %v912, %v914
    %v916 = vrot.slane %v902, %v915
    %v917 = vcombine.high %v909, %v909
    %v918 = vcombine.high %v916, %v916
    %v919 = vcombine.high %v204, %v204
    %v921 = vunpack.c.l.s4 1983009808
    %v922 = vunpack.c.0.s8 %v921
    %v923 = vlaneseq
    %v924 = vshrl.u32 %v923, 7
    %v925 = vsub.s32 %v922, %v924
    %v926 = vrot.slane %v204, %v925
    %v928 = vunpack.c.l.s4 1983009808
    %v929 = vunpack.c.0.s8 %v928
    %v930 = vlaneseq
    %v931 = vshrl.u32 %v930, 7
    %v932 = vsub.s32 %v929, %v931
    %v933 = vrot.slane %v919, %v932
    %v934 = vcombine.high %v926, %v926
    %v935 = vcombine.high %v933, %v933
    %v936 = vcombine.high %v205, %v205
    %v938 = vunpack.c.l.s4 1983009808
    %v939 = vunpack.c.0.s8 %v938
    %v940 = vlaneseq
    %v941 = vshrl.u32 %v940, 7
    %v942 = vsub.s32 %v939, %v941
    %v943 = vrot.slane %v205, %v942
    %v945 = vunpack.c.l.s4 1983009808
    %v946 = vunpack.c.0.s8 %v945
    %v947 = vlaneseq
    %v948 = vshrl.u32 %v947, 7
    %v949 = vsub.s32 %v946, %v948
    %v950 = vrot.slane %v936, %v949
    %v951 = vcombine.high %v943, %v943
    %v952 = vcombine.high %v950, %v950
    %v953 = vcombine.high %v206, %v206
    %v955 = vunpack.c.l.s4 1983009808
    %v956 = vunpack.c.0.s8 %v955
    %v957 = vlaneseq
    %v958 = vshrl.u32 %v957, 7
    %v959 = vsub.s32 %v956, %v958
    %v960 = vrot.slane %v206, %v959
    %v962 = vunpack.c.l.s4 1983009808
    %v963 = vunpack.c.0.s8 %v962
    %v964 = vlaneseq
    %v965 = vshrl.u32 %v964, 7
    %v966 = vsub.s32 %v963, %v965
    %v967 = vrot.slane %v953, %v966
    %v968 = vcombine.high %v960, %v960
    %v969 = vcombine.high %v967, %v967
    %v970 = vcombine.high %v207, %v207
    %v972 = vunpack.c.l.s4 1983009808
    %v973 = vunpack.c.0.s8 %v972
    %v974 = vlaneseq
    %v975 = vshrl.u32 %v974, 7
    %v976 = vsub.s32 %v973, %v975
    %v977 = vrot.slane %v207, %v976
    %v979 = vunpack.c.l.s4 1983009808
    %v980 = vunpack.c.0.s8 %v979
    %v981 = vlaneseq
    %v982 = vshrl.u32 %v981, 7
    %v983 = vsub.s32 %v980, %v982
    %v984 = vrot.slane %v970, %v983
    %v985 = vcombine.high %v977, %v977
    %v986 = vcombine.high %v984, %v984
    %v987 = vcombine.high %v208, %v208
    %v989 = vunpack.c.l.s4 1983009808
    %v990 = vunpack.c.0.s8 %v989
    %v991 = vlaneseq
    %v992 = vshrl.u32 %v991, 7
    %v993 = vsub.s32 %v990, %v992
    %v994 = vrot.slane %v208, %v993
    %v996 = vunpack.c.l.s4 1983009808
    %v997 = vunpack.c.0.s8 %v996
    %v998 = vlaneseq
    %v999 = vshrl.u32 %v998, 7
    %v1000 = vsub.s32 %v997, %v999
    %v1001 = vrot.slane %v987, %v1000
    %v1002 = vcombine.high %v994, %v994
    %v1003 = vcombine.high %v1001, %v1001
    %v1004 = vcombine.high %v209, %v209
    %v1006 = vunpack.c.l.s4 1983009808
    %v1007 = vunpack.c.0.s8 %v1006
    %v1008 = vlaneseq
    %v1009 = vshrl.u32 %v1008, 7
    %v1010 = vsub.s32 %v1007, %v1009
    %v1011 = vrot.slane %v209, %v1010
    %v1013 = vunpack.c.l.s4 1983009808
    %v1014 = vunpack.c.0.s8 %v1013
    %v1015 = vlaneseq
    %v1016 = vshrl.u32 %v1015, 7
    %v1017 = vsub.s32 %v1014, %v1016
    %v1018 = vrot.slane %v1004, %v1017
    %v1019 = vcombine.high %v1011, %v1011
    %v1020 = vcombine.high %v1018, %v1018
    %v1021 = vcombine.high %v210, %v210
    %v1023 = vunpack.c.l.s4 1983009808
    %v1024 = vunpack.c.0.s8 %v1023
    %v1025 = vlaneseq
    %v1026 = vshrl.u32 %v1025, 7
    %v1027 = vsub.s32 %v1024, %v1026
    %v1028 = vrot.slane %v210, %v1027
    %v1030 = vunpack.c.l.s4 1983009808
    %v1031 = vunpack.c.0.s8 %v1030
    %v1032 = vlaneseq
    %v1033 = vshrl.u32 %v1032, 7
    %v1034 = vsub.s32 %v1031, %v1033
    %v1035 = vrot.slane %v1021, %v1034
    %v1036 = vcombine.high %v1028, %v1028
    %v1037 = vcombine.high %v1035, %v1035
    %v1038 = vcombine.high %v211, %v211
    %v1040 = vunpack.c.l.s4 1983009808
    %v1041 = vunpack.c.0.s8 %v1040
    %v1042 = vlaneseq
    %v1043 = vshrl.u32 %v1042, 7
    %v1044 = vsub.s32 %v1041, %v1043
    %v1045 = vrot.slane %v211, %v1044
    %v1047 = vunpack.c.l.s4 1983009808
    %v1048 = vunpack.c.0.s8 %v1047
    %v1049 = vlaneseq
    %v1050 = vshrl.u32 %v1049, 7
    %v1051 = vsub.s32 %v1048, %v1050
    %v1052 = vrot.slane %v1038, %v1051
    %v1053 = vcombine.high %v1045, %v1045
    %v1054 = vcombine.high %v1052, %v1052
    %v1055 = vcombine.high %v212, %v212
    %v1057 = vunpack.c.l.s4 1983009808
    %v1058 = vunpack.c.0.s8 %v1057
    %v1059 = vlaneseq
    %v1060 = vshrl.u32 %v1059, 7
    %v1061 = vsub.s32 %v1058, %v1060
    %v1062 = vrot.slane %v212, %v1061
    %v1064 = vunpack.c.l.s4 1983009808
    %v1065 = vunpack.c.0.s8 %v1064
    %v1066 = vlaneseq
    %v1067 = vshrl.u32 %v1066, 7
    %v1068 = vsub.s32 %v1065, %v1067
    %v1069 = vrot.slane %v1055, %v1068
    %v1070 = vcombine.high %v1062, %v1062
    %v1071 = vcombine.high %v1069, %v1069
    %v1072 = vcombine.high %v213, %v213
    %v1074 = vunpack.c.l.s4 1983009808
    %v1075 = vunpack.c.0.s8 %v1074
    %v1076 = vlaneseq
    %v1077 = vshrl.u32 %v1076, 7
    %v1078 = vsub.s32 %v1075, %v1077
    %v1079 = vrot.slane %v213, %v1078
    %v1081 = vunpack.c.l.s4 1983009808
    %v1082 = vunpack.c.0.s8 %v1081
    %v1083 = vlaneseq
    %v1084 = vshrl.u32 %v1083, 7
    %v1085 = vsub.s32 %v1082, %v1084
    %v1086 = vrot.slane %v1072, %v1085
    %v1087 = vcombine.high %v1079, %v1079
    %v1088 = vcombine.high %v1086, %v1086
    %v1089 = vcombine.high %v214, %v214
    %v1091 = vunpack.c.l.s4 1983009808
    %v1092 = vunpack.c.0.s8 %v1091
    %v1093 = vlaneseq
    %v1094 = vshrl.u32 %v1093, 7
    %v1095 = vsub.s32 %v1092, %v1094
    %v1096 = vrot.slane %v214, %v1095
    %v1098 = vunpack.c.l.s4 1983009808
    %v1099 = vunpack.c.0.s8 %v1098
    %v1100 = vlaneseq
    %v1101 = vshrl.u32 %v1100, 7
    %v1102 = vsub.s32 %v1099, %v1101
    %v1103 = vrot.slane %v1089, %v1102
    %v1104 = vcombine.high %v1096, %v1096
    %v1105 = vcombine.high %v1103, %v1103
    %v1106 = vcombine.high %v215, %v215
    %v1108 = vunpack.c.l.s4 1983009808
    %v1109 = vunpack.c.0.s8 %v1108
    %v1110 = vlaneseq
    %v1111 = vshrl.u32 %v1110, 7
    %v1112 = vsub.s32 %v1109, %v1111
    %v1113 = vrot.slane %v215, %v1112
    %v1115 = vunpack.c.l.s4 1983009808
    %v1116 = vunpack.c.0.s8 %v1115
    %v1117 = vlaneseq
    %v1118 = vshrl.u32 %v1117, 7
    %v1119 = vsub.s32 %v1116, %v1118
    %v1120 = vrot.slane %v1106, %v1119
    %v1121 = vcombine.high %v1113, %v1113
    %v1122 = vcombine.high %v1120, %v1120
    %v1123 = vcombine.high %v216, %v216
    %v1125 = vunpack.c.l.s4 1983009808
    %v1126 = vunpack.c.0.s8 %v1125
    %v1127 = vlaneseq
    %v1128 = vshrl.u32 %v1127, 7
    %v1129 = vsub.s32 %v1126, %v1128
    %v1130 = vrot.slane %v216, %v1129
    %v1132 = vunpack.c.l.s4 1983009808
    %v1133 = vunpack.c.0.s8 %v1132
    %v1134 = vlaneseq
    %v1135 = vshrl.u32 %v1134, 7
    %v1136 = vsub.s32 %v1133, %v1135
    %v1137 = vrot.slane %v1123, %v1136
    %v1138 = vcombine.high %v1130, %v1130
    %v1139 = vcombine.high %v1137, %v1137
    %v1140 = vcombine.high %v217, %v217
    %v1142 = vunpack.c.l.s4 1983009808
    %v1143 = vunpack.c.0.s8 %v1142
    %v1144 = vlaneseq
    %v1145 = vshrl.u32 %v1144, 7
    %v1146 = vsub.s32 %v1143, %v1145
    %v1147 = vrot.slane %v217, %v1146
    %v1149 = vunpack.c.l.s4 1983009808
    %v1150 = vunpack.c.0.s8 %v1149
    %v1151 = vlaneseq
    %v1152 = vshrl.u32 %v1151, 7
    %v1153 = vsub.s32 %v1150, %v1152
    %v1154 = vrot.slane %v1140, %v1153
    %v1155 = vcombine.high %v1147, %v1147
    %v1156 = vcombine.high %v1154, %v1154
    %v1157 = vcombine.high %v218, %v218
    %v1159 = vunpack.c.l.s4 1983009808
    %v1160 = vunpack.c.0.s8 %v1159
    %v1161 = vlaneseq
    %v1162 = vshrl.u32 %v1161, 7
    %v1163 = vsub.s32 %v1160, %v1162
    %v1164 = vrot.slane %v218, %v1163
    %v1166 = vunpack.c.l.s4 1983009808
    %v1167 = vunpack.c.0.s8 %v1166
    %v1168 = vlaneseq
    %v1169 = vshrl.u32 %v1168, 7
    %v1170 = vsub.s32 %v1167, %v1169
    %v1171 = vrot.slane %v1157, %v1170
    %v1172 = vcombine.high %v1164, %v1164
    %v1173 = vcombine.high %v1171, %v1171
    %v1174 = vcombine.high %v219, %v219
    %v1176 = vunpack.c.l.s4 1983009808
    %v1177 = vunpack.c.0.s8 %v1176
    %v1178 = vlaneseq
    %v1179 = vshrl.u32 %v1178, 7
    %v1180 = vsub.s32 %v1177, %v1179
    %v1181 = vrot.slane %v219, %v1180
    %v1183 = vunpack.c.l.s4 1983009808
    %v1184 = vunpack.c.0.s8 %v1183
    %v1185 = vlaneseq
    %v1186 = vshrl.u32 %v1185, 7
    %v1187 = vsub.s32 %v1184, %v1186
    %v1188 = vrot.slane %v1174, %v1187
    %v1189 = vcombine.high %v1181, %v1181
    %v1190 = vcombine.high %v1188, %v1188
    %v1191 = vcombine.high %v220, %v220
    %v1193 = vunpack.c.l.s4 1983009808
    %v1194 = vunpack.c.0.s8 %v1193
    %v1195 = vlaneseq
    %v1196 = vshrl.u32 %v1195, 7
    %v1197 = vsub.s32 %v1194, %v1196
    %v1198 = vrot.slane %v220, %v1197
    %v1200 = vunpack.c.l.s4 1983009808
    %v1201 = vunpack.c.0.s8 %v1200
    %v1202 = vlaneseq
    %v1203 = vshrl.u32 %v1202, 7
    %v1204 = vsub.s32 %v1201, %v1203
    %v1205 = vrot.slane %v1191, %v1204
    %v1206 = vcombine.high %v1198, %v1198
    %v1207 = vcombine.high %v1205, %v1205
    %v1208 = vcombine.high %v221, %v221
    %v1210 = vunpack.c.l.s4 1983009808
    %v1211 = vunpack.c.0.s8 %v1210
    %v1212 = vlaneseq
    %v1213 = vshrl.u32 %v1212, 7
    %v1214 = vsub.s32 %v1211, %v1213
    %v1215 = vrot.slane %v221, %v1214
    %v1217 = vunpack.c.l.s4 1983009808
    %v1218 = vunpack.c.0.s8 %v1217
    %v1219 = vlaneseq
    %v1220 = vshrl.u32 %v1219, 7
    %v1221 = vsub.s32 %v1218, %v1220
    %v1222 = vrot.slane %v1208, %v1221
    %v1223 = vcombine.high %v1215, %v1215
    %v1224 = vcombine.high %v1222, %v1222
    %v1225 = vcombine.high %v222, %v222
    %v1227 = vunpack.c.l.s4 1983009808
    %v1228 = vunpack.c.0.s8 %v1227
    %v1229 = vlaneseq
    %v1230 = vshrl.u32 %v1229, 7
    %v1231 = vsub.s32 %v1228, %v1230
    %v1232 = vrot.slane %v222, %v1231
    %v1234 = vunpack.c.l.s4 1983009808
    %v1235 = vunpack.c.0.s8 %v1234
    %v1236 = vlaneseq
    %v1237 = vshrl.u32 %v1236, 7
    %v1238 = vsub.s32 %v1235, %v1237
    %v1239 = vrot.slane %v1225, %v1238
    %v1240 = vcombine.high %v1232, %v1232
    %v1241 = vcombine.high %v1239, %v1239
    %v1242 = vcombine.high %v223, %v223
    %v1244 = vunpack.c.l.s4 1983009808
    %v1245 = vunpack.c.0.s8 %v1244
    %v1246 = vlaneseq
    %v1247 = vshrl.u32 %v1246, 7
    %v1248 = vsub.s32 %v1245, %v1247
    %v1249 = vrot.slane %v223, %v1248
    %v1251 = vunpack.c.l.s4 1983009808
    %v1252 = vunpack.c.0.s8 %v1251
    %v1253 = vlaneseq
    %v1254 = vshrl.u32 %v1253, 7
    %v1255 = vsub.s32 %v1252, %v1254
    %v1256 = vrot.slane %v1242, %v1255
    %v1257 = vcombine.high %v1249, %v1249
    %v1258 = vcombine.high %v1256, %v1256
    %v1259 = vcombine.high %v224, %v224
    %v1261 = vunpack.c.l.s4 1983009808
    %v1262 = vunpack.c.0.s8 %v1261
    %v1263 = vlaneseq
    %v1264 = vshrl.u32 %v1263, 7
    %v1265 = vsub.s32 %v1262, %v1264
    %v1266 = vrot.slane %v224, %v1265
    %v1268 = vunpack.c.l.s4 1983009808
    %v1269 = vunpack.c.0.s8 %v1268
    %v1270 = vlaneseq
    %v1271 = vshrl.u32 %v1270, 7
    %v1272 = vsub.s32 %v1269, %v1271
    %v1273 = vrot.slane %v1259, %v1272
    %v1274 = vcombine.high %v1266, %v1266
    %v1275 = vcombine.high %v1273, %v1273
    %v1276 = vcombine.high %v225, %v225
    %v1278 = vunpack.c.l.s4 1983009808
    %v1279 = vunpack.c.0.s8 %v1278
    %v1280 = vlaneseq
    %v1281 = vshrl.u32 %v1280, 7
    %v1282 = vsub.s32 %v1279, %v1281
    %v1283 = vrot.slane %v225, %v1282
    %v1285 = vunpack.c.l.s4 1983009808
    %v1286 = vunpack.c.0.s8 %v1285
    %v1287 = vlaneseq
    %v1288 = vshrl.u32 %v1287, 7
    %v1289 = vsub.s32 %v1286, %v1288
    %v1290 = vrot.slane %v1276, %v1289
    %v1291 = vcombine.high %v1283, %v1283
    %v1292 = vcombine.high %v1290, %v1290
    %v1293 = vcombine.high %v226, %v226
    %v1295 = vunpack.c.l.s4 1983009808
    %v1296 = vunpack.c.0.s8 %v1295
    %v1297 = vlaneseq
    %v1298 = vshrl.u32 %v1297, 7
    %v1299 = vsub.s32 %v1296, %v1298
    %v1300 = vrot.slane %v226, %v1299
    %v1302 = vunpack.c.l.s4 1983009808
    %v1303 = vunpack.c.0.s8 %v1302
    %v1304 = vlaneseq
    %v1305 = vshrl.u32 %v1304, 7
    %v1306 = vsub.s32 %v1303, %v1305
    %v1307 = vrot.slane %v1293, %v1306
    %v1308 = vcombine.high %v1300, %v1300
    %v1309 = vcombine.high %v1307, %v1307
    %v1310 = vcombine.high %v227, %v227
    %v1312 = vunpack.c.l.s4 1983009808
    %v1313 = vunpack.c.0.s8 %v1312
    %v1314 = vlaneseq
    %v1315 = vshrl.u32 %v1314, 7
    %v1316 = vsub.s32 %v1313, %v1315
    %v1317 = vrot.slane %v227, %v1316
    %v1319 = vunpack.c.l.s4 1983009808
    %v1320 = vunpack.c.0.s8 %v1319
    %v1321 = vlaneseq
    %v1322 = vshrl.u32 %v1321, 7
    %v1323 = vsub.s32 %v1320, %v1322
    %v1324 = vrot.slane %v1310, %v1323
    %v1325 = vcombine.high %v1317, %v1317
    %v1326 = vcombine.high %v1324, %v1324
    %v1327 = vcombine.high %v228, %v228
    %v1329 = vunpack.c.l.s4 1983009808
    %v1330 = vunpack.c.0.s8 %v1329
    %v1331 = vlaneseq
    %v1332 = vshrl.u32 %v1331, 7
    %v1333 = vsub.s32 %v1330, %v1332
    %v1334 = vrot.slane %v228, %v1333
    %v1336 = vunpack.c.l.s4 1983009808
    %v1337 = vunpack.c.0.s8 %v1336
    %v1338 = vlaneseq
    %v1339 = vshrl.u32 %v1338, 7
    %v1340 = vsub.s32 %v1337, %v1339
    %v1341 = vrot.slane %v1327, %v1340
    %v1342 = vcombine.high %v1334, %v1334
    %v1343 = vcombine.high %v1341, %v1341
    %v1344 = vcombine.high %v229, %v229
    %v1346 = vunpack.c.l.s4 1983009808
    %v1347 = vunpack.c.0.s8 %v1346
    %v1348 = vlaneseq
    %v1349 = vshrl.u32 %v1348, 7
    %v1350 = vsub.s32 %v1347, %v1349
    %v1351 = vrot.slane %v229, %v1350
    %v1353 = vunpack.c.l.s4 1983009808
    %v1354 = vunpack.c.0.s8 %v1353
    %v1355 = vlaneseq
    %v1356 = vshrl.u32 %v1355, 7
    %v1357 = vsub.s32 %v1354, %v1356
    %v1358 = vrot.slane %v1344, %v1357
    %v1359 = vcombine.high %v1351, %v1351
    %v1360 = vcombine.high %v1358, %v1358
    %v1361 = vcombine.high %v230, %v230
    %v1363 = vunpack.c.l.s4 1983009808
    %v1364 = vunpack.c.0.s8 %v1363
    %v1365 = vlaneseq
    %v1366 = vshrl.u32 %v1365, 7
    %v1367 = vsub.s32 %v1364, %v1366
    %v1368 = vrot.slane %v230, %v1367
    %v1370 = vunpack.c.l.s4 1983009808
    %v1371 = vunpack.c.0.s8 %v1370
    %v1372 = vlaneseq
    %v1373 = vshrl.u32 %v1372, 7
    %v1374 = vsub.s32 %v1371, %v1373
    %v1375 = vrot.slane %v1361, %v1374
    %v1376 = vcombine.high %v1368, %v1368
    %v1377 = vcombine.high %v1375, %v1375
    %v1378 = vcombine.high %v231, %v231
    %v1380 = vunpack.c.l.s4 1983009808
    %v1381 = vunpack.c.0.s8 %v1380
    %v1382 = vlaneseq
    %v1383 = vshrl.u32 %v1382, 7
    %v1384 = vsub.s32 %v1381, %v1383
    %v1385 = vrot.slane %v231, %v1384
    %v1387 = vunpack.c.l.s4 1983009808
    %v1388 = vunpack.c.0.s8 %v1387
    %v1389 = vlaneseq
    %v1390 = vshrl.u32 %v1389, 7
    %v1391 = vsub.s32 %v1388, %v1390
    %v1392 = vrot.slane %v1378, %v1391
    %v1393 = vcombine.high %v1385, %v1385
    %v1394 = vcombine.high %v1392, %v1392
    %v1395 = vlaneseq
    %v1396 = vshrl.u32 %v1395, 7
    %v1397 = vsub.s32 1, %v1396
    %v1398 = vrot.slane %v314, %v1397
    %v1399 = vlaneseq
    %v1400 = vshrl.u32 %v1399, 7
    %v1401 = vsub.s32 1, %v1400
    %v1402 = vrot.slane %v322, %v1401
    %v1403 = vlaneseq
    %v1404 = vshrl.u32 %v1403, 7
    %v1405 = vsub.s32 1, %v1404
    %v1406 = vrot.slane %v321, %v1405
    %v1407 = vlaneseq
    %v1408 = vshrl.u32 %v1407, 7
    %v1409 = vsub.s32 1, %v1408
    %v1410 = vrot.slane %v323, %v1409
    %v1411 = vlaneseq
    %v1412 = vshrl.u32 %v1411, 7
    %v1413 = vsub.s32 1, %v1412
    %v1414 = vrot.slane %v331, %v1413
    %v1415 = vlaneseq
    %v1416 = vshrl.u32 %v1415, 7
    %v1417 = vsub.s32 1, %v1416
    %v1418 = vrot.slane %v339, %v1417
    %v1419 = vlaneseq
    %v1420 = vshrl.u32 %v1419, 7
    %v1421 = vsub.s32 1, %v1420
    %v1422 = vrot.slane %v338, %v1421
    %v1423 = vlaneseq
    %v1424 = vshrl.u32 %v1423, 7
    %v1425 = vsub.s32 1, %v1424
    %v1426 = vrot.slane %v340, %v1425
    %v1427 = vlaneseq
    %v1428 = vshrl.u32 %v1427, 7
    %v1429 = vsub.s32 1, %v1428
    %v1430 = vrot.slane %v348, %v1429
    %v1431 = vlaneseq
    %v1432 = vshrl.u32 %v1431, 7
    %v1433 = vsub.s32 1, %v1432
    %v1434 = vrot.slane %v356, %v1433
    %v1435 = vlaneseq
    %v1436 = vshrl.u32 %v1435, 7
    %v1437 = vsub.s32 1, %v1436
    %v1438 = vrot.slane %v355, %v1437
    %v1439 = vlaneseq
    %v1440 = vshrl.u32 %v1439, 7
    %v1441 = vsub.s32 1, %v1440
    %v1442 = vrot.slane %v357, %v1441
    %v1443 = vlaneseq
    %v1444 = vshrl.u32 %v1443, 7
    %v1445 = vsub.s32 1, %v1444
    %v1446 = vrot.slane %v365, %v1445
    %v1447 = vlaneseq
    %v1448 = vshrl.u32 %v1447, 7
    %v1449 = vsub.s32 1, %v1448
    %v1450 = vrot.slane %v373, %v1449
    %v1451 = vlaneseq
    %v1452 = vshrl.u32 %v1451, 7
    %v1453 = vsub.s32 1, %v1452
    %v1454 = vrot.slane %v372, %v1453
    %v1455 = vlaneseq
    %v1456 = vshrl.u32 %v1455, 7
    %v1457 = vsub.s32 1, %v1456
    %v1458 = vrot.slane %v374, %v1457
    %v1459 = vlaneseq
    %v1460 = vshrl.u32 %v1459, 7
    %v1461 = vsub.s32 1, %v1460
    %v1462 = vrot.slane %v382, %v1461
    %v1463 = vlaneseq
    %v1464 = vshrl.u32 %v1463, 7
    %v1465 = vsub.s32 1, %v1464
    %v1466 = vrot.slane %v390, %v1465
    %v1467 = vlaneseq
    %v1468 = vshrl.u32 %v1467, 7
    %v1469 = vsub.s32 1, %v1468
    %v1470 = vrot.slane %v389, %v1469
    %v1471 = vlaneseq
    %v1472 = vshrl.u32 %v1471, 7
    %v1473 = vsub.s32 1, %v1472
    %v1474 = vrot.slane %v391, %v1473
    %v1475 = vlaneseq
    %v1476 = vshrl.u32 %v1475, 7
    %v1477 = vsub.s32 1, %v1476
    %v1478 = vrot.slane %v399, %v1477
    %v1479 = vlaneseq
    %v1480 = vshrl.u32 %v1479, 7
    %v1481 = vsub.s32 1, %v1480
    %v1482 = vrot.slane %v407, %v1481
    %v1483 = vlaneseq
    %v1484 = vshrl.u32 %v1483, 7
    %v1485 = vsub.s32 1, %v1484
    %v1486 = vrot.slane %v406, %v1485
    %v1487 = vlaneseq
    %v1488 = vshrl.u32 %v1487, 7
    %v1489 = vsub.s32 1, %v1488
    %v1490 = vrot.slane %v408, %v1489
    %v1491 = vlaneseq
    %v1492 = vshrl.u32 %v1491, 7
    %v1493 = vsub.s32 1, %v1492
    %v1494 = vrot.slane %v416, %v1493
    %v1495 = vlaneseq
    %v1496 = vshrl.u32 %v1495, 7
    %v1497 = vsub.s32 1, %v1496
    %v1498 = vrot.slane %v424, %v1497
    %v1499 = vlaneseq
    %v1500 = vshrl.u32 %v1499, 7
    %v1501 = vsub.s32 1, %v1500
    %v1502 = vrot.slane %v423, %v1501
    %v1503 = vlaneseq
    %v1504 = vshrl.u32 %v1503, 7
    %v1505 = vsub.s32 1, %v1504
    %v1506 = vrot.slane %v425, %v1505
    %v1507 = vlaneseq
    %v1508 = vshrl.u32 %v1507, 7
    %v1509 = vsub.s32 1, %v1508
    %v1510 = vrot.slane %v433, %v1509
    %v1511 = vlaneseq
    %v1512 = vshrl.u32 %v1511, 7
    %v1513 = vsub.s32 1, %v1512
    %v1514 = vrot.slane %v441, %v1513
    %v1515 = vlaneseq
    %v1516 = vshrl.u32 %v1515, 7
    %v1517 = vsub.s32 1, %v1516
    %v1518 = vrot.slane %v440, %v1517
    %v1519 = vlaneseq
    %v1520 = vshrl.u32 %v1519, 7
    %v1521 = vsub.s32 1, %v1520
    %v1522 = vrot.slane %v450, %v1521
    %v1523 = vlaneseq
    %v1524 = vshrl.u32 %v1523, 7
    %v1525 = vsub.s32 1, %v1524
    %v1526 = vrot.slane %v458, %v1525
    %v1527 = vlaneseq
    %v1528 = vshrl.u32 %v1527, 7
    %v1529 = vsub.s32 1, %v1528
    %v1530 = vrot.slane %v457, %v1529
    %v1531 = vlaneseq
    %v1532 = vshrl.u32 %v1531, 7
    %v1533 = vsub.s32 1, %v1532
    %v1534 = vrot.slane %v459, %v1533
    %v1535 = vlaneseq
    %v1536 = vshrl.u32 %v1535, 7
    %v1537 = vsub.s32 1, %v1536
    %v1538 = vrot.slane %v467, %v1537
    %v1539 = vlaneseq
    %v1540 = vshrl.u32 %v1539, 7
    %v1541 = vsub.s32 1, %v1540
    %v1542 = vrot.slane %v475, %v1541
    %v1543 = vlaneseq
    %v1544 = vshrl.u32 %v1543, 7
    %v1545 = vsub.s32 1, %v1544
    %v1546 = vrot.slane %v474, %v1545
    %v1547 = vlaneseq
    %v1548 = vshrl.u32 %v1547, 7
    %v1549 = vsub.s32 1, %v1548
    %v1550 = vrot.slane %v476, %v1549
    %v1551 = vlaneseq
    %v1552 = vshrl.u32 %v1551, 7
    %v1553 = vsub.s32 1, %v1552
    %v1554 = vrot.slane %v484, %v1553
    %v1555 = vlaneseq
    %v1556 = vshrl.u32 %v1555, 7
    %v1557 = vsub.s32 1, %v1556
    %v1558 = vrot.slane %v492, %v1557
    %v1559 = vlaneseq
    %v1560 = vshrl.u32 %v1559, 7
    %v1561 = vsub.s32 1, %v1560
    %v1562 = vrot.slane %v491, %v1561
    %v1563 = vlaneseq
    %v1564 = vshrl.u32 %v1563, 7
    %v1565 = vsub.s32 1, %v1564
    %v1566 = vrot.slane %v493, %v1565
    %v1567 = vlaneseq
    %v1568 = vshrl.u32 %v1567, 7
    %v1569 = vsub.s32 1, %v1568
    %v1570 = vrot.slane %v501, %v1569
    %v1571 = vlaneseq
    %v1572 = vshrl.u32 %v1571, 7
    %v1573 = vsub.s32 1, %v1572
    %v1574 = vrot.slane %v509, %v1573
    %v1575 = vlaneseq
    %v1576 = vshrl.u32 %v1575, 7
    %v1577 = vsub.s32 1, %v1576
    %v1578 = vrot.slane %v508, %v1577
    %v1579 = vlaneseq
    %v1580 = vshrl.u32 %v1579, 7
    %v1581 = vsub.s32 1, %v1580
    %v1582 = vrot.slane %v510, %v1581
    %v1583 = vlaneseq
    %v1584 = vshrl.u32 %v1583, 7
    %v1585 = vsub.s32 1, %v1584
    %v1586 = vrot.slane %v518, %v1585
    %v1587 = vlaneseq
    %v1588 = vshrl.u32 %v1587, 7
    %v1589 = vsub.s32 1, %v1588
    %v1590 = vrot.slane %v526, %v1589
    %v1591 = vlaneseq
    %v1592 = vshrl.u32 %v1591, 7
    %v1593 = vsub.s32 1, %v1592
    %v1594 = vrot.slane %v525, %v1593
    %v1595 = vlaneseq
    %v1596 = vshrl.u32 %v1595, 7
    %v1597 = vsub.s32 1, %v1596
    %v1598 = vrot.slane %v527, %v1597
    %v1599 = vlaneseq
    %v1600 = vshrl.u32 %v1599, 7
    %v1601 = vsub.s32 1, %v1600
    %v1602 = vrot.slane %v535, %v1601
    %v1603 = vlaneseq
    %v1604 = vshrl.u32 %v1603, 7
    %v1605 = vsub.s32 1, %v1604
    %v1606 = vrot.slane %v543, %v1605
    %v1607 = vlaneseq
    %v1608 = vshrl.u32 %v1607, 7
    %v1609 = vsub.s32 1, %v1608
    %v1610 = vrot.slane %v542, %v1609
    %v1611 = vlaneseq
    %v1612 = vshrl.u32 %v1611, 7
    %v1613 = vsub.s32 1, %v1612
    %v1614 = vrot.slane %v544, %v1613
    %v1615 = vlaneseq
    %v1616 = vshrl.u32 %v1615, 7
    %v1617 = vsub.s32 1, %v1616
    %v1618 = vrot.slane %v552, %v1617
    %v1619 = vlaneseq
    %v1620 = vshrl.u32 %v1619, 7
    %v1621 = vsub.s32 1, %v1620
    %v1622 = vrot.slane %v560, %v1621
    %v1623 = vlaneseq
    %v1624 = vshrl.u32 %v1623, 7
    %v1625 = vsub.s32 1, %v1624
    %v1626 = vrot.slane %v559, %v1625
    %v1627 = vlaneseq
    %v1628 = vshrl.u32 %v1627, 7
    %v1629 = vsub.s32 1, %v1628
    %v1630 = vrot.slane %v561, %v1629
    %v1631 = vlaneseq
    %v1632 = vshrl.u32 %v1631, 7
    %v1633 = vsub.s32 1, %v1632
    %v1634 = vrot.slane %v569, %v1633
    %v1635 = vlaneseq
    %v1636 = vshrl.u32 %v1635, 7
    %v1637 = vsub.s32 1, %v1636
    %v1638 = vrot.slane %v577, %v1637
    %v1639 = vlaneseq
    %v1640 = vshrl.u32 %v1639, 7
    %v1641 = vsub.s32 1, %v1640
    %v1642 = vrot.slane %v576, %v1641
    %v1643 = vlaneseq
    %v1644 = vshrl.u32 %v1643, 7
    %v1645 = vsub.s32 1, %v1644
    %v1646 = vrot.slane %v586, %v1645
    %v1647 = vlaneseq
    %v1648 = vshrl.u32 %v1647, 7
    %v1649 = vsub.s32 1, %v1648
    %v1650 = vrot.slane %v594, %v1649
    %v1651 = vlaneseq
    %v1652 = vshrl.u32 %v1651, 7
    %v1653 = vsub.s32 1, %v1652
    %v1654 = vrot.slane %v593, %v1653
    %v1655 = vlaneseq
    %v1656 = vshrl.u32 %v1655, 7
    %v1657 = vsub.s32 1, %v1656
    %v1658 = vrot.slane %v595, %v1657
    %v1659 = vlaneseq
    %v1660 = vshrl.u32 %v1659, 7
    %v1661 = vsub.s32 1, %v1660
    %v1662 = vrot.slane %v603, %v1661
    %v1663 = vlaneseq
    %v1664 = vshrl.u32 %v1663, 7
    %v1665 = vsub.s32 1, %v1664
    %v1666 = vrot.slane %v611, %v1665
    %v1667 = vlaneseq
    %v1668 = vshrl.u32 %v1667, 7
    %v1669 = vsub.s32 1, %v1668
    %v1670 = vrot.slane %v610, %v1669
    %v1671 = vlaneseq
    %v1672 = vshrl.u32 %v1671, 7
    %v1673 = vsub.s32 1, %v1672
    %v1674 = vrot.slane %v612, %v1673
    %v1675 = vlaneseq
    %v1676 = vshrl.u32 %v1675, 7
    %v1677 = vsub.s32 1, %v1676
    %v1678 = vrot.slane %v620, %v1677
    %v1679 = vlaneseq
    %v1680 = vshrl.u32 %v1679, 7
    %v1681 = vsub.s32 1, %v1680
    %v1682 = vrot.slane %v628, %v1681
    %v1683 = vlaneseq
    %v1684 = vshrl.u32 %v1683, 7
    %v1685 = vsub.s32 1, %v1684
    %v1686 = vrot.slane %v627, %v1685
    %v1687 = vlaneseq
    %v1688 = vshrl.u32 %v1687, 7
    %v1689 = vsub.s32 1, %v1688
    %v1690 = vrot.slane %v629, %v1689
    %v1691 = vlaneseq
    %v1692 = vshrl.u32 %v1691, 7
    %v1693 = vsub.s32 1, %v1692
    %v1694 = vrot.slane %v637, %v1693
    %v1695 = vlaneseq
    %v1696 = vshrl.u32 %v1695, 7
    %v1697 = vsub.s32 1, %v1696
    %v1698 = vrot.slane %v645, %v1697
    %v1699 = vlaneseq
    %v1700 = vshrl.u32 %v1699, 7
    %v1701 = vsub.s32 1, %v1700
    %v1702 = vrot.slane %v644, %v1701
    %v1703 = vlaneseq
    %v1704 = vshrl.u32 %v1703, 7
    %v1705 = vsub.s32 1, %v1704
    %v1706 = vrot.slane %v646, %v1705
    %v1707 = vlaneseq
    %v1708 = vshrl.u32 %v1707, 7
    %v1709 = vsub.s32 1, %v1708
    %v1710 = vrot.slane %v654, %v1709
    %v1711 = vlaneseq
    %v1712 = vshrl.u32 %v1711, 7
    %v1713 = vsub.s32 1, %v1712
    %v1714 = vrot.slane %v662, %v1713
    %v1715 = vlaneseq
    %v1716 = vshrl.u32 %v1715, 7
    %v1717 = vsub.s32 1, %v1716
    %v1718 = vrot.slane %v661, %v1717
    %v1719 = vlaneseq
    %v1720 = vshrl.u32 %v1719, 7
    %v1721 = vsub.s32 1, %v1720
    %v1722 = vrot.slane %v663, %v1721
    %v1723 = vlaneseq
    %v1724 = vshrl.u32 %v1723, 7
    %v1725 = vsub.s32 1, %v1724
    %v1726 = vrot.slane %v671, %v1725
    %v1727 = vlaneseq
    %v1728 = vshrl.u32 %v1727, 7
    %v1729 = vsub.s32 1, %v1728
    %v1730 = vrot.slane %v679, %v1729
    %v1731 = vlaneseq
    %v1732 = vshrl.u32 %v1731, 7
    %v1733 = vsub.s32 1, %v1732
    %v1734 = vrot.slane %v678, %v1733
    %v1735 = vlaneseq
    %v1736 = vshrl.u32 %v1735, 7
    %v1737 = vsub.s32 1, %v1736
    %v1738 = vrot.slane %v680, %v1737
    %v1739 = vlaneseq
    %v1740 = vshrl.u32 %v1739, 7
    %v1741 = vsub.s32 1, %v1740
    %v1742 = vrot.slane %v688, %v1741
    %v1743 = vlaneseq
    %v1744 = vshrl.u32 %v1743, 7
    %v1745 = vsub.s32 1, %v1744
    %v1746 = vrot.slane %v696, %v1745
    %v1747 = vlaneseq
    %v1748 = vshrl.u32 %v1747, 7
    %v1749 = vsub.s32 1, %v1748
    %v1750 = vrot.slane %v695, %v1749
    %v1751 = vlaneseq
    %v1752 = vshrl.u32 %v1751, 7
    %v1753 = vsub.s32 1, %v1752
    %v1754 = vrot.slane %v697, %v1753
    %v1755 = vlaneseq
    %v1756 = vshrl.u32 %v1755, 7
    %v1757 = vsub.s32 1, %v1756
    %v1758 = vrot.slane %v705, %v1757
    %v1759 = vlaneseq
    %v1760 = vshrl.u32 %v1759, 7
    %v1761 = vsub.s32 1, %v1760
    %v1762 = vrot.slane %v713, %v1761
    %v1763 = vlaneseq
    %v1764 = vshrl.u32 %v1763, 7
    %v1765 = vsub.s32 1, %v1764
    %v1766 = vrot.slane %v712, %v1765
    %v1767 = vlaneseq
    %v1768 = vshrl.u32 %v1767, 7
    %v1769 = vsub.s32 1, %v1768
    %v1770 = vrot.slane %v722, %v1769
    %v1771 = vlaneseq
    %v1772 = vshrl.u32 %v1771, 7
    %v1773 = vsub.s32 1, %v1772
    %v1774 = vrot.slane %v730, %v1773
    %v1775 = vlaneseq
    %v1776 = vshrl.u32 %v1775, 7
    %v1777 = vsub.s32 1, %v1776
    %v1778 = vrot.slane %v729, %v1777
    %v1779 = vlaneseq
    %v1780 = vshrl.u32 %v1779, 7
    %v1781 = vsub.s32 1, %v1780
    %v1782 = vrot.slane %v731, %v1781
    %v1783 = vlaneseq
    %v1784 = vshrl.u32 %v1783, 7
    %v1785 = vsub.s32 1, %v1784
    %v1786 = vrot.slane %v739, %v1785
    %v1787 = vlaneseq
    %v1788 = vshrl.u32 %v1787, 7
    %v1789 = vsub.s32 1, %v1788
    %v1790 = vrot.slane %v747, %v1789
    %v1791 = vlaneseq
    %v1792 = vshrl.u32 %v1791, 7
    %v1793 = vsub.s32 1, %v1792
    %v1794 = vrot.slane %v746, %v1793
    %v1795 = vlaneseq
    %v1796 = vshrl.u32 %v1795, 7
    %v1797 = vsub.s32 1, %v1796
    %v1798 = vrot.slane %v748, %v1797
    %v1799 = vlaneseq
    %v1800 = vshrl.u32 %v1799, 7
    %v1801 = vsub.s32 1, %v1800
    %v1802 = vrot.slane %v756, %v1801
    %v1803 = vlaneseq
    %v1804 = vshrl.u32 %v1803, 7
    %v1805 = vsub.s32 1, %v1804
    %v1806 = vrot.slane %v764, %v1805
    %v1807 = vlaneseq
    %v1808 = vshrl.u32 %v1807, 7
    %v1809 = vsub.s32 1, %v1808
    %v1810 = vrot.slane %v763, %v1809
    %v1811 = vlaneseq
    %v1812 = vshrl.u32 %v1811, 7
    %v1813 = vsub.s32 1, %v1812
    %v1814 = vrot.slane %v765, %v1813
    %v1815 = vlaneseq
    %v1816 = vshrl.u32 %v1815, 7
    %v1817 = vsub.s32 1, %v1816
    %v1818 = vrot.slane %v773, %v1817
    %v1819 = vlaneseq
    %v1820 = vshrl.u32 %v1819, 7
    %v1821 = vsub.s32 1, %v1820
    %v1822 = vrot.slane %v781, %v1821
    %v1823 = vlaneseq
    %v1824 = vshrl.u32 %v1823, 7
    %v1825 = vsub.s32 1, %v1824
    %v1826 = vrot.slane %v780, %v1825
    %v1827 = vlaneseq
    %v1828 = vshrl.u32 %v1827, 7
    %v1829 = vsub.s32 1, %v1828
    %v1830 = vrot.slane %v782, %v1829
    %v1831 = vlaneseq
    %v1832 = vshrl.u32 %v1831, 7
    %v1833 = vsub.s32 1, %v1832
    %v1834 = vrot.slane %v790, %v1833
    %v1835 = vlaneseq
    %v1836 = vshrl.u32 %v1835, 7
    %v1837 = vsub.s32 1, %v1836
    %v1838 = vrot.slane %v798, %v1837
    %v1839 = vlaneseq
    %v1840 = vshrl.u32 %v1839, 7
    %v1841 = vsub.s32 1, %v1840
    %v1842 = vrot.slane %v797, %v1841
    %v1843 = vlaneseq
    %v1844 = vshrl.u32 %v1843, 7
    %v1845 = vsub.s32 1, %v1844
    %v1846 = vrot.slane %v799, %v1845
    %v1847 = vlaneseq
    %v1848 = vshrl.u32 %v1847, 7
    %v1849 = vsub.s32 1, %v1848
    %v1850 = vrot.slane %v807, %v1849
    %v1851 = vlaneseq
    %v1852 = vshrl.u32 %v1851, 7
    %v1853 = vsub.s32 1, %v1852
    %v1854 = vrot.slane %v815, %v1853
    %v1855 = vlaneseq
    %v1856 = vshrl.u32 %v1855, 7
    %v1857 = vsub.s32 1, %v1856
    %v1858 = vrot.slane %v814, %v1857
    %v1859 = vlaneseq
    %v1860 = vshrl.u32 %v1859, 7
    %v1861 = vsub.s32 1, %v1860
    %v1862 = vrot.slane %v816, %v1861
    %v1863 = vlaneseq
    %v1864 = vshrl.u32 %v1863, 7
    %v1865 = vsub.s32 1, %v1864
    %v1866 = vrot.slane %v824, %v1865
    %v1867 = vlaneseq
    %v1868 = vshrl.u32 %v1867, 7
    %v1869 = vsub.s32 1, %v1868
    %v1870 = vrot.slane %v832, %v1869
    %v1871 = vlaneseq
    %v1872 = vshrl.u32 %v1871, 7
    %v1873 = vsub.s32 1, %v1872
    %v1874 = vrot.slane %v831, %v1873
    %v1875 = vlaneseq
    %v1876 = vshrl.u32 %v1875, 7
    %v1877 = vsub.s32 1, %v1876
    %v1878 = vrot.slane %v833, %v1877
    %v1879 = vlaneseq
    %v1880 = vshrl.u32 %v1879, 7
    %v1881 = vsub.s32 1, %v1880
    %v1882 = vrot.slane %v841, %v1881
    %v1883 = vlaneseq
    %v1884 = vshrl.u32 %v1883, 7
    %v1885 = vsub.s32 1, %v1884
    %v1886 = vrot.slane %v849, %v1885
    %v1887 = vlaneseq
    %v1888 = vshrl.u32 %v1887, 7
    %v1889 = vsub.s32 1, %v1888
    %v1890 = vrot.slane %v848, %v1889
    %v1891 = vlaneseq
    %v1892 = vshrl.u32 %v1891, 7
    %v1893 = vsub.s32 1, %v1892
    %v1894 = vrot.slane %v858, %v1893
    %v1895 = vlaneseq
    %v1896 = vshrl.u32 %v1895, 7
    %v1897 = vsub.s32 1, %v1896
    %v1898 = vrot.slane %v866, %v1897
    %v1899 = vlaneseq
    %v1900 = vshrl.u32 %v1899, 7
    %v1901 = vsub.s32 1, %v1900
    %v1902 = vrot.slane %v865, %v1901
    %v1903 = vlaneseq
    %v1904 = vshrl.u32 %v1903, 7
    %v1905 = vsub.s32 1, %v1904
    %v1906 = vrot.slane %v867, %v1905
    %v1907 = vlaneseq
    %v1908 = vshrl.u32 %v1907, 7
    %v1909 = vsub.s32 1, %v1908
    %v1910 = vrot.slane %v875, %v1909
    %v1911 = vlaneseq
    %v1912 = vshrl.u32 %v1911, 7
    %v1913 = vsub.s32 1, %v1912
    %v1914 = vrot.slane %v883, %v1913
    %v1915 = vlaneseq
    %v1916 = vshrl.u32 %v1915, 7
    %v1917 = vsub.s32 1, %v1916
    %v1918 = vrot.slane %v882, %v1917
    %v1919 = vlaneseq
    %v1920 = vshrl.u32 %v1919, 7
    %v1921 = vsub.s32 1, %v1920
    %v1922 = vrot.slane %v884, %v1921
    %v1923 = vlaneseq
    %v1924 = vshrl.u32 %v1923, 7
    %v1925 = vsub.s32 1, %v1924
    %v1926 = vrot.slane %v892, %v1925
    %v1927 = vlaneseq
    %v1928 = vshrl.u32 %v1927, 7
    %v1929 = vsub.s32 1, %v1928
    %v1930 = vrot.slane %v900, %v1929
    %v1931 = vlaneseq
    %v1932 = vshrl.u32 %v1931, 7
    %v1933 = vsub.s32 1, %v1932
    %v1934 = vrot.slane %v899, %v1933
    %v1935 = vlaneseq
    %v1936 = vshrl.u32 %v1935, 7
    %v1937 = vsub.s32 1, %v1936
    %v1938 = vrot.slane %v901, %v1937
    %v1939 = vlaneseq
    %v1940 = vshrl.u32 %v1939, 7
    %v1941 = vsub.s32 1, %v1940
    %v1942 = vrot.slane %v909, %v1941
    %v1943 = vlaneseq
    %v1944 = vshrl.u32 %v1943, 7
    %v1945 = vsub.s32 1, %v1944
    %v1946 = vrot.slane %v917, %v1945
    %v1947 = vlaneseq
    %v1948 = vshrl.u32 %v1947, 7
    %v1949 = vsub.s32 1, %v1948
    %v1950 = vrot.slane %v916, %v1949
    %v1951 = vlaneseq
    %v1952 = vshrl.u32 %v1951, 7
    %v1953 = vsub.s32 1, %v1952
    %v1954 = vrot.slane %v918, %v1953
    %v1955 = vlaneseq
    %v1956 = vshrl.u32 %v1955, 7
    %v1957 = vsub.s32 1, %v1956
    %v1958 = vrot.slane %v926, %v1957
    %v1959 = vlaneseq
    %v1960 = vshrl.u32 %v1959, 7
    %v1961 = vsub.s32 1, %v1960
    %v1962 = vrot.slane %v934, %v1961
    %v1963 = vlaneseq
    %v1964 = vshrl.u32 %v1963, 7
    %v1965 = vsub.s32 1, %v1964
    %v1966 = vrot.slane %v933, %v1965
    %v1967 = vlaneseq
    %v1968 = vshrl.u32 %v1967, 7
    %v1969 = vsub.s32 1, %v1968
    %v1970 = vrot.slane %v935, %v1969
    %v1971 = vlaneseq
    %v1972 = vshrl.u32 %v1971, 7
    %v1973 = vsub.s32 1, %v1972
    %v1974 = vrot.slane %v943, %v1973
    %v1975 = vlaneseq
    %v1976 = vshrl.u32 %v1975, 7
    %v1977 = vsub.s32 1, %v1976
    %v1978 = vrot.slane %v951, %v1977
    %v1979 = vlaneseq
    %v1980 = vshrl.u32 %v1979, 7
    %v1981 = vsub.s32 1, %v1980
    %v1982 = vrot.slane %v950, %v1981
    %v1983 = vlaneseq
    %v1984 = vshrl.u32 %v1983, 7
    %v1985 = vsub.s32 1, %v1984
    %v1986 = vrot.slane %v952, %v1985
    %v1987 = vlaneseq
    %v1988 = vshrl.u32 %v1987, 7
    %v1989 = vsub.s32 1, %v1988
    %v1990 = vrot.slane %v960, %v1989
    %v1991 = vlaneseq
    %v1992 = vshrl.u32 %v1991, 7
    %v1993 = vsub.s32 1, %v1992
    %v1994 = vrot.slane %v968, %v1993
    %v1995 = vlaneseq
    %v1996 = vshrl.u32 %v1995, 7
    %v1997 = vsub.s32 1, %v1996
    %v1998 = vrot.slane %v967, %v1997
    %v1999 = vlaneseq
    %v2000 = vshrl.u32 %v1999, 7
    %v2001 = vsub.s32 1, %v2000
    %v2002 = vrot.slane %v969, %v2001
    %v2003 = vlaneseq
    %v2004 = vshrl.u32 %v2003, 7
    %v2005 = vsub.s32 1, %v2004
    %v2006 = vrot.slane %v977, %v2005
    %v2007 = vlaneseq
    %v2008 = vshrl.u32 %v2007, 7
    %v2009 = vsub.s32 1, %v2008
    %v2010 = vrot.slane %v985, %v2009
    %v2011 = vlaneseq
    %v2012 = vshrl.u32 %v2011, 7
    %v2013 = vsub.s32 1, %v2012
    %v2014 = vrot.slane %v984, %v2013
    %v2015 = vlaneseq
    %v2016 = vshrl.u32 %v2015, 7
    %v2017 = vsub.s32 1, %v2016
    %v2018 = vrot.slane %v994, %v2017
    %v2019 = vlaneseq
    %v2020 = vshrl.u32 %v2019, 7
    %v2021 = vsub.s32 1, %v2020
    %v2022 = vrot.slane %v1002, %v2021
    %v2023 = vlaneseq
    %v2024 = vshrl.u32 %v2023, 7
    %v2025 = vsub.s32 1, %v2024
    %v2026 = vrot.slane %v1001, %v2025
    %v2027 = vlaneseq
    %v2028 = vshrl.u32 %v2027, 7
    %v2029 = vsub.s32 1, %v2028
    %v2030 = vrot.slane %v1003, %v2029
    %v2031 = vlaneseq
    %v2032 = vshrl.u32 %v2031, 7
    %v2033 = vsub.s32 1, %v2032
    %v2034 = vrot.slane %v1011, %v2033
    %v2035 = vlaneseq
    %v2036 = vshrl.u32 %v2035, 7
    %v2037 = vsub.s32 1, %v2036
    %v2038 = vrot.slane %v1019, %v2037
    %v2039 = vlaneseq
    %v2040 = vshrl.u32 %v2039, 7
    %v2041 = vsub.s32 1, %v2040
    %v2042 = vrot.slane %v1018, %v2041
    %v2043 = vlaneseq
    %v2044 = vshrl.u32 %v2043, 7
    %v2045 = vsub.s32 1, %v2044
    %v2046 = vrot.slane %v1020, %v2045
    %v2047 = vlaneseq
    %v2048 = vshrl.u32 %v2047, 7
    %v2049 = vsub.s32 1, %v2048
    %v2050 = vrot.slane %v1028, %v2049
    %v2051 = vlaneseq
    %v2052 = vshrl.u32 %v2051, 7
    %v2053 = vsub.s32 1, %v2052
    %v2054 = vrot.slane %v1036, %v2053
    %v2055 = vlaneseq
    %v2056 = vshrl.u32 %v2055, 7
    %v2057 = vsub.s32 1, %v2056
    %v2058 = vrot.slane %v1035, %v2057
    %v2059 = vlaneseq
    %v2060 = vshrl.u32 %v2059, 7
    %v2061 = vsub.s32 1, %v2060
    %v2062 = vrot.slane %v1037, %v2061
    %v2063 = vlaneseq
    %v2064 = vshrl.u32 %v2063, 7
    %v2065 = vsub.s32 1, %v2064
    %v2066 = vrot.slane %v1045, %v2065
    %v2067 = vlaneseq
    %v2068 = vshrl.u32 %v2067, 7
    %v2069 = vsub.s32 1, %v2068
    %v2070 = vrot.slane %v1053, %v2069
    %v2071 = vlaneseq
    %v2072 = vshrl.u32 %v2071, 7
    %v2073 = vsub.s32 1, %v2072
    %v2074 = vrot.slane %v1052, %v2073
    %v2075 = vlaneseq
    %v2076 = vshrl.u32 %v2075, 7
    %v2077 = vsub.s32 1, %v2076
    %v2078 = vrot.slane %v1054, %v2077
    %v2079 = vlaneseq
    %v2080 = vshrl.u32 %v2079, 7
    %v2081 = vsub.s32 1, %v2080
    %v2082 = vrot.slane %v1062, %v2081
    %v2083 = vlaneseq
    %v2084 = vshrl.u32 %v2083, 7
    %v2085 = vsub.s32 1, %v2084
    %v2086 = vrot.slane %v1070, %v2085
    %v2087 = vlaneseq
    %v2088 = vshrl.u32 %v2087, 7
    %v2089 = vsub.s32 1, %v2088
    %v2090 = vrot.slane %v1069, %v2089
    %v2091 = vlaneseq
    %v2092 = vshrl.u32 %v2091, 7
    %v2093 = vsub.s32 1, %v2092
    %v2094 = vrot.slane %v1071, %v2093
    %v2095 = vlaneseq
    %v2096 = vshrl.u32 %v2095, 7
    %v2097 = vsub.s32 1, %v2096
    %v2098 = vrot.slane %v1079, %v2097
    %v2099 = vlaneseq
    %v2100 = vshrl.u32 %v2099, 7
    %v2101 = vsub.s32 1, %v2100
    %v2102 = vrot.slane %v1087, %v2101
    %v2103 = vlaneseq
    %v2104 = vshrl.u32 %v2103, 7
    %v2105 = vsub.s32 1, %v2104
    %v2106 = vrot.slane %v1086, %v2105
    %v2107 = vlaneseq
    %v2108 = vshrl.u32 %v2107, 7
    %v2109 = vsub.s32 1, %v2108
    %v2110 = vrot.slane %v1088, %v2109
    %v2111 = vlaneseq
    %v2112 = vshrl.u32 %v2111, 7
    %v2113 = vsub.s32 1, %v2112
    %v2114 = vrot.slane %v1096, %v2113
    %v2115 = vlaneseq
    %v2116 = vshrl.u32 %v2115, 7
    %v2117 = vsub.s32 1, %v2116
    %v2118 = vrot.slane %v1104, %v2117
    %v2119 = vlaneseq
    %v2120 = vshrl.u32 %v2119, 7
    %v2121 = vsub.s32 1, %v2120
    %v2122 = vrot.slane %v1103, %v2121
    %v2123 = vlaneseq
    %v2124 = vshrl.u32 %v2123, 7
    %v2125 = vsub.s32 1, %v2124
    %v2126 = vrot.slane %v1105, %v2125
    %v2127 = vlaneseq
    %v2128 = vshrl.u32 %v2127, 7
    %v2129 = vsub.s32 1, %v2128
    %v2130 = vrot.slane %v1113, %v2129
    %v2131 = vlaneseq
    %v2132 = vshrl.u32 %v2131, 7
    %v2133 = vsub.s32 1, %v2132
    %v2134 = vrot.slane %v1121, %v2133
    %v2135 = vlaneseq
    %v2136 = vshrl.u32 %v2135, 7
    %v2137 = vsub.s32 1, %v2136
    %v2138 = vrot.slane %v1120, %v2137
    %v2139 = vlaneseq
    %v2140 = vshrl.u32 %v2139, 7
    %v2141 = vsub.s32 1, %v2140
    %v2142 = vrot.slane %v1130, %v2141
    %v2143 = vlaneseq
    %v2144 = vshrl.u32 %v2143, 7
    %v2145 = vsub.s32 1, %v2144
    %v2146 = vrot.slane %v1138, %v2145
    %v2147 = vlaneseq
    %v2148 = vshrl.u32 %v2147, 7
    %v2149 = vsub.s32 1, %v2148
    %v2150 = vrot.slane %v1137, %v2149
    %v2151 = vlaneseq
    %v2152 = vshrl.u32 %v2151, 7
    %v2153 = vsub.s32 1, %v2152
    %v2154 = vrot.slane %v1139, %v2153
    %v2155 = vlaneseq
    %v2156 = vshrl.u32 %v2155, 7
    %v2157 = vsub.s32 1, %v2156
    %v2158 = vrot.slane %v1147, %v2157
    %v2159 = vlaneseq
    %v2160 = vshrl.u32 %v2159, 7
    %v2161 = vsub.s32 1, %v2160
    %v2162 = vrot.slane %v1155, %v2161
    %v2163 = vlaneseq
    %v2164 = vshrl.u32 %v2163, 7
    %v2165 = vsub.s32 1, %v2164
    %v2166 = vrot.slane %v1154, %v2165
    %v2167 = vlaneseq
    %v2168 = vshrl.u32 %v2167, 7
    %v2169 = vsub.s32 1, %v2168
    %v2170 = vrot.slane %v1156, %v2169
    %v2171 = vlaneseq
    %v2172 = vshrl.u32 %v2171, 7
    %v2173 = vsub.s32 1, %v2172
    %v2174 = vrot.slane %v1164, %v2173
    %v2175 = vlaneseq
    %v2176 = vshrl.u32 %v2175, 7
    %v2177 = vsub.s32 1, %v2176
    %v2178 = vrot.slane %v1172, %v2177
    %v2179 = vlaneseq
    %v2180 = vshrl.u32 %v2179, 7
    %v2181 = vsub.s32 1, %v2180
    %v2182 = vrot.slane %v1171, %v2181
    %v2183 = vlaneseq
    %v2184 = vshrl.u32 %v2183, 7
    %v2185 = vsub.s32 1, %v2184
    %v2186 = vrot.slane %v1173, %v2185
    %v2187 = vlaneseq
    %v2188 = vshrl.u32 %v2187, 7
    %v2189 = vsub.s32 1, %v2188
    %v2190 = vrot.slane %v1181, %v2189
    %v2191 = vlaneseq
    %v2192 = vshrl.u32 %v2191, 7
    %v2193 = vsub.s32 1, %v2192
    %v2194 = vrot.slane %v1189, %v2193
    %v2195 = vlaneseq
    %v2196 = vshrl.u32 %v2195, 7
    %v2197 = vsub.s32 1, %v2196
    %v2198 = vrot.slane %v1188, %v2197
    %v2199 = vlaneseq
    %v2200 = vshrl.u32 %v2199, 7
    %v2201 = vsub.s32 1, %v2200
    %v2202 = vrot.slane %v1190, %v2201
    %v2203 = vlaneseq
    %v2204 = vshrl.u32 %v2203, 7
    %v2205 = vsub.s32 1, %v2204
    %v2206 = vrot.slane %v1198, %v2205
    %v2207 = vlaneseq
    %v2208 = vshrl.u32 %v2207, 7
    %v2209 = vsub.s32 1, %v2208
    %v2210 = vrot.slane %v1206, %v2209
    %v2211 = vlaneseq
    %v2212 = vshrl.u32 %v2211, 7
    %v2213 = vsub.s32 1, %v2212
    %v2214 = vrot.slane %v1205, %v2213
    %v2215 = vlaneseq
    %v2216 = vshrl.u32 %v2215, 7
    %v2217 = vsub.s32 1, %v2216
    %v2218 = vrot.slane %v1207, %v2217
    %v2219 = vlaneseq
    %v2220 = vshrl.u32 %v2219, 7
    %v2221 = vsub.s32 1, %v2220
    %v2222 = vrot.slane %v1215, %v2221
    %v2223 = vlaneseq
    %v2224 = vshrl.u32 %v2223, 7
    %v2225 = vsub.s32 1, %v2224
    %v2226 = vrot.slane %v1223, %v2225
    %v2227 = vlaneseq
    %v2228 = vshrl.u32 %v2227, 7
    %v2229 = vsub.s32 1, %v2228
    %v2230 = vrot.slane %v1222, %v2229
    %v2231 = vlaneseq
    %v2232 = vshrl.u32 %v2231, 7
    %v2233 = vsub.s32 1, %v2232
    %v2234 = vrot.slane %v1224, %v2233
    %v2235 = vlaneseq
    %v2236 = vshrl.u32 %v2235, 7
    %v2237 = vsub.s32 1, %v2236
    %v2238 = vrot.slane %v1232, %v2237
    %v2239 = vlaneseq
    %v2240 = vshrl.u32 %v2239, 7
    %v2241 = vsub.s32 1, %v2240
    %v2242 = vrot.slane %v1240, %v2241
    %v2243 = vlaneseq
    %v2244 = vshrl.u32 %v2243, 7
    %v2245 = vsub.s32 1, %v2244
    %v2246 = vrot.slane %v1239, %v2245
    %v2247 = vlaneseq
    %v2248 = vshrl.u32 %v2247, 7
    %v2249 = vsub.s32 1, %v2248
    %v2250 = vrot.slane %v1241, %v2249
    %v2251 = vlaneseq
    %v2252 = vshrl.u32 %v2251, 7
    %v2253 = vsub.s32 1, %v2252
    %v2254 = vrot.slane %v1249, %v2253
    %v2255 = vlaneseq
    %v2256 = vshrl.u32 %v2255, 7
    %v2257 = vsub.s32 1, %v2256
    %v2258 = vrot.slane %v1257, %v2257
    %v2259 = vlaneseq
    %v2260 = vshrl.u32 %v2259, 7
    %v2261 = vsub.s32 1, %v2260
    %v2262 = vrot.slane %v1256, %v2261
    %v2263 = vlaneseq
    %v2264 = vshrl.u32 %v2263, 7
    %v2265 = vsub.s32 1, %v2264
    %v2266 = vrot.slane %v1266, %v2265
    %v2267 = vlaneseq
    %v2268 = vshrl.u32 %v2267, 7
    %v2269 = vsub.s32 1, %v2268
    %v2270 = vrot.slane %v1274, %v2269
    %v2271 = vlaneseq
    %v2272 = vshrl.u32 %v2271, 7
    %v2273 = vsub.s32 1, %v2272
    %v2274 = vrot.slane %v1273, %v2273
    %v2275 = vlaneseq
    %v2276 = vshrl.u32 %v2275, 7
    %v2277 = vsub.s32 1, %v2276
    %v2278 = vrot.slane %v1275, %v2277
    %v2279 = vlaneseq
    %v2280 = vshrl.u32 %v2279, 7
    %v2281 = vsub.s32 1, %v2280
    %v2282 = vrot.slane %v1283, %v2281
    %v2283 = vlaneseq
    %v2284 = vshrl.u32 %v2283, 7
    %v2285 = vsub.s32 1, %v2284
    %v2286 = vrot.slane %v1291, %v2285
    %v2287 = vlaneseq
    %v2288 = vshrl.u32 %v2287, 7
    %v2289 = vsub.s32 1, %v2288
    %v2290 = vrot.slane %v1290, %v2289
    %v2291 = vlaneseq
    %v2292 = vshrl.u32 %v2291, 7
    %v2293 = vsub.s32 1, %v2292
    %v2294 = vrot.slane %v1292, %v2293
    %v2295 = vlaneseq
    %v2296 = vshrl.u32 %v2295, 7
    %v2297 = vsub.s32 1, %v2296
    %v2298 = vrot.slane %v1300, %v2297
    %v2299 = vlaneseq
    %v2300 = vshrl.u32 %v2299, 7
    %v2301 = vsub.s32 1, %v2300
    %v2302 = vrot.slane %v1308, %v2301
    %v2303 = vlaneseq
    %v2304 = vshrl.u32 %v2303, 7
    %v2305 = vsub.s32 1, %v2304
    %v2306 = vrot.slane %v1307, %v2305
    %v2307 = vlaneseq
    %v2308 = vshrl.u32 %v2307, 7
    %v2309 = vsub.s32 1, %v2308
    %v2310 = vrot.slane %v1309, %v2309
    %v2311 = vlaneseq
    %v2312 = vshrl.u32 %v2311, 7
    %v2313 = vsub.s32 1, %v2312
    %v2314 = vrot.slane %v1317, %v2313
    %v2315 = vlaneseq
    %v2316 = vshrl.u32 %v2315, 7
    %v2317 = vsub.s32 1, %v2316
    %v2318 = vrot.slane %v1325, %v2317
    %v2319 = vlaneseq
    %v2320 = vshrl.u32 %v2319, 7
    %v2321 = vsub.s32 1, %v2320
    %v2322 = vrot.slane %v1324, %v2321
    %v2323 = vlaneseq
    %v2324 = vshrl.u32 %v2323, 7
    %v2325 = vsub.s32 1, %v2324
    %v2326 = vrot.slane %v1326, %v2325
    %v2327 = vlaneseq
    %v2328 = vshrl.u32 %v2327, 7
    %v2329 = vsub.s32 1, %v2328
    %v2330 = vrot.slane %v1334, %v2329
    %v2331 = vlaneseq
    %v2332 = vshrl.u32 %v2331, 7
    %v2333 = vsub.s32 1, %v2332
    %v2334 = vrot.slane %v1342, %v2333
    %v2335 = vlaneseq
    %v2336 = vshrl.u32 %v2335, 7
    %v2337 = vsub.s32 1, %v2336
    %v2338 = vrot.slane %v1341, %v2337
    %v2339 = vlaneseq
    %v2340 = vshrl.u32 %v2339, 7
    %v2341 = vsub.s32 1, %v2340
    %v2342 = vrot.slane %v1343, %v2341
    %v2343 = vlaneseq
    %v2344 = vshrl.u32 %v2343, 7
    %v2345 = vsub.s32 1, %v2344
    %v2346 = vrot.slane %v1351, %v2345
    %v2347 = vlaneseq
    %v2348 = vshrl.u32 %v2347, 7
    %v2349 = vsub.s32 1, %v2348
    %v2350 = vrot.slane %v1359, %v2349
    %v2351 = vlaneseq
    %v2352 = vshrl.u32 %v2351, 7
    %v2353 = vsub.s32 1, %v2352
    %v2354 = vrot.slane %v1358, %v2353
    %v2355 = vlaneseq
    %v2356 = vshrl.u32 %v2355, 7
    %v2357 = vsub.s32 1, %v2356
    %v2358 = vrot.slane %v1360, %v2357
    %v2359 = vlaneseq
    %v2360 = vshrl.u32 %v2359, 7
    %v2361 = vsub.s32 1, %v2360
    %v2362 = vrot.slane %v1368, %v2361
    %v2363 = vlaneseq
    %v2364 = vshrl.u32 %v2363, 7
    %v2365 = vsub.s32 1, %v2364
    %v2366 = vrot.slane %v1376, %v2365
    %v2367 = vlaneseq
    %v2368 = vshrl.u32 %v2367, 7
    %v2369 = vsub.s32 1, %v2368
    %v2370 = vrot.slane %v1375, %v2369
    %v2371 = vlaneseq
    %v2372 = vshrl.u32 %v2371, 7
    %v2373 = vsub.s32 1, %v2372
    %v2374 = vrot.slane %v1377, %v2373
    %v2375 = vlaneseq
    %v2376 = vshrl.u32 %v2375, 7
    %v2377 = vsub.s32 1, %v2376
    %v2378 = vrot.slane %v1385, %v2377
    %v2379 = vlaneseq
    %v2380 = vshrl.u32 %v2379, 7
    %v2381 = vsub.s32 1, %v2380
    %v2382 = vrot.slane %v1393, %v2381
    %v2383 = vlaneseq
    %v2384 = vshrl.u32 %v2383, 7
    %v2385 = vsub.s32 1, %v2384
    %v2386 = vrot.slane %v1392, %v2385
    %vm2387 = vcmask 1042434
    %v2388 = vsel %vm2387, %v1402, %v1398
    %vm2389 = vcmask 1043459
    %v2390 = vsel %vm2389, %v1406, %v2388
    %vm2391 = vcmask 1044484
    %v2392 = vsel %vm2391, %v1410, %v2390
    %vm2393 = vcmask 1045509
    %v2394 = vsel %vm2393, %v1414, %v2392
    %vm2395 = vcmask 1046534
    %v2396 = vsel %vm2395, %v1418, %v2394
    %vm2397 = vcmask 1047559
    %v2398 = vsel %vm2397, %v1422, %v2396
    %vm2399 = vcmask 1041409
    %v2400 = vsel %vm2399, %v1430, %v1426
    %v2401 = vsel %vm2387, %v1434, %v2400
    %v2402 = vsel %vm2389, %v1438, %v2401
    %v2403 = vsel %vm2391, %v1442, %v2402
    %v2404 = vsel %vm2393, %v1446, %v2403
    %v2405 = vsel %vm2395, %v1450, %v2404
    %v2406 = vsel %vm2397, %v1454, %v2405
    %v2407 = vsel %vm2399, %v1462, %v1458
    %v2408 = vsel %vm2387, %v1466, %v2407
    %v2409 = vsel %vm2389, %v1470, %v2408
    %v2410 = vsel %vm2391, %v1474, %v2409
    %v2411 = vsel %vm2393, %v1478, %v2410
    %v2412 = vsel %vm2395, %v1482, %v2411
    %v2413 = vsel %vm2397, %v1486, %v2412
    %v2414 = vsel %vm2399, %v1494, %v1490
    %v2415 = vsel %vm2387, %v1498, %v2414
    %v2416 = vsel %vm2389, %v1502, %v2415
    %v2417 = vsel %vm2391, %v1506, %v2416
    %v2418 = vsel %vm2393, %v1510, %v2417
    %v2419 = vsel %vm2395, %v1514, %v2418
    %v2420 = vsel %vm2397, %v1518, %v2419
    %v2421 = vsel %vm2387, %v1526, %v1522
    %v2422 = vsel %vm2389, %v1530, %v2421
    %v2423 = vsel %vm2391, %v1534, %v2422
    %v2424 = vsel %vm2393, %v1538, %v2423
    %v2425 = vsel %vm2395, %v1542, %v2424
    %v2426 = vsel %vm2397, %v1546, %v2425
    %v2427 = vsel %vm2399, %v1554, %v1550
    %v2428 = vsel %vm2387, %v1558, %v2427
    %v2429 = vsel %vm2389, %v1562, %v2428
    %v2430 = vsel %vm2391, %v1566, %v2429
    %v2431 = vsel %vm2393, %v1570, %v2430
    %v2432 = vsel %vm2395, %v1574, %v2431
    %v2433 = vsel %vm2397, %v1578, %v2432
    %v2434 = vsel %vm2399, %v1586, %v1582
    %v2435 = vsel %vm2387, %v1590, %v2434
    %v2436 = vsel %vm2389, %v1594, %v2435
    %v2437 = vsel %vm2391, %v1598, %v2436
    %v2438 = vsel %vm2393, %v1602, %v2437
    %v2439 = vsel %vm2395, %v1606, %v2438
    %v2440 = vsel %vm2397, %v1610, %v2439
    %v2441 = vsel %vm2399, %v1618, %v1614
    %v2442 = vsel %vm2387, %v1622, %v2441
    %v2443 = vsel %vm2389, %v1626, %v2442
    %v2444 = vsel %vm2391, %v1630, %v2443
    %v2445 = vsel %vm2393, %v1634, %v2444
    %v2446 = vsel %vm2395, %v1638, %v2445
    %v2447 = vsel %vm2397, %v1642, %v2446
    %v2448 = vsel %vm2387, %v1650, %v1646
    %v2449 = vsel %vm2389, %v1654, %v2448
    %v2450 = vsel %vm2391, %v1658, %v2449
    %v2451 = vsel %vm2393, %v1662, %v2450
    %v2452 = vsel %vm2395, %v1666, %v2451
    %v2453 = vsel %vm2397, %v1670, %v2452
    %v2454 = vsel %vm2399, %v1678, %v1674
    %v2455 = vsel %vm2387, %v1682, %v2454
    %v2456 = vsel %vm2389, %v1686, %v2455
    %v2457 = vsel %vm2391, %v1690, %v2456
    %v2458 = vsel %vm2393, %v1694, %v2457
    %v2459 = vsel %vm2395, %v1698, %v2458
    %v2460 = vsel %vm2397, %v1702, %v2459
    %v2461 = vsel %vm2399, %v1710, %v1706
    %v2462 = vsel %vm2387, %v1714, %v2461
    %v2463 = vsel %vm2389, %v1718, %v2462
    %v2464 = vsel %vm2391, %v1722, %v2463
    %v2465 = vsel %vm2393, %v1726, %v2464
    %v2466 = vsel %vm2395, %v1730, %v2465
    %v2467 = vsel %vm2397, %v1734, %v2466
    %v2468 = vsel %vm2399, %v1742, %v1738
    %v2469 = vsel %vm2387, %v1746, %v2468
    %v2470 = vsel %vm2389, %v1750, %v2469
    %v2471 = vsel %vm2391, %v1754, %v2470
    %v2472 = vsel %vm2393, %v1758, %v2471
    %v2473 = vsel %vm2395, %v1762, %v2472
    %v2474 = vsel %vm2397, %v1766, %v2473
    %v2475 = vsel %vm2387, %v1774, %v1770
    %v2476 = vsel %vm2389, %v1778, %v2475
    %v2477 = vsel %vm2391, %v1782, %v2476
    %v2478 = vsel %vm2393, %v1786, %v2477
    %v2479 = vsel %vm2395, %v1790, %v2478
    %v2480 = vsel %vm2397, %v1794, %v2479
    %v2481 = vsel %vm2399, %v1802, %v1798
    %v2482 = vsel %vm2387, %v1806, %v2481
    %v2483 = vsel %vm2389, %v1810, %v2482
    %v2484 = vsel %vm2391, %v1814, %v2483
    %v2485 = vsel %vm2393, %v1818, %v2484
    %v2486 = vsel %vm2395, %v1822, %v2485
    %v2487 = vsel %vm2397, %v1826, %v2486
    %v2488 = vsel %vm2399, %v1834, %v1830
    %v2489 = vsel %vm2387, %v1838, %v2488
    %v2490 = vsel %vm2389, %v1842, %v2489
    %v2491 = vsel %vm2391, %v1846, %v2490
    %v2492 = vsel %vm2393, %v1850, %v2491
    %v2493 = vsel %vm2395, %v1854, %v2492
    %v2494 = vsel %vm2397, %v1858, %v2493
    %v2495 = vsel %vm2399, %v1866, %v1862
    %v2496 = vsel %vm2387, %v1870, %v2495
    %v2497 = vsel %vm2389, %v1874, %v2496
    %v2498 = vsel %vm2391, %v1878, %v2497
    %v2499 = vsel %vm2393, %v1882, %v2498
    %v2500 = vsel %vm2395, %v1886, %v2499
    %v2501 = vsel %vm2397, %v1890, %v2500
    %v2502 = vsel %vm2387, %v1898, %v1894
    %v2503 = vsel %vm2389, %v1902, %v2502
    %v2504 = vsel %vm2391, %v1906, %v2503
    %v2505 = vsel %vm2393, %v1910, %v2504
    %v2506 = vsel %vm2395, %v1914, %v2505
    %v2507 = vsel %vm2397, %v1918, %v2506
    %v2508 = vsel %vm2399, %v1926, %v1922
    %v2509 = vsel %vm2387, %v1930, %v2508
    %v2510 = vsel %vm2389, %v1934, %v2509
    %v2511 = vsel %vm2391, %v1938, %v2510
    %v2512 = vsel %vm2393, %v1942, %v2511
    %v2513 = vsel %vm2395, %v1946, %v2512
    %v2514 = vsel %vm2397, %v1950, %v2513
    %v2515 = vsel %vm2399, %v1958, %v1954
    %v2516 = vsel %vm2387, %v1962, %v2515
    %v2517 = vsel %vm2389, %v1966, %v2516
    %v2518 = vsel %vm2391, %v1970, %v2517
    %v2519 = vsel %vm2393, %v1974, %v2518
    %v2520 = vsel %vm2395, %v1978, %v2519
    %v2521 = vsel %vm2397, %v1982, %v2520
    %v2522 = vsel %vm2399, %v1990, %v1986
    %v2523 = vsel %vm2387, %v1994, %v2522
    %v2524 = vsel %vm2389, %v1998, %v2523
    %v2525 = vsel %vm2391, %v2002, %v2524
    %v2526 = vsel %vm2393, %v2006, %v2525
    %v2527 = vsel %vm2395, %v2010, %v2526
    %v2528 = vsel %vm2397, %v2014, %v2527
    %v2529 = vsel %vm2387, %v2022, %v2018
    %v2530 = vsel %vm2389, %v2026, %v2529
    %v2531 = vsel %vm2391, %v2030, %v2530
    %v2532 = vsel %vm2393, %v2034, %v2531
    %v2533 = vsel %vm2395, %v2038, %v2532
    %v2534 = vsel %vm2397, %v2042, %v2533
    %v2535 = vsel %vm2399, %v2050, %v2046
    %v2536 = vsel %vm2387, %v2054, %v2535
    %v2537 = vsel %vm2389, %v2058, %v2536
    %v2538 = vsel %vm2391, %v2062, %v2537
    %v2539 = vsel %vm2393, %v2066, %v2538
    %v2540 = vsel %vm2395, %v2070, %v2539
    %v2541 = vsel %vm2397, %v2074, %v2540
    %v2542 = vsel %vm2399, %v2082, %v2078
    %v2543 = vsel %vm2387, %v2086, %v2542
    %v2544 = vsel %vm2389, %v2090, %v2543
    %v2545 = vsel %vm2391, %v2094, %v2544
    %v2546 = vsel %vm2393, %v2098, %v2545
    %v2547 = vsel %vm2395, %v2102, %v2546
    %v2548 = vsel %vm2397, %v2106, %v2547
    %v2549 = vsel %vm2399, %v2114, %v2110
    %v2550 = vsel %vm2387, %v2118, %v2549
    %v2551 = vsel %vm2389, %v2122, %v2550
    %v2552 = vsel %vm2391, %v2126, %v2551
    %v2553 = vsel %vm2393, %v2130, %v2552
    %v2554 = vsel %vm2395, %v2134, %v2553
    %v2555 = vsel %vm2397, %v2138, %v2554
    %v2556 = vsel %vm2387, %v2146, %v2142
    %v2557 = vsel %vm2389, %v2150, %v2556
    %v2558 = vsel %vm2391, %v2154, %v2557
    %v2559 = vsel %vm2393, %v2158, %v2558
    %v2560 = vsel %vm2395, %v2162, %v2559
    %v2561 = vsel %vm2397, %v2166, %v2560
    %v2562 = vsel %vm2399, %v2174, %v2170
    %v2563 = vsel %vm2387, %v2178, %v2562
    %v2564 = vsel %vm2389, %v2182, %v2563
    %v2565 = vsel %vm2391, %v2186, %v2564
    %v2566 = vsel %vm2393, %v2190, %v2565
    %v2567 = vsel %vm2395, %v2194, %v2566
    %v2568 = vsel %vm2397, %v2198, %v2567
    %v2569 = vsel %vm2399, %v2206, %v2202
    %v2570 = vsel %vm2387, %v2210, %v2569
    %v2571 = vsel %vm2389, %v2214, %v2570
    %v2572 = vsel %vm2391, %v2218, %v2571
    %v2573 = vsel %vm2393, %v2222, %v2572
    %v2574 = vsel %vm2395, %v2226, %v2573
    %v2575 = vsel %vm2397, %v2230, %v2574
    %v2576 = vsel %vm2399, %v2238, %v2234
    %v2577 = vsel %vm2387, %v2242, %v2576
    %v2578 = vsel %vm2389, %v2246, %v2577
    %v2579 = vsel %vm2391, %v2250, %v2578
    %v2580 = vsel %vm2393, %v2254, %v2579
    %v2581 = vsel %vm2395, %v2258, %v2580
    %v2582 = vsel %vm2397, %v2262, %v2581
    %v2583 = vsel %vm2387, %v2270, %v2266
    %v2584 = vsel %vm2389, %v2274, %v2583
    %v2585 = vsel %vm2391, %v2278, %v2584
    %v2586 = vsel %vm2393, %v2282, %v2585
    %v2587 = vsel %vm2395, %v2286, %v2586
    %v2588 = vsel %vm2397, %v2290, %v2587
    %v2589 = vsel %vm2399, %v2298, %v2294
    %v2590 = vsel %vm2387, %v2302, %v2589
    %v2591 = vsel %vm2389, %v2306, %v2590
    %v2592 = vsel %vm2391, %v2310, %v2591
    %v2593 = vsel %vm2393, %v2314, %v2592
    %v2594 = vsel %vm2395, %v2318, %v2593
    %v2595 = vsel %vm2397, %v2322, %v2594
    %v2596 = vsel %vm2399, %v2330, %v2326
    %v2597 = vsel %vm2387, %v2334, %v2596
    %v2598 = vsel %vm2389, %v2338, %v2597
    %v2599 = vsel %vm2391, %v2342, %v2598
    %v2600 = vsel %vm2393, %v2346, %v2599
    %v2601 = vsel %vm2395, %v2350, %v2600
    %v2602 = vsel %vm2397, %v2354, %v2601
    %v2603 = vsel %vm2399, %v2362, %v2358
    %v2604 = vsel %vm2387, %v2366, %v2603
    %v2605 = vsel %vm2389, %v2370, %v2604
    %v2606 = vsel %vm2391, %v2374, %v2605
    %v2607 = vsel %vm2393, %v2378, %v2606
    %v2608 = vsel %vm2395, %v2382, %v2607
    %v2609 = vsel %vm2397, %v2386, %v2608
    %vm2642 = vcmask 1040384
    %v2643 = vsel %vm2642, 0.0, %v2398
    %v2644 = vsel %vm2642, 0.0, %v2426
    %v2645 = vsel %vm2642, 0.0, %v2453
    %v2646 = vsel %vm2642, 0.0, %v2480
    %v2647 = vsel %vm2642, 0.0, %v2507
    %v2648 = vsel %vm2642, 0.0, %v2534
    %v2649 = vsel %vm2642, 0.0, %v2561
    %v2650 = vsel %vm2642, 0.0, %v2588
    %v2651 = vlaneseq
    %v2652 = vshrl.u32 %v2651, 7
    %v2653 = vsub.s32 0, %v2652
    %v2654 = vrot.slane %v314, %v2653
    %v2655 = vlaneseq
    %v2656 = vshrl.u32 %v2655, 7
    %v2657 = vsub.s32 0, %v2656
    %v2658 = vrot.slane %v322, %v2657
    %v2659 = vlaneseq
    %v2660 = vshrl.u32 %v2659, 7
    %v2661 = vsub.s32 0, %v2660
    %v2662 = vrot.slane %v321, %v2661
    %v2663 = vlaneseq
    %v2664 = vshrl.u32 %v2663, 7
    %v2665 = vsub.s32 0, %v2664
    %v2666 = vrot.slane %v323, %v2665
    %v2667 = vlaneseq
    %v2668 = vshrl.u32 %v2667, 7
    %v2669 = vsub.s32 0, %v2668
    %v2670 = vrot.slane %v331, %v2669
    %v2671 = vlaneseq
    %v2672 = vshrl.u32 %v2671, 7
    %v2673 = vsub.s32 0, %v2672
    %v2674 = vrot.slane %v339, %v2673
    %v2675 = vlaneseq
    %v2676 = vshrl.u32 %v2675, 7
    %v2677 = vsub.s32 0, %v2676
    %v2678 = vrot.slane %v338, %v2677
    %v2679 = vlaneseq
    %v2680 = vshrl.u32 %v2679, 7
    %v2681 = vsub.s32 0, %v2680
    %v2682 = vrot.slane %v340, %v2681
    %v2683 = vlaneseq
    %v2684 = vshrl.u32 %v2683, 7
    %v2685 = vsub.s32 0, %v2684
    %v2686 = vrot.slane %v348, %v2685
    %v2687 = vlaneseq
    %v2688 = vshrl.u32 %v2687, 7
    %v2689 = vsub.s32 0, %v2688
    %v2690 = vrot.slane %v356, %v2689
    %v2691 = vlaneseq
    %v2692 = vshrl.u32 %v2691, 7
    %v2693 = vsub.s32 0, %v2692
    %v2694 = vrot.slane %v355, %v2693
    %v2695 = vlaneseq
    %v2696 = vshrl.u32 %v2695, 7
    %v2697 = vsub.s32 0, %v2696
    %v2698 = vrot.slane %v357, %v2697
    %v2699 = vlaneseq
    %v2700 = vshrl.u32 %v2699, 7
    %v2701 = vsub.s32 0, %v2700
    %v2702 = vrot.slane %v365, %v2701
    %v2703 = vlaneseq
    %v2704 = vshrl.u32 %v2703, 7
    %v2705 = vsub.s32 0, %v2704
    %v2706 = vrot.slane %v373, %v2705
    %v2707 = vlaneseq
    %v2708 = vshrl.u32 %v2707, 7
    %v2709 = vsub.s32 0, %v2708
    %v2710 = vrot.slane %v372, %v2709
    %v2711 = vlaneseq
    %v2712 = vshrl.u32 %v2711, 7
    %v2713 = vsub.s32 0, %v2712
    %v2714 = vrot.slane %v374, %v2713
    %v2715 = vlaneseq
    %v2716 = vshrl.u32 %v2715, 7
    %v2717 = vsub.s32 0, %v2716
    %v2718 = vrot.slane %v382, %v2717
    %v2719 = vlaneseq
    %v2720 = vshrl.u32 %v2719, 7
    %v2721 = vsub.s32 0, %v2720
    %v2722 = vrot.slane %v390, %v2721
    %v2723 = vlaneseq
    %v2724 = vshrl.u32 %v2723, 7
    %v2725 = vsub.s32 0, %v2724
    %v2726 = vrot.slane %v389, %v2725
    %v2727 = vlaneseq
    %v2728 = vshrl.u32 %v2727, 7
    %v2729 = vsub.s32 0, %v2728
    %v2730 = vrot.slane %v391, %v2729
    %v2731 = vlaneseq
    %v2732 = vshrl.u32 %v2731, 7
    %v2733 = vsub.s32 0, %v2732
    %v2734 = vrot.slane %v399, %v2733
    %v2735 = vlaneseq
    %v2736 = vshrl.u32 %v2735, 7
    %v2737 = vsub.s32 0, %v2736
    %v2738 = vrot.slane %v407, %v2737
    %v2739 = vlaneseq
    %v2740 = vshrl.u32 %v2739, 7
    %v2741 = vsub.s32 0, %v2740
    %v2742 = vrot.slane %v406, %v2741
    %v2743 = vlaneseq
    %v2744 = vshrl.u32 %v2743, 7
    %v2745 = vsub.s32 0, %v2744
    %v2746 = vrot.slane %v408, %v2745
    %v2747 = vlaneseq
    %v2748 = vshrl.u32 %v2747, 7
    %v2749 = vsub.s32 0, %v2748
    %v2750 = vrot.slane %v416, %v2749
    %v2751 = vlaneseq
    %v2752 = vshrl.u32 %v2751, 7
    %v2753 = vsub.s32 0, %v2752
    %v2754 = vrot.slane %v424, %v2753
    %v2755 = vlaneseq
    %v2756 = vshrl.u32 %v2755, 7
    %v2757 = vsub.s32 0, %v2756
    %v2758 = vrot.slane %v423, %v2757
    %v2759 = vlaneseq
    %v2760 = vshrl.u32 %v2759, 7
    %v2761 = vsub.s32 0, %v2760
    %v2762 = vrot.slane %v425, %v2761
    %v2763 = vlaneseq
    %v2764 = vshrl.u32 %v2763, 7
    %v2765 = vsub.s32 0, %v2764
    %v2766 = vrot.slane %v433, %v2765
    %v2767 = vlaneseq
    %v2768 = vshrl.u32 %v2767, 7
    %v2769 = vsub.s32 0, %v2768
    %v2770 = vrot.slane %v441, %v2769
    %v2771 = vlaneseq
    %v2772 = vshrl.u32 %v2771, 7
    %v2773 = vsub.s32 0, %v2772
    %v2774 = vrot.slane %v440, %v2773
    %v2775 = vlaneseq
    %v2776 = vshrl.u32 %v2775, 7
    %v2777 = vsub.s32 0, %v2776
    %v2778 = vrot.slane %v442, %v2777
    %v2779 = vlaneseq
    %v2780 = vshrl.u32 %v2779, 7
    %v2781 = vsub.s32 0, %v2780
    %v2782 = vrot.slane %v450, %v2781
    %v2783 = vlaneseq
    %v2784 = vshrl.u32 %v2783, 7
    %v2785 = vsub.s32 0, %v2784
    %v2786 = vrot.slane %v458, %v2785
    %v2787 = vlaneseq
    %v2788 = vshrl.u32 %v2787, 7
    %v2789 = vsub.s32 0, %v2788
    %v2790 = vrot.slane %v457, %v2789
    %v2791 = vlaneseq
    %v2792 = vshrl.u32 %v2791, 7
    %v2793 = vsub.s32 0, %v2792
    %v2794 = vrot.slane %v459, %v2793
    %v2795 = vlaneseq
    %v2796 = vshrl.u32 %v2795, 7
    %v2797 = vsub.s32 0, %v2796
    %v2798 = vrot.slane %v467, %v2797
    %v2799 = vlaneseq
    %v2800 = vshrl.u32 %v2799, 7
    %v2801 = vsub.s32 0, %v2800
    %v2802 = vrot.slane %v475, %v2801
    %v2803 = vlaneseq
    %v2804 = vshrl.u32 %v2803, 7
    %v2805 = vsub.s32 0, %v2804
    %v2806 = vrot.slane %v474, %v2805
    %v2807 = vlaneseq
    %v2808 = vshrl.u32 %v2807, 7
    %v2809 = vsub.s32 0, %v2808
    %v2810 = vrot.slane %v476, %v2809
    %v2811 = vlaneseq
    %v2812 = vshrl.u32 %v2811, 7
    %v2813 = vsub.s32 0, %v2812
    %v2814 = vrot.slane %v484, %v2813
    %v2815 = vlaneseq
    %v2816 = vshrl.u32 %v2815, 7
    %v2817 = vsub.s32 0, %v2816
    %v2818 = vrot.slane %v492, %v2817
    %v2819 = vlaneseq
    %v2820 = vshrl.u32 %v2819, 7
    %v2821 = vsub.s32 0, %v2820
    %v2822 = vrot.slane %v491, %v2821
    %v2823 = vlaneseq
    %v2824 = vshrl.u32 %v2823, 7
    %v2825 = vsub.s32 0, %v2824
    %v2826 = vrot.slane %v493, %v2825
    %v2827 = vlaneseq
    %v2828 = vshrl.u32 %v2827, 7
    %v2829 = vsub.s32 0, %v2828
    %v2830 = vrot.slane %v501, %v2829
    %v2831 = vlaneseq
    %v2832 = vshrl.u32 %v2831, 7
    %v2833 = vsub.s32 0, %v2832
    %v2834 = vrot.slane %v509, %v2833
    %v2835 = vlaneseq
    %v2836 = vshrl.u32 %v2835, 7
    %v2837 = vsub.s32 0, %v2836
    %v2838 = vrot.slane %v508, %v2837
    %v2839 = vlaneseq
    %v2840 = vshrl.u32 %v2839, 7
    %v2841 = vsub.s32 0, %v2840
    %v2842 = vrot.slane %v510, %v2841
    %v2843 = vlaneseq
    %v2844 = vshrl.u32 %v2843, 7
    %v2845 = vsub.s32 0, %v2844
    %v2846 = vrot.slane %v518, %v2845
    %v2847 = vlaneseq
    %v2848 = vshrl.u32 %v2847, 7
    %v2849 = vsub.s32 0, %v2848
    %v2850 = vrot.slane %v526, %v2849
    %v2851 = vlaneseq
    %v2852 = vshrl.u32 %v2851, 7
    %v2853 = vsub.s32 0, %v2852
    %v2854 = vrot.slane %v525, %v2853
    %v2855 = vlaneseq
    %v2856 = vshrl.u32 %v2855, 7
    %v2857 = vsub.s32 0, %v2856
    %v2858 = vrot.slane %v527, %v2857
    %v2859 = vlaneseq
    %v2860 = vshrl.u32 %v2859, 7
    %v2861 = vsub.s32 0, %v2860
    %v2862 = vrot.slane %v535, %v2861
    %v2863 = vlaneseq
    %v2864 = vshrl.u32 %v2863, 7
    %v2865 = vsub.s32 0, %v2864
    %v2866 = vrot.slane %v543, %v2865
    %v2867 = vlaneseq
    %v2868 = vshrl.u32 %v2867, 7
    %v2869 = vsub.s32 0, %v2868
    %v2870 = vrot.slane %v542, %v2869
    %v2871 = vlaneseq
    %v2872 = vshrl.u32 %v2871, 7
    %v2873 = vsub.s32 0, %v2872
    %v2874 = vrot.slane %v544, %v2873
    %v2875 = vlaneseq
    %v2876 = vshrl.u32 %v2875, 7
    %v2877 = vsub.s32 0, %v2876
    %v2878 = vrot.slane %v552, %v2877
    %v2879 = vlaneseq
    %v2880 = vshrl.u32 %v2879, 7
    %v2881 = vsub.s32 0, %v2880
    %v2882 = vrot.slane %v560, %v2881
    %v2883 = vlaneseq
    %v2884 = vshrl.u32 %v2883, 7
    %v2885 = vsub.s32 0, %v2884
    %v2886 = vrot.slane %v559, %v2885
    %v2887 = vlaneseq
    %v2888 = vshrl.u32 %v2887, 7
    %v2889 = vsub.s32 0, %v2888
    %v2890 = vrot.slane %v561, %v2889
    %v2891 = vlaneseq
    %v2892 = vshrl.u32 %v2891, 7
    %v2893 = vsub.s32 0, %v2892
    %v2894 = vrot.slane %v569, %v2893
    %v2895 = vlaneseq
    %v2896 = vshrl.u32 %v2895, 7
    %v2897 = vsub.s32 0, %v2896
    %v2898 = vrot.slane %v577, %v2897
    %v2899 = vlaneseq
    %v2900 = vshrl.u32 %v2899, 7
    %v2901 = vsub.s32 0, %v2900
    %v2902 = vrot.slane %v576, %v2901
    %v2903 = vlaneseq
    %v2904 = vshrl.u32 %v2903, 7
    %v2905 = vsub.s32 0, %v2904
    %v2906 = vrot.slane %v578, %v2905
    %v2907 = vlaneseq
    %v2908 = vshrl.u32 %v2907, 7
    %v2909 = vsub.s32 0, %v2908
    %v2910 = vrot.slane %v586, %v2909
    %v2911 = vlaneseq
    %v2912 = vshrl.u32 %v2911, 7
    %v2913 = vsub.s32 0, %v2912
    %v2914 = vrot.slane %v594, %v2913
    %v2915 = vlaneseq
    %v2916 = vshrl.u32 %v2915, 7
    %v2917 = vsub.s32 0, %v2916
    %v2918 = vrot.slane %v593, %v2917
    %v2919 = vlaneseq
    %v2920 = vshrl.u32 %v2919, 7
    %v2921 = vsub.s32 0, %v2920
    %v2922 = vrot.slane %v595, %v2921
    %v2923 = vlaneseq
    %v2924 = vshrl.u32 %v2923, 7
    %v2925 = vsub.s32 0, %v2924
    %v2926 = vrot.slane %v603, %v2925
    %v2927 = vlaneseq
    %v2928 = vshrl.u32 %v2927, 7
    %v2929 = vsub.s32 0, %v2928
    %v2930 = vrot.slane %v611, %v2929
    %v2931 = vlaneseq
    %v2932 = vshrl.u32 %v2931, 7
    %v2933 = vsub.s32 0, %v2932
    %v2934 = vrot.slane %v610, %v2933
    %v2935 = vlaneseq
    %v2936 = vshrl.u32 %v2935, 7
    %v2937 = vsub.s32 0, %v2936
    %v2938 = vrot.slane %v612, %v2937
    %v2939 = vlaneseq
    %v2940 = vshrl.u32 %v2939, 7
    %v2941 = vsub.s32 0, %v2940
    %v2942 = vrot.slane %v620, %v2941
    %v2943 = vlaneseq
    %v2944 = vshrl.u32 %v2943, 7
    %v2945 = vsub.s32 0, %v2944
    %v2946 = vrot.slane %v628, %v2945
    %v2947 = vlaneseq
    %v2948 = vshrl.u32 %v2947, 7
    %v2949 = vsub.s32 0, %v2948
    %v2950 = vrot.slane %v627, %v2949
    %v2951 = vlaneseq
    %v2952 = vshrl.u32 %v2951, 7
    %v2953 = vsub.s32 0, %v2952
    %v2954 = vrot.slane %v629, %v2953
    %v2955 = vlaneseq
    %v2956 = vshrl.u32 %v2955, 7
    %v2957 = vsub.s32 0, %v2956
    %v2958 = vrot.slane %v637, %v2957
    %v2959 = vlaneseq
    %v2960 = vshrl.u32 %v2959, 7
    %v2961 = vsub.s32 0, %v2960
    %v2962 = vrot.slane %v645, %v2961
    %v2963 = vlaneseq
    %v2964 = vshrl.u32 %v2963, 7
    %v2965 = vsub.s32 0, %v2964
    %v2966 = vrot.slane %v644, %v2965
    %v2967 = vlaneseq
    %v2968 = vshrl.u32 %v2967, 7
    %v2969 = vsub.s32 0, %v2968
    %v2970 = vrot.slane %v646, %v2969
    %v2971 = vlaneseq
    %v2972 = vshrl.u32 %v2971, 7
    %v2973 = vsub.s32 0, %v2972
    %v2974 = vrot.slane %v654, %v2973
    %v2975 = vlaneseq
    %v2976 = vshrl.u32 %v2975, 7
    %v2977 = vsub.s32 0, %v2976
    %v2978 = vrot.slane %v662, %v2977
    %v2979 = vlaneseq
    %v2980 = vshrl.u32 %v2979, 7
    %v2981 = vsub.s32 0, %v2980
    %v2982 = vrot.slane %v661, %v2981
    %v2983 = vlaneseq
    %v2984 = vshrl.u32 %v2983, 7
    %v2985 = vsub.s32 0, %v2984
    %v2986 = vrot.slane %v663, %v2985
    %v2987 = vlaneseq
    %v2988 = vshrl.u32 %v2987, 7
    %v2989 = vsub.s32 0, %v2988
    %v2990 = vrot.slane %v671, %v2989
    %v2991 = vlaneseq
    %v2992 = vshrl.u32 %v2991, 7
    %v2993 = vsub.s32 0, %v2992
    %v2994 = vrot.slane %v679, %v2993
    %v2995 = vlaneseq
    %v2996 = vshrl.u32 %v2995, 7
    %v2997 = vsub.s32 0, %v2996
    %v2998 = vrot.slane %v678, %v2997
    %v2999 = vlaneseq
    %v3000 = vshrl.u32 %v2999, 7
    %v3001 = vsub.s32 0, %v3000
    %v3002 = vrot.slane %v680, %v3001
    %v3003 = vlaneseq
    %v3004 = vshrl.u32 %v3003, 7
    %v3005 = vsub.s32 0, %v3004
    %v3006 = vrot.slane %v688, %v3005
    %v3007 = vlaneseq
    %v3008 = vshrl.u32 %v3007, 7
    %v3009 = vsub.s32 0, %v3008
    %v3010 = vrot.slane %v696, %v3009
    %v3011 = vlaneseq
    %v3012 = vshrl.u32 %v3011, 7
    %v3013 = vsub.s32 0, %v3012
    %v3014 = vrot.slane %v695, %v3013
    %v3015 = vlaneseq
    %v3016 = vshrl.u32 %v3015, 7
    %v3017 = vsub.s32 0, %v3016
    %v3018 = vrot.slane %v697, %v3017
    %v3019 = vlaneseq
    %v3020 = vshrl.u32 %v3019, 7
    %v3021 = vsub.s32 0, %v3020
    %v3022 = vrot.slane %v705, %v3021
    %v3023 = vlaneseq
    %v3024 = vshrl.u32 %v3023, 7
    %v3025 = vsub.s32 0, %v3024
    %v3026 = vrot.slane %v713, %v3025
    %v3027 = vlaneseq
    %v3028 = vshrl.u32 %v3027, 7
    %v3029 = vsub.s32 0, %v3028
    %v3030 = vrot.slane %v712, %v3029
    %v3031 = vlaneseq
    %v3032 = vshrl.u32 %v3031, 7
    %v3033 = vsub.s32 0, %v3032
    %v3034 = vrot.slane %v714, %v3033
    %v3035 = vlaneseq
    %v3036 = vshrl.u32 %v3035, 7
    %v3037 = vsub.s32 0, %v3036
    %v3038 = vrot.slane %v722, %v3037
    %v3039 = vlaneseq
    %v3040 = vshrl.u32 %v3039, 7
    %v3041 = vsub.s32 0, %v3040
    %v3042 = vrot.slane %v730, %v3041
    %v3043 = vlaneseq
    %v3044 = vshrl.u32 %v3043, 7
    %v3045 = vsub.s32 0, %v3044
    %v3046 = vrot.slane %v729, %v3045
    %v3047 = vlaneseq
    %v3048 = vshrl.u32 %v3047, 7
    %v3049 = vsub.s32 0, %v3048
    %v3050 = vrot.slane %v731, %v3049
    %v3051 = vlaneseq
    %v3052 = vshrl.u32 %v3051, 7
    %v3053 = vsub.s32 0, %v3052
    %v3054 = vrot.slane %v739, %v3053
    %v3055 = vlaneseq
    %v3056 = vshrl.u32 %v3055, 7
    %v3057 = vsub.s32 0, %v3056
    %v3058 = vrot.slane %v747, %v3057
    %v3059 = vlaneseq
    %v3060 = vshrl.u32 %v3059, 7
    %v3061 = vsub.s32 0, %v3060
    %v3062 = vrot.slane %v746, %v3061
    %v3063 = vlaneseq
    %v3064 = vshrl.u32 %v3063, 7
    %v3065 = vsub.s32 0, %v3064
    %v3066 = vrot.slane %v748, %v3065
    %v3067 = vlaneseq
    %v3068 = vshrl.u32 %v3067, 7
    %v3069 = vsub.s32 0, %v3068
    %v3070 = vrot.slane %v756, %v3069
    %v3071 = vlaneseq
    %v3072 = vshrl.u32 %v3071, 7
    %v3073 = vsub.s32 0, %v3072
    %v3074 = vrot.slane %v764, %v3073
    %v3075 = vlaneseq
    %v3076 = vshrl.u32 %v3075, 7
    %v3077 = vsub.s32 0, %v3076
    %v3078 = vrot.slane %v763, %v3077
    %v3079 = vlaneseq
    %v3080 = vshrl.u32 %v3079, 7
    %v3081 = vsub.s32 0, %v3080
    %v3082 = vrot.slane %v765, %v3081
    %v3083 = vlaneseq
    %v3084 = vshrl.u32 %v3083, 7
    %v3085 = vsub.s32 0, %v3084
    %v3086 = vrot.slane %v773, %v3085
    %v3087 = vlaneseq
    %v3088 = vshrl.u32 %v3087, 7
    %v3089 = vsub.s32 0, %v3088
    %v3090 = vrot.slane %v781, %v3089
    %v3091 = vlaneseq
    %v3092 = vshrl.u32 %v3091, 7
    %v3093 = vsub.s32 0, %v3092
    %v3094 = vrot.slane %v780, %v3093
    %v3095 = vlaneseq
    %v3096 = vshrl.u32 %v3095, 7
    %v3097 = vsub.s32 0, %v3096
    %v3098 = vrot.slane %v782, %v3097
    %v3099 = vlaneseq
    %v3100 = vshrl.u32 %v3099, 7
    %v3101 = vsub.s32 0, %v3100
    %v3102 = vrot.slane %v790, %v3101
    %v3103 = vlaneseq
    %v3104 = vshrl.u32 %v3103, 7
    %v3105 = vsub.s32 0, %v3104
    %v3106 = vrot.slane %v798, %v3105
    %v3107 = vlaneseq
    %v3108 = vshrl.u32 %v3107, 7
    %v3109 = vsub.s32 0, %v3108
    %v3110 = vrot.slane %v797, %v3109
    %v3111 = vlaneseq
    %v3112 = vshrl.u32 %v3111, 7
    %v3113 = vsub.s32 0, %v3112
    %v3114 = vrot.slane %v799, %v3113
    %v3115 = vlaneseq
    %v3116 = vshrl.u32 %v3115, 7
    %v3117 = vsub.s32 0, %v3116
    %v3118 = vrot.slane %v807, %v3117
    %v3119 = vlaneseq
    %v3120 = vshrl.u32 %v3119, 7
    %v3121 = vsub.s32 0, %v3120
    %v3122 = vrot.slane %v815, %v3121
    %v3123 = vlaneseq
    %v3124 = vshrl.u32 %v3123, 7
    %v3125 = vsub.s32 0, %v3124
    %v3126 = vrot.slane %v814, %v3125
    %v3127 = vlaneseq
    %v3128 = vshrl.u32 %v3127, 7
    %v3129 = vsub.s32 0, %v3128
    %v3130 = vrot.slane %v816, %v3129
    %v3131 = vlaneseq
    %v3132 = vshrl.u32 %v3131, 7
    %v3133 = vsub.s32 0, %v3132
    %v3134 = vrot.slane %v824, %v3133
    %v3135 = vlaneseq
    %v3136 = vshrl.u32 %v3135, 7
    %v3137 = vsub.s32 0, %v3136
    %v3138 = vrot.slane %v832, %v3137
    %v3139 = vlaneseq
    %v3140 = vshrl.u32 %v3139, 7
    %v3141 = vsub.s32 0, %v3140
    %v3142 = vrot.slane %v831, %v3141
    %v3143 = vlaneseq
    %v3144 = vshrl.u32 %v3143, 7
    %v3145 = vsub.s32 0, %v3144
    %v3146 = vrot.slane %v833, %v3145
    %v3147 = vlaneseq
    %v3148 = vshrl.u32 %v3147, 7
    %v3149 = vsub.s32 0, %v3148
    %v3150 = vrot.slane %v841, %v3149
    %v3151 = vlaneseq
    %v3152 = vshrl.u32 %v3151, 7
    %v3153 = vsub.s32 0, %v3152
    %v3154 = vrot.slane %v849, %v3153
    %v3155 = vlaneseq
    %v3156 = vshrl.u32 %v3155, 7
    %v3157 = vsub.s32 0, %v3156
    %v3158 = vrot.slane %v848, %v3157
    %v3159 = vlaneseq
    %v3160 = vshrl.u32 %v3159, 7
    %v3161 = vsub.s32 0, %v3160
    %v3162 = vrot.slane %v850, %v3161
    %v3163 = vlaneseq
    %v3164 = vshrl.u32 %v3163, 7
    %v3165 = vsub.s32 0, %v3164
    %v3166 = vrot.slane %v858, %v3165
    %v3167 = vlaneseq
    %v3168 = vshrl.u32 %v3167, 7
    %v3169 = vsub.s32 0, %v3168
    %v3170 = vrot.slane %v866, %v3169
    %v3171 = vlaneseq
    %v3172 = vshrl.u32 %v3171, 7
    %v3173 = vsub.s32 0, %v3172
    %v3174 = vrot.slane %v865, %v3173
    %v3175 = vlaneseq
    %v3176 = vshrl.u32 %v3175, 7
    %v3177 = vsub.s32 0, %v3176
    %v3178 = vrot.slane %v867, %v3177
    %v3179 = vlaneseq
    %v3180 = vshrl.u32 %v3179, 7
    %v3181 = vsub.s32 0, %v3180
    %v3182 = vrot.slane %v875, %v3181
    %v3183 = vlaneseq
    %v3184 = vshrl.u32 %v3183, 7
    %v3185 = vsub.s32 0, %v3184
    %v3186 = vrot.slane %v883, %v3185
    %v3187 = vlaneseq
    %v3188 = vshrl.u32 %v3187, 7
    %v3189 = vsub.s32 0, %v3188
    %v3190 = vrot.slane %v882, %v3189
    %v3191 = vlaneseq
    %v3192 = vshrl.u32 %v3191, 7
    %v3193 = vsub.s32 0, %v3192
    %v3194 = vrot.slane %v884, %v3193
    %v3195 = vlaneseq
    %v3196 = vshrl.u32 %v3195, 7
    %v3197 = vsub.s32 0, %v3196
    %v3198 = vrot.slane %v892, %v3197
    %v3199 = vlaneseq
    %v3200 = vshrl.u32 %v3199, 7
    %v3201 = vsub.s32 0, %v3200
    %v3202 = vrot.slane %v900, %v3201
    %v3203 = vlaneseq
    %v3204 = vshrl.u32 %v3203, 7
    %v3205 = vsub.s32 0, %v3204
    %v3206 = vrot.slane %v899, %v3205
    %v3207 = vlaneseq
    %v3208 = vshrl.u32 %v3207, 7
    %v3209 = vsub.s32 0, %v3208
    %v3210 = vrot.slane %v901, %v3209
    %v3211 = vlaneseq
    %v3212 = vshrl.u32 %v3211, 7
    %v3213 = vsub.s32 0, %v3212
    %v3214 = vrot.slane %v909, %v3213
    %v3215 = vlaneseq
    %v3216 = vshrl.u32 %v3215, 7
    %v3217 = vsub.s32 0, %v3216
    %v3218 = vrot.slane %v917, %v3217
    %v3219 = vlaneseq
    %v3220 = vshrl.u32 %v3219, 7
    %v3221 = vsub.s32 0, %v3220
    %v3222 = vrot.slane %v916, %v3221
    %v3223 = vlaneseq
    %v3224 = vshrl.u32 %v3223, 7
    %v3225 = vsub.s32 0, %v3224
    %v3226 = vrot.slane %v918, %v3225
    %v3227 = vlaneseq
    %v3228 = vshrl.u32 %v3227, 7
    %v3229 = vsub.s32 0, %v3228
    %v3230 = vrot.slane %v926, %v3229
    %v3231 = vlaneseq
    %v3232 = vshrl.u32 %v3231, 7
    %v3233 = vsub.s32 0, %v3232
    %v3234 = vrot.slane %v934, %v3233
    %v3235 = vlaneseq
    %v3236 = vshrl.u32 %v3235, 7
    %v3237 = vsub.s32 0, %v3236
    %v3238 = vrot.slane %v933, %v3237
    %v3239 = vlaneseq
    %v3240 = vshrl.u32 %v3239, 7
    %v3241 = vsub.s32 0, %v3240
    %v3242 = vrot.slane %v935, %v3241
    %v3243 = vlaneseq
    %v3244 = vshrl.u32 %v3243, 7
    %v3245 = vsub.s32 0, %v3244
    %v3246 = vrot.slane %v943, %v3245
    %v3247 = vlaneseq
    %v3248 = vshrl.u32 %v3247, 7
    %v3249 = vsub.s32 0, %v3248
    %v3250 = vrot.slane %v951, %v3249
    %v3251 = vlaneseq
    %v3252 = vshrl.u32 %v3251, 7
    %v3253 = vsub.s32 0, %v3252
    %v3254 = vrot.slane %v950, %v3253
    %v3255 = vlaneseq
    %v3256 = vshrl.u32 %v3255, 7
    %v3257 = vsub.s32 0, %v3256
    %v3258 = vrot.slane %v952, %v3257
    %v3259 = vlaneseq
    %v3260 = vshrl.u32 %v3259, 7
    %v3261 = vsub.s32 0, %v3260
    %v3262 = vrot.slane %v960, %v3261
    %v3263 = vlaneseq
    %v3264 = vshrl.u32 %v3263, 7
    %v3265 = vsub.s32 0, %v3264
    %v3266 = vrot.slane %v968, %v3265
    %v3267 = vlaneseq
    %v3268 = vshrl.u32 %v3267, 7
    %v3269 = vsub.s32 0, %v3268
    %v3270 = vrot.slane %v967, %v3269
    %v3271 = vlaneseq
    %v3272 = vshrl.u32 %v3271, 7
    %v3273 = vsub.s32 0, %v3272
    %v3274 = vrot.slane %v969, %v3273
    %v3275 = vlaneseq
    %v3276 = vshrl.u32 %v3275, 7
    %v3277 = vsub.s32 0, %v3276
    %v3278 = vrot.slane %v977, %v3277
    %v3279 = vlaneseq
    %v3280 = vshrl.u32 %v3279, 7
    %v3281 = vsub.s32 0, %v3280
    %v3282 = vrot.slane %v985, %v3281
    %v3283 = vlaneseq
    %v3284 = vshrl.u32 %v3283, 7
    %v3285 = vsub.s32 0, %v3284
    %v3286 = vrot.slane %v984, %v3285
    %v3287 = vlaneseq
    %v3288 = vshrl.u32 %v3287, 7
    %v3289 = vsub.s32 0, %v3288
    %v3290 = vrot.slane %v986, %v3289
    %v3291 = vlaneseq
    %v3292 = vshrl.u32 %v3291, 7
    %v3293 = vsub.s32 0, %v3292
    %v3294 = vrot.slane %v994, %v3293
    %v3295 = vlaneseq
    %v3296 = vshrl.u32 %v3295, 7
    %v3297 = vsub.s32 0, %v3296
    %v3298 = vrot.slane %v1002, %v3297
    %v3299 = vlaneseq
    %v3300 = vshrl.u32 %v3299, 7
    %v3301 = vsub.s32 0, %v3300
    %v3302 = vrot.slane %v1001, %v3301
    %v3303 = vlaneseq
    %v3304 = vshrl.u32 %v3303, 7
    %v3305 = vsub.s32 0, %v3304
    %v3306 = vrot.slane %v1003, %v3305
    %v3307 = vlaneseq
    %v3308 = vshrl.u32 %v3307, 7
    %v3309 = vsub.s32 0, %v3308
    %v3310 = vrot.slane %v1011, %v3309
    %v3311 = vlaneseq
    %v3312 = vshrl.u32 %v3311, 7
    %v3313 = vsub.s32 0, %v3312
    %v3314 = vrot.slane %v1019, %v3313
    %v3315 = vlaneseq
    %v3316 = vshrl.u32 %v3315, 7
    %v3317 = vsub.s32 0, %v3316
    %v3318 = vrot.slane %v1018, %v3317
    %v3319 = vlaneseq
    %v3320 = vshrl.u32 %v3319, 7
    %v3321 = vsub.s32 0, %v3320
    %v3322 = vrot.slane %v1020, %v3321
    %v3323 = vlaneseq
    %v3324 = vshrl.u32 %v3323, 7
    %v3325 = vsub.s32 0, %v3324
    %v3326 = vrot.slane %v1028, %v3325
    %v3327 = vlaneseq
    %v3328 = vshrl.u32 %v3327, 7
    %v3329 = vsub.s32 0, %v3328
    %v3330 = vrot.slane %v1036, %v3329
    %v3331 = vlaneseq
    %v3332 = vshrl.u32 %v3331, 7
    %v3333 = vsub.s32 0, %v3332
    %v3334 = vrot.slane %v1035, %v3333
    %v3335 = vlaneseq
    %v3336 = vshrl.u32 %v3335, 7
    %v3337 = vsub.s32 0, %v3336
    %v3338 = vrot.slane %v1037, %v3337
    %v3339 = vlaneseq
    %v3340 = vshrl.u32 %v3339, 7
    %v3341 = vsub.s32 0, %v3340
    %v3342 = vrot.slane %v1045, %v3341
    %v3343 = vlaneseq
    %v3344 = vshrl.u32 %v3343, 7
    %v3345 = vsub.s32 0, %v3344
    %v3346 = vrot.slane %v1053, %v3345
    %v3347 = vlaneseq
    %v3348 = vshrl.u32 %v3347, 7
    %v3349 = vsub.s32 0, %v3348
    %v3350 = vrot.slane %v1052, %v3349
    %v3351 = vlaneseq
    %v3352 = vshrl.u32 %v3351, 7
    %v3353 = vsub.s32 0, %v3352
    %v3354 = vrot.slane %v1054, %v3353
    %v3355 = vlaneseq
    %v3356 = vshrl.u32 %v3355, 7
    %v3357 = vsub.s32 0, %v3356
    %v3358 = vrot.slane %v1062, %v3357
    %v3359 = vlaneseq
    %v3360 = vshrl.u32 %v3359, 7
    %v3361 = vsub.s32 0, %v3360
    %v3362 = vrot.slane %v1070, %v3361
    %v3363 = vlaneseq
    %v3364 = vshrl.u32 %v3363, 7
    %v3365 = vsub.s32 0, %v3364
    %v3366 = vrot.slane %v1069, %v3365
    %v3367 = vlaneseq
    %v3368 = vshrl.u32 %v3367, 7
    %v3369 = vsub.s32 0, %v3368
    %v3370 = vrot.slane %v1071, %v3369
    %v3371 = vlaneseq
    %v3372 = vshrl.u32 %v3371, 7
    %v3373 = vsub.s32 0, %v3372
    %v3374 = vrot.slane %v1079, %v3373
    %v3375 = vlaneseq
    %v3376 = vshrl.u32 %v3375, 7
    %v3377 = vsub.s32 0, %v3376
    %v3378 = vrot.slane %v1087, %v3377
    %v3379 = vlaneseq
    %v3380 = vshrl.u32 %v3379, 7
    %v3381 = vsub.s32 0, %v3380
    %v3382 = vrot.slane %v1086, %v3381
    %v3383 = vlaneseq
    %v3384 = vshrl.u32 %v3383, 7
    %v3385 = vsub.s32 0, %v3384
    %v3386 = vrot.slane %v1088, %v3385
    %v3387 = vlaneseq
    %v3388 = vshrl.u32 %v3387, 7
    %v3389 = vsub.s32 0, %v3388
    %v3390 = vrot.slane %v1096, %v3389
    %v3391 = vlaneseq
    %v3392 = vshrl.u32 %v3391, 7
    %v3393 = vsub.s32 0, %v3392
    %v3394 = vrot.slane %v1104, %v3393
    %v3395 = vlaneseq
    %v3396 = vshrl.u32 %v3395, 7
    %v3397 = vsub.s32 0, %v3396
    %v3398 = vrot.slane %v1103, %v3397
    %v3399 = vlaneseq
    %v3400 = vshrl.u32 %v3399, 7
    %v3401 = vsub.s32 0, %v3400
    %v3402 = vrot.slane %v1105, %v3401
    %v3403 = vlaneseq
    %v3404 = vshrl.u32 %v3403, 7
    %v3405 = vsub.s32 0, %v3404
    %v3406 = vrot.slane %v1113, %v3405
    %v3407 = vlaneseq
    %v3408 = vshrl.u32 %v3407, 7
    %v3409 = vsub.s32 0, %v3408
    %v3410 = vrot.slane %v1121, %v3409
    %v3411 = vlaneseq
    %v3412 = vshrl.u32 %v3411, 7
    %v3413 = vsub.s32 0, %v3412
    %v3414 = vrot.slane %v1120, %v3413
    %v3415 = vlaneseq
    %v3416 = vshrl.u32 %v3415, 7
    %v3417 = vsub.s32 0, %v3416
    %v3418 = vrot.slane %v1122, %v3417
    %v3419 = vlaneseq
    %v3420 = vshrl.u32 %v3419, 7
    %v3421 = vsub.s32 0, %v3420
    %v3422 = vrot.slane %v1130, %v3421
    %v3423 = vlaneseq
    %v3424 = vshrl.u32 %v3423, 7
    %v3425 = vsub.s32 0, %v3424
    %v3426 = vrot.slane %v1138, %v3425
    %v3427 = vlaneseq
    %v3428 = vshrl.u32 %v3427, 7
    %v3429 = vsub.s32 0, %v3428
    %v3430 = vrot.slane %v1137, %v3429
    %v3431 = vlaneseq
    %v3432 = vshrl.u32 %v3431, 7
    %v3433 = vsub.s32 0, %v3432
    %v3434 = vrot.slane %v1139, %v3433
    %v3435 = vlaneseq
    %v3436 = vshrl.u32 %v3435, 7
    %v3437 = vsub.s32 0, %v3436
    %v3438 = vrot.slane %v1147, %v3437
    %v3439 = vlaneseq
    %v3440 = vshrl.u32 %v3439, 7
    %v3441 = vsub.s32 0, %v3440
    %v3442 = vrot.slane %v1155, %v3441
    %v3443 = vlaneseq
    %v3444 = vshrl.u32 %v3443, 7
    %v3445 = vsub.s32 0, %v3444
    %v3446 = vrot.slane %v1154, %v3445
    %v3447 = vlaneseq
    %v3448 = vshrl.u32 %v3447, 7
    %v3449 = vsub.s32 0, %v3448
    %v3450 = vrot.slane %v1156, %v3449
    %v3451 = vlaneseq
    %v3452 = vshrl.u32 %v3451, 7
    %v3453 = vsub.s32 0, %v3452
    %v3454 = vrot.slane %v1164, %v3453
    %v3455 = vlaneseq
    %v3456 = vshrl.u32 %v3455, 7
    %v3457 = vsub.s32 0, %v3456
    %v3458 = vrot.slane %v1172, %v3457
    %v3459 = vlaneseq
    %v3460 = vshrl.u32 %v3459, 7
    %v3461 = vsub.s32 0, %v3460
    %v3462 = vrot.slane %v1171, %v3461
    %v3463 = vlaneseq
    %v3464 = vshrl.u32 %v3463, 7
    %v3465 = vsub.s32 0, %v3464
    %v3466 = vrot.slane %v1173, %v3465
    %v3467 = vlaneseq
    %v3468 = vshrl.u32 %v3467, 7
    %v3469 = vsub.s32 0, %v3468
    %v3470 = vrot.slane %v1181, %v3469
    %v3471 = vlaneseq
    %v3472 = vshrl.u32 %v3471, 7
    %v3473 = vsub.s32 0, %v3472
    %v3474 = vrot.slane %v1189, %v3473
    %v3475 = vlaneseq
    %v3476 = vshrl.u32 %v3475, 7
    %v3477 = vsub.s32 0, %v3476
    %v3478 = vrot.slane %v1188, %v3477
    %v3479 = vlaneseq
    %v3480 = vshrl.u32 %v3479, 7
    %v3481 = vsub.s32 0, %v3480
    %v3482 = vrot.slane %v1190, %v3481
    %v3483 = vlaneseq
    %v3484 = vshrl.u32 %v3483, 7
    %v3485 = vsub.s32 0, %v3484
    %v3486 = vrot.slane %v1198, %v3485
    %v3487 = vlaneseq
    %v3488 = vshrl.u32 %v3487, 7
    %v3489 = vsub.s32 0, %v3488
    %v3490 = vrot.slane %v1206, %v3489
    %v3491 = vlaneseq
    %v3492 = vshrl.u32 %v3491, 7
    %v3493 = vsub.s32 0, %v3492
    %v3494 = vrot.slane %v1205, %v3493
    %v3495 = vlaneseq
    %v3496 = vshrl.u32 %v3495, 7
    %v3497 = vsub.s32 0, %v3496
    %v3498 = vrot.slane %v1207, %v3497
    %v3499 = vlaneseq
    %v3500 = vshrl.u32 %v3499, 7
    %v3501 = vsub.s32 0, %v3500
    %v3502 = vrot.slane %v1215, %v3501
    %v3503 = vlaneseq
    %v3504 = vshrl.u32 %v3503, 7
    %v3505 = vsub.s32 0, %v3504
    %v3506 = vrot.slane %v1223, %v3505
    %v3507 = vlaneseq
    %v3508 = vshrl.u32 %v3507, 7
    %v3509 = vsub.s32 0, %v3508
    %v3510 = vrot.slane %v1222, %v3509
    %v3511 = vlaneseq
    %v3512 = vshrl.u32 %v3511, 7
    %v3513 = vsub.s32 0, %v3512
    %v3514 = vrot.slane %v1224, %v3513
    %v3515 = vlaneseq
    %v3516 = vshrl.u32 %v3515, 7
    %v3517 = vsub.s32 0, %v3516
    %v3518 = vrot.slane %v1232, %v3517
    %v3519 = vlaneseq
    %v3520 = vshrl.u32 %v3519, 7
    %v3521 = vsub.s32 0, %v3520
    %v3522 = vrot.slane %v1240, %v3521
    %v3523 = vlaneseq
    %v3524 = vshrl.u32 %v3523, 7
    %v3525 = vsub.s32 0, %v3524
    %v3526 = vrot.slane %v1239, %v3525
    %v3527 = vlaneseq
    %v3528 = vshrl.u32 %v3527, 7
    %v3529 = vsub.s32 0, %v3528
    %v3530 = vrot.slane %v1241, %v3529
    %v3531 = vlaneseq
    %v3532 = vshrl.u32 %v3531, 7
    %v3533 = vsub.s32 0, %v3532
    %v3534 = vrot.slane %v1249, %v3533
    %v3535 = vlaneseq
    %v3536 = vshrl.u32 %v3535, 7
    %v3537 = vsub.s32 0, %v3536
    %v3538 = vrot.slane %v1257, %v3537
    %v3539 = vlaneseq
    %v3540 = vshrl.u32 %v3539, 7
    %v3541 = vsub.s32 0, %v3540
    %v3542 = vrot.slane %v1256, %v3541
    %v3543 = vlaneseq
    %v3544 = vshrl.u32 %v3543, 7
    %v3545 = vsub.s32 0, %v3544
    %v3546 = vrot.slane %v1258, %v3545
    %v3547 = vlaneseq
    %v3548 = vshrl.u32 %v3547, 7
    %v3549 = vsub.s32 0, %v3548
    %v3550 = vrot.slane %v1266, %v3549
    %v3551 = vlaneseq
    %v3552 = vshrl.u32 %v3551, 7
    %v3553 = vsub.s32 0, %v3552
    %v3554 = vrot.slane %v1274, %v3553
    %v3555 = vlaneseq
    %v3556 = vshrl.u32 %v3555, 7
    %v3557 = vsub.s32 0, %v3556
    %v3558 = vrot.slane %v1273, %v3557
    %v3559 = vlaneseq
    %v3560 = vshrl.u32 %v3559, 7
    %v3561 = vsub.s32 0, %v3560
    %v3562 = vrot.slane %v1275, %v3561
    %v3563 = vlaneseq
    %v3564 = vshrl.u32 %v3563, 7
    %v3565 = vsub.s32 0, %v3564
    %v3566 = vrot.slane %v1283, %v3565
    %v3567 = vlaneseq
    %v3568 = vshrl.u32 %v3567, 7
    %v3569 = vsub.s32 0, %v3568
    %v3570 = vrot.slane %v1291, %v3569
    %v3571 = vlaneseq
    %v3572 = vshrl.u32 %v3571, 7
    %v3573 = vsub.s32 0, %v3572
    %v3574 = vrot.slane %v1290, %v3573
    %v3575 = vlaneseq
    %v3576 = vshrl.u32 %v3575, 7
    %v3577 = vsub.s32 0, %v3576
    %v3578 = vrot.slane %v1292, %v3577
    %v3579 = vlaneseq
    %v3580 = vshrl.u32 %v3579, 7
    %v3581 = vsub.s32 0, %v3580
    %v3582 = vrot.slane %v1300, %v3581
    %v3583 = vlaneseq
    %v3584 = vshrl.u32 %v3583, 7
    %v3585 = vsub.s32 0, %v3584
    %v3586 = vrot.slane %v1308, %v3585
    %v3587 = vlaneseq
    %v3588 = vshrl.u32 %v3587, 7
    %v3589 = vsub.s32 0, %v3588
    %v3590 = vrot.slane %v1307, %v3589
    %v3591 = vlaneseq
    %v3592 = vshrl.u32 %v3591, 7
    %v3593 = vsub.s32 0, %v3592
    %v3594 = vrot.slane %v1309, %v3593
    %v3595 = vlaneseq
    %v3596 = vshrl.u32 %v3595, 7
    %v3597 = vsub.s32 0, %v3596
    %v3598 = vrot.slane %v1317, %v3597
    %v3599 = vlaneseq
    %v3600 = vshrl.u32 %v3599, 7
    %v3601 = vsub.s32 0, %v3600
    %v3602 = vrot.slane %v1325, %v3601
    %v3603 = vlaneseq
    %v3604 = vshrl.u32 %v3603, 7
    %v3605 = vsub.s32 0, %v3604
    %v3606 = vrot.slane %v1324, %v3605
    %v3607 = vlaneseq
    %v3608 = vshrl.u32 %v3607, 7
    %v3609 = vsub.s32 0, %v3608
    %v3610 = vrot.slane %v1326, %v3609
    %v3611 = vlaneseq
    %v3612 = vshrl.u32 %v3611, 7
    %v3613 = vsub.s32 0, %v3612
    %v3614 = vrot.slane %v1334, %v3613
    %v3615 = vlaneseq
    %v3616 = vshrl.u32 %v3615, 7
    %v3617 = vsub.s32 0, %v3616
    %v3618 = vrot.slane %v1342, %v3617
    %v3619 = vlaneseq
    %v3620 = vshrl.u32 %v3619, 7
    %v3621 = vsub.s32 0, %v3620
    %v3622 = vrot.slane %v1341, %v3621
    %v3623 = vlaneseq
    %v3624 = vshrl.u32 %v3623, 7
    %v3625 = vsub.s32 0, %v3624
    %v3626 = vrot.slane %v1343, %v3625
    %v3627 = vlaneseq
    %v3628 = vshrl.u32 %v3627, 7
    %v3629 = vsub.s32 0, %v3628
    %v3630 = vrot.slane %v1351, %v3629
    %v3631 = vlaneseq
    %v3632 = vshrl.u32 %v3631, 7
    %v3633 = vsub.s32 0, %v3632
    %v3634 = vrot.slane %v1359, %v3633
    %v3635 = vlaneseq
    %v3636 = vshrl.u32 %v3635, 7
    %v3637 = vsub.s32 0, %v3636
    %v3638 = vrot.slane %v1358, %v3637
    %v3639 = vlaneseq
    %v3640 = vshrl.u32 %v3639, 7
    %v3641 = vsub.s32 0, %v3640
    %v3642 = vrot.slane %v1360, %v3641
    %v3643 = vlaneseq
    %v3644 = vshrl.u32 %v3643, 7
    %v3645 = vsub.s32 0, %v3644
    %v3646 = vrot.slane %v1368, %v3645
    %v3647 = vlaneseq
    %v3648 = vshrl.u32 %v3647, 7
    %v3649 = vsub.s32 0, %v3648
    %v3650 = vrot.slane %v1376, %v3649
    %v3651 = vlaneseq
    %v3652 = vshrl.u32 %v3651, 7
    %v3653 = vsub.s32 0, %v3652
    %v3654 = vrot.slane %v1375, %v3653
    %v3655 = vlaneseq
    %v3656 = vshrl.u32 %v3655, 7
    %v3657 = vsub.s32 0, %v3656
    %v3658 = vrot.slane %v1377, %v3657
    %v3659 = vlaneseq
    %v3660 = vshrl.u32 %v3659, 7
    %v3661 = vsub.s32 0, %v3660
    %v3662 = vrot.slane %v1385, %v3661
    %v3663 = vlaneseq
    %v3664 = vshrl.u32 %v3663, 7
    %v3665 = vsub.s32 0, %v3664
    %v3666 = vrot.slane %v1393, %v3665
    %v3667 = vlaneseq
    %v3668 = vshrl.u32 %v3667, 7
    %v3669 = vsub.s32 0, %v3668
    %v3670 = vrot.slane %v1392, %v3669
    %v3671 = vlaneseq
    %v3672 = vshrl.u32 %v3671, 7
    %v3673 = vsub.s32 0, %v3672
    %v3674 = vrot.slane %v1394, %v3673
    %v3675 = vsel %vm2399, %v2658, %v2654
    %v3676 = vsel %vm2387, %v2662, %v3675
    %v3677 = vsel %vm2389, %v2666, %v3676
    %v3678 = vsel %vm2391, %v2670, %v3677
    %v3679 = vsel %vm2393, %v2674, %v3678
    %v3680 = vsel %vm2395, %v2678, %v3679
    %v3681 = vsel %vm2397, %v2682, %v3680
    %v3682 = vsel %vm2399, %v2690, %v2686
    %v3683 = vsel %vm2387, %v2694, %v3682
    %v3684 = vsel %vm2389, %v2698, %v3683
    %v3685 = vsel %vm2391, %v2702, %v3684
    %v3686 = vsel %vm2393, %v2706, %v3685
    %v3687 = vsel %vm2395, %v2710, %v3686
    %v3688 = vsel %vm2397, %v2714, %v3687
    %v3689 = vsel %vm2399, %v2722, %v2718
    %v3690 = vsel %vm2387, %v2726, %v3689
    %v3691 = vsel %vm2389, %v2730, %v3690
    %v3692 = vsel %vm2391, %v2734, %v3691
    %v3693 = vsel %vm2393, %v2738, %v3692
    %v3694 = vsel %vm2395, %v2742, %v3693
    %v3695 = vsel %vm2397, %v2746, %v3694
    %v3696 = vsel %vm2399, %v2754, %v2750
    %v3697 = vsel %vm2387, %v2758, %v3696
    %v3698 = vsel %vm2389, %v2762, %v3697
    %v3699 = vsel %vm2391, %v2766, %v3698
    %v3700 = vsel %vm2393, %v2770, %v3699
    %v3701 = vsel %vm2395, %v2774, %v3700
    %v3702 = vsel %vm2397, %v2778, %v3701
    %v3703 = vsel %vm2399, %v2786, %v2782
    %v3704 = vsel %vm2387, %v2790, %v3703
    %v3705 = vsel %vm2389, %v2794, %v3704
    %v3706 = vsel %vm2391, %v2798, %v3705
    %v3707 = vsel %vm2393, %v2802, %v3706
    %v3708 = vsel %vm2395, %v2806, %v3707
    %v3709 = vsel %vm2397, %v2810, %v3708
    %v3710 = vsel %vm2399, %v2818, %v2814
    %v3711 = vsel %vm2387, %v2822, %v3710
    %v3712 = vsel %vm2389, %v2826, %v3711
    %v3713 = vsel %vm2391, %v2830, %v3712
    %v3714 = vsel %vm2393, %v2834, %v3713
    %v3715 = vsel %vm2395, %v2838, %v3714
    %v3716 = vsel %vm2397, %v2842, %v3715
    %v3717 = vsel %vm2399, %v2850, %v2846
    %v3718 = vsel %vm2387, %v2854, %v3717
    %v3719 = vsel %vm2389, %v2858, %v3718
    %v3720 = vsel %vm2391, %v2862, %v3719
    %v3721 = vsel %vm2393, %v2866, %v3720
    %v3722 = vsel %vm2395, %v2870, %v3721
    %v3723 = vsel %vm2397, %v2874, %v3722
    %v3724 = vsel %vm2399, %v2882, %v2878
    %v3725 = vsel %vm2387, %v2886, %v3724
    %v3726 = vsel %vm2389, %v2890, %v3725
    %v3727 = vsel %vm2391, %v2894, %v3726
    %v3728 = vsel %vm2393, %v2898, %v3727
    %v3729 = vsel %vm2395, %v2902, %v3728
    %v3730 = vsel %vm2397, %v2906, %v3729
    %v3731 = vsel %vm2399, %v2914, %v2910
    %v3732 = vsel %vm2387, %v2918, %v3731
    %v3733 = vsel %vm2389, %v2922, %v3732
    %v3734 = vsel %vm2391, %v2926, %v3733
    %v3735 = vsel %vm2393, %v2930, %v3734
    %v3736 = vsel %vm2395, %v2934, %v3735
    %v3737 = vsel %vm2397, %v2938, %v3736
    %v3738 = vsel %vm2399, %v2946, %v2942
    %v3739 = vsel %vm2387, %v2950, %v3738
    %v3740 = vsel %vm2389, %v2954, %v3739
    %v3741 = vsel %vm2391, %v2958, %v3740
    %v3742 = vsel %vm2393, %v2962, %v3741
    %v3743 = vsel %vm2395, %v2966, %v3742
    %v3744 = vsel %vm2397, %v2970, %v3743
    %v3745 = vsel %vm2399, %v2978, %v2974
    %v3746 = vsel %vm2387, %v2982, %v3745
    %v3747 = vsel %vm2389, %v2986, %v3746
    %v3748 = vsel %vm2391, %v2990, %v3747
    %v3749 = vsel %vm2393, %v2994, %v3748
    %v3750 = vsel %vm2395, %v2998, %v3749
    %v3751 = vsel %vm2397, %v3002, %v3750
    %v3752 = vsel %vm2399, %v3010, %v3006
    %v3753 = vsel %vm2387, %v3014, %v3752
    %v3754 = vsel %vm2389, %v3018, %v3753
    %v3755 = vsel %vm2391, %v3022, %v3754
    %v3756 = vsel %vm2393, %v3026, %v3755
    %v3757 = vsel %vm2395, %v3030, %v3756
    %v3758 = vsel %vm2397, %v3034, %v3757
    %v3759 = vsel %vm2399, %v3042, %v3038
    %v3760 = vsel %vm2387, %v3046, %v3759
    %v3761 = vsel %vm2389, %v3050, %v3760
    %v3762 = vsel %vm2391, %v3054, %v3761
    %v3763 = vsel %vm2393, %v3058, %v3762
    %v3764 = vsel %vm2395, %v3062, %v3763
    %v3765 = vsel %vm2397, %v3066, %v3764
    %v3766 = vsel %vm2399, %v3074, %v3070
    %v3767 = vsel %vm2387, %v3078, %v3766
    %v3768 = vsel %vm2389, %v3082, %v3767
    %v3769 = vsel %vm2391, %v3086, %v3768
    %v3770 = vsel %vm2393, %v3090, %v3769
    %v3771 = vsel %vm2395, %v3094, %v3770
    %v3772 = vsel %vm2397, %v3098, %v3771
    %v3773 = vsel %vm2399, %v3106, %v3102
    %v3774 = vsel %vm2387, %v3110, %v3773
    %v3775 = vsel %vm2389, %v3114, %v3774
    %v3776 = vsel %vm2391, %v3118, %v3775
    %v3777 = vsel %vm2393, %v3122, %v3776
    %v3778 = vsel %vm2395, %v3126, %v3777
    %v3779 = vsel %vm2397, %v3130, %v3778
    %v3780 = vsel %vm2399, %v3138, %v3134
    %v3781 = vsel %vm2387, %v3142, %v3780
    %v3782 = vsel %vm2389, %v3146, %v3781
    %v3783 = vsel %vm2391, %v3150, %v3782
    %v3784 = vsel %vm2393, %v3154, %v3783
    %v3785 = vsel %vm2395, %v3158, %v3784
    %v3786 = vsel %vm2397, %v3162, %v3785
    %v3787 = vsel %vm2399, %v3170, %v3166
    %v3788 = vsel %vm2387, %v3174, %v3787
    %v3789 = vsel %vm2389, %v3178, %v3788
    %v3790 = vsel %vm2391, %v3182, %v3789
    %v3791 = vsel %vm2393, %v3186, %v3790
    %v3792 = vsel %vm2395, %v3190, %v3791
    %v3793 = vsel %vm2397, %v3194, %v3792
    %v3794 = vsel %vm2399, %v3202, %v3198
    %v3795 = vsel %vm2387, %v3206, %v3794
    %v3796 = vsel %vm2389, %v3210, %v3795
    %v3797 = vsel %vm2391, %v3214, %v3796
    %v3798 = vsel %vm2393, %v3218, %v3797
    %v3799 = vsel %vm2395, %v3222, %v3798
    %v3800 = vsel %vm2397, %v3226, %v3799
    %v3801 = vsel %vm2399, %v3234, %v3230
    %v3802 = vsel %vm2387, %v3238, %v3801
    %v3803 = vsel %vm2389, %v3242, %v3802
    %v3804 = vsel %vm2391, %v3246, %v3803
    %v3805 = vsel %vm2393, %v3250, %v3804
    %v3806 = vsel %vm2395, %v3254, %v3805
    %v3807 = vsel %vm2397, %v3258, %v3806
    %v3808 = vsel %vm2399, %v3266, %v3262
    %v3809 = vsel %vm2387, %v3270, %v3808
    %v3810 = vsel %vm2389, %v3274, %v3809
    %v3811 = vsel %vm2391, %v3278, %v3810
    %v3812 = vsel %vm2393, %v3282, %v3811
    %v3813 = vsel %vm2395, %v3286, %v3812
    %v3814 = vsel %vm2397, %v3290, %v3813
    %v3815 = vsel %vm2399, %v3298, %v3294
    %v3816 = vsel %vm2387, %v3302, %v3815
    %v3817 = vsel %vm2389, %v3306, %v3816
    %v3818 = vsel %vm2391, %v3310, %v3817
    %v3819 = vsel %vm2393, %v3314, %v3818
    %v3820 = vsel %vm2395, %v3318, %v3819
    %v3821 = vsel %vm2397, %v3322, %v3820
    %v3822 = vsel %vm2399, %v3330, %v3326
    %v3823 = vsel %vm2387, %v3334, %v3822
    %v3824 = vsel %vm2389, %v3338, %v3823
    %v3825 = vsel %vm2391, %v3342, %v3824
    %v3826 = vsel %vm2393, %v3346, %v3825
    %v3827 = vsel %vm2395, %v3350, %v3826
    %v3828 = vsel %vm2397, %v3354, %v3827
    %v3829 = vsel %vm2399, %v3362, %v3358
    %v3830 = vsel %vm2387, %v3366, %v3829
    %v3831 = vsel %vm2389, %v3370, %v3830
    %v3832 = vsel %vm2391, %v3374, %v3831
    %v3833 = vsel %vm2393, %v3378, %v3832
    %v3834 = vsel %vm2395, %v3382, %v3833
    %v3835 = vsel %vm2397, %v3386, %v3834
    %v3836 = vsel %vm2399, %v3394, %v3390
    %v3837 = vsel %vm2387, %v3398, %v3836
    %v3838 = vsel %vm2389, %v3402, %v3837
    %v3839 = vsel %vm2391, %v3406, %v3838
    %v3840 = vsel %vm2393, %v3410, %v3839
    %v3841 = vsel %vm2395, %v3414, %v3840
    %v3842 = vsel %vm2397, %v3418, %v3841
    %v3843 = vsel %vm2399, %v3426, %v3422
    %v3844 = vsel %vm2387, %v3430, %v3843
    %v3845 = vsel %vm2389, %v3434, %v3844
    %v3846 = vsel %vm2391, %v3438, %v3845
    %v3847 = vsel %vm2393, %v3442, %v3846
    %v3848 = vsel %vm2395, %v3446, %v3847
    %v3849 = vsel %vm2397, %v3450, %v3848
    %v3850 = vsel %vm2399, %v3458, %v3454
    %v3851 = vsel %vm2387, %v3462, %v3850
    %v3852 = vsel %vm2389, %v3466, %v3851
    %v3853 = vsel %vm2391, %v3470, %v3852
    %v3854 = vsel %vm2393, %v3474, %v3853
    %v3855 = vsel %vm2395, %v3478, %v3854
    %v3856 = vsel %vm2397, %v3482, %v3855
    %v3857 = vsel %vm2399, %v3490, %v3486
    %v3858 = vsel %vm2387, %v3494, %v3857
    %v3859 = vsel %vm2389, %v3498, %v3858
    %v3860 = vsel %vm2391, %v3502, %v3859
    %v3861 = vsel %vm2393, %v3506, %v3860
    %v3862 = vsel %vm2395, %v3510, %v3861
    %v3863 = vsel %vm2397, %v3514, %v3862
    %v3864 = vsel %vm2399, %v3522, %v3518
    %v3865 = vsel %vm2387, %v3526, %v3864
    %v3866 = vsel %vm2389, %v3530, %v3865
    %v3867 = vsel %vm2391, %v3534, %v3866
    %v3868 = vsel %vm2393, %v3538, %v3867
    %v3869 = vsel %vm2395, %v3542, %v3868
    %v3870 = vsel %vm2397, %v3546, %v3869
    %v3871 = vsel %vm2399, %v3554, %v3550
    %v3872 = vsel %vm2387, %v3558, %v3871
    %v3873 = vsel %vm2389, %v3562, %v3872
    %v3874 = vsel %vm2391, %v3566, %v3873
    %v3875 = vsel %vm2393, %v3570, %v3874
    %v3876 = vsel %vm2395, %v3574, %v3875
    %v3877 = vsel %vm2397, %v3578, %v3876
    %v3878 = vsel %vm2399, %v3586, %v3582
    %v3879 = vsel %vm2387, %v3590, %v3878
    %v3880 = vsel %vm2389, %v3594, %v3879
    %v3881 = vsel %vm2391, %v3598, %v3880
    %v3882 = vsel %vm2393, %v3602, %v3881
    %v3883 = vsel %vm2395, %v3606, %v3882
    %v3884 = vsel %vm2397, %v3610, %v3883
    %v3885 = vsel %vm2399, %v3618, %v3614
    %v3886 = vsel %vm2387, %v3622, %v3885
    %v3887 = vsel %vm2389, %v3626, %v3886
    %v3888 = vsel %vm2391, %v3630, %v3887
    %v3889 = vsel %vm2393, %v3634, %v3888
    %v3890 = vsel %vm2395, %v3638, %v3889
    %v3891 = vsel %vm2397, %v3642, %v3890
    %v3892 = vsel %vm2399, %v3650, %v3646
    %v3893 = vsel %vm2387, %v3654, %v3892
    %v3894 = vsel %vm2389, %v3658, %v3893
    %v3895 = vsel %vm2391, %v3662, %v3894
    %v3896 = vsel %vm2393, %v3666, %v3895
    %v3897 = vsel %vm2395, %v3670, %v3896
    %v3898 = vsel %vm2397, %v3674, %v3897
    %3899 = vrot.lane.b32.xlu0 %v3681, 20
    %v3900 = vpop.permute.xlu0 %3899
    %3901 = vrot.lane.b32.xlu0 %v3688, 20
    %v3902 = vpop.permute.xlu0 %3901
    %3903 = vrot.lane.b32.xlu0 %v3695, 20
    %v3904 = vpop.permute.xlu0 %3903
    %3905 = vrot.lane.b32.xlu0 %v3702, 20
    %v3906 = vpop.permute.xlu0 %3905
    %3907 = vrot.lane.b32.xlu0 %v3709, 20
    %v3908 = vpop.permute.xlu0 %3907
    %3909 = vrot.lane.b32.xlu0 %v3716, 20
    %v3910 = vpop.permute.xlu0 %3909
    %3911 = vrot.lane.b32.xlu0 %v3723, 20
    %v3912 = vpop.permute.xlu0 %3911
    %3913 = vrot.lane.b32.xlu0 %v3730, 20
    %v3914 = vpop.permute.xlu0 %3913
    %3915 = vrot.lane.b32.xlu0 %v3737, 20
    %v3916 = vpop.permute.xlu0 %3915
    %3917 = vrot.lane.b32.xlu0 %v3744, 20
    %v3918 = vpop.permute.xlu0 %3917
    %3919 = vrot.lane.b32.xlu0 %v3751, 20
    %v3920 = vpop.permute.xlu0 %3919
    %3921 = vrot.lane.b32.xlu0 %v3758, 20
    %v3922 = vpop.permute.xlu0 %3921
    %3923 = vrot.lane.b32.xlu0 %v3765, 20
    %v3924 = vpop.permute.xlu0 %3923
    %3925 = vrot.lane.b32.xlu0 %v3772, 20
    %v3926 = vpop.permute.xlu0 %3925
    %3927 = vrot.lane.b32.xlu0 %v3779, 20
    %v3928 = vpop.permute.xlu0 %3927
    %3929 = vrot.lane.b32.xlu0 %v3786, 20
    %v3930 = vpop.permute.xlu0 %3929
    %3931 = vrot.lane.b32.xlu0 %v3793, 20
    %v3932 = vpop.permute.xlu0 %3931
    %3933 = vrot.lane.b32.xlu0 %v3800, 20
    %v3934 = vpop.permute.xlu0 %3933
    %3935 = vrot.lane.b32.xlu0 %v3807, 20
    %v3936 = vpop.permute.xlu0 %3935
    %3937 = vrot.lane.b32.xlu0 %v3814, 20
    %v3938 = vpop.permute.xlu0 %3937
    %3939 = vrot.lane.b32.xlu0 %v3821, 20
    %v3940 = vpop.permute.xlu0 %3939
    %3941 = vrot.lane.b32.xlu0 %v3828, 20
    %v3942 = vpop.permute.xlu0 %3941
    %3943 = vrot.lane.b32.xlu0 %v3835, 20
    %v3944 = vpop.permute.xlu0 %3943
    %3945 = vrot.lane.b32.xlu0 %v3842, 20
    %v3946 = vpop.permute.xlu0 %3945
    %3947 = vrot.lane.b32.xlu0 %v3849, 20
    %v3948 = vpop.permute.xlu0 %3947
    %3949 = vrot.lane.b32.xlu0 %v3856, 20
    %v3950 = vpop.permute.xlu0 %3949
    %3951 = vrot.lane.b32.xlu0 %v3863, 20
    %v3952 = vpop.permute.xlu0 %3951
    %3953 = vrot.lane.b32.xlu0 %v3870, 20
    %v3954 = vpop.permute.xlu0 %3953
    %3955 = vrot.lane.b32.xlu0 %v3877, 20
    %v3956 = vpop.permute.xlu0 %3955
    %3957 = vrot.lane.b32.xlu0 %v3884, 20
    %v3958 = vpop.permute.xlu0 %3957
    %3959 = vrot.lane.b32.xlu0 %v3891, 20
    %v3960 = vpop.permute.xlu0 %3959
    %3961 = vrot.lane.b32.xlu0 %v3898, 20
    %v3962 = vpop.permute.xlu0 %3961
    %v3995 = vlaneseq
    %v3996 = vshrl.u32 %v3995, 7
    %v3997 = vsub.s32 1, %v3996
    %v3998 = vrot.slane %v442, %v3997
    %v3999 = vlaneseq
    %v4000 = vshrl.u32 %v3999, 7
    %v4001 = vsub.s32 1, %v4000
    %v4002 = vrot.slane %v578, %v4001
    %v4003 = vlaneseq
    %v4004 = vshrl.u32 %v4003, 7
    %v4005 = vsub.s32 1, %v4004
    %v4006 = vrot.slane %v714, %v4005
    %v4007 = vlaneseq
    %v4008 = vshrl.u32 %v4007, 7
    %v4009 = vsub.s32 1, %v4008
    %v4010 = vrot.slane %v850, %v4009
    %v4011 = vlaneseq
    %v4012 = vshrl.u32 %v4011, 7
    %v4013 = vsub.s32 1, %v4012
    %v4014 = vrot.slane %v986, %v4013
    %v4015 = vlaneseq
    %v4016 = vshrl.u32 %v4015, 7
    %v4017 = vsub.s32 1, %v4016
    %v4018 = vrot.slane %v1122, %v4017
    %v4019 = vlaneseq
    %v4020 = vshrl.u32 %v4019, 7
    %v4021 = vsub.s32 1, %v4020
    %v4022 = vrot.slane %v1258, %v4021
    %v4023 = vlaneseq
    %v4024 = vshrl.u32 %v4023, 7
    %v4025 = vsub.s32 1, %v4024
    %v4026 = vrot.slane %v1394, %v4025
    %v4027 = vsel %vm2399, %v1402, %v1398
    %v4028 = vsel %vm2387, %v1406, %v4027
    %v4029 = vsel %vm2389, %v1410, %v4028
    %v4030 = vsel %vm2391, %v1414, %v4029
    %v4031 = vsel %vm2393, %v1418, %v4030
    %v4032 = vsel %vm2395, %v1422, %v4031
    %v4033 = vsel %vm2397, %v1426, %v4032
    %v4034 = vsel %vm2399, %v1434, %v1430
    %v4035 = vsel %vm2387, %v1438, %v4034
    %v4036 = vsel %vm2389, %v1442, %v4035
    %v4037 = vsel %vm2391, %v1446, %v4036
    %v4038 = vsel %vm2393, %v1450, %v4037
    %v4039 = vsel %vm2395, %v1454, %v4038
    %v4040 = vsel %vm2397, %v1458, %v4039
    %v4041 = vsel %vm2399, %v1466, %v1462
    %v4042 = vsel %vm2387, %v1470, %v4041
    %v4043 = vsel %vm2389, %v1474, %v4042
    %v4044 = vsel %vm2391, %v1478, %v4043
    %v4045 = vsel %vm2393, %v1482, %v4044
    %v4046 = vsel %vm2395, %v1486, %v4045
    %v4047 = vsel %vm2397, %v1490, %v4046
    %v4048 = vsel %vm2399, %v1498, %v1494
    %v4049 = vsel %vm2387, %v1502, %v4048
    %v4050 = vsel %vm2389, %v1506, %v4049
    %v4051 = vsel %vm2391, %v1510, %v4050
    %v4052 = vsel %vm2393, %v1514, %v4051
    %v4053 = vsel %vm2395, %v1518, %v4052
    %v4054 = vsel %vm2397, %v3998, %v4053
    %v4055 = vsel %vm2399, %v1526, %v1522
    %v4056 = vsel %vm2387, %v1530, %v4055
    %v4057 = vsel %vm2389, %v1534, %v4056
    %v4058 = vsel %vm2391, %v1538, %v4057
    %v4059 = vsel %vm2393, %v1542, %v4058
    %v4060 = vsel %vm2395, %v1546, %v4059
    %v4061 = vsel %vm2397, %v1550, %v4060
    %v4062 = vsel %vm2399, %v1558, %v1554
    %v4063 = vsel %vm2387, %v1562, %v4062
    %v4064 = vsel %vm2389, %v1566, %v4063
    %v4065 = vsel %vm2391, %v1570, %v4064
    %v4066 = vsel %vm2393, %v1574, %v4065
    %v4067 = vsel %vm2395, %v1578, %v4066
    %v4068 = vsel %vm2397, %v1582, %v4067
    %v4069 = vsel %vm2399, %v1590, %v1586
    %v4070 = vsel %vm2387, %v1594, %v4069
    %v4071 = vsel %vm2389, %v1598, %v4070
    %v4072 = vsel %vm2391, %v1602, %v4071
    %v4073 = vsel %vm2393, %v1606, %v4072
    %v4074 = vsel %vm2395, %v1610, %v4073
    %v4075 = vsel %vm2397, %v1614, %v4074
    %v4076 = vsel %vm2399, %v1622, %v1618
    %v4077 = vsel %vm2387, %v1626, %v4076
    %v4078 = vsel %vm2389, %v1630, %v4077
    %v4079 = vsel %vm2391, %v1634, %v4078
    %v4080 = vsel %vm2393, %v1638, %v4079
    %v4081 = vsel %vm2395, %v1642, %v4080
    %v4082 = vsel %vm2397, %v4002, %v4081
    %v4083 = vsel %vm2399, %v1650, %v1646
    %v4084 = vsel %vm2387, %v1654, %v4083
    %v4085 = vsel %vm2389, %v1658, %v4084
    %v4086 = vsel %vm2391, %v1662, %v4085
    %v4087 = vsel %vm2393, %v1666, %v4086
    %v4088 = vsel %vm2395, %v1670, %v4087
    %v4089 = vsel %vm2397, %v1674, %v4088
    %v4090 = vsel %vm2399, %v1682, %v1678
    %v4091 = vsel %vm2387, %v1686, %v4090
    %v4092 = vsel %vm2389, %v1690, %v4091
    %v4093 = vsel %vm2391, %v1694, %v4092
    %v4094 = vsel %vm2393, %v1698, %v4093
    %v4095 = vsel %vm2395, %v1702, %v4094
    %v4096 = vsel %vm2397, %v1706, %v4095
    %v4097 = vsel %vm2399, %v1714, %v1710
    %v4098 = vsel %vm2387, %v1718, %v4097
    %v4099 = vsel %vm2389, %v1722, %v4098
    %v4100 = vsel %vm2391, %v1726, %v4099
    %v4101 = vsel %vm2393, %v1730, %v4100
    %v4102 = vsel %vm2395, %v1734, %v4101
    %v4103 = vsel %vm2397, %v1738, %v4102
    %v4104 = vsel %vm2399, %v1746, %v1742
    %v4105 = vsel %vm2387, %v1750, %v4104
    %v4106 = vsel %vm2389, %v1754, %v4105
    %v4107 = vsel %vm2391, %v1758, %v4106
    %v4108 = vsel %vm2393, %v1762, %v4107
    %v4109 = vsel %vm2395, %v1766, %v4108
    %v4110 = vsel %vm2397, %v4006, %v4109
    %v4111 = vsel %vm2399, %v1774, %v1770
    %v4112 = vsel %vm2387, %v1778, %v4111
    %v4113 = vsel %vm2389, %v1782, %v4112
    %v4114 = vsel %vm2391, %v1786, %v4113
    %v4115 = vsel %vm2393, %v1790, %v4114
    %v4116 = vsel %vm2395, %v1794, %v4115
    %v4117 = vsel %vm2397, %v1798, %v4116
    %v4118 = vsel %vm2399, %v1806, %v1802
    %v4119 = vsel %vm2387, %v1810, %v4118
    %v4120 = vsel %vm2389, %v1814, %v4119
    %v4121 = vsel %vm2391, %v1818, %v4120
    %v4122 = vsel %vm2393, %v1822, %v4121
    %v4123 = vsel %vm2395, %v1826, %v4122
    %v4124 = vsel %vm2397, %v1830, %v4123
    %v4125 = vsel %vm2399, %v1838, %v1834
    %v4126 = vsel %vm2387, %v1842, %v4125
    %v4127 = vsel %vm2389, %v1846, %v4126
    %v4128 = vsel %vm2391, %v1850, %v4127
    %v4129 = vsel %vm2393, %v1854, %v4128
    %v4130 = vsel %vm2395, %v1858, %v4129
    %v4131 = vsel %vm2397, %v1862, %v4130
    %v4132 = vsel %vm2399, %v1870, %v1866
    %v4133 = vsel %vm2387, %v1874, %v4132
    %v4134 = vsel %vm2389, %v1878, %v4133
    %v4135 = vsel %vm2391, %v1882, %v4134
    %v4136 = vsel %vm2393, %v1886, %v4135
    %v4137 = vsel %vm2395, %v1890, %v4136
    %v4138 = vsel %vm2397, %v4010, %v4137
    %v4139 = vsel %vm2399, %v1898, %v1894
    %v4140 = vsel %vm2387, %v1902, %v4139
    %v4141 = vsel %vm2389, %v1906, %v4140
    %v4142 = vsel %vm2391, %v1910, %v4141
    %v4143 = vsel %vm2393, %v1914, %v4142
    %v4144 = vsel %vm2395, %v1918, %v4143
    %v4145 = vsel %vm2397, %v1922, %v4144
    %v4146 = vsel %vm2399, %v1930, %v1926
    %v4147 = vsel %vm2387, %v1934, %v4146
    %v4148 = vsel %vm2389, %v1938, %v4147
    %v4149 = vsel %vm2391, %v1942, %v4148
    %v4150 = vsel %vm2393, %v1946, %v4149
    %v4151 = vsel %vm2395, %v1950, %v4150
    %v4152 = vsel %vm2397, %v1954, %v4151
    %v4153 = vsel %vm2399, %v1962, %v1958
    %v4154 = vsel %vm2387, %v1966, %v4153
    %v4155 = vsel %vm2389, %v1970, %v4154
    %v4156 = vsel %vm2391, %v1974, %v4155
    %v4157 = vsel %vm2393, %v1978, %v4156
    %v4158 = vsel %vm2395, %v1982, %v4157
    %v4159 = vsel %vm2397, %v1986, %v4158
    %v4160 = vsel %vm2399, %v1994, %v1990
    %v4161 = vsel %vm2387, %v1998, %v4160
    %v4162 = vsel %vm2389, %v2002, %v4161
    %v4163 = vsel %vm2391, %v2006, %v4162
    %v4164 = vsel %vm2393, %v2010, %v4163
    %v4165 = vsel %vm2395, %v2014, %v4164
    %v4166 = vsel %vm2397, %v4014, %v4165
    %v4167 = vsel %vm2399, %v2022, %v2018
    %v4168 = vsel %vm2387, %v2026, %v4167
    %v4169 = vsel %vm2389, %v2030, %v4168
    %v4170 = vsel %vm2391, %v2034, %v4169
    %v4171 = vsel %vm2393, %v2038, %v4170
    %v4172 = vsel %vm2395, %v2042, %v4171
    %v4173 = vsel %vm2397, %v2046, %v4172
    %v4174 = vsel %vm2399, %v2054, %v2050
    %v4175 = vsel %vm2387, %v2058, %v4174
    %v4176 = vsel %vm2389, %v2062, %v4175
    %v4177 = vsel %vm2391, %v2066, %v4176
    %v4178 = vsel %vm2393, %v2070, %v4177
    %v4179 = vsel %vm2395, %v2074, %v4178
    %v4180 = vsel %vm2397, %v2078, %v4179
    %v4181 = vsel %vm2399, %v2086, %v2082
    %v4182 = vsel %vm2387, %v2090, %v4181
    %v4183 = vsel %vm2389, %v2094, %v4182
    %v4184 = vsel %vm2391, %v2098, %v4183
    %v4185 = vsel %vm2393, %v2102, %v4184
    %v4186 = vsel %vm2395, %v2106, %v4185
    %v4187 = vsel %vm2397, %v2110, %v4186
    %v4188 = vsel %vm2399, %v2118, %v2114
    %v4189 = vsel %vm2387, %v2122, %v4188
    %v4190 = vsel %vm2389, %v2126, %v4189
    %v4191 = vsel %vm2391, %v2130, %v4190
    %v4192 = vsel %vm2393, %v2134, %v4191
    %v4193 = vsel %vm2395, %v2138, %v4192
    %v4194 = vsel %vm2397, %v4018, %v4193
    %v4195 = vsel %vm2399, %v2146, %v2142
    %v4196 = vsel %vm2387, %v2150, %v4195
    %v4197 = vsel %vm2389, %v2154, %v4196
    %v4198 = vsel %vm2391, %v2158, %v4197
    %v4199 = vsel %vm2393, %v2162, %v4198
    %v4200 = vsel %vm2395, %v2166, %v4199
    %v4201 = vsel %vm2397, %v2170, %v4200
    %v4202 = vsel %vm2399, %v2178, %v2174
    %v4203 = vsel %vm2387, %v2182, %v4202
    %v4204 = vsel %vm2389, %v2186, %v4203
    %v4205 = vsel %vm2391, %v2190, %v4204
    %v4206 = vsel %vm2393, %v2194, %v4205
    %v4207 = vsel %vm2395, %v2198, %v4206
    %v4208 = vsel %vm2397, %v2202, %v4207
    %v4209 = vsel %vm2399, %v2210, %v2206
    %v4210 = vsel %vm2387, %v2214, %v4209
    %v4211 = vsel %vm2389, %v2218, %v4210
    %v4212 = vsel %vm2391, %v2222, %v4211
    %v4213 = vsel %vm2393, %v2226, %v4212
    %v4214 = vsel %vm2395, %v2230, %v4213
    %v4215 = vsel %vm2397, %v2234, %v4214
    %v4216 = vsel %vm2399, %v2242, %v2238
    %v4217 = vsel %vm2387, %v2246, %v4216
    %v4218 = vsel %vm2389, %v2250, %v4217
    %v4219 = vsel %vm2391, %v2254, %v4218
    %v4220 = vsel %vm2393, %v2258, %v4219
    %v4221 = vsel %vm2395, %v2262, %v4220
    %v4222 = vsel %vm2397, %v4022, %v4221
    %v4223 = vsel %vm2399, %v2270, %v2266
    %v4224 = vsel %vm2387, %v2274, %v4223
    %v4225 = vsel %vm2389, %v2278, %v4224
    %v4226 = vsel %vm2391, %v2282, %v4225
    %v4227 = vsel %vm2393, %v2286, %v4226
    %v4228 = vsel %vm2395, %v2290, %v4227
    %v4229 = vsel %vm2397, %v2294, %v4228
    %v4230 = vsel %vm2399, %v2302, %v2298
    %v4231 = vsel %vm2387, %v2306, %v4230
    %v4232 = vsel %vm2389, %v2310, %v4231
    %v4233 = vsel %vm2391, %v2314, %v4232
    %v4234 = vsel %vm2393, %v2318, %v4233
    %v4235 = vsel %vm2395, %v2322, %v4234
    %v4236 = vsel %vm2397, %v2326, %v4235
    %v4237 = vsel %vm2399, %v2334, %v2330
    %v4238 = vsel %vm2387, %v2338, %v4237
    %v4239 = vsel %vm2389, %v2342, %v4238
    %v4240 = vsel %vm2391, %v2346, %v4239
    %v4241 = vsel %vm2393, %v2350, %v4240
    %v4242 = vsel %vm2395, %v2354, %v4241
    %v4243 = vsel %vm2397, %v2358, %v4242
    %v4244 = vsel %vm2399, %v2366, %v2362
    %v4245 = vsel %vm2387, %v2370, %v4244
    %v4246 = vsel %vm2389, %v2374, %v4245
    %v4247 = vsel %vm2391, %v2378, %v4246
    %v4248 = vsel %vm2393, %v2382, %v4247
    %v4249 = vsel %vm2395, %v2386, %v4248
    %v4250 = vsel %vm2397, %v4026, %v4249
    %4251 = vrot.lane.b32.xlu0 %v4033, 40
    %v4252 = vpop.permute.xlu0 %4251
    %4253 = vrot.lane.b32.xlu0 %v4040, 40
    %v4254 = vpop.permute.xlu0 %4253
    %4255 = vrot.lane.b32.xlu0 %v4047, 40
    %v4256 = vpop.permute.xlu0 %4255
    %4257 = vrot.lane.b32.xlu0 %v4054, 40
    %v4258 = vpop.permute.xlu0 %4257
    %4259 = vrot.lane.b32.xlu0 %v4061, 40
    %v4260 = vpop.permute.xlu0 %4259
    %4261 = vrot.lane.b32.xlu0 %v4068, 40
    %v4262 = vpop.permute.xlu0 %4261
    %4263 = vrot.lane.b32.xlu0 %v4075, 40
    %v4264 = vpop.permute.xlu0 %4263
    %4265 = vrot.lane.b32.xlu0 %v4082, 40
    %v4266 = vpop.permute.xlu0 %4265
    %4267 = vrot.lane.b32.xlu0 %v4089, 40
    %v4268 = vpop.permute.xlu0 %4267
    %4269 = vrot.lane.b32.xlu0 %v4096, 40
    %v4270 = vpop.permute.xlu0 %4269
    %4271 = vrot.lane.b32.xlu0 %v4103, 40
    %v4272 = vpop.permute.xlu0 %4271
    %4273 = vrot.lane.b32.xlu0 %v4110, 40
    %v4274 = vpop.permute.xlu0 %4273
    %4275 = vrot.lane.b32.xlu0 %v4117, 40
    %v4276 = vpop.permute.xlu0 %4275
    %4277 = vrot.lane.b32.xlu0 %v4124, 40
    %v4278 = vpop.permute.xlu0 %4277
    %4279 = vrot.lane.b32.xlu0 %v4131, 40
    %v4280 = vpop.permute.xlu0 %4279
    %4281 = vrot.lane.b32.xlu0 %v4138, 40
    %v4282 = vpop.permute.xlu0 %4281
    %4283 = vrot.lane.b32.xlu0 %v4145, 40
    %v4284 = vpop.permute.xlu0 %4283
    %4285 = vrot.lane.b32.xlu0 %v4152, 40
    %v4286 = vpop.permute.xlu0 %4285
    %4287 = vrot.lane.b32.xlu0 %v4159, 40
    %v4288 = vpop.permute.xlu0 %4287
    %4289 = vrot.lane.b32.xlu0 %v4166, 40
    %v4290 = vpop.permute.xlu0 %4289
    %4291 = vrot.lane.b32.xlu0 %v4173, 40
    %v4292 = vpop.permute.xlu0 %4291
    %4293 = vrot.lane.b32.xlu0 %v4180, 40
    %v4294 = vpop.permute.xlu0 %4293
    %4295 = vrot.lane.b32.xlu0 %v4187, 40
    %v4296 = vpop.permute.xlu0 %4295
    %4297 = vrot.lane.b32.xlu0 %v4194, 40
    %v4298 = vpop.permute.xlu0 %4297
    %4299 = vrot.lane.b32.xlu0 %v4201, 40
    %v4300 = vpop.permute.xlu0 %4299
    %4301 = vrot.lane.b32.xlu0 %v4208, 40
    %v4302 = vpop.permute.xlu0 %4301
    %4303 = vrot.lane.b32.xlu0 %v4215, 40
    %v4304 = vpop.permute.xlu0 %4303
    %4305 = vrot.lane.b32.xlu0 %v4222, 40
    %v4306 = vpop.permute.xlu0 %4305
    %4307 = vrot.lane.b32.xlu0 %v4229, 40
    %v4308 = vpop.permute.xlu0 %4307
    %4309 = vrot.lane.b32.xlu0 %v4236, 40
    %v4310 = vpop.permute.xlu0 %4309
    %4311 = vrot.lane.b32.xlu0 %v4243, 40
    %v4312 = vpop.permute.xlu0 %4311
    %4313 = vrot.lane.b32.xlu0 %v4250, 40
    %v4314 = vpop.permute.xlu0 %4313
    %vm4347 = vcmask 162816
    %v4348 = vsel %vm4347, %v2643, %v3900
    %v4349 = vsel %vm4347, %v2406, %v3902
    %v4350 = vsel %vm4347, %v2413, %v3904
    %v4351 = vsel %vm4347, %v2420, %v3906
    %v4352 = vsel %vm4347, %v2644, %v3908
    %v4353 = vsel %vm4347, %v2433, %v3910
    %v4354 = vsel %vm4347, %v2440, %v3912
    %v4355 = vsel %vm4347, %v2447, %v3914
    %v4356 = vsel %vm4347, %v2645, %v3916
    %v4357 = vsel %vm4347, %v2460, %v3918
    %v4358 = vsel %vm4347, %v2467, %v3920
    %v4359 = vsel %vm4347, %v2474, %v3922
    %v4360 = vsel %vm4347, %v2646, %v3924
    %v4361 = vsel %vm4347, %v2487, %v3926
    %v4362 = vsel %vm4347, %v2494, %v3928
    %v4363 = vsel %vm4347, %v2501, %v3930
    %v4364 = vsel %vm4347, %v2647, %v3932
    %v4365 = vsel %vm4347, %v2514, %v3934
    %v4366 = vsel %vm4347, %v2521, %v3936
    %v4367 = vsel %vm4347, %v2528, %v3938
    %v4368 = vsel %vm4347, %v2648, %v3940
    %v4369 = vsel %vm4347, %v2541, %v3942
    %v4370 = vsel %vm4347, %v2548, %v3944
    %v4371 = vsel %vm4347, %v2555, %v3946
    %v4372 = vsel %vm4347, %v2649, %v3948
    %v4373 = vsel %vm4347, %v2568, %v3950
    %v4374 = vsel %vm4347, %v2575, %v3952
    %v4375 = vsel %vm4347, %v2582, %v3954
    %v4376 = vsel %vm4347, %v2650, %v3956
    %v4377 = vsel %vm4347, %v2595, %v3958
    %v4378 = vsel %vm4347, %v2602, %v3960
    %v4379 = vsel %vm4347, %v2609, %v3962
    %vm4380 = vcmask 326656
    %v4381 = vsel %vm4380, %v4348, %v4252
    %v4382 = vsel %vm4380, %v4349, %v4254
    %v4383 = vsel %vm4380, %v4350, %v4256
    %v4384 = vsel %vm4380, %v4351, %v4258
    %v4385 = vsel %vm4380, %v4352, %v4260
    %v4386 = vsel %vm4380, %v4353, %v4262
    %v4387 = vsel %vm4380, %v4354, %v4264
    %v4388 = vsel %vm4380, %v4355, %v4266
    %v4389 = vsel %vm4380, %v4356, %v4268
    %v4390 = vsel %vm4380, %v4357, %v4270
    %v4391 = vsel %vm4380, %v4358, %v4272
    %v4392 = vsel %vm4380, %v4359, %v4274
    %v4393 = vsel %vm4380, %v4360, %v4276
    %v4394 = vsel %vm4380, %v4361, %v4278
    %v4395 = vsel %vm4380, %v4362, %v4280
    %v4396 = vsel %vm4380, %v4363, %v4282
    %v4397 = vsel %vm4380, %v4364, %v4284
    %v4398 = vsel %vm4380, %v4365, %v4286
    %v4399 = vsel %vm4380, %v4366, %v4288
    %v4400 = vsel %vm4380, %v4367, %v4290
    %v4401 = vsel %vm4380, %v4368, %v4292
    %v4402 = vsel %vm4380, %v4369, %v4294
    %v4403 = vsel %vm4380, %v4370, %v4296
    %v4404 = vsel %vm4380, %v4371, %v4298
    %v4405 = vsel %vm4380, %v4372, %v4300
    %v4406 = vsel %vm4380, %v4373, %v4302
    %v4407 = vsel %vm4380, %v4374, %v4304
    %v4408 = vsel %vm4380, %v4375, %v4306
    %v4409 = vsel %vm4380, %v4376, %v4308
    %v4410 = vsel %vm4380, %v4377, %v4310
    %v4411 = vsel %vm4380, %v4378, %v4312
    %v4412 = vsel %vm4380, %v4379, %v4314
    %v4413 = vpack.c.bf16 %v4382, %v4381
    %v4414 = vpack.c.bf16 %v4384, %v4383
    %v4415 = vpack.c.bf16 %v4386, %v4385
    %v4416 = vpack.c.bf16 %v4388, %v4387
    %v4417 = vpack.c.bf16 %v4390, %v4389
    %v4418 = vpack.c.bf16 %v4392, %v4391
    %v4419 = vpack.c.bf16 %v4394, %v4393
    %v4420 = vpack.c.bf16 %v4396, %v4395
    %v4421 = vpack.c.bf16 %v4398, %v4397
    %v4422 = vpack.c.bf16 %v4400, %v4399
    %v4423 = vpack.c.bf16 %v4402, %v4401
    %v4424 = vpack.c.bf16 %v4404, %v4403
    %v4425 = vpack.c.bf16 %v4406, %v4405
    %v4426 = vpack.c.bf16 %v4408, %v4407
    %v4427 = vpack.c.bf16 %v4410, %v4409
    %v4428 = vpack.c.bf16 %v4412, %v4411
    %v4437 = vunpack.c.l.b16 %v232
    %v4438 = vunpack.c.l.b16 %v233
    %v4439 = vunpack.c.l.b16 %v234
    %v4440 = vunpack.c.l.b16 %v235
    %v4441 = vunpack.c.l.b16 %v236
    %v4442 = vunpack.c.l.b16 %v237
    %v4443 = vunpack.c.l.b16 %v238
    %v4444 = vunpack.c.l.b16 %v239
    %v4445 = vpack.c.b16 %v4438, %v4437
    %v4446 = vpack.c.b16 %v4440, %v4439
    %v4447 = vpack.c.b16 %v4442, %v4441
    %v4448 = vpack.c.b16 %v4444, %v4443
    %vm4452 = vcmask 490496
    %v4454 = vsel %vm4452, %v4413, 0
    %v4457 = vsel %vm4452, %v4414, 0
    %v4460 = vsel %vm4452, %v4415, 0
    %v4463 = vsel %vm4452, %v4416, 0
    %v4466 = vsel %vm4452, %v4417, 0
    %v4469 = vsel %vm4452, %v4418, 0
    %v4472 = vsel %vm4452, %v4419, 0
    %v4475 = vsel %vm4452, %v4420, 0
    %v4478 = vsel %vm4452, %v4421, 0
    %v4481 = vsel %vm4452, %v4422, 0
    %v4484 = vsel %vm4452, %v4423, 0
    %v4487 = vsel %vm4452, %v4424, 0
    %v4490 = vsel %vm4452, %v4425, 0
    %v4493 = vsel %vm4452, %v4426, 0
    %v4496 = vsel %vm4452, %v4427, 0
    %v4499 = vsel %vm4452, %v4428, 0
    %vm4501 = vcmask 1045504
    %v4503 = vsel %vm4501, %v4448, 0
    %4505 = vmatprep.subr.bf16.mxu0 0
    %4506 = vmatpush1.bf16.msra.mxu0 0
    %4507 = vmatprep.subr.bf16.mxu0 0
    %4508 = vmatpush1.bf16.msra.mxu0 0
    %4509 = vmatprep.subr.bf16.mxu0 0
    %4510 = vmatpush1.bf16.msra.mxu0 0
    %4511 = vmatprep.subr.bf16.mxu0 0
    %4512 = vmatpush1.bf16.msra.mxu0 0
    %4513 = vmatprep.subr.bf16.mxu0 0
    %4514 = vmatpush1.bf16.msra.mxu0 %v4503
    %4515 = vmatprep.subr.bf16.mxu0 0
    %4516 = vmatpush1.bf16.msra.mxu0 %v4447
    %4517 = vmatprep.subr.bf16.mxu0 0
    %4518 = vmatpush1.bf16.msra.mxu0 %v4446
    %4519 = vmatprep.subr.bf16.mxu0 0
    %4520 = vmatpush1.bf16.msra.mxu0 %v4445
    %4521 = vmatprep.subr.bf16.mxu0 0
    %4522 = vmatpush2.bf16.msra.mxu0 0
    %4523 = vmatprep.subr.bf16.mxu0 0
    %4524 = vmatpush2.bf16.msra.mxu0 0
    %4525 = vmatprep.subr.bf16.mxu0 0
    %4526 = vmatpush2.bf16.msra.mxu0 0
    %4527 = vmatprep.subr.bf16.mxu0 0
    %4528 = vmatpush2.bf16.msra.mxu0 0
    %4529 = vmatprep.subr.bf16.mxu0 0
    %4530 = vmatpush2.bf16.msra.mxu0 0
    %4531 = vmatprep.subr.bf16.mxu0 0
    %4532 = vmatpush2.bf16.msra.mxu0 0
    %4533 = vmatprep.subr.bf16.mxu0 0
    %4534 = vmatpush2.bf16.msra.mxu0 0
    %4535 = vmatprep.subr.bf16.mxu0 0
    %4536 = vmatpush2.bf16.msra.mxu0 0
    %4537 = vmatprep.mubr.bf16.mxu0 0
    %4538 = vmatmul.mubr.bf16.gmra.mxu0 %v4454
    %v4539 = vpop.f32.mrf.mxu0
    %v4540 = vadd.f32 %v240, %v4539
    %v4541 = vpop.f32.mrf.mxu0
    %v4542 = vpop.f32.mrf.mxu0
    %v4543 = vadd.f32 %v240, %v4542
    %v4544 = vpop.f32.mrf.mxu0
    %4545 = vmatprep.mubr.bf16.mxu0 0
    %4546 = vmatmul.mubr.bf16.gmra.mxu0 %v4457
    %v4547 = vpop.f32.mrf.mxu0
    %v4548 = vadd.f32 %v240, %v4547
    %v4549 = vpop.f32.mrf.mxu0
    %v4550 = vpop.f32.mrf.mxu0
    %v4551 = vadd.f32 %v240, %v4550
    %v4552 = vpop.f32.mrf.mxu0
    %4553 = vmatprep.mubr.bf16.mxu0 0
    %4554 = vmatmul.mubr.bf16.gmra.mxu0 %v4460
    %v4555 = vpop.f32.mrf.mxu0
    %v4556 = vadd.f32 %v240, %v4555
    %v4557 = vpop.f32.mrf.mxu0
    %v4558 = vpop.f32.mrf.mxu0
    %v4559 = vadd.f32 %v240, %v4558
    %v4560 = vpop.f32.mrf.mxu0
    %4561 = vmatprep.mubr.bf16.mxu0 0
    %4562 = vmatmul.mubr.bf16.gmra.mxu0 %v4463
    %v4563 = vpop.f32.mrf.mxu0
    %v4564 = vadd.f32 %v240, %v4563
    %v4565 = vpop.f32.mrf.mxu0
    %v4566 = vpop.f32.mrf.mxu0
    %v4567 = vadd.f32 %v240, %v4566
    %v4568 = vpop.f32.mrf.mxu0
    %4569 = vmatprep.mubr.bf16.mxu0 0
    %4570 = vmatmul.mubr.bf16.gmra.mxu0 %v4466
    %v4571 = vpop.f32.mrf.mxu0
    %v4572 = vadd.f32 %v240, %v4571
    %v4573 = vpop.f32.mrf.mxu0
    %v4574 = vpop.f32.mrf.mxu0
    %v4575 = vadd.f32 %v240, %v4574
    %v4576 = vpop.f32.mrf.mxu0
    %4577 = vmatprep.mubr.bf16.mxu0 0
    %4578 = vmatmul.mubr.bf16.gmra.mxu0 %v4469
    %v4579 = vpop.f32.mrf.mxu0
    %v4580 = vadd.f32 %v240, %v4579
    %v4581 = vpop.f32.mrf.mxu0
    %v4582 = vpop.f32.mrf.mxu0
    %v4583 = vadd.f32 %v240, %v4582
    %v4584 = vpop.f32.mrf.mxu0
    %4585 = vmatprep.mubr.bf16.mxu0 0
    %4586 = vmatmul.mubr.bf16.gmra.mxu0 %v4472
    %v4587 = vpop.f32.mrf.mxu0
    %v4588 = vadd.f32 %v240, %v4587
    %v4589 = vpop.f32.mrf.mxu0
    %v4590 = vpop.f32.mrf.mxu0
    %v4591 = vadd.f32 %v240, %v4590
    %v4592 = vpop.f32.mrf.mxu0
    %4593 = vmatprep.mubr.bf16.mxu0 0
    %4594 = vmatmul.mubr.bf16.gmra.mxu0 %v4475
    %v4595 = vpop.f32.mrf.mxu0
    %v4596 = vadd.f32 %v240, %v4595
    %v4597 = vpop.f32.mrf.mxu0
    %v4598 = vpop.f32.mrf.mxu0
    %v4599 = vadd.f32 %v240, %v4598
    %v4600 = vpop.f32.mrf.mxu0
    %4601 = vmatprep.mubr.bf16.mxu0 0
    %4602 = vmatmul.mubr.bf16.gmra.mxu0 %v4478
    %v4603 = vpop.f32.mrf.mxu0
    %v4604 = vadd.f32 %v240, %v4603
    %v4605 = vpop.f32.mrf.mxu0
    %v4606 = vpop.f32.mrf.mxu0
    %v4607 = vadd.f32 %v240, %v4606
    %v4608 = vpop.f32.mrf.mxu0
    %4609 = vmatprep.mubr.bf16.mxu0 0
    %4610 = vmatmul.mubr.bf16.gmra.mxu0 %v4481
    %v4611 = vpop.f32.mrf.mxu0
    %v4612 = vadd.f32 %v240, %v4611
    %v4613 = vpop.f32.mrf.mxu0
    %v4614 = vpop.f32.mrf.mxu0
    %v4615 = vadd.f32 %v240, %v4614
    %v4616 = vpop.f32.mrf.mxu0
    %4617 = vmatprep.mubr.bf16.mxu0 0
    %4618 = vmatmul.mubr.bf16.gmra.mxu0 %v4484
    %v4619 = vpop.f32.mrf.mxu0
    %v4620 = vadd.f32 %v240, %v4619
    %v4621 = vpop.f32.mrf.mxu0
    %v4622 = vpop.f32.mrf.mxu0
    %v4623 = vadd.f32 %v240, %v4622
    %v4624 = vpop.f32.mrf.mxu0
    %4625 = vmatprep.mubr.bf16.mxu0 0
    %4626 = vmatmul.mubr.bf16.gmra.mxu0 %v4487
    %v4627 = vpop.f32.mrf.mxu0
    %v4628 = vadd.f32 %v240, %v4627
    %v4629 = vpop.f32.mrf.mxu0
    %v4630 = vpop.f32.mrf.mxu0
    %v4631 = vadd.f32 %v240, %v4630
    %v4632 = vpop.f32.mrf.mxu0
    %4633 = vmatprep.mubr.bf16.mxu0 0
    %4634 = vmatmul.mubr.bf16.gmra.mxu0 %v4490
    %v4635 = vpop.f32.mrf.mxu0
    %v4636 = vadd.f32 %v240, %v4635
    %v4637 = vpop.f32.mrf.mxu0
    %v4638 = vpop.f32.mrf.mxu0
    %v4639 = vadd.f32 %v240, %v4638
    %v4640 = vpop.f32.mrf.mxu0
    %4641 = vmatprep.mubr.bf16.mxu0 0
    %4642 = vmatmul.mubr.bf16.gmra.mxu0 %v4493
    %v4643 = vpop.f32.mrf.mxu0
    %v4644 = vadd.f32 %v240, %v4643
    %v4645 = vpop.f32.mrf.mxu0
    %v4646 = vpop.f32.mrf.mxu0
    %v4647 = vadd.f32 %v240, %v4646
    %v4648 = vpop.f32.mrf.mxu0
    %4649 = vmatprep.mubr.bf16.mxu0 0
    %4650 = vmatmul.mubr.bf16.gmra.mxu0 %v4496
    %v4651 = vpop.f32.mrf.mxu0
    %v4652 = vadd.f32 %v240, %v4651
    %v4653 = vpop.f32.mrf.mxu0
    %v4654 = vpop.f32.mrf.mxu0
    %v4655 = vadd.f32 %v240, %v4654
    %v4656 = vpop.f32.mrf.mxu0
    %4657 = vmatprep.mubr.bf16.mxu0 0
    %4658 = vmatmul.mubr.bf16.gmra.mxu0 %v4499
    %v4659 = vpop.f32.mrf.mxu0
    %v4660 = vadd.f32 %v240, %v4659
    %v4661 = vpop.f32.mrf.mxu0
    %v4662 = vpop.f32.mrf.mxu0
    %v4663 = vadd.f32 %v240, %v4662
    %v4664 = vpop.f32.mrf.mxu0
    %4665 = vdwg.mxu0
    %v4666 = vmax.f32 %v4540, 0.0
    %v4667 = vmax.f32 %v4543, 0.0
    %v4668 = vmax.f32 %v4548, 0.0
    %v4669 = vmax.f32 %v4551, 0.0
    %v4670 = vmax.f32 %v4556, 0.0
    %v4671 = vmax.f32 %v4559, 0.0
    %v4672 = vmax.f32 %v4564, 0.0
    %v4673 = vmax.f32 %v4567, 0.0
    %v4674 = vmax.f32 %v4572, 0.0
    %v4675 = vmax.f32 %v4575, 0.0
    %v4676 = vmax.f32 %v4580, 0.0
    %v4677 = vmax.f32 %v4583, 0.0
    %v4678 = vmax.f32 %v4588, 0.0
    %v4679 = vmax.f32 %v4591, 0.0
    %v4680 = vmax.f32 %v4596, 0.0
    %v4681 = vmax.f32 %v4599, 0.0
    %v4682 = vmax.f32 %v4604, 0.0
    %v4683 = vmax.f32 %v4607, 0.0
    %v4684 = vmax.f32 %v4612, 0.0
    %v4685 = vmax.f32 %v4615, 0.0
    %v4686 = vmax.f32 %v4620, 0.0
    %v4687 = vmax.f32 %v4623, 0.0
    %v4688 = vmax.f32 %v4628, 0.0
    %v4689 = vmax.f32 %v4631, 0.0
    %v4690 = vmax.f32 %v4636, 0.0
    %v4691 = vmax.f32 %v4639, 0.0
    %v4692 = vmax.f32 %v4644, 0.0
    %v4693 = vmax.f32 %v4647, 0.0
    %v4694 = vmax.f32 %v4652, 0.0
    %v4695 = vmax.f32 %v4655, 0.0
    %v4696 = vmax.f32 %v4660, 0.0
    %v4697 = vmax.f32 %v4663, 0.0
    %v4730 = vcombine.high %v4666, %v4666
    %v4732 = vunpack.c.l.s4 1983009808
    %v4733 = vunpack.c.0.s8 %v4732
    %v4734 = vlaneseq
    %v4735 = vshrl.u32 %v4734, 7
    %v4736 = vsub.s32 %v4733, %v4735
    %v4737 = vrot.slane %v4666, %v4736
    %v4739 = vunpack.c.l.s4 1983009808
    %v4740 = vunpack.c.0.s8 %v4739
    %v4741 = vlaneseq
    %v4742 = vshrl.u32 %v4741, 7
    %v4743 = vsub.s32 %v4740, %v4742
    %v4744 = vrot.slane %v4730, %v4743
    %v4745 = vcombine.high %v4737, %v4737
    %v4746 = vcombine.high %v4744, %v4744
    %v4747 = vcombine.high %v4667, %v4667
    %v4749 = vunpack.c.l.s4 1983009808
    %v4750 = vunpack.c.0.s8 %v4749
    %v4751 = vlaneseq
    %v4752 = vshrl.u32 %v4751, 7
    %v4753 = vsub.s32 %v4750, %v4752
    %v4754 = vrot.slane %v4667, %v4753
    %v4756 = vunpack.c.l.s4 1983009808
    %v4757 = vunpack.c.0.s8 %v4756
    %v4758 = vlaneseq
    %v4759 = vshrl.u32 %v4758, 7
    %v4760 = vsub.s32 %v4757, %v4759
    %v4761 = vrot.slane %v4747, %v4760
    %v4762 = vcombine.high %v4754, %v4754
    %v4763 = vcombine.high %v4761, %v4761
    %v4764 = vcombine.high %v4668, %v4668
    %v4766 = vunpack.c.l.s4 1983009808
    %v4767 = vunpack.c.0.s8 %v4766
    %v4768 = vlaneseq
    %v4769 = vshrl.u32 %v4768, 7
    %v4770 = vsub.s32 %v4767, %v4769
    %v4771 = vrot.slane %v4668, %v4770
    %v4773 = vunpack.c.l.s4 1983009808
    %v4774 = vunpack.c.0.s8 %v4773
    %v4775 = vlaneseq
    %v4776 = vshrl.u32 %v4775, 7
    %v4777 = vsub.s32 %v4774, %v4776
    %v4778 = vrot.slane %v4764, %v4777
    %v4779 = vcombine.high %v4771, %v4771
    %v4780 = vcombine.high %v4778, %v4778
    %v4781 = vcombine.high %v4669, %v4669
    %v4783 = vunpack.c.l.s4 1983009808
    %v4784 = vunpack.c.0.s8 %v4783
    %v4785 = vlaneseq
    %v4786 = vshrl.u32 %v4785, 7
    %v4787 = vsub.s32 %v4784, %v4786
    %v4788 = vrot.slane %v4669, %v4787
    %v4790 = vunpack.c.l.s4 1983009808
    %v4791 = vunpack.c.0.s8 %v4790
    %v4792 = vlaneseq
    %v4793 = vshrl.u32 %v4792, 7
    %v4794 = vsub.s32 %v4791, %v4793
    %v4795 = vrot.slane %v4781, %v4794
    %v4796 = vcombine.high %v4788, %v4788
    %v4797 = vcombine.high %v4795, %v4795
    %v4798 = vcombine.high %v4670, %v4670
    %v4800 = vunpack.c.l.s4 1983009808
    %v4801 = vunpack.c.0.s8 %v4800
    %v4802 = vlaneseq
    %v4803 = vshrl.u32 %v4802, 7
    %v4804 = vsub.s32 %v4801, %v4803
    %v4805 = vrot.slane %v4670, %v4804
    %v4807 = vunpack.c.l.s4 1983009808
    %v4808 = vunpack.c.0.s8 %v4807
    %v4809 = vlaneseq
    %v4810 = vshrl.u32 %v4809, 7
    %v4811 = vsub.s32 %v4808, %v4810
    %v4812 = vrot.slane %v4798, %v4811
    %v4813 = vcombine.high %v4805, %v4805
    %v4814 = vcombine.high %v4812, %v4812
    %v4815 = vcombine.high %v4671, %v4671
    %v4817 = vunpack.c.l.s4 1983009808
    %v4818 = vunpack.c.0.s8 %v4817
    %v4819 = vlaneseq
    %v4820 = vshrl.u32 %v4819, 7
    %v4821 = vsub.s32 %v4818, %v4820
    %v4822 = vrot.slane %v4671, %v4821
    %v4824 = vunpack.c.l.s4 1983009808
    %v4825 = vunpack.c.0.s8 %v4824
    %v4826 = vlaneseq
    %v4827 = vshrl.u32 %v4826, 7
    %v4828 = vsub.s32 %v4825, %v4827
    %v4829 = vrot.slane %v4815, %v4828
    %v4830 = vcombine.high %v4822, %v4822
    %v4831 = vcombine.high %v4829, %v4829
    %v4832 = vcombine.high %v4672, %v4672
    %v4834 = vunpack.c.l.s4 1983009808
    %v4835 = vunpack.c.0.s8 %v4834
    %v4836 = vlaneseq
    %v4837 = vshrl.u32 %v4836, 7
    %v4838 = vsub.s32 %v4835, %v4837
    %v4839 = vrot.slane %v4672, %v4838
    %v4841 = vunpack.c.l.s4 1983009808
    %v4842 = vunpack.c.0.s8 %v4841
    %v4843 = vlaneseq
    %v4844 = vshrl.u32 %v4843, 7
    %v4845 = vsub.s32 %v4842, %v4844
    %v4846 = vrot.slane %v4832, %v4845
    %v4847 = vcombine.high %v4839, %v4839
    %v4848 = vcombine.high %v4846, %v4846
    %v4849 = vcombine.high %v4673, %v4673
    %v4851 = vunpack.c.l.s4 1983009808
    %v4852 = vunpack.c.0.s8 %v4851
    %v4853 = vlaneseq
    %v4854 = vshrl.u32 %v4853, 7
    %v4855 = vsub.s32 %v4852, %v4854
    %v4856 = vrot.slane %v4673, %v4855
    %v4858 = vunpack.c.l.s4 1983009808
    %v4859 = vunpack.c.0.s8 %v4858
    %v4860 = vlaneseq
    %v4861 = vshrl.u32 %v4860, 7
    %v4862 = vsub.s32 %v4859, %v4861
    %v4863 = vrot.slane %v4849, %v4862
    %v4864 = vcombine.high %v4856, %v4856
    %v4865 = vcombine.high %v4863, %v4863
    %v4866 = vcombine.high %v4674, %v4674
    %v4868 = vunpack.c.l.s4 1983009808
    %v4869 = vunpack.c.0.s8 %v4868
    %v4870 = vlaneseq
    %v4871 = vshrl.u32 %v4870, 7
    %v4872 = vsub.s32 %v4869, %v4871
    %v4873 = vrot.slane %v4674, %v4872
    %v4875 = vunpack.c.l.s4 1983009808
    %v4876 = vunpack.c.0.s8 %v4875
    %v4877 = vlaneseq
    %v4878 = vshrl.u32 %v4877, 7
    %v4879 = vsub.s32 %v4876, %v4878
    %v4880 = vrot.slane %v4866, %v4879
    %v4881 = vcombine.high %v4873, %v4873
    %v4882 = vcombine.high %v4880, %v4880
    %v4883 = vcombine.high %v4675, %v4675
    %v4885 = vunpack.c.l.s4 1983009808
    %v4886 = vunpack.c.0.s8 %v4885
    %v4887 = vlaneseq
    %v4888 = vshrl.u32 %v4887, 7
    %v4889 = vsub.s32 %v4886, %v4888
    %v4890 = vrot.slane %v4675, %v4889
    %v4892 = vunpack.c.l.s4 1983009808
    %v4893 = vunpack.c.0.s8 %v4892
    %v4894 = vlaneseq
    %v4895 = vshrl.u32 %v4894, 7
    %v4896 = vsub.s32 %v4893, %v4895
    %v4897 = vrot.slane %v4883, %v4896
    %v4898 = vcombine.high %v4890, %v4890
    %v4899 = vcombine.high %v4897, %v4897
    %v4900 = vcombine.high %v4676, %v4676
    %v4902 = vunpack.c.l.s4 1983009808
    %v4903 = vunpack.c.0.s8 %v4902
    %v4904 = vlaneseq
    %v4905 = vshrl.u32 %v4904, 7
    %v4906 = vsub.s32 %v4903, %v4905
    %v4907 = vrot.slane %v4676, %v4906
    %v4909 = vunpack.c.l.s4 1983009808
    %v4910 = vunpack.c.0.s8 %v4909
    %v4911 = vlaneseq
    %v4912 = vshrl.u32 %v4911, 7
    %v4913 = vsub.s32 %v4910, %v4912
    %v4914 = vrot.slane %v4900, %v4913
    %v4915 = vcombine.high %v4907, %v4907
    %v4916 = vcombine.high %v4914, %v4914
    %v4917 = vcombine.high %v4677, %v4677
    %v4919 = vunpack.c.l.s4 1983009808
    %v4920 = vunpack.c.0.s8 %v4919
    %v4921 = vlaneseq
    %v4922 = vshrl.u32 %v4921, 7
    %v4923 = vsub.s32 %v4920, %v4922
    %v4924 = vrot.slane %v4677, %v4923
    %v4926 = vunpack.c.l.s4 1983009808
    %v4927 = vunpack.c.0.s8 %v4926
    %v4928 = vlaneseq
    %v4929 = vshrl.u32 %v4928, 7
    %v4930 = vsub.s32 %v4927, %v4929
    %v4931 = vrot.slane %v4917, %v4930
    %v4932 = vcombine.high %v4924, %v4924
    %v4933 = vcombine.high %v4931, %v4931
    %v4934 = vcombine.high %v4678, %v4678
    %v4936 = vunpack.c.l.s4 1983009808
    %v4937 = vunpack.c.0.s8 %v4936
    %v4938 = vlaneseq
    %v4939 = vshrl.u32 %v4938, 7
    %v4940 = vsub.s32 %v4937, %v4939
    %v4941 = vrot.slane %v4678, %v4940
    %v4943 = vunpack.c.l.s4 1983009808
    %v4944 = vunpack.c.0.s8 %v4943
    %v4945 = vlaneseq
    %v4946 = vshrl.u32 %v4945, 7
    %v4947 = vsub.s32 %v4944, %v4946
    %v4948 = vrot.slane %v4934, %v4947
    %v4949 = vcombine.high %v4941, %v4941
    %v4950 = vcombine.high %v4948, %v4948
    %v4951 = vcombine.high %v4679, %v4679
    %v4953 = vunpack.c.l.s4 1983009808
    %v4954 = vunpack.c.0.s8 %v4953
    %v4955 = vlaneseq
    %v4956 = vshrl.u32 %v4955, 7
    %v4957 = vsub.s32 %v4954, %v4956
    %v4958 = vrot.slane %v4679, %v4957
    %v4960 = vunpack.c.l.s4 1983009808
    %v4961 = vunpack.c.0.s8 %v4960
    %v4962 = vlaneseq
    %v4963 = vshrl.u32 %v4962, 7
    %v4964 = vsub.s32 %v4961, %v4963
    %v4965 = vrot.slane %v4951, %v4964
    %v4966 = vcombine.high %v4958, %v4958
    %v4967 = vcombine.high %v4965, %v4965
    %v4968 = vcombine.high %v4680, %v4680
    %v4970 = vunpack.c.l.s4 1983009808
    %v4971 = vunpack.c.0.s8 %v4970
    %v4972 = vlaneseq
    %v4973 = vshrl.u32 %v4972, 7
    %v4974 = vsub.s32 %v4971, %v4973
    %v4975 = vrot.slane %v4680, %v4974
    %v4977 = vunpack.c.l.s4 1983009808
    %v4978 = vunpack.c.0.s8 %v4977
    %v4979 = vlaneseq
    %v4980 = vshrl.u32 %v4979, 7
    %v4981 = vsub.s32 %v4978, %v4980
    %v4982 = vrot.slane %v4968, %v4981
    %v4983 = vcombine.high %v4975, %v4975
    %v4984 = vcombine.high %v4982, %v4982
    %v4985 = vcombine.high %v4681, %v4681
    %v4987 = vunpack.c.l.s4 1983009808
    %v4988 = vunpack.c.0.s8 %v4987
    %v4989 = vlaneseq
    %v4990 = vshrl.u32 %v4989, 7
    %v4991 = vsub.s32 %v4988, %v4990
    %v4992 = vrot.slane %v4681, %v4991
    %v4994 = vunpack.c.l.s4 1983009808
    %v4995 = vunpack.c.0.s8 %v4994
    %v4996 = vlaneseq
    %v4997 = vshrl.u32 %v4996, 7
    %v4998 = vsub.s32 %v4995, %v4997
    %v4999 = vrot.slane %v4985, %v4998
    %v5000 = vcombine.high %v4992, %v4992
    %v5001 = vcombine.high %v4999, %v4999
    %v5002 = vcombine.high %v4682, %v4682
    %v5004 = vunpack.c.l.s4 1983009808
    %v5005 = vunpack.c.0.s8 %v5004
    %v5006 = vlaneseq
    %v5007 = vshrl.u32 %v5006, 7
    %v5008 = vsub.s32 %v5005, %v5007
    %v5009 = vrot.slane %v4682, %v5008
    %v5011 = vunpack.c.l.s4 1983009808
    %v5012 = vunpack.c.0.s8 %v5011
    %v5013 = vlaneseq
    %v5014 = vshrl.u32 %v5013, 7
    %v5015 = vsub.s32 %v5012, %v5014
    %v5016 = vrot.slane %v5002, %v5015
    %v5017 = vcombine.high %v5009, %v5009
    %v5018 = vcombine.high %v5016, %v5016
    %v5019 = vcombine.high %v4683, %v4683
    %v5021 = vunpack.c.l.s4 1983009808
    %v5022 = vunpack.c.0.s8 %v5021
    %v5023 = vlaneseq
    %v5024 = vshrl.u32 %v5023, 7
    %v5025 = vsub.s32 %v5022, %v5024
    %v5026 = vrot.slane %v4683, %v5025
    %v5028 = vunpack.c.l.s4 1983009808
    %v5029 = vunpack.c.0.s8 %v5028
    %v5030 = vlaneseq
    %v5031 = vshrl.u32 %v5030, 7
    %v5032 = vsub.s32 %v5029, %v5031
    %v5033 = vrot.slane %v5019, %v5032
    %v5034 = vcombine.high %v5026, %v5026
    %v5035 = vcombine.high %v5033, %v5033
    %v5036 = vcombine.high %v4684, %v4684
    %v5038 = vunpack.c.l.s4 1983009808
    %v5039 = vunpack.c.0.s8 %v5038
    %v5040 = vlaneseq
    %v5041 = vshrl.u32 %v5040, 7
    %v5042 = vsub.s32 %v5039, %v5041
    %v5043 = vrot.slane %v4684, %v5042
    %v5045 = vunpack.c.l.s4 1983009808
    %v5046 = vunpack.c.0.s8 %v5045
    %v5047 = vlaneseq
    %v5048 = vshrl.u32 %v5047, 7
    %v5049 = vsub.s32 %v5046, %v5048
    %v5050 = vrot.slane %v5036, %v5049
    %v5051 = vcombine.high %v5043, %v5043
    %v5052 = vcombine.high %v5050, %v5050
    %v5053 = vcombine.high %v4685, %v4685
    %v5055 = vunpack.c.l.s4 1983009808
    %v5056 = vunpack.c.0.s8 %v5055
    %v5057 = vlaneseq
    %v5058 = vshrl.u32 %v5057, 7
    %v5059 = vsub.s32 %v5056, %v5058
    %v5060 = vrot.slane %v4685, %v5059
    %v5062 = vunpack.c.l.s4 1983009808
    %v5063 = vunpack.c.0.s8 %v5062
    %v5064 = vlaneseq
    %v5065 = vshrl.u32 %v5064, 7
    %v5066 = vsub.s32 %v5063, %v5065
    %v5067 = vrot.slane %v5053, %v5066
    %v5068 = vcombine.high %v5060, %v5060
    %v5069 = vcombine.high %v5067, %v5067
    %v5070 = vcombine.high %v4686, %v4686
    %v5072 = vunpack.c.l.s4 1983009808
    %v5073 = vunpack.c.0.s8 %v5072
    %v5074 = vlaneseq
    %v5075 = vshrl.u32 %v5074, 7
    %v5076 = vsub.s32 %v5073, %v5075
    %v5077 = vrot.slane %v4686, %v5076
    %v5079 = vunpack.c.l.s4 1983009808
    %v5080 = vunpack.c.0.s8 %v5079
    %v5081 = vlaneseq
    %v5082 = vshrl.u32 %v5081, 7
    %v5083 = vsub.s32 %v5080, %v5082
    %v5084 = vrot.slane %v5070, %v5083
    %v5085 = vcombine.high %v5077, %v5077
    %v5086 = vcombine.high %v5084, %v5084
    %v5087 = vcombine.high %v4687, %v4687
    %v5089 = vunpack.c.l.s4 1983009808
    %v5090 = vunpack.c.0.s8 %v5089
    %v5091 = vlaneseq
    %v5092 = vshrl.u32 %v5091, 7
    %v5093 = vsub.s32 %v5090, %v5092
    %v5094 = vrot.slane %v4687, %v5093
    %v5096 = vunpack.c.l.s4 1983009808
    %v5097 = vunpack.c.0.s8 %v5096
    %v5098 = vlaneseq
    %v5099 = vshrl.u32 %v5098, 7
    %v5100 = vsub.s32 %v5097, %v5099
    %v5101 = vrot.slane %v5087, %v5100
    %v5102 = vcombine.high %v5094, %v5094
    %v5103 = vcombine.high %v5101, %v5101
    %v5104 = vcombine.high %v4688, %v4688
    %v5106 = vunpack.c.l.s4 1983009808
    %v5107 = vunpack.c.0.s8 %v5106
    %v5108 = vlaneseq
    %v5109 = vshrl.u32 %v5108, 7
    %v5110 = vsub.s32 %v5107, %v5109
    %v5111 = vrot.slane %v4688, %v5110
    %v5113 = vunpack.c.l.s4 1983009808
    %v5114 = vunpack.c.0.s8 %v5113
    %v5115 = vlaneseq
    %v5116 = vshrl.u32 %v5115, 7
    %v5117 = vsub.s32 %v5114, %v5116
    %v5118 = vrot.slane %v5104, %v5117
    %v5119 = vcombine.high %v5111, %v5111
    %v5120 = vcombine.high %v5118, %v5118
    %v5121 = vcombine.high %v4689, %v4689
    %v5123 = vunpack.c.l.s4 1983009808
    %v5124 = vunpack.c.0.s8 %v5123
    %v5125 = vlaneseq
    %v5126 = vshrl.u32 %v5125, 7
    %v5127 = vsub.s32 %v5124, %v5126
    %v5128 = vrot.slane %v4689, %v5127
    %v5130 = vunpack.c.l.s4 1983009808
    %v5131 = vunpack.c.0.s8 %v5130
    %v5132 = vlaneseq
    %v5133 = vshrl.u32 %v5132, 7
    %v5134 = vsub.s32 %v5131, %v5133
    %v5135 = vrot.slane %v5121, %v5134
    %v5136 = vcombine.high %v5128, %v5128
    %v5137 = vcombine.high %v5135, %v5135
    %v5138 = vcombine.high %v4690, %v4690
    %v5140 = vunpack.c.l.s4 1983009808
    %v5141 = vunpack.c.0.s8 %v5140
    %v5142 = vlaneseq
    %v5143 = vshrl.u32 %v5142, 7
    %v5144 = vsub.s32 %v5141, %v5143
    %v5145 = vrot.slane %v4690, %v5144
    %v5147 = vunpack.c.l.s4 1983009808
    %v5148 = vunpack.c.0.s8 %v5147
    %v5149 = vlaneseq
    %v5150 = vshrl.u32 %v5149, 7
    %v5151 = vsub.s32 %v5148, %v5150
    %v5152 = vrot.slane %v5138, %v5151
    %v5153 = vcombine.high %v5145, %v5145
    %v5154 = vcombine.high %v5152, %v5152
    %v5155 = vcombine.high %v4691, %v4691
    %v5157 = vunpack.c.l.s4 1983009808
    %v5158 = vunpack.c.0.s8 %v5157
    %v5159 = vlaneseq
    %v5160 = vshrl.u32 %v5159, 7
    %v5161 = vsub.s32 %v5158, %v5160
    %v5162 = vrot.slane %v4691, %v5161
    %v5164 = vunpack.c.l.s4 1983009808
    %v5165 = vunpack.c.0.s8 %v5164
    %v5166 = vlaneseq
    %v5167 = vshrl.u32 %v5166, 7
    %v5168 = vsub.s32 %v5165, %v5167
    %v5169 = vrot.slane %v5155, %v5168
    %v5170 = vcombine.high %v5162, %v5162
    %v5171 = vcombine.high %v5169, %v5169
    %v5172 = vcombine.high %v4692, %v4692
    %v5174 = vunpack.c.l.s4 1983009808
    %v5175 = vunpack.c.0.s8 %v5174
    %v5176 = vlaneseq
    %v5177 = vshrl.u32 %v5176, 7
    %v5178 = vsub.s32 %v5175, %v5177
    %v5179 = vrot.slane %v4692, %v5178
    %v5181 = vunpack.c.l.s4 1983009808
    %v5182 = vunpack.c.0.s8 %v5181
    %v5183 = vlaneseq
    %v5184 = vshrl.u32 %v5183, 7
    %v5185 = vsub.s32 %v5182, %v5184
    %v5186 = vrot.slane %v5172, %v5185
    %v5187 = vcombine.high %v5179, %v5179
    %v5188 = vcombine.high %v5186, %v5186
    %v5189 = vcombine.high %v4693, %v4693
    %v5191 = vunpack.c.l.s4 1983009808
    %v5192 = vunpack.c.0.s8 %v5191
    %v5193 = vlaneseq
    %v5194 = vshrl.u32 %v5193, 7
    %v5195 = vsub.s32 %v5192, %v5194
    %v5196 = vrot.slane %v4693, %v5195
    %v5198 = vunpack.c.l.s4 1983009808
    %v5199 = vunpack.c.0.s8 %v5198
    %v5200 = vlaneseq
    %v5201 = vshrl.u32 %v5200, 7
    %v5202 = vsub.s32 %v5199, %v5201
    %v5203 = vrot.slane %v5189, %v5202
    %v5204 = vcombine.high %v5196, %v5196
    %v5205 = vcombine.high %v5203, %v5203
    %v5206 = vcombine.high %v4694, %v4694
    %v5208 = vunpack.c.l.s4 1983009808
    %v5209 = vunpack.c.0.s8 %v5208
    %v5210 = vlaneseq
    %v5211 = vshrl.u32 %v5210, 7
    %v5212 = vsub.s32 %v5209, %v5211
    %v5213 = vrot.slane %v4694, %v5212
    %v5215 = vunpack.c.l.s4 1983009808
    %v5216 = vunpack.c.0.s8 %v5215
    %v5217 = vlaneseq
    %v5218 = vshrl.u32 %v5217, 7
    %v5219 = vsub.s32 %v5216, %v5218
    %v5220 = vrot.slane %v5206, %v5219
    %v5221 = vcombine.high %v5213, %v5213
    %v5222 = vcombine.high %v5220, %v5220
    %v5223 = vcombine.high %v4695, %v4695
    %v5225 = vunpack.c.l.s4 1983009808
    %v5226 = vunpack.c.0.s8 %v5225
    %v5227 = vlaneseq
    %v5228 = vshrl.u32 %v5227, 7
    %v5229 = vsub.s32 %v5226, %v5228
    %v5230 = vrot.slane %v4695, %v5229
    %v5232 = vunpack.c.l.s4 1983009808
    %v5233 = vunpack.c.0.s8 %v5232
    %v5234 = vlaneseq
    %v5235 = vshrl.u32 %v5234, 7
    %v5236 = vsub.s32 %v5233, %v5235
    %v5237 = vrot.slane %v5223, %v5236
    %v5238 = vcombine.high %v5230, %v5230
    %v5239 = vcombine.high %v5237, %v5237
    %v5240 = vcombine.high %v4696, %v4696
    %v5242 = vunpack.c.l.s4 1983009808
    %v5243 = vunpack.c.0.s8 %v5242
    %v5244 = vlaneseq
    %v5245 = vshrl.u32 %v5244, 7
    %v5246 = vsub.s32 %v5243, %v5245
    %v5247 = vrot.slane %v4696, %v5246
    %v5249 = vunpack.c.l.s4 1983009808
    %v5250 = vunpack.c.0.s8 %v5249
    %v5251 = vlaneseq
    %v5252 = vshrl.u32 %v5251, 7
    %v5253 = vsub.s32 %v5250, %v5252
    %v5254 = vrot.slane %v5240, %v5253
    %v5255 = vcombine.high %v5247, %v5247
    %v5256 = vcombine.high %v5254, %v5254
    %v5257 = vcombine.high %v4697, %v4697
    %v5259 = vunpack.c.l.s4 1983009808
    %v5260 = vunpack.c.0.s8 %v5259
    %v5261 = vlaneseq
    %v5262 = vshrl.u32 %v5261, 7
    %v5263 = vsub.s32 %v5260, %v5262
    %v5264 = vrot.slane %v4697, %v5263
    %v5266 = vunpack.c.l.s4 1983009808
    %v5267 = vunpack.c.0.s8 %v5266
    %v5268 = vlaneseq
    %v5269 = vshrl.u32 %v5268, 7
    %v5270 = vsub.s32 %v5267, %v5269
    %v5271 = vrot.slane %v5257, %v5270
    %v5272 = vcombine.high %v5264, %v5264
    %v5273 = vcombine.high %v5271, %v5271
    %v5402 = vrot.slane %v4737, 7
    %v5403 = vrot.slane %v5402, 2
    %v5404 = vrot.slane %v4745, 7
    %v5405 = vrot.slane %v5404, 2
    %v5406 = vrot.slane %v4744, 7
    %v5407 = vrot.slane %v5406, 2
    %v5408 = vrot.slane %v4746, 7
    %v5409 = vrot.slane %v5408, 2
    %v5410 = vrot.slane %v4754, 7
    %v5411 = vrot.slane %v5410, 2
    %v5412 = vrot.slane %v4762, 7
    %v5413 = vrot.slane %v5412, 2
    %v5414 = vrot.slane %v4761, 7
    %v5415 = vrot.slane %v5414, 2
    %v5416 = vrot.slane %v4763, 7
    %v5417 = vrot.slane %v5416, 2
    %v5418 = vrot.slane %v4771, 7
    %v5419 = vrot.slane %v5418, 2
    %v5420 = vrot.slane %v4779, 7
    %v5421 = vrot.slane %v5420, 2
    %v5422 = vrot.slane %v4778, 7
    %v5423 = vrot.slane %v5422, 2
    %v5424 = vrot.slane %v4780, 7
    %v5425 = vrot.slane %v5424, 2
    %v5426 = vrot.slane %v4788, 7
    %v5427 = vrot.slane %v5426, 2
    %v5428 = vrot.slane %v4796, 7
    %v5429 = vrot.slane %v5428, 2
    %v5430 = vrot.slane %v4795, 7
    %v5431 = vrot.slane %v5430, 2
    %v5432 = vrot.slane %v4797, 7
    %v5433 = vrot.slane %v5432, 2
    %v5434 = vrot.slane %v4805, 7
    %v5435 = vrot.slane %v5434, 2
    %v5436 = vrot.slane %v4813, 7
    %v5437 = vrot.slane %v5436, 2
    %v5438 = vrot.slane %v4812, 7
    %v5439 = vrot.slane %v5438, 2
    %v5440 = vrot.slane %v4814, 7
    %v5441 = vrot.slane %v5440, 2
    %v5442 = vrot.slane %v4822, 7
    %v5443 = vrot.slane %v5442, 2
    %v5444 = vrot.slane %v4830, 7
    %v5445 = vrot.slane %v5444, 2
    %v5446 = vrot.slane %v4829, 7
    %v5447 = vrot.slane %v5446, 2
    %v5448 = vrot.slane %v4831, 7
    %v5449 = vrot.slane %v5448, 2
    %v5450 = vrot.slane %v4839, 7
    %v5451 = vrot.slane %v5450, 2
    %v5452 = vrot.slane %v4847, 7
    %v5453 = vrot.slane %v5452, 2
    %v5454 = vrot.slane %v4846, 7
    %v5455 = vrot.slane %v5454, 2
    %v5456 = vrot.slane %v4848, 7
    %v5457 = vrot.slane %v5456, 2
    %v5458 = vrot.slane %v4856, 7
    %v5459 = vrot.slane %v5458, 2
    %v5460 = vrot.slane %v4864, 7
    %v5461 = vrot.slane %v5460, 2
    %v5462 = vrot.slane %v4863, 7
    %v5463 = vrot.slane %v5462, 2
    %v5464 = vrot.slane %v4865, 7
    %v5465 = vrot.slane %v5464, 2
    %v5466 = vrot.slane %v4873, 7
    %v5467 = vrot.slane %v5466, 2
    %v5468 = vrot.slane %v4881, 7
    %v5469 = vrot.slane %v5468, 2
    %v5470 = vrot.slane %v4880, 7
    %v5471 = vrot.slane %v5470, 2
    %v5472 = vrot.slane %v4882, 7
    %v5473 = vrot.slane %v5472, 2
    %v5474 = vrot.slane %v4890, 7
    %v5475 = vrot.slane %v5474, 2
    %v5476 = vrot.slane %v4898, 7
    %v5477 = vrot.slane %v5476, 2
    %v5478 = vrot.slane %v4897, 7
    %v5479 = vrot.slane %v5478, 2
    %v5480 = vrot.slane %v4899, 7
    %v5481 = vrot.slane %v5480, 2
    %v5482 = vrot.slane %v4907, 7
    %v5483 = vrot.slane %v5482, 2
    %v5484 = vrot.slane %v4915, 7
    %v5485 = vrot.slane %v5484, 2
    %v5486 = vrot.slane %v4914, 7
    %v5487 = vrot.slane %v5486, 2
    %v5488 = vrot.slane %v4916, 7
    %v5489 = vrot.slane %v5488, 2
    %v5490 = vrot.slane %v4924, 7
    %v5491 = vrot.slane %v5490, 2
    %v5492 = vrot.slane %v4932, 7
    %v5493 = vrot.slane %v5492, 2
    %v5494 = vrot.slane %v4931, 7
    %v5495 = vrot.slane %v5494, 2
    %v5496 = vrot.slane %v4933, 7
    %v5497 = vrot.slane %v5496, 2
    %v5498 = vrot.slane %v4941, 7
    %v5499 = vrot.slane %v5498, 2
    %v5500 = vrot.slane %v4949, 7
    %v5501 = vrot.slane %v5500, 2
    %v5502 = vrot.slane %v4948, 7
    %v5503 = vrot.slane %v5502, 2
    %v5504 = vrot.slane %v4950, 7
    %v5505 = vrot.slane %v5504, 2
    %v5506 = vrot.slane %v4958, 7
    %v5507 = vrot.slane %v5506, 2
    %v5508 = vrot.slane %v4966, 7
    %v5509 = vrot.slane %v5508, 2
    %v5510 = vrot.slane %v4965, 7
    %v5511 = vrot.slane %v5510, 2
    %v5512 = vrot.slane %v4967, 7
    %v5513 = vrot.slane %v5512, 2
    %v5514 = vrot.slane %v4975, 7
    %v5515 = vrot.slane %v5514, 2
    %v5516 = vrot.slane %v4983, 7
    %v5517 = vrot.slane %v5516, 2
    %v5518 = vrot.slane %v4982, 7
    %v5519 = vrot.slane %v5518, 2
    %v5520 = vrot.slane %v4984, 7
    %v5521 = vrot.slane %v5520, 2
    %v5522 = vrot.slane %v4992, 7
    %v5523 = vrot.slane %v5522, 2
    %v5524 = vrot.slane %v5000, 7
    %v5525 = vrot.slane %v5524, 2
    %v5526 = vrot.slane %v4999, 7
    %v5527 = vrot.slane %v5526, 2
    %v5528 = vrot.slane %v5001, 7
    %v5529 = vrot.slane %v5528, 2
    %v5530 = vrot.slane %v5009, 7
    %v5531 = vrot.slane %v5530, 2
    %v5532 = vrot.slane %v5017, 7
    %v5533 = vrot.slane %v5532, 2
    %v5534 = vrot.slane %v5016, 7
    %v5535 = vrot.slane %v5534, 2
    %v5536 = vrot.slane %v5018, 7
    %v5537 = vrot.slane %v5536, 2
    %v5538 = vrot.slane %v5026, 7
    %v5539 = vrot.slane %v5538, 2
    %v5540 = vrot.slane %v5034, 7
    %v5541 = vrot.slane %v5540, 2
    %v5542 = vrot.slane %v5033, 7
    %v5543 = vrot.slane %v5542, 2
    %v5544 = vrot.slane %v5035, 7
    %v5545 = vrot.slane %v5544, 2
    %v5546 = vrot.slane %v5043, 7
    %v5547 = vrot.slane %v5546, 2
    %v5548 = vrot.slane %v5051, 7
    %v5549 = vrot.slane %v5548, 2
    %v5550 = vrot.slane %v5050, 7
    %v5551 = vrot.slane %v5550, 2
    %v5552 = vrot.slane %v5052, 7
    %v5553 = vrot.slane %v5552, 2
    %v5554 = vrot.slane %v5060, 7
    %v5555 = vrot.slane %v5554, 2
    %v5556 = vrot.slane %v5068, 7
    %v5557 = vrot.slane %v5556, 2
    %v5558 = vrot.slane %v5067, 7
    %v5559 = vrot.slane %v5558, 2
    %v5560 = vrot.slane %v5069, 7
    %v5561 = vrot.slane %v5560, 2
    %v5562 = vrot.slane %v5077, 7
    %v5563 = vrot.slane %v5562, 2
    %v5564 = vrot.slane %v5085, 7
    %v5565 = vrot.slane %v5564, 2
    %v5566 = vrot.slane %v5084, 7
    %v5567 = vrot.slane %v5566, 2
    %v5568 = vrot.slane %v5086, 7
    %v5569 = vrot.slane %v5568, 2
    %v5570 = vrot.slane %v5094, 7
    %v5571 = vrot.slane %v5570, 2
    %v5572 = vrot.slane %v5102, 7
    %v5573 = vrot.slane %v5572, 2
    %v5574 = vrot.slane %v5101, 7
    %v5575 = vrot.slane %v5574, 2
    %v5576 = vrot.slane %v5103, 7
    %v5577 = vrot.slane %v5576, 2
    %v5578 = vrot.slane %v5111, 7
    %v5579 = vrot.slane %v5578, 2
    %v5580 = vrot.slane %v5119, 7
    %v5581 = vrot.slane %v5580, 2
    %v5582 = vrot.slane %v5118, 7
    %v5583 = vrot.slane %v5582, 2
    %v5584 = vrot.slane %v5120, 7
    %v5585 = vrot.slane %v5584, 2
    %v5586 = vrot.slane %v5128, 7
    %v5587 = vrot.slane %v5586, 2
    %v5588 = vrot.slane %v5136, 7
    %v5589 = vrot.slane %v5588, 2
    %v5590 = vrot.slane %v5135, 7
    %v5591 = vrot.slane %v5590, 2
    %v5592 = vrot.slane %v5137, 7
    %v5593 = vrot.slane %v5592, 2
    %v5594 = vrot.slane %v5145, 7
    %v5595 = vrot.slane %v5594, 2
    %v5596 = vrot.slane %v5153, 7
    %v5597 = vrot.slane %v5596, 2
    %v5598 = vrot.slane %v5152, 7
    %v5599 = vrot.slane %v5598, 2
    %v5600 = vrot.slane %v5154, 7
    %v5601 = vrot.slane %v5600, 2
    %v5602 = vrot.slane %v5162, 7
    %v5603 = vrot.slane %v5602, 2
    %v5604 = vrot.slane %v5170, 7
    %v5605 = vrot.slane %v5604, 2
    %v5606 = vrot.slane %v5169, 7
    %v5607 = vrot.slane %v5606, 2
    %v5608 = vrot.slane %v5171, 7
    %v5609 = vrot.slane %v5608, 2
    %v5610 = vrot.slane %v5179, 7
    %v5611 = vrot.slane %v5610, 2
    %v5612 = vrot.slane %v5187, 7
    %v5613 = vrot.slane %v5612, 2
    %v5614 = vrot.slane %v5186, 7
    %v5615 = vrot.slane %v5614, 2
    %v5616 = vrot.slane %v5188, 7
    %v5617 = vrot.slane %v5616, 2
    %v5618 = vrot.slane %v5196, 7
    %v5619 = vrot.slane %v5618, 2
    %v5620 = vrot.slane %v5204, 7
    %v5621 = vrot.slane %v5620, 2
    %v5622 = vrot.slane %v5203, 7
    %v5623 = vrot.slane %v5622, 2
    %v5624 = vrot.slane %v5205, 7
    %v5625 = vrot.slane %v5624, 2
    %v5626 = vrot.slane %v5213, 7
    %v5627 = vrot.slane %v5626, 2
    %v5628 = vrot.slane %v5221, 7
    %v5629 = vrot.slane %v5628, 2
    %v5630 = vrot.slane %v5220, 7
    %v5631 = vrot.slane %v5630, 2
    %v5632 = vrot.slane %v5222, 7
    %v5633 = vrot.slane %v5632, 2
    %v5634 = vrot.slane %v5230, 7
    %v5635 = vrot.slane %v5634, 2
    %v5636 = vrot.slane %v5238, 7
    %v5637 = vrot.slane %v5636, 2
    %v5638 = vrot.slane %v5237, 7
    %v5639 = vrot.slane %v5638, 2
    %v5640 = vrot.slane %v5239, 7
    %v5641 = vrot.slane %v5640, 2
    %v5642 = vrot.slane %v5247, 7
    %v5643 = vrot.slane %v5642, 2
    %v5644 = vrot.slane %v5255, 7
    %v5645 = vrot.slane %v5644, 2
    %v5646 = vrot.slane %v5254, 7
    %v5647 = vrot.slane %v5646, 2
    %v5648 = vrot.slane %v5256, 7
    %v5649 = vrot.slane %v5648, 2
    %v5650 = vrot.slane %v5264, 7
    %v5651 = vrot.slane %v5650, 2
    %v5652 = vrot.slane %v5272, 7
    %v5653 = vrot.slane %v5652, 2
    %v5654 = vrot.slane %v5271, 7
    %v5655 = vrot.slane %v5654, 2
    %v5656 = vrot.slane %v5273, 7
    %v5657 = vrot.slane %v5656, 2
    %v5786 = vmax.f32 %v4737, %v5403
    %v5787 = vmax.f32 %v4745, %v5405
    %v5788 = vmax.f32 %v4744, %v5407
    %v5789 = vmax.f32 %v4746, %v5409
    %v5790 = vmax.f32 %v4754, %v5411
    %v5791 = vmax.f32 %v4762, %v5413
    %v5792 = vmax.f32 %v4761, %v5415
    %v5793 = vmax.f32 %v4763, %v5417
    %v5794 = vmax.f32 %v4771, %v5419
    %v5795 = vmax.f32 %v4779, %v5421
    %v5796 = vmax.f32 %v4778, %v5423
    %v5797 = vmax.f32 %v4780, %v5425
    %v5798 = vmax.f32 %v4788, %v5427
    %v5799 = vmax.f32 %v4796, %v5429
    %v5800 = vmax.f32 %v4795, %v5431
    %v5801 = vmax.f32 %v4797, %v5433
    %v5802 = vmax.f32 %v4805, %v5435
    %v5803 = vmax.f32 %v4813, %v5437
    %v5804 = vmax.f32 %v4812, %v5439
    %v5805 = vmax.f32 %v4814, %v5441
    %v5806 = vmax.f32 %v4822, %v5443
    %v5807 = vmax.f32 %v4830, %v5445
    %v5808 = vmax.f32 %v4829, %v5447
    %v5809 = vmax.f32 %v4831, %v5449
    %v5810 = vmax.f32 %v4839, %v5451
    %v5811 = vmax.f32 %v4847, %v5453
    %v5812 = vmax.f32 %v4846, %v5455
    %v5813 = vmax.f32 %v4848, %v5457
    %v5814 = vmax.f32 %v4856, %v5459
    %v5815 = vmax.f32 %v4864, %v5461
    %v5816 = vmax.f32 %v4863, %v5463
    %v5817 = vmax.f32 %v4865, %v5465
    %v5818 = vmax.f32 %v4873, %v5467
    %v5819 = vmax.f32 %v4881, %v5469
    %v5820 = vmax.f32 %v4880, %v5471
    %v5821 = vmax.f32 %v4882, %v5473
    %v5822 = vmax.f32 %v4890, %v5475
    %v5823 = vmax.f32 %v4898, %v5477
    %v5824 = vmax.f32 %v4897, %v5479
    %v5825 = vmax.f32 %v4899, %v5481
    %v5826 = vmax.f32 %v4907, %v5483
    %v5827 = vmax.f32 %v4915, %v5485
    %v5828 = vmax.f32 %v4914, %v5487
    %v5829 = vmax.f32 %v4916, %v5489
    %v5830 = vmax.f32 %v4924, %v5491
    %v5831 = vmax.f32 %v4932, %v5493
    %v5832 = vmax.f32 %v4931, %v5495
    %v5833 = vmax.f32 %v4933, %v5497
    %v5834 = vmax.f32 %v4941, %v5499
    %v5835 = vmax.f32 %v4949, %v5501
    %v5836 = vmax.f32 %v4948, %v5503
    %v5837 = vmax.f32 %v4950, %v5505
    %v5838 = vmax.f32 %v4958, %v5507
    %v5839 = vmax.f32 %v4966, %v5509
    %v5840 = vmax.f32 %v4965, %v5511
    %v5841 = vmax.f32 %v4967, %v5513
    %v5842 = vmax.f32 %v4975, %v5515
    %v5843 = vmax.f32 %v4983, %v5517
    %v5844 = vmax.f32 %v4982, %v5519
    %v5845 = vmax.f32 %v4984, %v5521
    %v5846 = vmax.f32 %v4992, %v5523
    %v5847 = vmax.f32 %v5000, %v5525
    %v5848 = vmax.f32 %v4999, %v5527
    %v5849 = vmax.f32 %v5001, %v5529
    %v5850 = vmax.f32 %v5009, %v5531
    %v5851 = vmax.f32 %v5017, %v5533
    %v5852 = vmax.f32 %v5016, %v5535
    %v5853 = vmax.f32 %v5018, %v5537
    %v5854 = vmax.f32 %v5026, %v5539
    %v5855 = vmax.f32 %v5034, %v5541
    %v5856 = vmax.f32 %v5033, %v5543
    %v5857 = vmax.f32 %v5035, %v5545
    %v5858 = vmax.f32 %v5043, %v5547
    %v5859 = vmax.f32 %v5051, %v5549
    %v5860 = vmax.f32 %v5050, %v5551
    %v5861 = vmax.f32 %v5052, %v5553
    %v5862 = vmax.f32 %v5060, %v5555
    %v5863 = vmax.f32 %v5068, %v5557
    %v5864 = vmax.f32 %v5067, %v5559
    %v5865 = vmax.f32 %v5069, %v5561
    %v5866 = vmax.f32 %v5077, %v5563
    %v5867 = vmax.f32 %v5085, %v5565
    %v5868 = vmax.f32 %v5084, %v5567
    %v5869 = vmax.f32 %v5086, %v5569
    %v5870 = vmax.f32 %v5094, %v5571
    %v5871 = vmax.f32 %v5102, %v5573
    %v5872 = vmax.f32 %v5101, %v5575
    %v5873 = vmax.f32 %v5103, %v5577
    %v5874 = vmax.f32 %v5111, %v5579
    %v5875 = vmax.f32 %v5119, %v5581
    %v5876 = vmax.f32 %v5118, %v5583
    %v5877 = vmax.f32 %v5120, %v5585
    %v5878 = vmax.f32 %v5128, %v5587
    %v5879 = vmax.f32 %v5136, %v5589
    %v5880 = vmax.f32 %v5135, %v5591
    %v5881 = vmax.f32 %v5137, %v5593
    %v5882 = vmax.f32 %v5145, %v5595
    %v5883 = vmax.f32 %v5153, %v5597
    %v5884 = vmax.f32 %v5152, %v5599
    %v5885 = vmax.f32 %v5154, %v5601
    %v5886 = vmax.f32 %v5162, %v5603
    %v5887 = vmax.f32 %v5170, %v5605
    %v5888 = vmax.f32 %v5169, %v5607
    %v5889 = vmax.f32 %v5171, %v5609
    %v5890 = vmax.f32 %v5179, %v5611
    %v5891 = vmax.f32 %v5187, %v5613
    %v5892 = vmax.f32 %v5186, %v5615
    %v5893 = vmax.f32 %v5188, %v5617
    %v5894 = vmax.f32 %v5196, %v5619
    %v5895 = vmax.f32 %v5204, %v5621
    %v5896 = vmax.f32 %v5203, %v5623
    %v5897 = vmax.f32 %v5205, %v5625
    %v5898 = vmax.f32 %v5213, %v5627
    %v5899 = vmax.f32 %v5221, %v5629
    %v5900 = vmax.f32 %v5220, %v5631
    %v5901 = vmax.f32 %v5222, %v5633
    %v5902 = vmax.f32 %v5230, %v5635
    %v5903 = vmax.f32 %v5238, %v5637
    %v5904 = vmax.f32 %v5237, %v5639
    %v5905 = vmax.f32 %v5239, %v5641
    %v5906 = vmax.f32 %v5247, %v5643
    %v5907 = vmax.f32 %v5255, %v5645
    %v5908 = vmax.f32 %v5254, %v5647
    %v5909 = vmax.f32 %v5256, %v5649
    %v5910 = vmax.f32 %v5264, %v5651
    %v5911 = vmax.f32 %v5272, %v5653
    %v5912 = vmax.f32 %v5271, %v5655
    %v5913 = vmax.f32 %v5273, %v5657
    %v5915 = vcombine.high %v241, %v241
    %v5917 = vunpack.c.l.s4 1983009808
    %v5918 = vunpack.c.0.s8 %v5917
    %v5919 = vlaneseq
    %v5920 = vshrl.u32 %v5919, 7
    %v5921 = vsub.s32 %v5918, %v5920
    %v5922 = vrot.slane %v241, %v5921
    %v5924 = vunpack.c.l.s4 1983009808
    %v5925 = vunpack.c.0.s8 %v5924
    %v5926 = vlaneseq
    %v5927 = vshrl.u32 %v5926, 7
    %v5928 = vsub.s32 %v5925, %v5927
    %v5929 = vrot.slane %v5915, %v5928
    %v5930 = vcombine.high %v5922, %v5922
    %v5931 = vcombine.high %v5929, %v5929
    %v5932 = vrot.slane %v5922, 1
    %v5933 = vrot.slane %v5930, 1
    %v5934 = vrot.slane %v5929, 1
    %v5935 = vrot.slane %v5931, 1
    %v5944 = vmul.f32 %v5786, %v5922
    %v5945 = vmul.f32 %v5787, %v5932
    %v5946 = vmul.f32 %v5788, %v5930
    %v5947 = vmul.f32 %v5789, %v5933
    %v5948 = vmul.f32 %v5790, %v5929
    %v5949 = vmul.f32 %v5791, %v5934
    %v5950 = vmul.f32 %v5792, %v5931
    %v5951 = vmul.f32 %v5793, %v5935
    %v5952 = vmul.f32 %v5794, %v5922
    %v5953 = vmul.f32 %v5795, %v5932
    %v5954 = vmul.f32 %v5796, %v5930
    %v5955 = vmul.f32 %v5797, %v5933
    %v5956 = vmul.f32 %v5798, %v5929
    %v5957 = vmul.f32 %v5799, %v5934
    %v5958 = vmul.f32 %v5800, %v5931
    %v5959 = vmul.f32 %v5801, %v5935
    %v5960 = vmul.f32 %v5802, %v5922
    %v5961 = vmul.f32 %v5803, %v5932
    %v5962 = vmul.f32 %v5804, %v5930
    %v5963 = vmul.f32 %v5805, %v5933
    %v5964 = vmul.f32 %v5806, %v5929
    %v5965 = vmul.f32 %v5807, %v5934
    %v5966 = vmul.f32 %v5808, %v5931
    %v5967 = vmul.f32 %v5809, %v5935
    %v5968 = vmul.f32 %v5810, %v5922
    %v5969 = vmul.f32 %v5811, %v5932
    %v5970 = vmul.f32 %v5812, %v5930
    %v5971 = vmul.f32 %v5813, %v5933
    %v5972 = vmul.f32 %v5814, %v5929
    %v5973 = vmul.f32 %v5815, %v5934
    %v5974 = vmul.f32 %v5816, %v5931
    %v5975 = vmul.f32 %v5817, %v5935
    %v5976 = vmul.f32 %v5818, %v5922
    %v5977 = vmul.f32 %v5819, %v5932
    %v5978 = vmul.f32 %v5820, %v5930
    %v5979 = vmul.f32 %v5821, %v5933
    %v5980 = vmul.f32 %v5822, %v5929
    %v5981 = vmul.f32 %v5823, %v5934
    %v5982 = vmul.f32 %v5824, %v5931
    %v5983 = vmul.f32 %v5825, %v5935
    %v5984 = vmul.f32 %v5826, %v5922
    %v5985 = vmul.f32 %v5827, %v5932
    %v5986 = vmul.f32 %v5828, %v5930
    %v5987 = vmul.f32 %v5829, %v5933
    %v5988 = vmul.f32 %v5830, %v5929
    %v5989 = vmul.f32 %v5831, %v5934
    %v5990 = vmul.f32 %v5832, %v5931
    %v5991 = vmul.f32 %v5833, %v5935
    %v5992 = vmul.f32 %v5834, %v5922
    %v5993 = vmul.f32 %v5835, %v5932
    %v5994 = vmul.f32 %v5836, %v5930
    %v5995 = vmul.f32 %v5837, %v5933
    %v5996 = vmul.f32 %v5838, %v5929
    %v5997 = vmul.f32 %v5839, %v5934
    %v5998 = vmul.f32 %v5840, %v5931
    %v5999 = vmul.f32 %v5841, %v5935
    %v6000 = vmul.f32 %v5842, %v5922
    %v6001 = vmul.f32 %v5843, %v5932
    %v6002 = vmul.f32 %v5844, %v5930
    %v6003 = vmul.f32 %v5845, %v5933
    %v6004 = vmul.f32 %v5846, %v5929
    %v6005 = vmul.f32 %v5847, %v5934
    %v6006 = vmul.f32 %v5848, %v5931
    %v6007 = vmul.f32 %v5849, %v5935
    %v6008 = vmul.f32 %v5850, %v5922
    %v6009 = vmul.f32 %v5851, %v5932
    %v6010 = vmul.f32 %v5852, %v5930
    %v6011 = vmul.f32 %v5853, %v5933
    %v6012 = vmul.f32 %v5854, %v5929
    %v6013 = vmul.f32 %v5855, %v5934
    %v6014 = vmul.f32 %v5856, %v5931
    %v6015 = vmul.f32 %v5857, %v5935
    %v6016 = vmul.f32 %v5858, %v5922
    %v6017 = vmul.f32 %v5859, %v5932
    %v6018 = vmul.f32 %v5860, %v5930
    %v6019 = vmul.f32 %v5861, %v5933
    %v6020 = vmul.f32 %v5862, %v5929
    %v6021 = vmul.f32 %v5863, %v5934
    %v6022 = vmul.f32 %v5864, %v5931
    %v6023 = vmul.f32 %v5865, %v5935
    %v6024 = vmul.f32 %v5866, %v5922
    %v6025 = vmul.f32 %v5867, %v5932
    %v6026 = vmul.f32 %v5868, %v5930
    %v6027 = vmul.f32 %v5869, %v5933
    %v6028 = vmul.f32 %v5870, %v5929
    %v6029 = vmul.f32 %v5871, %v5934
    %v6030 = vmul.f32 %v5872, %v5931
    %v6031 = vmul.f32 %v5873, %v5935
    %v6032 = vmul.f32 %v5874, %v5922
    %v6033 = vmul.f32 %v5875, %v5932
    %v6034 = vmul.f32 %v5876, %v5930
    %v6035 = vmul.f32 %v5877, %v5933
    %v6036 = vmul.f32 %v5878, %v5929
    %v6037 = vmul.f32 %v5879, %v5934
    %v6038 = vmul.f32 %v5880, %v5931
    %v6039 = vmul.f32 %v5881, %v5935
    %v6040 = vmul.f32 %v5882, %v5922
    %v6041 = vmul.f32 %v5883, %v5932
    %v6042 = vmul.f32 %v5884, %v5930
    %v6043 = vmul.f32 %v5885, %v5933
    %v6044 = vmul.f32 %v5886, %v5929
    %v6045 = vmul.f32 %v5887, %v5934
    %v6046 = vmul.f32 %v5888, %v5931
    %v6047 = vmul.f32 %v5889, %v5935
    %v6048 = vmul.f32 %v5890, %v5922
    %v6049 = vmul.f32 %v5891, %v5932
    %v6050 = vmul.f32 %v5892, %v5930
    %v6051 = vmul.f32 %v5893, %v5933
    %v6052 = vmul.f32 %v5894, %v5929
    %v6053 = vmul.f32 %v5895, %v5934
    %v6054 = vmul.f32 %v5896, %v5931
    %v6055 = vmul.f32 %v5897, %v5935
    %v6056 = vmul.f32 %v5898, %v5922
    %v6057 = vmul.f32 %v5899, %v5932
    %v6058 = vmul.f32 %v5900, %v5930
    %v6059 = vmul.f32 %v5901, %v5933
    %v6060 = vmul.f32 %v5902, %v5929
    %v6061 = vmul.f32 %v5903, %v5934
    %v6062 = vmul.f32 %v5904, %v5931
    %v6063 = vmul.f32 %v5905, %v5935
    %v6064 = vmul.f32 %v5906, %v5922
    %v6065 = vmul.f32 %v5907, %v5932
    %v6066 = vmul.f32 %v5908, %v5930
    %v6067 = vmul.f32 %v5909, %v5933
    %v6068 = vmul.f32 %v5910, %v5929
    %v6069 = vmul.f32 %v5911, %v5934
    %v6070 = vmul.f32 %v5912, %v5931
    %v6071 = vmul.f32 %v5913, %v5935
    %v6073 = vcombine.high %v242, %v242
    %v6075 = vunpack.c.l.s4 1983009808
    %v6076 = vunpack.c.0.s8 %v6075
    %v6077 = vlaneseq
    %v6078 = vshrl.u32 %v6077, 7
    %v6079 = vsub.s32 %v6076, %v6078
    %v6080 = vrot.slane %v242, %v6079
    %v6082 = vunpack.c.l.s4 1983009808
    %v6083 = vunpack.c.0.s8 %v6082
    %v6084 = vlaneseq
    %v6085 = vshrl.u32 %v6084, 7
    %v6086 = vsub.s32 %v6083, %v6085
    %v6087 = vrot.slane %v6073, %v6086
    %v6088 = vcombine.high %v6080, %v6080
    %v6089 = vcombine.high %v6087, %v6087
    %v6090 = vrot.slane %v6080, 1
    %v6091 = vrot.slane %v6088, 1
    %v6092 = vrot.slane %v6087, 1
    %v6093 = vrot.slane %v6089, 1
    %v6102 = vadd.f32 %v5944, %v6080
    %v6103 = vadd.f32 %v5945, %v6090
    %v6104 = vadd.f32 %v5946, %v6088
    %v6105 = vadd.f32 %v5947, %v6091
    %v6106 = vadd.f32 %v5948, %v6087
    %v6107 = vadd.f32 %v5949, %v6092
    %v6108 = vadd.f32 %v5950, %v6089
    %v6109 = vadd.f32 %v5951, %v6093
    %v6110 = vadd.f32 %v5952, %v6080
    %v6111 = vadd.f32 %v5953, %v6090
    %v6112 = vadd.f32 %v5954, %v6088
    %v6113 = vadd.f32 %v5955, %v6091
    %v6114 = vadd.f32 %v5956, %v6087
    %v6115 = vadd.f32 %v5957, %v6092
    %v6116 = vadd.f32 %v5958, %v6089
    %v6117 = vadd.f32 %v5959, %v6093
    %v6118 = vadd.f32 %v5960, %v6080
    %v6119 = vadd.f32 %v5961, %v6090
    %v6120 = vadd.f32 %v5962, %v6088
    %v6121 = vadd.f32 %v5963, %v6091
    %v6122 = vadd.f32 %v5964, %v6087
    %v6123 = vadd.f32 %v5965, %v6092
    %v6124 = vadd.f32 %v5966, %v6089
    %v6125 = vadd.f32 %v5967, %v6093
    %v6126 = vadd.f32 %v5968, %v6080
    %v6127 = vadd.f32 %v5969, %v6090
    %v6128 = vadd.f32 %v5970, %v6088
    %v6129 = vadd.f32 %v5971, %v6091
    %v6130 = vadd.f32 %v5972, %v6087
    %v6131 = vadd.f32 %v5973, %v6092
    %v6132 = vadd.f32 %v5974, %v6089
    %v6133 = vadd.f32 %v5975, %v6093
    %v6134 = vadd.f32 %v5976, %v6080
    %v6135 = vadd.f32 %v5977, %v6090
    %v6136 = vadd.f32 %v5978, %v6088
    %v6137 = vadd.f32 %v5979, %v6091
    %v6138 = vadd.f32 %v5980, %v6087
    %v6139 = vadd.f32 %v5981, %v6092
    %v6140 = vadd.f32 %v5982, %v6089
    %v6141 = vadd.f32 %v5983, %v6093
    %v6142 = vadd.f32 %v5984, %v6080
    %v6143 = vadd.f32 %v5985, %v6090
    %v6144 = vadd.f32 %v5986, %v6088
    %v6145 = vadd.f32 %v5987, %v6091
    %v6146 = vadd.f32 %v5988, %v6087
    %v6147 = vadd.f32 %v5989, %v6092
    %v6148 = vadd.f32 %v5990, %v6089
    %v6149 = vadd.f32 %v5991, %v6093
    %v6150 = vadd.f32 %v5992, %v6080
    %v6151 = vadd.f32 %v5993, %v6090
    %v6152 = vadd.f32 %v5994, %v6088
    %v6153 = vadd.f32 %v5995, %v6091
    %v6154 = vadd.f32 %v5996, %v6087
    %v6155 = vadd.f32 %v5997, %v6092
    %v6156 = vadd.f32 %v5998, %v6089
    %v6157 = vadd.f32 %v5999, %v6093
    %v6158 = vadd.f32 %v6000, %v6080
    %v6159 = vadd.f32 %v6001, %v6090
    %v6160 = vadd.f32 %v6002, %v6088
    %v6161 = vadd.f32 %v6003, %v6091
    %v6162 = vadd.f32 %v6004, %v6087
    %v6163 = vadd.f32 %v6005, %v6092
    %v6164 = vadd.f32 %v6006, %v6089
    %v6165 = vadd.f32 %v6007, %v6093
    %v6166 = vadd.f32 %v6008, %v6080
    %v6167 = vadd.f32 %v6009, %v6090
    %v6168 = vadd.f32 %v6010, %v6088
    %v6169 = vadd.f32 %v6011, %v6091
    %v6170 = vadd.f32 %v6012, %v6087
    %v6171 = vadd.f32 %v6013, %v6092
    %v6172 = vadd.f32 %v6014, %v6089
    %v6173 = vadd.f32 %v6015, %v6093
    %v6174 = vadd.f32 %v6016, %v6080
    %v6175 = vadd.f32 %v6017, %v6090
    %v6176 = vadd.f32 %v6018, %v6088
    %v6177 = vadd.f32 %v6019, %v6091
    %v6178 = vadd.f32 %v6020, %v6087
    %v6179 = vadd.f32 %v6021, %v6092
    %v6180 = vadd.f32 %v6022, %v6089
    %v6181 = vadd.f32 %v6023, %v6093
    %v6182 = vadd.f32 %v6024, %v6080
    %v6183 = vadd.f32 %v6025, %v6090
    %v6184 = vadd.f32 %v6026, %v6088
    %v6185 = vadd.f32 %v6027, %v6091
    %v6186 = vadd.f32 %v6028, %v6087
    %v6187 = vadd.f32 %v6029, %v6092
    %v6188 = vadd.f32 %v6030, %v6089
    %v6189 = vadd.f32 %v6031, %v6093
    %v6190 = vadd.f32 %v6032, %v6080
    %v6191 = vadd.f32 %v6033, %v6090
    %v6192 = vadd.f32 %v6034, %v6088
    %v6193 = vadd.f32 %v6035, %v6091
    %v6194 = vadd.f32 %v6036, %v6087
    %v6195 = vadd.f32 %v6037, %v6092
    %v6196 = vadd.f32 %v6038, %v6089
    %v6197 = vadd.f32 %v6039, %v6093
    %v6198 = vadd.f32 %v6040, %v6080
    %v6199 = vadd.f32 %v6041, %v6090
    %v6200 = vadd.f32 %v6042, %v6088
    %v6201 = vadd.f32 %v6043, %v6091
    %v6202 = vadd.f32 %v6044, %v6087
    %v6203 = vadd.f32 %v6045, %v6092
    %v6204 = vadd.f32 %v6046, %v6089
    %v6205 = vadd.f32 %v6047, %v6093
    %v6206 = vadd.f32 %v6048, %v6080
    %v6207 = vadd.f32 %v6049, %v6090
    %v6208 = vadd.f32 %v6050, %v6088
    %v6209 = vadd.f32 %v6051, %v6091
    %v6210 = vadd.f32 %v6052, %v6087
    %v6211 = vadd.f32 %v6053, %v6092
    %v6212 = vadd.f32 %v6054, %v6089
    %v6213 = vadd.f32 %v6055, %v6093
    %v6214 = vadd.f32 %v6056, %v6080
    %v6215 = vadd.f32 %v6057, %v6090
    %v6216 = vadd.f32 %v6058, %v6088
    %v6217 = vadd.f32 %v6059, %v6091
    %v6218 = vadd.f32 %v6060, %v6087
    %v6219 = vadd.f32 %v6061, %v6092
    %v6220 = vadd.f32 %v6062, %v6089
    %v6221 = vadd.f32 %v6063, %v6093
    %v6222 = vadd.f32 %v6064, %v6080
    %v6223 = vadd.f32 %v6065, %v6090
    %v6224 = vadd.f32 %v6066, %v6088
    %v6225 = vadd.f32 %v6067, %v6091
    %v6226 = vadd.f32 %v6068, %v6087
    %v6227 = vadd.f32 %v6069, %v6092
    %v6228 = vadd.f32 %v6070, %v6089
    %v6229 = vadd.f32 %v6071, %v6093
    %v6230 = vld [vmem:[%s3] sm:$0xf]
    %v6231 = vld [vmem:[%s3 + $0x4] sm:$0xf]
    %v6232 = vld [vmem:[%s3 + $0x8] sm:$0xf]
    %v6233 = vld [vmem:[%s3 + $0xc] sm:$0xf]
    %v6234 = vld [vmem:[%s3 + $0x10] sm:$0xf]
    %v6235 = vld [vmem:[%s3 + $0x14] sm:$0xf]
    %v6236 = vld [vmem:[%s3 + $0x18] sm:$0xf]
    %v6237 = vld [vmem:[%s3 + $0x1c] sm:$0xf]
    %v6238 = vld [vmem:[%s3 + $0x20] sm:$0xf]
    %v6239 = vld [vmem:[%s3 + $0x24] sm:$0xf]
    %v6240 = vld [vmem:[%s3 + $0x28] sm:$0xf]
    %v6241 = vld [vmem:[%s3 + $0x2c] sm:$0xf]
    %v6242 = vld [vmem:[%s3 + $0x30] sm:$0xf]
    %v6243 = vld [vmem:[%s3 + $0x34] sm:$0xf]
    %v6244 = vld [vmem:[%s3 + $0x38] sm:$0xf]
    %v6245 = vld [vmem:[%s3 + $0x3c] sm:$0xf]
    %v6246 = vld [vmem:[%s3 + $0x40] sm:$0xf]
    %v6247 = vld [vmem:[%s3 + $0x44] sm:$0xf]
    %v6248 = vld [vmem:[%s3 + $0x48] sm:$0xf]
    %v6249 = vld [vmem:[%s3 + $0x4c] sm:$0xf]
    %v6250 = vld [vmem:[%s3 + $0x50] sm:$0xf]
    %v6251 = vld [vmem:[%s3 + $0x54] sm:$0xf]
    %v6252 = vld [vmem:[%s3 + $0x58] sm:$0xf]
    %v6253 = vld [vmem:[%s3 + $0x5c] sm:$0xf]
    %v6254 = vld [vmem:[%s3 + $0x60] sm:$0xf]
    %v6255 = vld [vmem:[%s3 + $0x64] sm:$0xf]
    %v6256 = vld [vmem:[%s3 + $0x68] sm:$0xf]
    %v6257 = vld [vmem:[%s3 + $0x6c] sm:$0xf]
    %v6258 = vld [vmem:[%s3 + $0x70] sm:$0xf]
    %v6259 = vld [vmem:[%s3 + $0x74] sm:$0xf]
    %v6260 = vld [vmem:[%s3 + $0x78] sm:$0xf]
    %v6261 = vld [vmem:[%s3 + $0x7c] sm:$0xf]
    %v6262 = vld [vmem:[%s3 + $0x80] sm:$0xf]
    %v6263 = vld [vmem:[%s3 + $0x84] sm:$0xf]
    %v6264 = vld [vmem:[%s3 + $0x88] sm:$0xf]
    %v6265 = vld [vmem:[%s3 + $0x8c] sm:$0xf]
    %v6266 = vld [vmem:[%s3 + $0x90] sm:$0xf]
    %v6267 = vld [vmem:[%s3 + $0x94] sm:$0xf]
    %v6268 = vld [vmem:[%s3 + $0x98] sm:$0xf]
    %v6269 = vld [vmem:[%s3 + $0x9c] sm:$0xf]
    %v6270 = vld [vmem:[%s3 + $0xa0] sm:$0xf]
    %v6271 = vld [vmem:[%s3 + $0xa4] sm:$0xf]
    %v6272 = vld [vmem:[%s3 + $0xa8] sm:$0xf]
    %v6273 = vld [vmem:[%s3 + $0xac] sm:$0xf]
    %v6274 = vld [vmem:[%s3 + $0xb0] sm:$0xf]
    %v6275 = vld [vmem:[%s3 + $0xb4] sm:$0xf]
    %v6276 = vld [vmem:[%s3 + $0xb8] sm:$0xf]
    %v6277 = vld [vmem:[%s3 + $0xbc] sm:$0xf]
    %v6278 = vld [vmem:[%s1 + $0x5] ss:$0 sm:$0xff]
    %v6279 = vld [vmem:[%s1 + $0x6] ss:$0 sm:$0xff]
    %v6280 = vld [vmem:[%s1 + $0x7] ss:$0 sm:$0xff]
    %v6337 = vlaneseq
    %v6338 = vshrl.u32 %v6337, 7
    %v6339 = vsub.s32 0, %v6338
    %v6340 = vrot.slane %v6103, %v6339
    %v6341 = vlaneseq
    %v6342 = vshrl.u32 %v6341, 7
    %v6343 = vsub.s32 0, %v6342
    %v6344 = vrot.slane %v6105, %v6343
    %v6345 = vlaneseq
    %v6346 = vshrl.u32 %v6345, 7
    %v6347 = vsub.s32 0, %v6346
    %v6348 = vrot.slane %v6107, %v6347
    %v6349 = vlaneseq
    %v6350 = vshrl.u32 %v6349, 7
    %v6351 = vsub.s32 0, %v6350
    %v6352 = vrot.slane %v6109, %v6351
    %v6353 = vlaneseq
    %v6354 = vshrl.u32 %v6353, 7
    %v6355 = vsub.s32 0, %v6354
    %v6356 = vrot.slane %v6111, %v6355
    %v6357 = vlaneseq
    %v6358 = vshrl.u32 %v6357, 7
    %v6359 = vsub.s32 0, %v6358
    %v6360 = vrot.slane %v6113, %v6359
    %v6361 = vlaneseq
    %v6362 = vshrl.u32 %v6361, 7
    %v6363 = vsub.s32 0, %v6362
    %v6364 = vrot.slane %v6115, %v6363
    %v6365 = vlaneseq
    %v6366 = vshrl.u32 %v6365, 7
    %v6367 = vsub.s32 0, %v6366
    %v6368 = vrot.slane %v6119, %v6367
    %v6369 = vlaneseq
    %v6370 = vshrl.u32 %v6369, 7
    %v6371 = vsub.s32 0, %v6370
    %v6372 = vrot.slane %v6121, %v6371
    %v6373 = vlaneseq
    %v6374 = vshrl.u32 %v6373, 7
    %v6375 = vsub.s32 0, %v6374
    %v6376 = vrot.slane %v6123, %v6375
    %v6377 = vlaneseq
    %v6378 = vshrl.u32 %v6377, 7
    %v6379 = vsub.s32 0, %v6378
    %v6380 = vrot.slane %v6125, %v6379
    %v6381 = vlaneseq
    %v6382 = vshrl.u32 %v6381, 7
    %v6383 = vsub.s32 0, %v6382
    %v6384 = vrot.slane %v6127, %v6383
    %v6385 = vlaneseq
    %v6386 = vshrl.u32 %v6385, 7
    %v6387 = vsub.s32 0, %v6386
    %v6388 = vrot.slane %v6129, %v6387
    %v6389 = vlaneseq
    %v6390 = vshrl.u32 %v6389, 7
    %v6391 = vsub.s32 0, %v6390
    %v6392 = vrot.slane %v6131, %v6391
    %v6393 = vlaneseq
    %v6394 = vshrl.u32 %v6393, 7
    %v6395 = vsub.s32 0, %v6394
    %v6396 = vrot.slane %v6135, %v6395
    %v6397 = vlaneseq
    %v6398 = vshrl.u32 %v6397, 7
    %v6399 = vsub.s32 0, %v6398
    %v6400 = vrot.slane %v6137, %v6399
    %v6401 = vlaneseq
    %v6402 = vshrl.u32 %v6401, 7
    %v6403 = vsub.s32 0, %v6402
    %v6404 = vrot.slane %v6139, %v6403
    %v6405 = vlaneseq
    %v6406 = vshrl.u32 %v6405, 7
    %v6407 = vsub.s32 0, %v6406
    %v6408 = vrot.slane %v6141, %v6407
    %v6409 = vlaneseq
    %v6410 = vshrl.u32 %v6409, 7
    %v6411 = vsub.s32 0, %v6410
    %v6412 = vrot.slane %v6143, %v6411
    %v6413 = vlaneseq
    %v6414 = vshrl.u32 %v6413, 7
    %v6415 = vsub.s32 0, %v6414
    %v6416 = vrot.slane %v6145, %v6415
    %v6417 = vlaneseq
    %v6418 = vshrl.u32 %v6417, 7
    %v6419 = vsub.s32 0, %v6418
    %v6420 = vrot.slane %v6147, %v6419
    %v6421 = vlaneseq
    %v6422 = vshrl.u32 %v6421, 7
    %v6423 = vsub.s32 0, %v6422
    %v6424 = vrot.slane %v6151, %v6423
    %v6425 = vlaneseq
    %v6426 = vshrl.u32 %v6425, 7
    %v6427 = vsub.s32 0, %v6426
    %v6428 = vrot.slane %v6153, %v6427
    %v6429 = vlaneseq
    %v6430 = vshrl.u32 %v6429, 7
    %v6431 = vsub.s32 0, %v6430
    %v6432 = vrot.slane %v6155, %v6431
    %v6433 = vlaneseq
    %v6434 = vshrl.u32 %v6433, 7
    %v6435 = vsub.s32 0, %v6434
    %v6436 = vrot.slane %v6157, %v6435
    %v6437 = vlaneseq
    %v6438 = vshrl.u32 %v6437, 7
    %v6439 = vsub.s32 0, %v6438
    %v6440 = vrot.slane %v6159, %v6439
    %v6441 = vlaneseq
    %v6442 = vshrl.u32 %v6441, 7
    %v6443 = vsub.s32 0, %v6442
    %v6444 = vrot.slane %v6161, %v6443
    %v6445 = vlaneseq
    %v6446 = vshrl.u32 %v6445, 7
    %v6447 = vsub.s32 0, %v6446
    %v6448 = vrot.slane %v6163, %v6447
    %v6449 = vlaneseq
    %v6450 = vshrl.u32 %v6449, 7
    %v6451 = vsub.s32 0, %v6450
    %v6452 = vrot.slane %v6167, %v6451
    %v6453 = vlaneseq
    %v6454 = vshrl.u32 %v6453, 7
    %v6455 = vsub.s32 0, %v6454
    %v6456 = vrot.slane %v6169, %v6455
    %v6457 = vlaneseq
    %v6458 = vshrl.u32 %v6457, 7
    %v6459 = vsub.s32 0, %v6458
    %v6460 = vrot.slane %v6171, %v6459
    %v6461 = vlaneseq
    %v6462 = vshrl.u32 %v6461, 7
    %v6463 = vsub.s32 0, %v6462
    %v6464 = vrot.slane %v6173, %v6463
    %v6465 = vlaneseq
    %v6466 = vshrl.u32 %v6465, 7
    %v6467 = vsub.s32 0, %v6466
    %v6468 = vrot.slane %v6175, %v6467
    %v6469 = vlaneseq
    %v6470 = vshrl.u32 %v6469, 7
    %v6471 = vsub.s32 0, %v6470
    %v6472 = vrot.slane %v6177, %v6471
    %v6473 = vlaneseq
    %v6474 = vshrl.u32 %v6473, 7
    %v6475 = vsub.s32 0, %v6474
    %v6476 = vrot.slane %v6179, %v6475
    %v6477 = vlaneseq
    %v6478 = vshrl.u32 %v6477, 7
    %v6479 = vsub.s32 0, %v6478
    %v6480 = vrot.slane %v6183, %v6479
    %v6481 = vlaneseq
    %v6482 = vshrl.u32 %v6481, 7
    %v6483 = vsub.s32 0, %v6482
    %v6484 = vrot.slane %v6185, %v6483
    %v6485 = vlaneseq
    %v6486 = vshrl.u32 %v6485, 7
    %v6487 = vsub.s32 0, %v6486
    %v6488 = vrot.slane %v6187, %v6487
    %v6489 = vlaneseq
    %v6490 = vshrl.u32 %v6489, 7
    %v6491 = vsub.s32 0, %v6490
    %v6492 = vrot.slane %v6189, %v6491
    %v6493 = vlaneseq
    %v6494 = vshrl.u32 %v6493, 7
    %v6495 = vsub.s32 0, %v6494
    %v6496 = vrot.slane %v6191, %v6495
    %v6497 = vlaneseq
    %v6498 = vshrl.u32 %v6497, 7
    %v6499 = vsub.s32 0, %v6498
    %v6500 = vrot.slane %v6193, %v6499
    %v6501 = vlaneseq
    %v6502 = vshrl.u32 %v6501, 7
    %v6503 = vsub.s32 0, %v6502
    %v6504 = vrot.slane %v6195, %v6503
    %v6505 = vlaneseq
    %v6506 = vshrl.u32 %v6505, 7
    %v6507 = vsub.s32 0, %v6506
    %v6508 = vrot.slane %v6199, %v6507
    %v6509 = vlaneseq
    %v6510 = vshrl.u32 %v6509, 7
    %v6511 = vsub.s32 0, %v6510
    %v6512 = vrot.slane %v6201, %v6511
    %v6513 = vlaneseq
    %v6514 = vshrl.u32 %v6513, 7
    %v6515 = vsub.s32 0, %v6514
    %v6516 = vrot.slane %v6203, %v6515
    %v6517 = vlaneseq
    %v6518 = vshrl.u32 %v6517, 7
    %v6519 = vsub.s32 0, %v6518
    %v6520 = vrot.slane %v6205, %v6519
    %v6521 = vlaneseq
    %v6522 = vshrl.u32 %v6521, 7
    %v6523 = vsub.s32 0, %v6522
    %v6524 = vrot.slane %v6207, %v6523
    %v6525 = vlaneseq
    %v6526 = vshrl.u32 %v6525, 7
    %v6527 = vsub.s32 0, %v6526
    %v6528 = vrot.slane %v6209, %v6527
    %v6529 = vlaneseq
    %v6530 = vshrl.u32 %v6529, 7
    %v6531 = vsub.s32 0, %v6530
    %v6532 = vrot.slane %v6211, %v6531
    %v6533 = vlaneseq
    %v6534 = vshrl.u32 %v6533, 7
    %v6535 = vsub.s32 0, %v6534
    %v6536 = vrot.slane %v6215, %v6535
    %v6537 = vlaneseq
    %v6538 = vshrl.u32 %v6537, 7
    %v6539 = vsub.s32 0, %v6538
    %v6540 = vrot.slane %v6217, %v6539
    %v6541 = vlaneseq
    %v6542 = vshrl.u32 %v6541, 7
    %v6543 = vsub.s32 0, %v6542
    %v6544 = vrot.slane %v6219, %v6543
    %v6545 = vlaneseq
    %v6546 = vshrl.u32 %v6545, 7
    %v6547 = vsub.s32 0, %v6546
    %v6548 = vrot.slane %v6221, %v6547
    %v6549 = vlaneseq
    %v6550 = vshrl.u32 %v6549, 7
    %v6551 = vsub.s32 0, %v6550
    %v6552 = vrot.slane %v6223, %v6551
    %v6553 = vlaneseq
    %v6554 = vshrl.u32 %v6553, 7
    %v6555 = vsub.s32 0, %v6554
    %v6556 = vrot.slane %v6225, %v6555
    %v6557 = vlaneseq
    %v6558 = vshrl.u32 %v6557, 7
    %v6559 = vsub.s32 0, %v6558
    %v6560 = vrot.slane %v6227, %v6559
    %v6561 = vsel %vm2387, %v6344, %v6340
    %v6562 = vsel %vm2389, %v6348, %v6561
    %v6563 = vsel %vm2391, %v6352, %v6562
    %v6564 = vsel %vm2393, %v6356, %v6563
    %v6565 = vsel %vm2395, %v6360, %v6564
    %v6566 = vsel %vm2397, %v6364, %v6565
    %v6567 = vsel %vm2387, %v6372, %v6368
    %v6568 = vsel %vm2389, %v6376, %v6567
    %v6569 = vsel %vm2391, %v6380, %v6568
    %v6570 = vsel %vm2393, %v6384, %v6569
    %v6571 = vsel %vm2395, %v6388, %v6570
    %v6572 = vsel %vm2397, %v6392, %v6571
    %v6573 = vsel %vm2387, %v6400, %v6396
    %v6574 = vsel %vm2389, %v6404, %v6573
    %v6575 = vsel %vm2391, %v6408, %v6574
    %v6576 = vsel %vm2393, %v6412, %v6575
    %v6577 = vsel %vm2395, %v6416, %v6576
    %v6578 = vsel %vm2397, %v6420, %v6577
    %v6579 = vsel %vm2387, %v6428, %v6424
    %v6580 = vsel %vm2389, %v6432, %v6579
    %v6581 = vsel %vm2391, %v6436, %v6580
    %v6582 = vsel %vm2393, %v6440, %v6581
    %v6583 = vsel %vm2395, %v6444, %v6582
    %v6584 = vsel %vm2397, %v6448, %v6583
    %v6585 = vsel %vm2387, %v6456, %v6452
    %v6586 = vsel %vm2389, %v6460, %v6585
    %v6587 = vsel %vm2391, %v6464, %v6586
    %v6588 = vsel %vm2393, %v6468, %v6587
    %v6589 = vsel %vm2395, %v6472, %v6588
    %v6590 = vsel %vm2397, %v6476, %v6589
    %v6591 = vsel %vm2387, %v6484, %v6480
    %v6592 = vsel %vm2389, %v6488, %v6591
    %v6593 = vsel %vm2391, %v6492, %v6592
    %v6594 = vsel %vm2393, %v6496, %v6593
    %v6595 = vsel %vm2395, %v6500, %v6594
    %v6596 = vsel %vm2397, %v6504, %v6595
    %v6597 = vsel %vm2387, %v6512, %v6508
    %v6598 = vsel %vm2389, %v6516, %v6597
    %v6599 = vsel %vm2391, %v6520, %v6598
    %v6600 = vsel %vm2393, %v6524, %v6599
    %v6601 = vsel %vm2395, %v6528, %v6600
    %v6602 = vsel %vm2397, %v6532, %v6601
    %v6603 = vsel %vm2387, %v6540, %v6536
    %v6604 = vsel %vm2389, %v6544, %v6603
    %v6605 = vsel %vm2391, %v6548, %v6604
    %v6606 = vsel %vm2393, %v6552, %v6605
    %v6607 = vsel %vm2395, %v6556, %v6606
    %v6608 = vsel %vm2397, %v6560, %v6607
    %v6617 = vsel %vm2642, 0.0, %v6566
    %v6618 = vsel %vm2642, 0.0, %v6572
    %v6619 = vsel %vm2642, 0.0, %v6578
    %v6620 = vsel %vm2642, 0.0, %v6584
    %v6621 = vsel %vm2642, 0.0, %v6590
    %v6622 = vsel %vm2642, 0.0, %v6596
    %v6623 = vsel %vm2642, 0.0, %v6602
    %v6624 = vsel %vm2642, 0.0, %v6608
    %v6689 = vlaneseq
    %v6690 = vshrl.u32 %v6689, 7
    %v6691 = vsub.s32 0, %v6690
    %v6692 = vrot.slane %v6102, %v6691
    %v6693 = vlaneseq
    %v6694 = vshrl.u32 %v6693, 7
    %v6695 = vsub.s32 0, %v6694
    %v6696 = vrot.slane %v6104, %v6695
    %v6697 = vlaneseq
    %v6698 = vshrl.u32 %v6697, 7
    %v6699 = vsub.s32 0, %v6698
    %v6700 = vrot.slane %v6106, %v6699
    %v6701 = vlaneseq
    %v6702 = vshrl.u32 %v6701, 7
    %v6703 = vsub.s32 0, %v6702
    %v6704 = vrot.slane %v6108, %v6703
    %v6705 = vlaneseq
    %v6706 = vshrl.u32 %v6705, 7
    %v6707 = vsub.s32 0, %v6706
    %v6708 = vrot.slane %v6110, %v6707
    %v6709 = vlaneseq
    %v6710 = vshrl.u32 %v6709, 7
    %v6711 = vsub.s32 0, %v6710
    %v6712 = vrot.slane %v6112, %v6711
    %v6713 = vlaneseq
    %v6714 = vshrl.u32 %v6713, 7
    %v6715 = vsub.s32 0, %v6714
    %v6716 = vrot.slane %v6114, %v6715
    %v6717 = vlaneseq
    %v6718 = vshrl.u32 %v6717, 7
    %v6719 = vsub.s32 0, %v6718
    %v6720 = vrot.slane %v6116, %v6719
    %v6721 = vlaneseq
    %v6722 = vshrl.u32 %v6721, 7
    %v6723 = vsub.s32 0, %v6722
    %v6724 = vrot.slane %v6118, %v6723
    %v6725 = vlaneseq
    %v6726 = vshrl.u32 %v6725, 7
    %v6727 = vsub.s32 0, %v6726
    %v6728 = vrot.slane %v6120, %v6727
    %v6729 = vlaneseq
    %v6730 = vshrl.u32 %v6729, 7
    %v6731 = vsub.s32 0, %v6730
    %v6732 = vrot.slane %v6122, %v6731
    %v6733 = vlaneseq
    %v6734 = vshrl.u32 %v6733, 7
    %v6735 = vsub.s32 0, %v6734
    %v6736 = vrot.slane %v6124, %v6735
    %v6737 = vlaneseq
    %v6738 = vshrl.u32 %v6737, 7
    %v6739 = vsub.s32 0, %v6738
    %v6740 = vrot.slane %v6126, %v6739
    %v6741 = vlaneseq
    %v6742 = vshrl.u32 %v6741, 7
    %v6743 = vsub.s32 0, %v6742
    %v6744 = vrot.slane %v6128, %v6743
    %v6745 = vlaneseq
    %v6746 = vshrl.u32 %v6745, 7
    %v6747 = vsub.s32 0, %v6746
    %v6748 = vrot.slane %v6130, %v6747
    %v6749 = vlaneseq
    %v6750 = vshrl.u32 %v6749, 7
    %v6751 = vsub.s32 0, %v6750
    %v6752 = vrot.slane %v6132, %v6751
    %v6753 = vlaneseq
    %v6754 = vshrl.u32 %v6753, 7
    %v6755 = vsub.s32 0, %v6754
    %v6756 = vrot.slane %v6134, %v6755
    %v6757 = vlaneseq
    %v6758 = vshrl.u32 %v6757, 7
    %v6759 = vsub.s32 0, %v6758
    %v6760 = vrot.slane %v6136, %v6759
    %v6761 = vlaneseq
    %v6762 = vshrl.u32 %v6761, 7
    %v6763 = vsub.s32 0, %v6762
    %v6764 = vrot.slane %v6138, %v6763
    %v6765 = vlaneseq
    %v6766 = vshrl.u32 %v6765, 7
    %v6767 = vsub.s32 0, %v6766
    %v6768 = vrot.slane %v6140, %v6767
    %v6769 = vlaneseq
    %v6770 = vshrl.u32 %v6769, 7
    %v6771 = vsub.s32 0, %v6770
    %v6772 = vrot.slane %v6142, %v6771
    %v6773 = vlaneseq
    %v6774 = vshrl.u32 %v6773, 7
    %v6775 = vsub.s32 0, %v6774
    %v6776 = vrot.slane %v6144, %v6775
    %v6777 = vlaneseq
    %v6778 = vshrl.u32 %v6777, 7
    %v6779 = vsub.s32 0, %v6778
    %v6780 = vrot.slane %v6146, %v6779
    %v6781 = vlaneseq
    %v6782 = vshrl.u32 %v6781, 7
    %v6783 = vsub.s32 0, %v6782
    %v6784 = vrot.slane %v6148, %v6783
    %v6785 = vlaneseq
    %v6786 = vshrl.u32 %v6785, 7
    %v6787 = vsub.s32 0, %v6786
    %v6788 = vrot.slane %v6150, %v6787
    %v6789 = vlaneseq
    %v6790 = vshrl.u32 %v6789, 7
    %v6791 = vsub.s32 0, %v6790
    %v6792 = vrot.slane %v6152, %v6791
    %v6793 = vlaneseq
    %v6794 = vshrl.u32 %v6793, 7
    %v6795 = vsub.s32 0, %v6794
    %v6796 = vrot.slane %v6154, %v6795
    %v6797 = vlaneseq
    %v6798 = vshrl.u32 %v6797, 7
    %v6799 = vsub.s32 0, %v6798
    %v6800 = vrot.slane %v6156, %v6799
    %v6801 = vlaneseq
    %v6802 = vshrl.u32 %v6801, 7
    %v6803 = vsub.s32 0, %v6802
    %v6804 = vrot.slane %v6158, %v6803
    %v6805 = vlaneseq
    %v6806 = vshrl.u32 %v6805, 7
    %v6807 = vsub.s32 0, %v6806
    %v6808 = vrot.slane %v6160, %v6807
    %v6809 = vlaneseq
    %v6810 = vshrl.u32 %v6809, 7
    %v6811 = vsub.s32 0, %v6810
    %v6812 = vrot.slane %v6162, %v6811
    %v6813 = vlaneseq
    %v6814 = vshrl.u32 %v6813, 7
    %v6815 = vsub.s32 0, %v6814
    %v6816 = vrot.slane %v6164, %v6815
    %v6817 = vlaneseq
    %v6818 = vshrl.u32 %v6817, 7
    %v6819 = vsub.s32 0, %v6818
    %v6820 = vrot.slane %v6166, %v6819
    %v6821 = vlaneseq
    %v6822 = vshrl.u32 %v6821, 7
    %v6823 = vsub.s32 0, %v6822
    %v6824 = vrot.slane %v6168, %v6823
    %v6825 = vlaneseq
    %v6826 = vshrl.u32 %v6825, 7
    %v6827 = vsub.s32 0, %v6826
    %v6828 = vrot.slane %v6170, %v6827
    %v6829 = vlaneseq
    %v6830 = vshrl.u32 %v6829, 7
    %v6831 = vsub.s32 0, %v6830
    %v6832 = vrot.slane %v6172, %v6831
    %v6833 = vlaneseq
    %v6834 = vshrl.u32 %v6833, 7
    %v6835 = vsub.s32 0, %v6834
    %v6836 = vrot.slane %v6174, %v6835
    %v6837 = vlaneseq
    %v6838 = vshrl.u32 %v6837, 7
    %v6839 = vsub.s32 0, %v6838
    %v6840 = vrot.slane %v6176, %v6839
    %v6841 = vlaneseq
    %v6842 = vshrl.u32 %v6841, 7
    %v6843 = vsub.s32 0, %v6842
    %v6844 = vrot.slane %v6178, %v6843
    %v6845 = vlaneseq
    %v6846 = vshrl.u32 %v6845, 7
    %v6847 = vsub.s32 0, %v6846
    %v6848 = vrot.slane %v6180, %v6847
    %v6849 = vlaneseq
    %v6850 = vshrl.u32 %v6849, 7
    %v6851 = vsub.s32 0, %v6850
    %v6852 = vrot.slane %v6182, %v6851
    %v6853 = vlaneseq
    %v6854 = vshrl.u32 %v6853, 7
    %v6855 = vsub.s32 0, %v6854
    %v6856 = vrot.slane %v6184, %v6855
    %v6857 = vlaneseq
    %v6858 = vshrl.u32 %v6857, 7
    %v6859 = vsub.s32 0, %v6858
    %v6860 = vrot.slane %v6186, %v6859
    %v6861 = vlaneseq
    %v6862 = vshrl.u32 %v6861, 7
    %v6863 = vsub.s32 0, %v6862
    %v6864 = vrot.slane %v6188, %v6863
    %v6865 = vlaneseq
    %v6866 = vshrl.u32 %v6865, 7
    %v6867 = vsub.s32 0, %v6866
    %v6868 = vrot.slane %v6190, %v6867
    %v6869 = vlaneseq
    %v6870 = vshrl.u32 %v6869, 7
    %v6871 = vsub.s32 0, %v6870
    %v6872 = vrot.slane %v6192, %v6871
    %v6873 = vlaneseq
    %v6874 = vshrl.u32 %v6873, 7
    %v6875 = vsub.s32 0, %v6874
    %v6876 = vrot.slane %v6194, %v6875
    %v6877 = vlaneseq
    %v6878 = vshrl.u32 %v6877, 7
    %v6879 = vsub.s32 0, %v6878
    %v6880 = vrot.slane %v6196, %v6879
    %v6881 = vlaneseq
    %v6882 = vshrl.u32 %v6881, 7
    %v6883 = vsub.s32 0, %v6882
    %v6884 = vrot.slane %v6198, %v6883
    %v6885 = vlaneseq
    %v6886 = vshrl.u32 %v6885, 7
    %v6887 = vsub.s32 0, %v6886
    %v6888 = vrot.slane %v6200, %v6887
    %v6889 = vlaneseq
    %v6890 = vshrl.u32 %v6889, 7
    %v6891 = vsub.s32 0, %v6890
    %v6892 = vrot.slane %v6202, %v6891
    %v6893 = vlaneseq
    %v6894 = vshrl.u32 %v6893, 7
    %v6895 = vsub.s32 0, %v6894
    %v6896 = vrot.slane %v6204, %v6895
    %v6897 = vlaneseq
    %v6898 = vshrl.u32 %v6897, 7
    %v6899 = vsub.s32 0, %v6898
    %v6900 = vrot.slane %v6206, %v6899
    %v6901 = vlaneseq
    %v6902 = vshrl.u32 %v6901, 7
    %v6903 = vsub.s32 0, %v6902
    %v6904 = vrot.slane %v6208, %v6903
    %v6905 = vlaneseq
    %v6906 = vshrl.u32 %v6905, 7
    %v6907 = vsub.s32 0, %v6906
    %v6908 = vrot.slane %v6210, %v6907
    %v6909 = vlaneseq
    %v6910 = vshrl.u32 %v6909, 7
    %v6911 = vsub.s32 0, %v6910
    %v6912 = vrot.slane %v6212, %v6911
    %v6913 = vlaneseq
    %v6914 = vshrl.u32 %v6913, 7
    %v6915 = vsub.s32 0, %v6914
    %v6916 = vrot.slane %v6214, %v6915
    %v6917 = vlaneseq
    %v6918 = vshrl.u32 %v6917, 7
    %v6919 = vsub.s32 0, %v6918
    %v6920 = vrot.slane %v6216, %v6919
    %v6921 = vlaneseq
    %v6922 = vshrl.u32 %v6921, 7
    %v6923 = vsub.s32 0, %v6922
    %v6924 = vrot.slane %v6218, %v6923
    %v6925 = vlaneseq
    %v6926 = vshrl.u32 %v6925, 7
    %v6927 = vsub.s32 0, %v6926
    %v6928 = vrot.slane %v6220, %v6927
    %v6929 = vlaneseq
    %v6930 = vshrl.u32 %v6929, 7
    %v6931 = vsub.s32 0, %v6930
    %v6932 = vrot.slane %v6222, %v6931
    %v6933 = vlaneseq
    %v6934 = vshrl.u32 %v6933, 7
    %v6935 = vsub.s32 0, %v6934
    %v6936 = vrot.slane %v6224, %v6935
    %v6937 = vlaneseq
    %v6938 = vshrl.u32 %v6937, 7
    %v6939 = vsub.s32 0, %v6938
    %v6940 = vrot.slane %v6226, %v6939
    %v6941 = vlaneseq
    %v6942 = vshrl.u32 %v6941, 7
    %v6943 = vsub.s32 0, %v6942
    %v6944 = vrot.slane %v6228, %v6943
    %v6945 = vsel %vm2399, %v6696, %v6692
    %v6946 = vsel %vm2387, %v6700, %v6945
    %v6947 = vsel %vm2389, %v6704, %v6946
    %v6948 = vsel %vm2391, %v6708, %v6947
    %v6949 = vsel %vm2393, %v6712, %v6948
    %v6950 = vsel %vm2395, %v6716, %v6949
    %v6951 = vsel %vm2397, %v6720, %v6950
    %v6952 = vsel %vm2399, %v6728, %v6724
    %v6953 = vsel %vm2387, %v6732, %v6952
    %v6954 = vsel %vm2389, %v6736, %v6953
    %v6955 = vsel %vm2391, %v6740, %v6954
    %v6956 = vsel %vm2393, %v6744, %v6955
    %v6957 = vsel %vm2395, %v6748, %v6956
    %v6958 = vsel %vm2397, %v6752, %v6957
    %v6959 = vsel %vm2399, %v6760, %v6756
    %v6960 = vsel %vm2387, %v6764, %v6959
    %v6961 = vsel %vm2389, %v6768, %v6960
    %v6962 = vsel %vm2391, %v6772, %v6961
    %v6963 = vsel %vm2393, %v6776, %v6962
    %v6964 = vsel %vm2395, %v6780, %v6963
    %v6965 = vsel %vm2397, %v6784, %v6964
    %v6966 = vsel %vm2399, %v6792, %v6788
    %v6967 = vsel %vm2387, %v6796, %v6966
    %v6968 = vsel %vm2389, %v6800, %v6967
    %v6969 = vsel %vm2391, %v6804, %v6968
    %v6970 = vsel %vm2393, %v6808, %v6969
    %v6971 = vsel %vm2395, %v6812, %v6970
    %v6972 = vsel %vm2397, %v6816, %v6971
    %v6973 = vsel %vm2399, %v6824, %v6820
    %v6974 = vsel %vm2387, %v6828, %v6973
    %v6975 = vsel %vm2389, %v6832, %v6974
    %v6976 = vsel %vm2391, %v6836, %v6975
    %v6977 = vsel %vm2393, %v6840, %v6976
    %v6978 = vsel %vm2395, %v6844, %v6977
    %v6979 = vsel %vm2397, %v6848, %v6978
    %v6980 = vsel %vm2399, %v6856, %v6852
    %v6981 = vsel %vm2387, %v6860, %v6980
    %v6982 = vsel %vm2389, %v6864, %v6981
    %v6983 = vsel %vm2391, %v6868, %v6982
    %v6984 = vsel %vm2393, %v6872, %v6983
    %v6985 = vsel %vm2395, %v6876, %v6984
    %v6986 = vsel %vm2397, %v6880, %v6985
    %v6987 = vsel %vm2399, %v6888, %v6884
    %v6988 = vsel %vm2387, %v6892, %v6987
    %v6989 = vsel %vm2389, %v6896, %v6988
    %v6990 = vsel %vm2391, %v6900, %v6989
    %v6991 = vsel %vm2393, %v6904, %v6990
    %v6992 = vsel %vm2395, %v6908, %v6991
    %v6993 = vsel %vm2397, %v6912, %v6992
    %v6994 = vsel %vm2399, %v6920, %v6916
    %v6995 = vsel %vm2387, %v6924, %v6994
    %v6996 = vsel %vm2389, %v6928, %v6995
    %v6997 = vsel %vm2391, %v6932, %v6996
    %v6998 = vsel %vm2393, %v6936, %v6997
    %v6999 = vsel %vm2395, %v6940, %v6998
    %v7000 = vsel %vm2397, %v6944, %v6999
    %v7017 = vlaneseq
    %v7018 = vshrl.u32 %v7017, 7
    %v7019 = vsub.s32 0, %v7018
    %v7020 = vrot.slane %v6117, %v7019
    %v7021 = vlaneseq
    %v7022 = vshrl.u32 %v7021, 7
    %v7023 = vsub.s32 0, %v7022
    %v7024 = vrot.slane %v6133, %v7023
    %v7025 = vlaneseq
    %v7026 = vshrl.u32 %v7025, 7
    %v7027 = vsub.s32 0, %v7026
    %v7028 = vrot.slane %v6149, %v7027
    %v7029 = vlaneseq
    %v7030 = vshrl.u32 %v7029, 7
    %v7031 = vsub.s32 0, %v7030
    %v7032 = vrot.slane %v6165, %v7031
    %v7033 = vlaneseq
    %v7034 = vshrl.u32 %v7033, 7
    %v7035 = vsub.s32 0, %v7034
    %v7036 = vrot.slane %v6181, %v7035
    %v7037 = vlaneseq
    %v7038 = vshrl.u32 %v7037, 7
    %v7039 = vsub.s32 0, %v7038
    %v7040 = vrot.slane %v6197, %v7039
    %v7041 = vlaneseq
    %v7042 = vshrl.u32 %v7041, 7
    %v7043 = vsub.s32 0, %v7042
    %v7044 = vrot.slane %v6213, %v7043
    %v7045 = vlaneseq
    %v7046 = vshrl.u32 %v7045, 7
    %v7047 = vsub.s32 0, %v7046
    %v7048 = vrot.slane %v6229, %v7047
    %v7049 = vsel %vm2399, %v6344, %v6340
    %v7050 = vsel %vm2387, %v6348, %v7049
    %v7051 = vsel %vm2389, %v6352, %v7050
    %v7052 = vsel %vm2391, %v6356, %v7051
    %v7053 = vsel %vm2393, %v6360, %v7052
    %v7054 = vsel %vm2395, %v6364, %v7053
    %v7055 = vsel %vm2397, %v7020, %v7054
    %v7056 = vsel %vm2399, %v6372, %v6368
    %v7057 = vsel %vm2387, %v6376, %v7056
    %v7058 = vsel %vm2389, %v6380, %v7057
    %v7059 = vsel %vm2391, %v6384, %v7058
    %v7060 = vsel %vm2393, %v6388, %v7059
    %v7061 = vsel %vm2395, %v6392, %v7060
    %v7062 = vsel %vm2397, %v7024, %v7061
    %v7063 = vsel %vm2399, %v6400, %v6396
    %v7064 = vsel %vm2387, %v6404, %v7063
    %v7065 = vsel %vm2389, %v6408, %v7064
    %v7066 = vsel %vm2391, %v6412, %v7065
    %v7067 = vsel %vm2393, %v6416, %v7066
    %v7068 = vsel %vm2395, %v6420, %v7067
    %v7069 = vsel %vm2397, %v7028, %v7068
    %v7070 = vsel %vm2399, %v6428, %v6424
    %v7071 = vsel %vm2387, %v6432, %v7070
    %v7072 = vsel %vm2389, %v6436, %v7071
    %v7073 = vsel %vm2391, %v6440, %v7072
    %v7074 = vsel %vm2393, %v6444, %v7073
    %v7075 = vsel %vm2395, %v6448, %v7074
    %v7076 = vsel %vm2397, %v7032, %v7075
    %v7077 = vsel %vm2399, %v6456, %v6452
    %v7078 = vsel %vm2387, %v6460, %v7077
    %v7079 = vsel %vm2389, %v6464, %v7078
    %v7080 = vsel %vm2391, %v6468, %v7079
    %v7081 = vsel %vm2393, %v6472, %v7080
    %v7082 = vsel %vm2395, %v6476, %v7081
    %v7083 = vsel %vm2397, %v7036, %v7082
    %v7084 = vsel %vm2399, %v6484, %v6480
    %v7085 = vsel %vm2387, %v6488, %v7084
    %v7086 = vsel %vm2389, %v6492, %v7085
    %v7087 = vsel %vm2391, %v6496, %v7086
    %v7088 = vsel %vm2393, %v6500, %v7087
    %v7089 = vsel %vm2395, %v6504, %v7088
    %v7090 = vsel %vm2397, %v7040, %v7089
    %v7091 = vsel %vm2399, %v6512, %v6508
    %v7092 = vsel %vm2387, %v6516, %v7091
    %v7093 = vsel %vm2389, %v6520, %v7092
    %v7094 = vsel %vm2391, %v6524, %v7093
    %v7095 = vsel %vm2393, %v6528, %v7094
    %v7096 = vsel %vm2395, %v6532, %v7095
    %v7097 = vsel %vm2397, %v7044, %v7096
    %v7098 = vsel %vm2399, %v6540, %v6536
    %v7099 = vsel %vm2387, %v6544, %v7098
    %v7100 = vsel %vm2389, %v6548, %v7099
    %v7101 = vsel %vm2391, %v6552, %v7100
    %v7102 = vsel %vm2393, %v6556, %v7101
    %v7103 = vsel %vm2395, %v6560, %v7102
    %v7104 = vsel %vm2397, %v7048, %v7103
    %v7113 = vpack.c.bf16 %v6618, %v6617
    %v7114 = vpack.c.bf16 %v6958, %v6951
    %v7115 = vpack.c.bf16 %v7062, %v7055
    %v7116 = vpack.c.bf16 %v6620, %v6619
    %v7117 = vpack.c.bf16 %v6972, %v6965
    %v7118 = vpack.c.bf16 %v7076, %v7069
    %v7119 = vpack.c.bf16 %v6622, %v6621
    %v7120 = vpack.c.bf16 %v6986, %v6979
    %v7121 = vpack.c.bf16 %v7090, %v7083
    %v7122 = vpack.c.bf16 %v6624, %v6623
    %v7123 = vpack.c.bf16 %v7000, %v6993
    %v7124 = vpack.c.bf16 %v7104, %v7097
    %v7173 = vunpack.c.l.b16 %v6230
    %v7174 = vunpack.c.l.b16 %v6231
    %v7175 = vunpack.c.l.b16 %v6232
    %v7176 = vunpack.c.l.b16 %v6233
    %v7177 = vunpack.c.l.b16 %v6234
    %v7178 = vunpack.c.l.b16 %v6235
    %v7179 = vunpack.c.l.b16 %v6236
    %v7180 = vunpack.c.l.b16 %v6237
    %v7181 = vunpack.c.l.b16 %v6238
    %v7182 = vunpack.c.l.b16 %v6239
    %v7183 = vunpack.c.l.b16 %v6240
    %v7184 = vunpack.c.l.b16 %v6241
    %v7185 = vunpack.c.l.b16 %v6242
    %v7186 = vunpack.c.l.b16 %v6243
    %v7187 = vunpack.c.l.b16 %v6244
    %v7188 = vunpack.c.l.b16 %v6245
    %v7189 = vunpack.c.l.b16 %v6246
    %v7190 = vunpack.c.l.b16 %v6247
    %v7191 = vunpack.c.l.b16 %v6248
    %v7192 = vunpack.c.l.b16 %v6249
    %v7193 = vunpack.c.l.b16 %v6250
    %v7194 = vunpack.c.l.b16 %v6251
    %v7195 = vunpack.c.l.b16 %v6252
    %v7196 = vunpack.c.l.b16 %v6253
    %v7197 = vunpack.c.l.b16 %v6254
    %v7198 = vunpack.c.l.b16 %v6255
    %v7199 = vunpack.c.l.b16 %v6256
    %v7200 = vunpack.c.l.b16 %v6257
    %v7201 = vunpack.c.l.b16 %v6258
    %v7202 = vunpack.c.l.b16 %v6259
    %v7203 = vunpack.c.l.b16 %v6260
    %v7204 = vunpack.c.l.b16 %v6261
    %v7205 = vunpack.c.l.b16 %v6262
    %v7206 = vunpack.c.l.b16 %v6263
    %v7207 = vunpack.c.l.b16 %v6264
    %v7208 = vunpack.c.l.b16 %v6265
    %v7209 = vunpack.c.l.b16 %v6266
    %v7210 = vunpack.c.l.b16 %v6267
    %v7211 = vunpack.c.l.b16 %v6268
    %v7212 = vunpack.c.l.b16 %v6269
    %v7213 = vunpack.c.l.b16 %v6270
    %v7214 = vunpack.c.l.b16 %v6271
    %v7215 = vunpack.c.l.b16 %v6272
    %v7216 = vunpack.c.l.b16 %v6273
    %v7217 = vunpack.c.l.b16 %v6274
    %v7218 = vunpack.c.l.b16 %v6275
    %v7219 = vunpack.c.l.b16 %v6276
    %v7220 = vunpack.c.l.b16 %v6277
    %v7221 = vpack.c.b16 %v7174, %v7173
    %v7222 = vpack.c.b16 %v7176, %v7175
    %v7223 = vpack.c.b16 %v7178, %v7177
    %v7224 = vpack.c.b16 %v7180, %v7179
    %v7225 = vpack.c.b16 %v7182, %v7181
    %v7226 = vpack.c.b16 %v7184, %v7183
    %v7227 = vpack.c.b16 %v7186, %v7185
    %v7228 = vpack.c.b16 %v7188, %v7187
    %v7229 = vpack.c.b16 %v7190, %v7189
    %v7230 = vpack.c.b16 %v7192, %v7191
    %v7231 = vpack.c.b16 %v7194, %v7193
    %v7232 = vpack.c.b16 %v7196, %v7195
    %v7233 = vpack.c.b16 %v7198, %v7197
    %v7234 = vpack.c.b16 %v7200, %v7199
    %v7235 = vpack.c.b16 %v7202, %v7201
    %v7236 = vpack.c.b16 %v7204, %v7203
    %v7237 = vpack.c.b16 %v7206, %v7205
    %v7238 = vpack.c.b16 %v7208, %v7207
    %v7239 = vpack.c.b16 %v7210, %v7209
    %v7240 = vpack.c.b16 %v7212, %v7211
    %v7241 = vpack.c.b16 %v7214, %v7213
    %v7242 = vpack.c.b16 %v7216, %v7215
    %v7243 = vpack.c.b16 %v7218, %v7217
    %v7244 = vpack.c.b16 %v7220, %v7219
    %7269 = vmatprep.subr.bf16.mxu0 0
    %7270 = vmatpush1.bf16.msra.mxu0 %v7228
    %7271 = vmatprep.subr.bf16.mxu0 0
    %7272 = vmatpush1.bf16.msra.mxu0 %v7227
    %7273 = vmatprep.subr.bf16.mxu0 0
    %7274 = vmatpush1.bf16.msra.mxu0 %v7226
    %7275 = vmatprep.subr.bf16.mxu0 0
    %7276 = vmatpush1.bf16.msra.mxu0 %v7225
    %7277 = vmatprep.subr.bf16.mxu0 0
    %7278 = vmatpush1.bf16.msra.mxu0 %v7224
    %7279 = vmatprep.subr.bf16.mxu0 0
    %7280 = vmatpush1.bf16.msra.mxu0 %v7223
    %7281 = vmatprep.subr.bf16.mxu0 0
    %7282 = vmatpush1.bf16.msra.mxu0 %v7222
    %7283 = vmatprep.subr.bf16.mxu0 0
    %7284 = vmatpush1.bf16.msra.mxu0 %v7221
    %7285 = vmatprep.subr.bf16.mxu0 0
    %7286 = vmatpush2.bf16.msra.mxu0 %v7236
    %7287 = vmatprep.subr.bf16.mxu0 0
    %7288 = vmatpush2.bf16.msra.mxu0 %v7235
    %7289 = vmatprep.subr.bf16.mxu0 0
    %7290 = vmatpush2.bf16.msra.mxu0 %v7234
    %7291 = vmatprep.subr.bf16.mxu0 0
    %7292 = vmatpush2.bf16.msra.mxu0 %v7233
    %7293 = vmatprep.subr.bf16.mxu0 0
    %7294 = vmatpush2.bf16.msra.mxu0 %v7232
    %7295 = vmatprep.subr.bf16.mxu0 0
    %7296 = vmatpush2.bf16.msra.mxu0 %v7231
    %7297 = vmatprep.subr.bf16.mxu0 0
    %7298 = vmatpush2.bf16.msra.mxu0 %v7230
    %7299 = vmatprep.subr.bf16.mxu0 0
    %7300 = vmatpush2.bf16.msra.mxu0 %v7229
    %7301 = vmatprep.mubr.bf16.mxu0 %v7114
    %7302 = vmatmul.mubr.bf16.gmra.mxu0 %v7113
    %v7303 = vpop.f32.mrf.mxu0
    %v7304 = vadd.f32 %v6278, %v7303
    %v7305 = vpop.f32.mrf.mxu0
    %v7306 = vpop.f32.mrf.mxu0
    %v7307 = vadd.f32 %v6278, %v7306
    %v7308 = vpop.f32.mrf.mxu0
    %7309 = vmatprep.mubr.bf16.mxu0 %v7117
    %7310 = vmatmul.mubr.bf16.gmra.mxu0 %v7116
    %v7311 = vpop.f32.mrf.mxu0
    %v7312 = vadd.f32 %v6278, %v7311
    %v7313 = vpop.f32.mrf.mxu0
    %v7314 = vpop.f32.mrf.mxu0
    %v7315 = vadd.f32 %v6278, %v7314
    %v7316 = vpop.f32.mrf.mxu0
    %7317 = vmatprep.mubr.bf16.mxu0 %v7120
    %7318 = vmatmul.mubr.bf16.gmra.mxu0 %v7119
    %v7319 = vpop.f32.mrf.mxu0
    %v7320 = vadd.f32 %v6278, %v7319
    %v7321 = vpop.f32.mrf.mxu0
    %v7322 = vpop.f32.mrf.mxu0
    %v7323 = vadd.f32 %v6278, %v7322
    %v7324 = vpop.f32.mrf.mxu0
    %7325 = vmatprep.mubr.bf16.mxu0 %v7123
    %7326 = vmatmul.mubr.bf16.gmra.mxu0 %v7122
    %v7327 = vpop.f32.mrf.mxu0
    %v7328 = vadd.f32 %v6278, %v7327
    %v7329 = vpop.f32.mrf.mxu0
    %v7330 = vpop.f32.mrf.mxu0
    %v7331 = vadd.f32 %v6278, %v7330
    %v7332 = vpop.f32.mrf.mxu0
    %7333 = vdwg.mxu0
    %7334 = vmatprep.subr.bf16.mxu0 0
    %7335 = vmatpush1.bf16.msra.mxu0 %v7244
    %7336 = vmatprep.subr.bf16.mxu0 0
    %7337 = vmatpush1.bf16.msra.mxu0 %v7243
    %7338 = vmatprep.subr.bf16.mxu0 0
    %7339 = vmatpush1.bf16.msra.mxu0 %v7242
    %7340 = vmatprep.subr.bf16.mxu0 0
    %7341 = vmatpush1.bf16.msra.mxu0 %v7241
    %7342 = vmatprep.subr.bf16.mxu0 0
    %7343 = vmatpush1.bf16.msra.mxu0 %v7240
    %7344 = vmatprep.subr.bf16.mxu0 0
    %7345 = vmatpush1.bf16.msra.mxu0 %v7239
    %7346 = vmatprep.subr.bf16.mxu0 0
    %7347 = vmatpush1.bf16.msra.mxu0 %v7238
    %7348 = vmatprep.subr.bf16.mxu0 0
    %7349 = vmatpush1.bf16.msra.mxu0 %v7237
    %7350 = vmatprep.subr.bf16.mxu0 0
    %7351 = vmatpush2.bf16.msra.mxu0 0
    %7352 = vmatprep.subr.bf16.mxu0 0
    %7353 = vmatpush2.bf16.msra.mxu0 0
    %7354 = vmatprep.subr.bf16.mxu0 0
    %7355 = vmatpush2.bf16.msra.mxu0 0
    %7356 = vmatprep.subr.bf16.mxu0 0
    %7357 = vmatpush2.bf16.msra.mxu0 0
    %7358 = vmatprep.subr.bf16.mxu0 0
    %7359 = vmatpush2.bf16.msra.mxu0 0
    %7360 = vmatprep.subr.bf16.mxu0 0
    %7361 = vmatpush2.bf16.msra.mxu0 0
    %7362 = vmatprep.subr.bf16.mxu0 0
    %7363 = vmatpush2.bf16.msra.mxu0 0
    %7364 = vmatprep.subr.bf16.mxu0 0
    %7365 = vmatpush2.bf16.msra.mxu0 0
    %7366 = vmatprep.mubr.bf16.mxu0 0
    %7367 = vmatmul.mubr.bf16.gmra.mxu0 %v7115
    %v7368 = vpop.f32.mrf.mxu0
    %v7369 = vadd.f32 %v7304, %v7368
    %v7370 = vpop.f32.mrf.mxu0
    %v7371 = vpop.f32.mrf.mxu0
    %v7372 = vadd.f32 %v7307, %v7371
    %v7373 = vpop.f32.mrf.mxu0
    %7374 = vmatprep.mubr.bf16.mxu0 0
    %7375 = vmatmul.mubr.bf16.gmra.mxu0 %v7118
    %v7376 = vpop.f32.mrf.mxu0
    %v7377 = vadd.f32 %v7312, %v7376
    %v7378 = vpop.f32.mrf.mxu0
    %v7379 = vpop.f32.mrf.mxu0
    %v7380 = vadd.f32 %v7315, %v7379
    %v7381 = vpop.f32.mrf.mxu0
    %7382 = vmatprep.mubr.bf16.mxu0 0
    %7383 = vmatmul.mubr.bf16.gmra.mxu0 %v7121
    %v7384 = vpop.f32.mrf.mxu0
    %v7385 = vadd.f32 %v7320, %v7384
    %v7386 = vpop.f32.mrf.mxu0
    %v7387 = vpop.f32.mrf.mxu0
    %v7388 = vadd.f32 %v7323, %v7387
    %v7389 = vpop.f32.mrf.mxu0
    %7390 = vmatprep.mubr.bf16.mxu0 0
    %7391 = vmatmul.mubr.bf16.gmra.mxu0 %v7124
    %v7392 = vpop.f32.mrf.mxu0
    %v7393 = vadd.f32 %v7328, %v7392
    %v7394 = vpop.f32.mrf.mxu0
    %v7395 = vpop.f32.mrf.mxu0
    %v7396 = vadd.f32 %v7331, %v7395
    %v7397 = vpop.f32.mrf.mxu0
    %7398 = vdwg.mxu0
    %v7399 = vmax.f32 %v7369, 0.0
    %v7400 = vmax.f32 %v7372, 0.0
    %v7401 = vmax.f32 %v7377, 0.0
    %v7402 = vmax.f32 %v7380, 0.0
    %v7403 = vmax.f32 %v7385, 0.0
    %v7404 = vmax.f32 %v7388, 0.0
    %v7405 = vmax.f32 %v7393, 0.0
    %v7406 = vmax.f32 %v7396, 0.0
    %v7415 = vcombine.high %v7399, %v7399
    %v7417 = vunpack.c.l.s4 1983009808
    %v7418 = vunpack.c.0.s8 %v7417
    %v7419 = vlaneseq
    %v7420 = vshrl.u32 %v7419, 7
    %v7421 = vsub.s32 %v7418, %v7420
    %v7422 = vrot.slane %v7399, %v7421
    %v7424 = vunpack.c.l.s4 1983009808
    %v7425 = vunpack.c.0.s8 %v7424
    %v7426 = vlaneseq
    %v7427 = vshrl.u32 %v7426, 7
    %v7428 = vsub.s32 %v7425, %v7427
    %v7429 = vrot.slane %v7415, %v7428
    %v7430 = vcombine.high %v7422, %v7422
    %v7431 = vcombine.high %v7429, %v7429
    %v7432 = vcombine.high %v7400, %v7400
    %v7434 = vunpack.c.l.s4 1983009808
    %v7435 = vunpack.c.0.s8 %v7434
    %v7436 = vlaneseq
    %v7437 = vshrl.u32 %v7436, 7
    %v7438 = vsub.s32 %v7435, %v7437
    %v7439 = vrot.slane %v7400, %v7438
    %v7441 = vunpack.c.l.s4 1983009808
    %v7442 = vunpack.c.0.s8 %v7441
    %v7443 = vlaneseq
    %v7444 = vshrl.u32 %v7443, 7
    %v7445 = vsub.s32 %v7442, %v7444
    %v7446 = vrot.slane %v7432, %v7445
    %v7447 = vcombine.high %v7439, %v7439
    %v7448 = vcombine.high %v7446, %v7446
    %v7449 = vcombine.high %v7401, %v7401
    %v7451 = vunpack.c.l.s4 1983009808
    %v7452 = vunpack.c.0.s8 %v7451
    %v7453 = vlaneseq
    %v7454 = vshrl.u32 %v7453, 7
    %v7455 = vsub.s32 %v7452, %v7454
    %v7456 = vrot.slane %v7401, %v7455
    %v7458 = vunpack.c.l.s4 1983009808
    %v7459 = vunpack.c.0.s8 %v7458
    %v7460 = vlaneseq
    %v7461 = vshrl.u32 %v7460, 7
    %v7462 = vsub.s32 %v7459, %v7461
    %v7463 = vrot.slane %v7449, %v7462
    %v7464 = vcombine.high %v7456, %v7456
    %v7465 = vcombine.high %v7463, %v7463
    %v7466 = vcombine.high %v7402, %v7402
    %v7468 = vunpack.c.l.s4 1983009808
    %v7469 = vunpack.c.0.s8 %v7468
    %v7470 = vlaneseq
    %v7471 = vshrl.u32 %v7470, 7
    %v7472 = vsub.s32 %v7469, %v7471
    %v7473 = vrot.slane %v7402, %v7472
    %v7475 = vunpack.c.l.s4 1983009808
    %v7476 = vunpack.c.0.s8 %v7475
    %v7477 = vlaneseq
    %v7478 = vshrl.u32 %v7477, 7
    %v7479 = vsub.s32 %v7476, %v7478
    %v7480 = vrot.slane %v7466, %v7479
    %v7481 = vcombine.high %v7473, %v7473
    %v7482 = vcombine.high %v7480, %v7480
    %v7483 = vcombine.high %v7403, %v7403
    %v7485 = vunpack.c.l.s4 1983009808
    %v7486 = vunpack.c.0.s8 %v7485
    %v7487 = vlaneseq
    %v7488 = vshrl.u32 %v7487, 7
    %v7489 = vsub.s32 %v7486, %v7488
    %v7490 = vrot.slane %v7403, %v7489
    %v7492 = vunpack.c.l.s4 1983009808
    %v7493 = vunpack.c.0.s8 %v7492
    %v7494 = vlaneseq
    %v7495 = vshrl.u32 %v7494, 7
    %v7496 = vsub.s32 %v7493, %v7495
    %v7497 = vrot.slane %v7483, %v7496
    %v7498 = vcombine.high %v7490, %v7490
    %v7499 = vcombine.high %v7497, %v7497
    %v7500 = vcombine.high %v7404, %v7404
    %v7502 = vunpack.c.l.s4 1983009808
    %v7503 = vunpack.c.0.s8 %v7502
    %v7504 = vlaneseq
    %v7505 = vshrl.u32 %v7504, 7
    %v7506 = vsub.s32 %v7503, %v7505
    %v7507 = vrot.slane %v7404, %v7506
    %v7509 = vunpack.c.l.s4 1983009808
    %v7510 = vunpack.c.0.s8 %v7509
    %v7511 = vlaneseq
    %v7512 = vshrl.u32 %v7511, 7
    %v7513 = vsub.s32 %v7510, %v7512
    %v7514 = vrot.slane %v7500, %v7513
    %v7515 = vcombine.high %v7507, %v7507
    %v7516 = vcombine.high %v7514, %v7514
    %v7517 = vcombine.high %v7405, %v7405
    %v7519 = vunpack.c.l.s4 1983009808
    %v7520 = vunpack.c.0.s8 %v7519
    %v7521 = vlaneseq
    %v7522 = vshrl.u32 %v7521, 7
    %v7523 = vsub.s32 %v7520, %v7522
    %v7524 = vrot.slane %v7405, %v7523
    %v7526 = vunpack.c.l.s4 1983009808
    %v7527 = vunpack.c.0.s8 %v7526
    %v7528 = vlaneseq
    %v7529 = vshrl.u32 %v7528, 7
    %v7530 = vsub.s32 %v7527, %v7529
    %v7531 = vrot.slane %v7517, %v7530
    %v7532 = vcombine.high %v7524, %v7524
    %v7533 = vcombine.high %v7531, %v7531
    %v7534 = vcombine.high %v7406, %v7406
    %v7536 = vunpack.c.l.s4 1983009808
    %v7537 = vunpack.c.0.s8 %v7536
    %v7538 = vlaneseq
    %v7539 = vshrl.u32 %v7538, 7
    %v7540 = vsub.s32 %v7537, %v7539
    %v7541 = vrot.slane %v7406, %v7540
    %v7543 = vunpack.c.l.s4 1983009808
    %v7544 = vunpack.c.0.s8 %v7543
    %v7545 = vlaneseq
    %v7546 = vshrl.u32 %v7545, 7
    %v7547 = vsub.s32 %v7544, %v7546
    %v7548 = vrot.slane %v7534, %v7547
    %v7549 = vcombine.high %v7541, %v7541
    %v7550 = vcombine.high %v7548, %v7548
    %v7583 = vrot.slane %v7422, 7
    %v7584 = vrot.slane %v7583, 2
    %v7585 = vrot.slane %v7430, 7
    %v7586 = vrot.slane %v7585, 2
    %v7587 = vrot.slane %v7429, 7
    %v7588 = vrot.slane %v7587, 2
    %v7589 = vrot.slane %v7431, 7
    %v7590 = vrot.slane %v7589, 2
    %v7591 = vrot.slane %v7439, 7
    %v7592 = vrot.slane %v7591, 2
    %v7593 = vrot.slane %v7447, 7
    %v7594 = vrot.slane %v7593, 2
    %v7595 = vrot.slane %v7446, 7
    %v7596 = vrot.slane %v7595, 2
    %v7597 = vrot.slane %v7448, 7
    %v7598 = vrot.slane %v7597, 2
    %v7599 = vrot.slane %v7456, 7
    %v7600 = vrot.slane %v7599, 2
    %v7601 = vrot.slane %v7464, 7
    %v7602 = vrot.slane %v7601, 2
    %v7603 = vrot.slane %v7463, 7
    %v7604 = vrot.slane %v7603, 2
    %v7605 = vrot.slane %v7465, 7
    %v7606 = vrot.slane %v7605, 2
    %v7607 = vrot.slane %v7473, 7
    %v7608 = vrot.slane %v7607, 2
    %v7609 = vrot.slane %v7481, 7
    %v7610 = vrot.slane %v7609, 2
    %v7611 = vrot.slane %v7480, 7
    %v7612 = vrot.slane %v7611, 2
    %v7613 = vrot.slane %v7482, 7
    %v7614 = vrot.slane %v7613, 2
    %v7615 = vrot.slane %v7490, 7
    %v7616 = vrot.slane %v7615, 2
    %v7617 = vrot.slane %v7498, 7
    %v7618 = vrot.slane %v7617, 2
    %v7619 = vrot.slane %v7497, 7
    %v7620 = vrot.slane %v7619, 2
    %v7621 = vrot.slane %v7499, 7
    %v7622 = vrot.slane %v7621, 2
    %v7623 = vrot.slane %v7507, 7
    %v7624 = vrot.slane %v7623, 2
    %v7625 = vrot.slane %v7515, 7
    %v7626 = vrot.slane %v7625, 2
    %v7627 = vrot.slane %v7514, 7
    %v7628 = vrot.slane %v7627, 2
    %v7629 = vrot.slane %v7516, 7
    %v7630 = vrot.slane %v7629, 2
    %v7631 = vrot.slane %v7524, 7
    %v7632 = vrot.slane %v7631, 2
    %v7633 = vrot.slane %v7532, 7
    %v7634 = vrot.slane %v7633, 2
    %v7635 = vrot.slane %v7531, 7
    %v7636 = vrot.slane %v7635, 2
    %v7637 = vrot.slane %v7533, 7
    %v7638 = vrot.slane %v7637, 2
    %v7639 = vrot.slane %v7541, 7
    %v7640 = vrot.slane %v7639, 2
    %v7641 = vrot.slane %v7549, 7
    %v7642 = vrot.slane %v7641, 2
    %v7643 = vrot.slane %v7548, 7
    %v7644 = vrot.slane %v7643, 2
    %v7645 = vrot.slane %v7550, 7
    %v7646 = vrot.slane %v7645, 2
    %v7679 = vmax.f32 %v7422, %v7584
    %v7680 = vmax.f32 %v7430, %v7586
    %v7681 = vmax.f32 %v7429, %v7588
    %v7682 = vmax.f32 %v7431, %v7590
    %v7683 = vmax.f32 %v7439, %v7592
    %v7684 = vmax.f32 %v7447, %v7594
    %v7685 = vmax.f32 %v7446, %v7596
    %v7686 = vmax.f32 %v7448, %v7598
    %v7687 = vmax.f32 %v7456, %v7600
    %v7688 = vmax.f32 %v7464, %v7602
    %v7689 = vmax.f32 %v7463, %v7604
    %v7690 = vmax.f32 %v7465, %v7606
    %v7691 = vmax.f32 %v7473, %v7608
    %v7692 = vmax.f32 %v7481, %v7610
    %v7693 = vmax.f32 %v7480, %v7612
    %v7694 = vmax.f32 %v7482, %v7614
    %v7695 = vmax.f32 %v7490, %v7616
    %v7696 = vmax.f32 %v7498, %v7618
    %v7697 = vmax.f32 %v7497, %v7620
    %v7698 = vmax.f32 %v7499, %v7622
    %v7699 = vmax.f32 %v7507, %v7624
    %v7700 = vmax.f32 %v7515, %v7626
    %v7701 = vmax.f32 %v7514, %v7628
    %v7702 = vmax.f32 %v7516, %v7630
    %v7703 = vmax.f32 %v7524, %v7632
    %v7704 = vmax.f32 %v7532, %v7634
    %v7705 = vmax.f32 %v7531, %v7636
    %v7706 = vmax.f32 %v7533, %v7638
    %v7707 = vmax.f32 %v7541, %v7640
    %v7708 = vmax.f32 %v7549, %v7642
    %v7709 = vmax.f32 %v7548, %v7644
    %v7710 = vmax.f32 %v7550, %v7646
    %v7713 = vunpack.c.l.s4 1983009808
    %v7714 = vunpack.c.0.s8 %v7713
    %v7715 = vlaneseq
    %v7716 = vshrl.u32 %v7715, 7
    %v7717 = vsub.s32 %v7714, %v7716
    %v7718 = vrot.slane %v6279, %v7717
    %v7719 = vcombine.high %v7718, %v7718
    %v7720 = vrot.slane %v7718, 1
    %v7721 = vrot.slane %v7719, 1
    %v7726 = vmul.f32 %v7679, %v7718
    %v7727 = vmul.f32 %v7680, %v7720
    %v7728 = vmul.f32 %v7681, %v7719
    %v7729 = vmul.f32 %v7682, %v7721
    %v7730 = vmul.f32 %v7683, %v7718
    %v7731 = vmul.f32 %v7684, %v7720
    %v7732 = vmul.f32 %v7685, %v7719
    %v7733 = vmul.f32 %v7686, %v7721
    %v7734 = vmul.f32 %v7687, %v7718
    %v7735 = vmul.f32 %v7688, %v7720
    %v7736 = vmul.f32 %v7689, %v7719
    %v7737 = vmul.f32 %v7690, %v7721
    %v7738 = vmul.f32 %v7691, %v7718
    %v7739 = vmul.f32 %v7692, %v7720
    %v7740 = vmul.f32 %v7693, %v7719
    %v7741 = vmul.f32 %v7694, %v7721
    %v7742 = vmul.f32 %v7695, %v7718
    %v7743 = vmul.f32 %v7696, %v7720
    %v7744 = vmul.f32 %v7697, %v7719
    %v7745 = vmul.f32 %v7698, %v7721
    %v7746 = vmul.f32 %v7699, %v7718
    %v7747 = vmul.f32 %v7700, %v7720
    %v7748 = vmul.f32 %v7701, %v7719
    %v7749 = vmul.f32 %v7702, %v7721
    %v7750 = vmul.f32 %v7703, %v7718
    %v7751 = vmul.f32 %v7704, %v7720
    %v7752 = vmul.f32 %v7705, %v7719
    %v7753 = vmul.f32 %v7706, %v7721
    %v7754 = vmul.f32 %v7707, %v7718
    %v7755 = vmul.f32 %v7708, %v7720
    %v7756 = vmul.f32 %v7709, %v7719
    %v7757 = vmul.f32 %v7710, %v7721
    %v7760 = vunpack.c.l.s4 1983009808
    %v7761 = vunpack.c.0.s8 %v7760
    %v7762 = vlaneseq
    %v7763 = vshrl.u32 %v7762, 7
    %v7764 = vsub.s32 %v7761, %v7763
    %v7765 = vrot.slane %v6280, %v7764
    %v7766 = vcombine.high %v7765, %v7765
    %v7767 = vrot.slane %v7765, 1
    %v7768 = vrot.slane %v7766, 1
    %v7773 = vadd.f32 %v7726, %v7765
    %v7774 = vadd.f32 %v7727, %v7767
    %v7775 = vadd.f32 %v7728, %v7766
    %v7776 = vadd.f32 %v7729, %v7768
    %v7777 = vadd.f32 %v7730, %v7765
    %v7778 = vadd.f32 %v7731, %v7767
    %v7779 = vadd.f32 %v7732, %v7766
    %v7780 = vadd.f32 %v7733, %v7768
    %v7781 = vadd.f32 %v7734, %v7765
    %v7782 = vadd.f32 %v7735, %v7767
    %v7783 = vadd.f32 %v7736, %v7766
    %v7784 = vadd.f32 %v7737, %v7768
    %v7785 = vadd.f32 %v7738, %v7765
    %v7786 = vadd.f32 %v7739, %v7767
    %v7787 = vadd.f32 %v7740, %v7766
    %v7788 = vadd.f32 %v7741, %v7768
    %v7789 = vadd.f32 %v7742, %v7765
    %v7790 = vadd.f32 %v7743, %v7767
    %v7791 = vadd.f32 %v7744, %v7766
    %v7792 = vadd.f32 %v7745, %v7768
    %v7793 = vadd.f32 %v7746, %v7765
    %v7794 = vadd.f32 %v7747, %v7767
    %v7795 = vadd.f32 %v7748, %v7766
    %v7796 = vadd.f32 %v7749, %v7768
    %v7797 = vadd.f32 %v7750, %v7765
    %v7798 = vadd.f32 %v7751, %v7767
    %v7799 = vadd.f32 %v7752, %v7766
    %v7800 = vadd.f32 %v7753, %v7768
    %v7801 = vadd.f32 %v7754, %v7765
    %v7802 = vadd.f32 %v7755, %v7767
    %v7803 = vadd.f32 %v7756, %v7766
    %v7804 = vadd.f32 %v7757, %v7768
    %v7813 = vlaneseq
    %v7814 = vshrl.u32 %v7813, 7
    %v7815 = vsub.s32 0, %v7814
    %v7816 = vrot.slane %v7773, %v7815
    %v7817 = vlaneseq
    %v7818 = vshrl.u32 %v7817, 7
    %v7819 = vsub.s32 0, %v7818
    %v7820 = vrot.slane %v7777, %v7819
    %v7821 = vlaneseq
    %v7822 = vshrl.u32 %v7821, 7
    %v7823 = vsub.s32 0, %v7822
    %v7824 = vrot.slane %v7781, %v7823
    %v7825 = vlaneseq
    %v7826 = vshrl.u32 %v7825, 7
    %v7827 = vsub.s32 0, %v7826
    %v7828 = vrot.slane %v7785, %v7827
    %v7829 = vlaneseq
    %v7830 = vshrl.u32 %v7829, 7
    %v7831 = vsub.s32 0, %v7830
    %v7832 = vrot.slane %v7789, %v7831
    %v7833 = vlaneseq
    %v7834 = vshrl.u32 %v7833, 7
    %v7835 = vsub.s32 0, %v7834
    %v7836 = vrot.slane %v7793, %v7835
    %v7837 = vlaneseq
    %v7838 = vshrl.u32 %v7837, 7
    %v7839 = vsub.s32 0, %v7838
    %v7840 = vrot.slane %v7797, %v7839
    %v7841 = vlaneseq
    %v7842 = vshrl.u32 %v7841, 7
    %v7843 = vsub.s32 0, %v7842
    %v7844 = vrot.slane %v7801, %v7843
    %v7845 = vsel %vm2399, %v7820, %v7816
    %v7846 = vsel %vm2387, %v7824, %v7845
    %v7847 = vsel %vm2389, %v7828, %v7846
    %v7848 = vsel %vm2391, %v7832, %v7847
    %v7849 = vsel %vm2393, %v7836, %v7848
    %v7850 = vsel %vm2395, %v7840, %v7849
    %v7851 = vsel %vm2397, %v7844, %v7850
    %7853 = vst [vmem:[#allocation2] sm:$0xff] %v7851
    %v7862 = vlaneseq
    %v7863 = vshrl.u32 %v7862, 7
    %v7864 = vsub.s32 0, %v7863
    %v7865 = vrot.slane %v7774, %v7864
    %v7866 = vlaneseq
    %v7867 = vshrl.u32 %v7866, 7
    %v7868 = vsub.s32 0, %v7867
    %v7869 = vrot.slane %v7778, %v7868
    %v7870 = vlaneseq
    %v7871 = vshrl.u32 %v7870, 7
    %v7872 = vsub.s32 0, %v7871
    %v7873 = vrot.slane %v7782, %v7872
    %v7874 = vlaneseq
    %v7875 = vshrl.u32 %v7874, 7
    %v7876 = vsub.s32 0, %v7875
    %v7877 = vrot.slane %v7786, %v7876
    %v7878 = vlaneseq
    %v7879 = vshrl.u32 %v7878, 7
    %v7880 = vsub.s32 0, %v7879
    %v7881 = vrot.slane %v7790, %v7880
    %v7882 = vlaneseq
    %v7883 = vshrl.u32 %v7882, 7
    %v7884 = vsub.s32 0, %v7883
    %v7885 = vrot.slane %v7794, %v7884
    %v7886 = vlaneseq
    %v7887 = vshrl.u32 %v7886, 7
    %v7888 = vsub.s32 0, %v7887
    %v7889 = vrot.slane %v7798, %v7888
    %v7890 = vlaneseq
    %v7891 = vshrl.u32 %v7890, 7
    %v7892 = vsub.s32 0, %v7891
    %v7893 = vrot.slane %v7802, %v7892
    %v7894 = vsel %vm2399, %v7869, %v7865
    %v7895 = vsel %vm2387, %v7873, %v7894
    %v7896 = vsel %vm2389, %v7877, %v7895
    %v7897 = vsel %vm2391, %v7881, %v7896
    %v7898 = vsel %vm2393, %v7885, %v7897
    %v7899 = vsel %vm2395, %v7889, %v7898
    %v7900 = vsel %vm2397, %v7893, %v7899
    %7902 = vst [vmem:[#allocation2 + $0x8] sm:$0xff] %v7900
    %v7911 = vlaneseq
    %v7912 = vshrl.u32 %v7911, 7
    %v7913 = vsub.s32 0, %v7912
    %v7914 = vrot.slane %v7775, %v7913
    %v7915 = vlaneseq
    %v7916 = vshrl.u32 %v7915, 7
    %v7917 = vsub.s32 0, %v7916
    %v7918 = vrot.slane %v7779, %v7917
    %v7919 = vlaneseq
    %v7920 = vshrl.u32 %v7919, 7
    %v7921 = vsub.s32 0, %v7920
    %v7922 = vrot.slane %v7783, %v7921
    %v7923 = vlaneseq
    %v7924 = vshrl.u32 %v7923, 7
    %v7925 = vsub.s32 0, %v7924
    %v7926 = vrot.slane %v7787, %v7925
    %v7927 = vlaneseq
    %v7928 = vshrl.u32 %v7927, 7
    %v7929 = vsub.s32 0, %v7928
    %v7930 = vrot.slane %v7791, %v7929
    %v7931 = vlaneseq
    %v7932 = vshrl.u32 %v7931, 7
    %v7933 = vsub.s32 0, %v7932
    %v7934 = vrot.slane %v7795, %v7933
    %v7935 = vlaneseq
    %v7936 = vshrl.u32 %v7935, 7
    %v7937 = vsub.s32 0, %v7936
    %v7938 = vrot.slane %v7799, %v7937
    %v7939 = vlaneseq
    %v7940 = vshrl.u32 %v7939, 7
    %v7941 = vsub.s32 0, %v7940
    %v7942 = vrot.slane %v7803, %v7941
    %v7943 = vsel %vm2399, %v7918, %v7914
    %v7944 = vsel %vm2387, %v7922, %v7943
    %v7945 = vsel %vm2389, %v7926, %v7944
    %v7946 = vsel %vm2391, %v7930, %v7945
    %v7947 = vsel %vm2393, %v7934, %v7946
    %v7948 = vsel %vm2395, %v7938, %v7947
    %v7949 = vsel %vm2397, %v7942, %v7948
    %7951 = vst [vmem:[#allocation2 + $0x10] sm:$0xff] %v7949
    %v7960 = vlaneseq
    %v7961 = vshrl.u32 %v7960, 7
    %v7962 = vsub.s32 0, %v7961
    %v7963 = vrot.slane %v7776, %v7962
    %v7964 = vlaneseq
    %v7965 = vshrl.u32 %v7964, 7
    %v7966 = vsub.s32 0, %v7965
    %v7967 = vrot.slane %v7780, %v7966
    %v7968 = vlaneseq
    %v7969 = vshrl.u32 %v7968, 7
    %v7970 = vsub.s32 0, %v7969
    %v7971 = vrot.slane %v7784, %v7970
    %v7972 = vlaneseq
    %v7973 = vshrl.u32 %v7972, 7
    %v7974 = vsub.s32 0, %v7973
    %v7975 = vrot.slane %v7788, %v7974
    %v7976 = vlaneseq
    %v7977 = vshrl.u32 %v7976, 7
    %v7978 = vsub.s32 0, %v7977
    %v7979 = vrot.slane %v7792, %v7978
    %v7980 = vlaneseq
    %v7981 = vshrl.u32 %v7980, 7
    %v7982 = vsub.s32 0, %v7981
    %v7983 = vrot.slane %v7796, %v7982
    %v7984 = vlaneseq
    %v7985 = vshrl.u32 %v7984, 7
    %v7986 = vsub.s32 0, %v7985
    %v7987 = vrot.slane %v7800, %v7986
    %v7988 = vlaneseq
    %v7989 = vshrl.u32 %v7988, 7
    %v7990 = vsub.s32 0, %v7989
    %v7991 = vrot.slane %v7804, %v7990
    %v7992 = vsel %vm2399, %v7967, %v7963
    %v7993 = vsel %vm2387, %v7971, %v7992
    %v7994 = vsel %vm2389, %v7975, %v7993
    %v7995 = vsel %vm2391, %v7979, %v7994
    %v7996 = vsel %vm2393, %v7983, %v7995
    %v7997 = vsel %vm2395, %v7987, %v7996
    %v7998 = vsel %vm2397, %v7991, %v7997
    %8000 = vst [vmem:[#allocation2 + $0x18] sm:$0xff] %v7998
    %v8001 = vlaneseq
    %v8002 = vand.u32 %v8001, 127
    %v8003 = vadd.s32 %v8002, 128
    %v8004 = vand.u32 %v8002, 63
    %v8005 = vand.u32 %v8003, 63
    %vm8006 = vcmp.lt.s32.totalorder %v8004, 32
    %vm8007 = vcmp.lt.s32.totalorder %v8005, 32
    %vm8008 = vcmp.ge.s32.totalorder %v8002, 128
    %vm8009 = vcmp.ge.s32.totalorder %v8003, 128
    %vm8010 = vcmp.lt.s32.totalorder %v8002, 192
    %vm8011 = vcmp.lt.s32.totalorder %v8003, 192
    %vm8012 = vmand %vm8008, %vm8010
    %vm8013 = vmand %vm8009, %vm8011
    %v8014 = vld [vmem:[%s4] sm:$0xff]
    %v8015 = vld [vmem:[%s4 + $0x8] sm:$0xff]
    %v8016 = vld [vmem:[%s4 + $0x10] sm:$0xff]
    %v8017 = vld [vmem:[%s4 + $0x18] sm:$0xff]
    %v8018 = vld [vmem:[%s4 + $0x20] sm:$0xff]
    %v8019 = vld [vmem:[%s4 + $0x28] sm:$0xff]
    %v8020 = vld [vmem:[%s4 + $0x30] sm:$0xff]
    %v8021 = vld [vmem:[%s4 + $0x38] sm:$0xff]
    %v8022 = vld [vmem:[%s4 + $0x40] sm:$0xff]
    %v8023 = vld [vmem:[%s4 + $0x48] sm:$0xff]
    %v8024 = vld [vmem:[%s4 + $0x50] sm:$0xff]
    %v8025 = vld [vmem:[%s4 + $0x58] sm:$0xff]
    %v8026 = vld [vmem:[%s4 + $0x60] sm:$0xff]
    %v8027 = vld [vmem:[%s4 + $0x68] sm:$0xff]
    %v8028 = vld [vmem:[%s4 + $0x70] sm:$0xff]
    %v8029 = vld [vmem:[%s4 + $0x78] sm:$0xff]
    %v8030 = vld [vmem:[%s5] sm:$0xff]
    %v8031 = vld [vmem:[%s5 + $0x8] sm:$0xff]
    %v8032 = vld [vmem:[%s5 + $0x10] sm:$0xff]
    %v8033 = vld [vmem:[%s5 + $0x18] sm:$0xff]
    %v8034 = vld [vmem:[%s5 + $0x20] sm:$0xff]
    %v8035 = vld [vmem:[%s5 + $0x28] sm:$0xff]
    %v8036 = vld [vmem:[%s5 + $0x30] sm:$0xff]
    %v8037 = vld [vmem:[%s5 + $0x38] sm:$0xff]
    %s8038 = scalar_lea.vmem %s1, 16
    %v8039 = vld [vmem:[%s8038] ss:$8 sm:$0x3]
    %v8040 = vld [vmem:[#allocation2] sm:$0xff]
    %v8041 = vld [vmem:[#allocation2 + $0x8] sm:$0xff]
    %v8042 = vld [vmem:[#allocation2 + $0x10] sm:$0xff]
    %v8043 = vld [vmem:[#allocation2 + $0x18] sm:$0xff]
    %v8044 = vpack.c.bf16 %v8041, %v8040
    %v8045 = vpack.c.bf16 %v8043, %v8042
    %v8047 = vlaneseq
    %v8048 = vshrl.u32 %v8047, 7
    %v8049 = vsub.s32 0, %v8048
    %v8050 = vrot.slane %v8039, %v8049
    %v8051 = vlaneseq
    %v8052 = vshrl.u32 %v8051, 7
    %v8053 = vsub.s32 1, %v8052
    %v8054 = vrot.slane %v8039, %v8053
    %v8073 = vunpack.c.l.b16 %v8014
    %v8074 = vunpack.c.h.b16 %v8014
    %v8075 = vunpack.c.l.b16 %v8015
    %v8076 = vunpack.c.h.b16 %v8015
    %v8077 = vunpack.c.l.b16 %v8016
    %v8078 = vunpack.c.h.b16 %v8016
    %v8079 = vunpack.c.l.b16 %v8017
    %v8080 = vunpack.c.h.b16 %v8017
    %v8081 = vunpack.c.l.b16 %v8018
    %v8082 = vunpack.c.h.b16 %v8018
    %v8083 = vunpack.c.l.b16 %v8019
    %v8084 = vunpack.c.h.b16 %v8019
    %v8085 = vunpack.c.l.b16 %v8020
    %v8086 = vunpack.c.h.b16 %v8020
    %v8087 = vunpack.c.l.b16 %v8021
    %v8088 = vunpack.c.h.b16 %v8021
    %v8089 = vunpack.c.l.b16 %v8022
    %v8090 = vunpack.c.h.b16 %v8022
    %v8091 = vunpack.c.l.b16 %v8023
    %v8092 = vunpack.c.h.b16 %v8023
    %v8093 = vunpack.c.l.b16 %v8024
    %v8094 = vunpack.c.h.b16 %v8024
    %v8095 = vunpack.c.l.b16 %v8025
    %v8096 = vunpack.c.h.b16 %v8025
    %v8097 = vunpack.c.l.b16 %v8026
    %v8098 = vunpack.c.h.b16 %v8026
    %v8099 = vunpack.c.l.b16 %v8027
    %v8100 = vunpack.c.h.b16 %v8027
    %v8101 = vunpack.c.l.b16 %v8028
    %v8102 = vunpack.c.h.b16 %v8028
    %v8103 = vunpack.c.l.b16 %v8029
    %v8104 = vunpack.c.h.b16 %v8029
    %v8105 = vpack.c.b16 %v8075, %v8073
    %v8106 = vpack.c.b16 %v8076, %v8074
    %v8107 = vpack.c.b16 %v8079, %v8077
    %v8108 = vpack.c.b16 %v8080, %v8078
    %v8109 = vpack.c.b16 %v8083, %v8081
    %v8110 = vpack.c.b16 %v8084, %v8082
    %v8111 = vpack.c.b16 %v8087, %v8085
    %v8112 = vpack.c.b16 %v8088, %v8086
    %v8113 = vpack.c.b16 %v8091, %v8089
    %v8114 = vpack.c.b16 %v8092, %v8090
    %v8115 = vpack.c.b16 %v8095, %v8093
    %v8116 = vpack.c.b16 %v8096, %v8094
    %v8117 = vpack.c.b16 %v8099, %v8097
    %v8118 = vpack.c.b16 %v8100, %v8098
    %v8119 = vpack.c.b16 %v8103, %v8101
    %v8120 = vpack.c.b16 %v8104, %v8102
    %8137 = vmatprep.subr.bf16.mxu0 %v8120
    %8138 = vmatpush1.bf16.msra.mxu0 %v8119
    %8139 = vmatprep.subr.bf16.mxu0 %v8118
    %8140 = vmatpush1.bf16.msra.mxu0 %v8117
    %8141 = vmatprep.subr.bf16.mxu0 %v8116
    %8142 = vmatpush1.bf16.msra.mxu0 %v8115
    %8143 = vmatprep.subr.bf16.mxu0 %v8114
    %8144 = vmatpush1.bf16.msra.mxu0 %v8113
    %8145 = vmatprep.subr.bf16.mxu0 %v8112
    %8146 = vmatpush1.bf16.msra.mxu0 %v8111
    %8147 = vmatprep.subr.bf16.mxu0 %v8110
    %8148 = vmatpush1.bf16.msra.mxu0 %v8109
    %8149 = vmatprep.subr.bf16.mxu0 %v8108
    %8150 = vmatpush1.bf16.msra.mxu0 %v8107
    %8151 = vmatprep.subr.bf16.mxu0 %v8106
    %8152 = vmatpush1.bf16.msra.mxu0 %v8105
    %8153 = vmatprep.subr.bf16.mxu0 0
    %8154 = vmatpush2.bf16.msra.mxu0 0
    %8155 = vmatprep.subr.bf16.mxu0 0
    %8156 = vmatpush2.bf16.msra.mxu0 0
    %8157 = vmatprep.subr.bf16.mxu0 0
    %8158 = vmatpush2.bf16.msra.mxu0 0
    %8159 = vmatprep.subr.bf16.mxu0 0
    %8160 = vmatpush2.bf16.msra.mxu0 0
    %8161 = vmatprep.subr.bf16.mxu0 0
    %8162 = vmatpush2.bf16.msra.mxu0 0
    %8163 = vmatprep.subr.bf16.mxu0 0
    %8164 = vmatpush2.bf16.msra.mxu0 0
    %8165 = vmatprep.subr.bf16.mxu0 0
    %8166 = vmatpush2.bf16.msra.mxu0 0
    %8167 = vmatprep.subr.bf16.mxu0 0
    %8168 = vmatpush2.bf16.msra.mxu0 0
    %8169 = vmatprep.mubr.bf16.mxu0 0
    %8170 = vmatmul.mubr.bf16.gmra.mxu0 %v8044
    %v8171 = vpop.f32.mrf.mxu0
    %v8172 = vadd.f32 %v8050, %v8171
    %v8173 = vpop.f32.mrf.mxu0
    %v8174 = vadd.f32 %v8054, %v8173
    %v8175 = vpop.f32.mrf.mxu0
    %v8176 = vadd.f32 %v8050, %v8175
    %v8177 = vpop.f32.mrf.mxu0
    %v8178 = vadd.f32 %v8054, %v8177
    %8179 = vmatprep.mubr.bf16.mxu0 0
    %8180 = vmatmul.mubr.bf16.gmra.mxu0 %v8045
    %v8181 = vpop.f32.mrf.mxu0
    %v8182 = vadd.f32 %v8050, %v8181
    %v8183 = vpop.f32.mrf.mxu0
    %v8184 = vadd.f32 %v8054, %v8183
    %v8185 = vpop.f32.mrf.mxu0
    %v8186 = vadd.f32 %v8050, %v8185
    %v8187 = vpop.f32.mrf.mxu0
    %v8188 = vadd.f32 %v8054, %v8187
    %8189 = vdwg.mxu0
    %v8190 = vsel %vm8006, %v8172, %v8186
    %v8191 = vsel %vm8007, %v8174, %v8188
    %v8200 = vunpack.c.l.b16 %v8030
    %v8201 = vunpack.c.h.b16 %v8030
    %v8202 = vunpack.c.l.b16 %v8031
    %v8203 = vunpack.c.h.b16 %v8031
    %v8204 = vunpack.c.l.b16 %v8032
    %v8205 = vunpack.c.h.b16 %v8032
    %v8206 = vunpack.c.l.b16 %v8033
    %v8207 = vunpack.c.h.b16 %v8033
    %v8208 = vunpack.c.l.b16 %v8034
    %v8209 = vunpack.c.h.b16 %v8034
    %v8210 = vunpack.c.l.b16 %v8035
    %v8211 = vunpack.c.h.b16 %v8035
    %v8212 = vunpack.c.l.b16 %v8036
    %v8213 = vunpack.c.h.b16 %v8036
    %v8214 = vunpack.c.l.b16 %v8037
    %v8215 = vunpack.c.h.b16 %v8037
    %v8216 = vpack.c.b16 %v8202, %v8200
    %v8217 = vpack.c.b16 %v8203, %v8201
    %v8218 = vpack.c.b16 %v8206, %v8204
    %v8219 = vpack.c.b16 %v8207, %v8205
    %v8220 = vpack.c.b16 %v8210, %v8208
    %v8221 = vpack.c.b16 %v8211, %v8209
    %v8222 = vpack.c.b16 %v8214, %v8212
    %v8223 = vpack.c.b16 %v8215, %v8213
    %vm8232 = vcmask 523264
    %v8234 = vsel %vm8232, 0, 0
    %8236 = vmatprep.subr.bf16.mxu0 0
    %8237 = vmatpush1.bf16.msra.mxu0 0
    %8238 = vmatprep.subr.bf16.mxu0 0
    %8239 = vmatpush1.bf16.msra.mxu0 0
    %8240 = vmatprep.subr.bf16.mxu0 0
    %8241 = vmatpush1.bf16.msra.mxu0 0
    %8242 = vmatprep.subr.bf16.mxu0 0
    %8243 = vmatpush1.bf16.msra.mxu0 0
    %8244 = vmatprep.subr.bf16.mxu0 %v8223
    %8245 = vmatpush1.bf16.msra.mxu0 %v8222
    %8246 = vmatprep.subr.bf16.mxu0 %v8221
    %8247 = vmatpush1.bf16.msra.mxu0 %v8220
    %8248 = vmatprep.subr.bf16.mxu0 %v8219
    %8249 = vmatpush1.bf16.msra.mxu0 %v8218
    %8250 = vmatprep.subr.bf16.mxu0 %v8217
    %8251 = vmatpush1.bf16.msra.mxu0 %v8216
    %8252 = vmatprep.subr.bf16.mxu0 0
    %8253 = vmatpush2.bf16.msra.mxu0 0
    %8254 = vmatprep.subr.bf16.mxu0 0
    %8255 = vmatpush2.bf16.msra.mxu0 0
    %8256 = vmatprep.subr.bf16.mxu0 0
    %8257 = vmatpush2.bf16.msra.mxu0 0
    %8258 = vmatprep.subr.bf16.mxu0 0
    %8259 = vmatpush2.bf16.msra.mxu0 0
    %8260 = vmatprep.subr.bf16.mxu0 0
    %8261 = vmatpush2.bf16.msra.mxu0 0
    %8262 = vmatprep.subr.bf16.mxu0 0
    %8263 = vmatpush2.bf16.msra.mxu0 0
    %8264 = vmatprep.subr.bf16.mxu0 0
    %8265 = vmatpush2.bf16.msra.mxu0 0
    %8266 = vmatprep.subr.bf16.mxu0 0
    %8267 = vmatpush2.bf16.msra.mxu0 0
    %8268 = vmatprep.mubr.bf16.mxu0 0
    %8269 = vmatmul.mubr.bf16.gmra.mxu0 %v8234
    %v8270 = vpop.f32.mrf.mxu0
    %v8271 = vadd.f32 0.0, %v8270
    %v8272 = vpop.f32.mrf.mxu0
    %v8273 = vadd.f32 0.0, %v8272
    %v8274 = vpop.f32.mrf.mxu0
    %v8275 = vpop.f32.mrf.mxu0
    %8276 = vdwg.mxu0
    %v8277 = vadd.f32 %v8190, %v8271
    %v8278 = vadd.f32 %v8191, %v8273
    %v8279 = vtanh.pop %v8277
    %v8280 = vtanh.pop %v8278
    %v8281 = vxor.u32 %v8277, 2147483648
    %v8282 = vxor.u32 %v8278, 2147483648
    %v8283 = vmul.f32 %v8281, 1.442695
    %v8284 = vpow.pop %v8283
    %v8285 = vmul.f32 %v8282, 1.442695
    %v8286 = vpow.pop %v8285
    %v8287 = vadd.f32 %v8284, 1.0
    %v8288 = vadd.f32 %v8286, 1.0
    %v8289 = vrcp.pop %v8287
    %v8290 = vmul.f32 1.0, %v8289
    %v8291 = vrcp.pop %v8288
    %v8292 = vmul.f32 1.0, %v8291
    %v8293 = vsel %vm8012, %v8279, %v8290
    %v8294 = vsel %vm8013, %v8280, %v8292
    %v8295 = vmul.f32 %v8293, 0.0
    %v8296 = vmul.f32 %v8293, %v8294
    %8298 = vrot.lane.b32.xlu0 %v8296, 64
    %v8299 = vpop.permute.xlu0 %8298
    %v8301 = vadd.f32 %v8295, %v8299
    %v8302 = vtanh.pop %v8301
    %v8303 = vmul.f32 %v8294, %v8302
    %8305 = vrot.lane.b32.xlu0 %v8303, 64
    %v8306 = vpop.permute.xlu0 %8305
    %vm8308 = vcmask 261120
    %8309 = vst.msk [vmem:[#allocation2] sm:$0xff] %vm8308, %v8306
    %vm8310 = vcmask 523520
    %8311 = vst.msk [vmem:[#allocation2 + $0x18] sm:$0xff] %vm8310, %v8306
    %v8312 = vsel %vm8006, %v8176, %v8182
    %v8313 = vsel %vm8007, %v8178, %v8184
    %v8314 = vpack.c.bf16 %v8303, %v8303
    %8316 = vrot.lane.b32.xlu0 %v8314, 64
    %v8317 = vpop.permute.xlu0 %8316
    %v8319 = vsel %vm8232, %v8317, 0
    %8321 = vmatprep.subr.bf16.mxu0 0
    %8322 = vmatpush1.bf16.msra.mxu0 0
    %8323 = vmatprep.subr.bf16.mxu0 0
    %8324 = vmatpush1.bf16.msra.mxu0 0
    %8325 = vmatprep.subr.bf16.mxu0 0
    %8326 = vmatpush1.bf16.msra.mxu0 0
    %8327 = vmatprep.subr.bf16.mxu0 0
    %8328 = vmatpush1.bf16.msra.mxu0 0
    %8329 = vmatprep.subr.bf16.mxu0 %v8223
    %8330 = vmatpush1.bf16.msra.mxu0 %v8222
    %8331 = vmatprep.subr.bf16.mxu0 %v8221
    %8332 = vmatpush1.bf16.msra.mxu0 %v8220
    %8333 = vmatprep.subr.bf16.mxu0 %v8219
    %8334 = vmatpush1.bf16.msra.mxu0 %v8218
    %8335 = vmatprep.subr.bf16.mxu0 %v8217
    %8336 = vmatpush1.bf16.msra.mxu0 %v8216
    %8337 = vmatprep.subr.bf16.mxu0 0
    %8338 = vmatpush2.bf16.msra.mxu0 0
    %8339 = vmatprep.subr.bf16.mxu0 0
    %8340 = vmatpush2.bf16.msra.mxu0 0
    %8341 = vmatprep.subr.bf16.mxu0 0
    %8342 = vmatpush2.bf16.msra.mxu0 0
    %8343 = vmatprep.subr.bf16.mxu0 0
    %8344 = vmatpush2.bf16.msra.mxu0 0
    %8345 = vmatprep.subr.bf16.mxu0 0
    %8346 = vmatpush2.bf16.msra.mxu0 0
    %8347 = vmatprep.subr.bf16.mxu0 0
    %8348 = vmatpush2.bf16.msra.mxu0 0
    %8349 = vmatprep.subr.bf16.mxu0 0
    %8350 = vmatpush2.bf16.msra.mxu0 0
    %8351 = vmatprep.subr.bf16.mxu0 0
    %8352 = vmatpush2.bf16.msra.mxu0 0
    %8353 = vmatprep.mubr.bf16.mxu0 0
    %8354 = vmatmul.mubr.bf16.gmra.mxu0 %v8319
    %v8355 = vpop.f32.mrf.mxu0
    %v8356 = vadd.f32 0.0, %v8355
    %v8357 = vpop.f32.mrf.mxu0
    %v8358 = vadd.f32 0.0, %v8357
    %v8359 = vpop.f32.mrf.mxu0
    %v8360 = vpop.f32.mrf.mxu0
    %8361 = vdwg.mxu0
    %v8362 = vadd.f32 %v8312, %v8356
    %v8363 = vadd.f32 %v8313, %v8358
    %v8364 = vtanh.pop %v8362
    %v8365 = vtanh.pop %v8363
    %v8366 = vxor.u32 %v8362, 2147483648
    %v8367 = vxor.u32 %v8363, 2147483648
    %v8368 = vmul.f32 %v8366, 1.442695
    %v8369 = vpow.pop %v8368
    %v8370 = vmul.f32 %v8367, 1.442695
    %v8371 = vpow.pop %v8370
    %v8372 = vadd.f32 %v8369, 1.0
    %v8373 = vadd.f32 %v8371, 1.0
    %v8374 = vrcp.pop %v8372
    %v8375 = vmul.f32 1.0, %v8374
    %v8376 = vrcp.pop %v8373
    %v8377 = vmul.f32 1.0, %v8376
    %v8378 = vsel %vm8012, %v8364, %v8375
    %v8379 = vsel %vm8013, %v8365, %v8377
    %v8380 = vmul.f32 %v8378, %v8301
    %v8381 = vmul.f32 %v8378, %v8379
    %8383 = vrot.lane.b32.xlu0 %v8381, 64
    %v8384 = vpop.permute.xlu0 %8383
    %v8386 = vadd.f32 %v8380, %v8384
    %v8387 = vtanh.pop %v8386
    %v8388 = vmul.f32 %v8379, %v8387
    %8390 = vrot.lane.b32.xlu0 %v8388, 64
    %v8391 = vpop.permute.xlu0 %8390
    %8393 = vst.msk [vmem:[#allocation2 + $0x8] sm:$0xff] %vm8308, %v8391
    %8394 = vst.msk [vmem:[#allocation2 + $0x10] sm:$0xff] %vm8310, %v8391
    %v8395 = vsel %vm8006, %v8182, %v8176
    %v8396 = vsel %vm8007, %v8184, %v8178
    %v8397 = vpack.c.bf16 %v8388, %v8388
    %8399 = vrot.lane.b32.xlu0 %v8397, 64
    %v8400 = vpop.permute.xlu0 %8399
    %v8402 = vsel %vm8232, %v8400, 0
    %8404 = vmatprep.subr.bf16.mxu0 0
    %8405 = vmatpush1.bf16.msra.mxu0 0
    %8406 = vmatprep.subr.bf16.mxu0 0
    %8407 = vmatpush1.bf16.msra.mxu0 0
    %8408 = vmatprep.subr.bf16.mxu0 0
    %8409 = vmatpush1.bf16.msra.mxu0 0
    %8410 = vmatprep.subr.bf16.mxu0 0
    %8411 = vmatpush1.bf16.msra.mxu0 0
    %8412 = vmatprep.subr.bf16.mxu0 %v8223
    %8413 = vmatpush1.bf16.msra.mxu0 %v8222
    %8414 = vmatprep.subr.bf16.mxu0 %v8221
    %8415 = vmatpush1.bf16.msra.mxu0 %v8220
    %8416 = vmatprep.subr.bf16.mxu0 %v8219
    %8417 = vmatpush1.bf16.msra.mxu0 %v8218
    %8418 = vmatprep.subr.bf16.mxu0 %v8217
    %8419 = vmatpush1.bf16.msra.mxu0 %v8216
    %8420 = vmatprep.subr.bf16.mxu0 0
    %8421 = vmatpush2.bf16.msra.mxu0 0
    %8422 = vmatprep.subr.bf16.mxu0 0
    %8423 = vmatpush2.bf16.msra.mxu0 0
    %8424 = vmatprep.subr.bf16.mxu0 0
    %8425 = vmatpush2.bf16.msra.mxu0 0
    %8426 = vmatprep.subr.bf16.mxu0 0
    %8427 = vmatpush2.bf16.msra.mxu0 0
    %8428 = vmatprep.subr.bf16.mxu0 0
    %8429 = vmatpush2.bf16.msra.mxu0 0
    %8430 = vmatprep.subr.bf16.mxu0 0
    %8431 = vmatpush2.bf16.msra.mxu0 0
    %8432 = vmatprep.subr.bf16.mxu0 0
    %8433 = vmatpush2.bf16.msra.mxu0 0
    %8434 = vmatprep.subr.bf16.mxu0 0
    %8435 = vmatpush2.bf16.msra.mxu0 0
    %8436 = vmatprep.mubr.bf16.mxu0 0
    %8437 = vmatmul.mubr.bf16.gmra.mxu0 %v8402
    %v8438 = vpop.f32.mrf.mxu0
    %v8439 = vadd.f32 0.0, %v8438
    %v8440 = vpop.f32.mrf.mxu0
    %v8441 = vadd.f32 0.0, %v8440
    %v8442 = vpop.f32.mrf.mxu0
    %v8443 = vpop.f32.mrf.mxu0
    %8444 = vdwg.mxu0
    %v8445 = vadd.f32 %v8395, %v8439
    %v8446 = vadd.f32 %v8396, %v8441
    %v8447 = vtanh.pop %v8445
    %v8448 = vtanh.pop %v8446
    %v8449 = vxor.u32 %v8445, 2147483648
    %v8450 = vxor.u32 %v8446, 2147483648
    %v8451 = vmul.f32 %v8449, 1.442695
    %v8452 = vpow.pop %v8451
    %v8453 = vmul.f32 %v8450, 1.442695
    %v8454 = vpow.pop %v8453
    %v8455 = vadd.f32 %v8452, 1.0
    %v8456 = vadd.f32 %v8454, 1.0
    %v8457 = vrcp.pop %v8455
    %v8458 = vmul.f32 1.0, %v8457
    %v8459 = vrcp.pop %v8456
    %v8460 = vmul.f32 1.0, %v8459
    %v8461 = vsel %vm8012, %v8447, %v8458
    %v8462 = vsel %vm8013, %v8448, %v8460
    %v8463 = vmul.f32 %v8461, %v8386
    %v8464 = vmul.f32 %v8461, %v8462
    %8466 = vrot.lane.b32.xlu0 %v8464, 64
    %v8467 = vpop.permute.xlu0 %8466
    %v8469 = vadd.f32 %v8463, %v8467
    %v8470 = vtanh.pop %v8469
    %v8471 = vmul.f32 %v8462, %v8470
    %8473 = vrot.lane.b32.xlu0 %v8471, 64
    %v8474 = vpop.permute.xlu0 %8473
    %8476 = vst.msk [vmem:[#allocation2 + $0x10] sm:$0xff] %vm8308, %v8474
    %8477 = vst.msk [vmem:[#allocation2 + $0x8] sm:$0xff] %vm8310, %v8474
    %v8478 = vsel %vm8006, %v8186, %v8172
    %v8479 = vsel %vm8007, %v8188, %v8174
    %v8480 = vpack.c.bf16 %v8471, %v8471
    %8482 = vrot.lane.b32.xlu0 %v8480, 64
    %v8483 = vpop.permute.xlu0 %8482
    %v8485 = vsel %vm8232, %v8483, 0
    %8487 = vmatprep.subr.bf16.mxu0 0
    %8488 = vmatpush1.bf16.msra.mxu0 0
    %8489 = vmatprep.subr.bf16.mxu0 0
    %8490 = vmatpush1.bf16.msra.mxu0 0
    %8491 = vmatprep.subr.bf16.mxu0 0
    %8492 = vmatpush1.bf16.msra.mxu0 0
    %8493 = vmatprep.subr.bf16.mxu0 0
    %8494 = vmatpush1.bf16.msra.mxu0 0
    %8495 = vmatprep.subr.bf16.mxu0 %v8223
    %8496 = vmatpush1.bf16.msra.mxu0 %v8222
    %8497 = vmatprep.subr.bf16.mxu0 %v8221
    %8498 = vmatpush1.bf16.msra.mxu0 %v8220
    %8499 = vmatprep.subr.bf16.mxu0 %v8219
    %8500 = vmatpush1.bf16.msra.mxu0 %v8218
    %8501 = vmatprep.subr.bf16.mxu0 %v8217
    %8502 = vmatpush1.bf16.msra.mxu0 %v8216
    %8503 = vmatprep.subr.bf16.mxu0 0
    %8504 = vmatpush2.bf16.msra.mxu0 0
    %8505 = vmatprep.subr.bf16.mxu0 0
    %8506 = vmatpush2.bf16.msra.mxu0 0
    %8507 = vmatprep.subr.bf16.mxu0 0
    %8508 = vmatpush2.bf16.msra.mxu0 0
    %8509 = vmatprep.subr.bf16.mxu0 0
    %8510 = vmatpush2.bf16.msra.mxu0 0
    %8511 = vmatprep.subr.bf16.mxu0 0
    %8512 = vmatpush2.bf16.msra.mxu0 0
    %8513 = vmatprep.subr.bf16.mxu0 0
    %8514 = vmatpush2.bf16.msra.mxu0 0
    %8515 = vmatprep.subr.bf16.mxu0 0
    %8516 = vmatpush2.bf16.msra.mxu0 0
    %8517 = vmatprep.subr.bf16.mxu0 0
    %8518 = vmatpush2.bf16.msra.mxu0 0
    %8519 = vmatprep.mubr.bf16.mxu0 0
    %8520 = vmatmul.mubr.bf16.gmra.mxu0 %v8485
    %v8521 = vpop.f32.mrf.mxu0
    %v8522 = vadd.f32 0.0, %v8521
    %v8523 = vpop.f32.mrf.mxu0
    %v8524 = vadd.f32 0.0, %v8523
    %v8525 = vpop.f32.mrf.mxu0
    %v8526 = vpop.f32.mrf.mxu0
    %8527 = vdwg.mxu0
    %v8528 = vadd.f32 %v8478, %v8522
    %v8529 = vadd.f32 %v8479, %v8524
    %v8530 = vtanh.pop %v8528
    %v8531 = vtanh.pop %v8529
    %v8532 = vxor.u32 %v8528, 2147483648
    %v8533 = vxor.u32 %v8529, 2147483648
    %v8534 = vmul.f32 %v8532, 1.442695
    %v8535 = vpow.pop %v8534
    %v8536 = vmul.f32 %v8533, 1.442695
    %v8537 = vpow.pop %v8536
    %v8538 = vadd.f32 %v8535, 1.0
    %v8539 = vadd.f32 %v8537, 1.0
    %v8540 = vrcp.pop %v8538
    %v8541 = vmul.f32 1.0, %v8540
    %v8542 = vrcp.pop %v8539
    %v8543 = vmul.f32 1.0, %v8542
    %v8544 = vsel %vm8012, %v8530, %v8541
    %v8545 = vsel %vm8013, %v8531, %v8543
    %v8546 = vmul.f32 %v8544, %v8469
    %v8547 = vmul.f32 %v8544, %v8545
    %8549 = vrot.lane.b32.xlu0 %v8547, 64
    %v8550 = vpop.permute.xlu0 %8549
    %v8552 = vadd.f32 %v8546, %v8550
    %v8553 = vtanh.pop %v8552
    %v8554 = vmul.f32 %v8545, %v8553
    %8556 = vrot.lane.b32.xlu0 %v8554, 64
    %v8557 = vpop.permute.xlu0 %8556
    %8559 = vst.msk [vmem:[#allocation2 + $0x18] sm:$0xff] %vm8308, %v8557
    %8560 = vst.msk [vmem:[#allocation2] sm:$0xff] %vm8310, %v8557
    %v8561 = vld [vmem:[%s4 + $0x80] sm:$0xff]
    %v8562 = vld [vmem:[%s4 + $0x88] sm:$0xff]
    %v8563 = vld [vmem:[%s4 + $0x90] sm:$0xff]
    %v8564 = vld [vmem:[%s4 + $0x98] sm:$0xff]
    %v8565 = vld [vmem:[%s4 + $0xa0] sm:$0xff]
    %v8566 = vld [vmem:[%s4 + $0xa8] sm:$0xff]
    %v8567 = vld [vmem:[%s4 + $0xb0] sm:$0xff]
    %v8568 = vld [vmem:[%s4 + $0xb8] sm:$0xff]
    %v8569 = vld [vmem:[%s5 + $0x40] sm:$0xff]
    %v8570 = vld [vmem:[%s5 + $0x48] sm:$0xff]
    %v8571 = vld [vmem:[%s5 + $0x50] sm:$0xff]
    %v8572 = vld [vmem:[%s5 + $0x58] sm:$0xff]
    %v8573 = vld [vmem:[%s5 + $0x60] sm:$0xff]
    %v8574 = vld [vmem:[%s5 + $0x68] sm:$0xff]
    %v8575 = vld [vmem:[%s5 + $0x70] sm:$0xff]
    %v8576 = vld [vmem:[%s5 + $0x78] sm:$0xff]
    %s8577 = scalar_lea.vmem %s1, 17
    %v8578 = vld [vmem:[%s8577] ss:$8 sm:$0x3]
    %v8579 = vld [vmem:[#allocation2] sm:$0xff]
    %v8580 = vld [vmem:[#allocation2 + $0x8] sm:$0xff]
    %v8581 = vld [vmem:[#allocation2 + $0x10] sm:$0xff]
    %v8582 = vld [vmem:[#allocation2 + $0x18] sm:$0xff]
    %v8583 = vpack.c.bf16 %v8580, %v8579
    %v8584 = vpack.c.bf16 %v8582, %v8581
    %v8586 = vlaneseq
    %v8587 = vshrl.u32 %v8586, 7
    %v8588 = vsub.s32 0, %v8587
    %v8589 = vrot.slane %v8578, %v8588
    %v8590 = vlaneseq
    %v8591 = vshrl.u32 %v8590, 7
    %v8592 = vsub.s32 1, %v8591
    %v8593 = vrot.slane %v8578, %v8592
    %v8604 = vunpack.c.l.b16 %v8561
    %v8605 = vunpack.c.h.b16 %v8561
    %v8606 = vunpack.c.l.b16 %v8562
    %v8607 = vunpack.c.h.b16 %v8562
    %v8608 = vunpack.c.l.b16 %v8563
    %v8609 = vunpack.c.h.b16 %v8563
    %v8610 = vunpack.c.l.b16 %v8564
    %v8611 = vunpack.c.h.b16 %v8564
    %v8612 = vunpack.c.l.b16 %v8565
    %v8613 = vunpack.c.h.b16 %v8565
    %v8614 = vunpack.c.l.b16 %v8566
    %v8615 = vunpack.c.h.b16 %v8566
    %v8616 = vunpack.c.l.b16 %v8567
    %v8617 = vunpack.c.h.b16 %v8567
    %v8618 = vunpack.c.l.b16 %v8568
    %v8619 = vunpack.c.h.b16 %v8568
    %v8620 = vpack.c.b16 %v8606, %v8604
    %v8621 = vpack.c.b16 %v8607, %v8605
    %v8622 = vpack.c.b16 %v8610, %v8608
    %v8623 = vpack.c.b16 %v8611, %v8609
    %v8624 = vpack.c.b16 %v8614, %v8612
    %v8625 = vpack.c.b16 %v8615, %v8613
    %v8626 = vpack.c.b16 %v8618, %v8616
    %v8627 = vpack.c.b16 %v8619, %v8617
    %v8637 = vsel %vm8232, %v8583, 0
    %v8640 = vsel %vm8232, %v8584, 0
    %8642 = vmatprep.subr.bf16.mxu0 0
    %8643 = vmatpush1.bf16.msra.mxu0 0
    %8644 = vmatprep.subr.bf16.mxu0 0
    %8645 = vmatpush1.bf16.msra.mxu0 0
    %8646 = vmatprep.subr.bf16.mxu0 0
    %8647 = vmatpush1.bf16.msra.mxu0 0
    %8648 = vmatprep.subr.bf16.mxu0 0
    %8649 = vmatpush1.bf16.msra.mxu0 0
    %8650 = vmatprep.subr.bf16.mxu0 %v8627
    %8651 = vmatpush1.bf16.msra.mxu0 %v8626
    %8652 = vmatprep.subr.bf16.mxu0 %v8625
    %8653 = vmatpush1.bf16.msra.mxu0 %v8624
    %8654 = vmatprep.subr.bf16.mxu0 %v8623
    %8655 = vmatpush1.bf16.msra.mxu0 %v8622
    %8656 = vmatprep.subr.bf16.mxu0 %v8621
    %8657 = vmatpush1.bf16.msra.mxu0 %v8620
    %8658 = vmatprep.subr.bf16.mxu0 0
    %8659 = vmatpush2.bf16.msra.mxu0 0
    %8660 = vmatprep.subr.bf16.mxu0 0
    %8661 = vmatpush2.bf16.msra.mxu0 0
    %8662 = vmatprep.subr.bf16.mxu0 0
    %8663 = vmatpush2.bf16.msra.mxu0 0
    %8664 = vmatprep.subr.bf16.mxu0 0
    %8665 = vmatpush2.bf16.msra.mxu0 0
    %8666 = vmatprep.subr.bf16.mxu0 0
    %8667 = vmatpush2.bf16.msra.mxu0 0
    %8668 = vmatprep.subr.bf16.mxu0 0
    %8669 = vmatpush2.bf16.msra.mxu0 0
    %8670 = vmatprep.subr.bf16.mxu0 0
    %8671 = vmatpush2.bf16.msra.mxu0 0
    %8672 = vmatprep.subr.bf16.mxu0 0
    %8673 = vmatpush2.bf16.msra.mxu0 0
    %8674 = vmatprep.mubr.bf16.mxu0 0
    %8675 = vmatmul.mubr.bf16.gmra.mxu0 %v8637
    %v8676 = vpop.f32.mrf.mxu0
    %v8677 = vadd.f32 %v8589, %v8676
    %v8678 = vpop.f32.mrf.mxu0
    %v8679 = vadd.f32 %v8593, %v8678
    %v8680 = vpop.f32.mrf.mxu0
    %v8681 = vadd.f32 %v8589, %v8680
    %v8682 = vpop.f32.mrf.mxu0
    %v8683 = vadd.f32 %v8593, %v8682
    %8684 = vmatprep.mubr.bf16.mxu0 0
    %8685 = vmatmul.mubr.bf16.gmra.mxu0 %v8640
    %v8686 = vpop.f32.mrf.mxu0
    %v8687 = vadd.f32 %v8589, %v8686
    %v8688 = vpop.f32.mrf.mxu0
    %v8689 = vadd.f32 %v8593, %v8688
    %v8690 = vpop.f32.mrf.mxu0
    %v8691 = vadd.f32 %v8589, %v8690
    %v8692 = vpop.f32.mrf.mxu0
    %v8693 = vadd.f32 %v8593, %v8692
    %8694 = vdwg.mxu0
    %v8695 = vsel %vm8006, %v8677, %v8691
    %v8696 = vsel %vm8007, %v8679, %v8693
    %v8705 = vunpack.c.l.b16 %v8569
    %v8706 = vunpack.c.h.b16 %v8569
    %v8707 = vunpack.c.l.b16 %v8570
    %v8708 = vunpack.c.h.b16 %v8570
    %v8709 = vunpack.c.l.b16 %v8571
    %v8710 = vunpack.c.h.b16 %v8571
    %v8711 = vunpack.c.l.b16 %v8572
    %v8712 = vunpack.c.h.b16 %v8572
    %v8713 = vunpack.c.l.b16 %v8573
    %v8714 = vunpack.c.h.b16 %v8573
    %v8715 = vunpack.c.l.b16 %v8574
    %v8716 = vunpack.c.h.b16 %v8574
    %v8717 = vunpack.c.l.b16 %v8575
    %v8718 = vunpack.c.h.b16 %v8575
    %v8719 = vunpack.c.l.b16 %v8576
    %v8720 = vunpack.c.h.b16 %v8576
    %v8721 = vpack.c.b16 %v8707, %v8705
    %v8722 = vpack.c.b16 %v8708, %v8706
    %v8723 = vpack.c.b16 %v8711, %v8709
    %v8724 = vpack.c.b16 %v8712, %v8710
    %v8725 = vpack.c.b16 %v8715, %v8713
    %v8726 = vpack.c.b16 %v8716, %v8714
    %v8727 = vpack.c.b16 %v8719, %v8717
    %v8728 = vpack.c.b16 %v8720, %v8718
    %8737 = vmatprep.subr.bf16.mxu0 0
    %8738 = vmatpush1.bf16.msra.mxu0 0
    %8739 = vmatprep.subr.bf16.mxu0 0
    %8740 = vmatpush1.bf16.msra.mxu0 0
    %8741 = vmatprep.subr.bf16.mxu0 0
    %8742 = vmatpush1.bf16.msra.mxu0 0
    %8743 = vmatprep.subr.bf16.mxu0 0
    %8744 = vmatpush1.bf16.msra.mxu0 0
    %8745 = vmatprep.subr.bf16.mxu0 %v8728
    %8746 = vmatpush1.bf16.msra.mxu0 %v8727
    %8747 = vmatprep.subr.bf16.mxu0 %v8726
    %8748 = vmatpush1.bf16.msra.mxu0 %v8725
    %8749 = vmatprep.subr.bf16.mxu0 %v8724
    %8750 = vmatpush1.bf16.msra.mxu0 %v8723
    %8751 = vmatprep.subr.bf16.mxu0 %v8722
    %8752 = vmatpush1.bf16.msra.mxu0 %v8721
    %8753 = vmatprep.subr.bf16.mxu0 0
    %8754 = vmatpush2.bf16.msra.mxu0 0
    %8755 = vmatprep.subr.bf16.mxu0 0
    %8756 = vmatpush2.bf16.msra.mxu0 0
    %8757 = vmatprep.subr.bf16.mxu0 0
    %8758 = vmatpush2.bf16.msra.mxu0 0
    %8759 = vmatprep.subr.bf16.mxu0 0
    %8760 = vmatpush2.bf16.msra.mxu0 0
    %8761 = vmatprep.subr.bf16.mxu0 0
    %8762 = vmatpush2.bf16.msra.mxu0 0
    %8763 = vmatprep.subr.bf16.mxu0 0
    %8764 = vmatpush2.bf16.msra.mxu0 0
    %8765 = vmatprep.subr.bf16.mxu0 0
    %8766 = vmatpush2.bf16.msra.mxu0 0
    %8767 = vmatprep.subr.bf16.mxu0 0
    %8768 = vmatpush2.bf16.msra.mxu0 0
    %8769 = vmatprep.mubr.bf16.mxu0 0
    %8770 = vmatmul.mubr.bf16.gmra.mxu0 %v8234
    %v8771 = vpop.f32.mrf.mxu0
    %v8772 = vadd.f32 0.0, %v8771
    %v8773 = vpop.f32.mrf.mxu0
    %v8774 = vadd.f32 0.0, %v8773
    %v8775 = vpop.f32.mrf.mxu0
    %v8776 = vpop.f32.mrf.mxu0
    %8777 = vdwg.mxu0
    %v8778 = vadd.f32 %v8695, %v8772
    %v8779 = vadd.f32 %v8696, %v8774
    %v8780 = vtanh.pop %v8778
    %v8781 = vtanh.pop %v8779
    %v8782 = vxor.u32 %v8778, 2147483648
    %v8783 = vxor.u32 %v8779, 2147483648
    %v8784 = vmul.f32 %v8782, 1.442695
    %v8785 = vpow.pop %v8784
    %v8786 = vmul.f32 %v8783, 1.442695
    %v8787 = vpow.pop %v8786
    %v8788 = vadd.f32 %v8785, 1.0
    %v8789 = vadd.f32 %v8787, 1.0
    %v8790 = vrcp.pop %v8788
    %v8791 = vmul.f32 1.0, %v8790
    %v8792 = vrcp.pop %v8789
    %v8793 = vmul.f32 1.0, %v8792
    %v8794 = vsel %vm8012, %v8780, %v8791
    %v8795 = vsel %vm8013, %v8781, %v8793
    %v8796 = vmul.f32 %v8794, 0.0
    %v8797 = vmul.f32 %v8794, %v8795
    %8799 = vrot.lane.b32.xlu0 %v8797, 64
    %v8800 = vpop.permute.xlu0 %8799
    %v8802 = vadd.f32 %v8796, %v8800
    %v8803 = vtanh.pop %v8802
    %v8804 = vmul.f32 %v8795, %v8803
    %8806 = vrot.lane.b32.xlu0 %v8804, 64
    %v8807 = vpop.permute.xlu0 %8806
    %8809 = vst.msk [vmem:[#allocation2] sm:$0xff] %vm8308, %v8807
    %8810 = vst.msk [vmem:[#allocation2 + $0x18] sm:$0xff] %vm8310, %v8807
    %v8811 = vsel %vm8006, %v8681, %v8687
    %v8812 = vsel %vm8007, %v8683, %v8689
    %v8813 = vpack.c.bf16 %v8804, %v8804
    %8815 = vrot.lane.b32.xlu0 %v8813, 64
    %v8816 = vpop.permute.xlu0 %8815
    %v8818 = vsel %vm8232, %v8816, 0
    %8820 = vmatprep.subr.bf16.mxu0 0
    %8821 = vmatpush1.bf16.msra.mxu0 0
    %8822 = vmatprep.subr.bf16.mxu0 0
    %8823 = vmatpush1.bf16.msra.mxu0 0
    %8824 = vmatprep.subr.bf16.mxu0 0
    %8825 = vmatpush1.bf16.msra.mxu0 0
    %8826 = vmatprep.subr.bf16.mxu0 0
    %8827 = vmatpush1.bf16.msra.mxu0 0
    %8828 = vmatprep.subr.bf16.mxu0 %v8728
    %8829 = vmatpush1.bf16.msra.mxu0 %v8727
    %8830 = vmatprep.subr.bf16.mxu0 %v8726
    %8831 = vmatpush1.bf16.msra.mxu0 %v8725
    %8832 = vmatprep.subr.bf16.mxu0 %v8724
    %8833 = vmatpush1.bf16.msra.mxu0 %v8723
    %8834 = vmatprep.subr.bf16.mxu0 %v8722
    %8835 = vmatpush1.bf16.msra.mxu0 %v8721
    %8836 = vmatprep.subr.bf16.mxu0 0
    %8837 = vmatpush2.bf16.msra.mxu0 0
    %8838 = vmatprep.subr.bf16.mxu0 0
    %8839 = vmatpush2.bf16.msra.mxu0 0
    %8840 = vmatprep.subr.bf16.mxu0 0
    %8841 = vmatpush2.bf16.msra.mxu0 0
    %8842 = vmatprep.subr.bf16.mxu0 0
    %8843 = vmatpush2.bf16.msra.mxu0 0
    %8844 = vmatprep.subr.bf16.mxu0 0
    %8845 = vmatpush2.bf16.msra.mxu0 0
    %8846 = vmatprep.subr.bf16.mxu0 0
    %8847 = vmatpush2.bf16.msra.mxu0 0
    %8848 = vmatprep.subr.bf16.mxu0 0
    %8849 = vmatpush2.bf16.msra.mxu0 0
    %8850 = vmatprep.subr.bf16.mxu0 0
    %8851 = vmatpush2.bf16.msra.mxu0 0
    %8852 = vmatprep.mubr.bf16.mxu0 0
    %8853 = vmatmul.mubr.bf16.gmra.mxu0 %v8818
    %v8854 = vpop.f32.mrf.mxu0
    %v8855 = vadd.f32 0.0, %v8854
    %v8856 = vpop.f32.mrf.mxu0
    %v8857 = vadd.f32 0.0, %v8856
    %v8858 = vpop.f32.mrf.mxu0
    %v8859 = vpop.f32.mrf.mxu0
    %8860 = vdwg.mxu0
    %v8861 = vadd.f32 %v8811, %v8855
    %v8862 = vadd.f32 %v8812, %v8857
    %v8863 = vtanh.pop %v8861
    %v8864 = vtanh.pop %v8862
    %v8865 = vxor.u32 %v8861, 2147483648
    %v8866 = vxor.u32 %v8862, 2147483648
    %v8867 = vmul.f32 %v8865, 1.442695
    %v8868 = vpow.pop %v8867
    %v8869 = vmul.f32 %v8866, 1.442695
    %v8870 = vpow.pop %v8869
    %v8871 = vadd.f32 %v8868, 1.0
    %v8872 = vadd.f32 %v8870, 1.0
    %v8873 = vrcp.pop %v8871
    %v8874 = vmul.f32 1.0, %v8873
    %v8875 = vrcp.pop %v8872
    %v8876 = vmul.f32 1.0, %v8875
    %v8877 = vsel %vm8012, %v8863, %v8874
    %v8878 = vsel %vm8013, %v8864, %v8876
    %v8879 = vmul.f32 %v8877, %v8802
    %v8880 = vmul.f32 %v8877, %v8878
    %8882 = vrot.lane.b32.xlu0 %v8880, 64
    %v8883 = vpop.permute.xlu0 %8882
    %v8885 = vadd.f32 %v8879, %v8883
    %v8886 = vtanh.pop %v8885
    %v8887 = vmul.f32 %v8878, %v8886
    %8889 = vrot.lane.b32.xlu0 %v8887, 64
    %v8890 = vpop.permute.xlu0 %8889
    %8892 = vst.msk [vmem:[#allocation2 + $0x8] sm:$0xff] %vm8308, %v8890
    %8893 = vst.msk [vmem:[#allocation2 + $0x10] sm:$0xff] %vm8310, %v8890
    %v8894 = vsel %vm8006, %v8687, %v8681
    %v8895 = vsel %vm8007, %v8689, %v8683
    %v8896 = vpack.c.bf16 %v8887, %v8887
    %8898 = vrot.lane.b32.xlu0 %v8896, 64
    %v8899 = vpop.permute.xlu0 %8898
    %v8901 = vsel %vm8232, %v8899, 0
    %8903 = vmatprep.subr.bf16.mxu0 0
    %8904 = vmatpush1.bf16.msra.mxu0 0
    %8905 = vmatprep.subr.bf16.mxu0 0
    %8906 = vmatpush1.bf16.msra.mxu0 0
    %8907 = vmatprep.subr.bf16.mxu0 0
    %8908 = vmatpush1.bf16.msra.mxu0 0
    %8909 = vmatprep.subr.bf16.mxu0 0
    %8910 = vmatpush1.bf16.msra.mxu0 0
    %8911 = vmatprep.subr.bf16.mxu0 %v8728
    %8912 = vmatpush1.bf16.msra.mxu0 %v8727
    %8913 = vmatprep.subr.bf16.mxu0 %v8726
    %8914 = vmatpush1.bf16.msra.mxu0 %v8725
    %8915 = vmatprep.subr.bf16.mxu0 %v8724
    %8916 = vmatpush1.bf16.msra.mxu0 %v8723
    %8917 = vmatprep.subr.bf16.mxu0 %v8722
    %8918 = vmatpush1.bf16.msra.mxu0 %v8721
    %8919 = vmatprep.subr.bf16.mxu0 0
    %8920 = vmatpush2.bf16.msra.mxu0 0
    %8921 = vmatprep.subr.bf16.mxu0 0
    %8922 = vmatpush2.bf16.msra.mxu0 0
    %8923 = vmatprep.subr.bf16.mxu0 0
    %8924 = vmatpush2.bf16.msra.mxu0 0
    %8925 = vmatprep.subr.bf16.mxu0 0
    %8926 = vmatpush2.bf16.msra.mxu0 0
    %8927 = vmatprep.subr.bf16.mxu0 0
    %8928 = vmatpush2.bf16.msra.mxu0 0
    %8929 = vmatprep.subr.bf16.mxu0 0
    %8930 = vmatpush2.bf16.msra.mxu0 0
    %8931 = vmatprep.subr.bf16.mxu0 0
    %8932 = vmatpush2.bf16.msra.mxu0 0
    %8933 = vmatprep.subr.bf16.mxu0 0
    %8934 = vmatpush2.bf16.msra.mxu0 0
    %8935 = vmatprep.mubr.bf16.mxu0 0
    %8936 = vmatmul.mubr.bf16.gmra.mxu0 %v8901
    %v8937 = vpop.f32.mrf.mxu0
    %v8938 = vadd.f32 0.0, %v8937
    %v8939 = vpop.f32.mrf.mxu0
    %v8940 = vadd.f32 0.0, %v8939
    %v8941 = vpop.f32.mrf.mxu0
    %v8942 = vpop.f32.mrf.mxu0
    %8943 = vdwg.mxu0
    %v8944 = vadd.f32 %v8894, %v8938
    %v8945 = vadd.f32 %v8895, %v8940
    %v8946 = vtanh.pop %v8944
    %v8947 = vtanh.pop %v8945
    %v8948 = vxor.u32 %v8944, 2147483648
    %v8949 = vxor.u32 %v8945, 2147483648
    %v8950 = vmul.f32 %v8948, 1.442695
    %v8951 = vpow.pop %v8950
    %v8952 = vmul.f32 %v8949, 1.442695
    %v8953 = vpow.pop %v8952
    %v8954 = vadd.f32 %v8951, 1.0
    %v8955 = vadd.f32 %v8953, 1.0
    %v8956 = vrcp.pop %v8954
    %v8957 = vmul.f32 1.0, %v8956
    %v8958 = vrcp.pop %v8955
    %v8959 = vmul.f32 1.0, %v8958
    %v8960 = vsel %vm8012, %v8946, %v8957
    %v8961 = vsel %vm8013, %v8947, %v8959
    %v8962 = vmul.f32 %v8960, %v8885
    %v8963 = vmul.f32 %v8960, %v8961
    %8965 = vrot.lane.b32.xlu0 %v8963, 64
    %v8966 = vpop.permute.xlu0 %8965
    %v8968 = vadd.f32 %v8962, %v8966
    %v8969 = vtanh.pop %v8968
    %v8970 = vmul.f32 %v8961, %v8969
    %8972 = vrot.lane.b32.xlu0 %v8970, 64
    %v8973 = vpop.permute.xlu0 %8972
    %8975 = vst.msk [vmem:[#allocation2 + $0x10] sm:$0xff] %vm8308, %v8973
    %8976 = vst.msk [vmem:[#allocation2 + $0x8] sm:$0xff] %vm8310, %v8973
    %v8977 = vsel %vm8006, %v8691, %v8677
    %v8978 = vsel %vm8007, %v8693, %v8679
    %v8979 = vpack.c.bf16 %v8970, %v8970
    %8981 = vrot.lane.b32.xlu0 %v8979, 64
    %v8982 = vpop.permute.xlu0 %8981
    %v8984 = vsel %vm8232, %v8982, 0
    %8986 = vmatprep.subr.bf16.mxu0 0
    %8987 = vmatpush1.bf16.msra.mxu0 0
    %8988 = vmatprep.subr.bf16.mxu0 0
    %8989 = vmatpush1.bf16.msra.mxu0 0
    %8990 = vmatprep.subr.bf16.mxu0 0
    %8991 = vmatpush1.bf16.msra.mxu0 0
    %8992 = vmatprep.subr.bf16.mxu0 0
    %8993 = vmatpush1.bf16.msra.mxu0 0
    %8994 = vmatprep.subr.bf16.mxu0 %v8728
    %8995 = vmatpush1.bf16.msra.mxu0 %v8727
    %8996 = vmatprep.subr.bf16.mxu0 %v8726
    %8997 = vmatpush1.bf16.msra.mxu0 %v8725
    %8998 = vmatprep.subr.bf16.mxu0 %v8724
    %8999 = vmatpush1.bf16.msra.mxu0 %v8723
    %9000 = vmatprep.subr.bf16.mxu0 %v8722
    %9001 = vmatpush1.bf16.msra.mxu0 %v8721
    %9002 = vmatprep.subr.bf16.mxu0 0
    %9003 = vmatpush2.bf16.msra.mxu0 0
    %9004 = vmatprep.subr.bf16.mxu0 0
    %9005 = vmatpush2.bf16.msra.mxu0 0
    %9006 = vmatprep.subr.bf16.mxu0 0
    %9007 = vmatpush2.bf16.msra.mxu0 0
    %9008 = vmatprep.subr.bf16.mxu0 0
    %9009 = vmatpush2.bf16.msra.mxu0 0
    %9010 = vmatprep.subr.bf16.mxu0 0
    %9011 = vmatpush2.bf16.msra.mxu0 0
    %9012 = vmatprep.subr.bf16.mxu0 0
    %9013 = vmatpush2.bf16.msra.mxu0 0
    %9014 = vmatprep.subr.bf16.mxu0 0
    %9015 = vmatpush2.bf16.msra.mxu0 0
    %9016 = vmatprep.subr.bf16.mxu0 0
    %9017 = vmatpush2.bf16.msra.mxu0 0
    %9018 = vmatprep.mubr.bf16.mxu0 0
    %9019 = vmatmul.mubr.bf16.gmra.mxu0 %v8984
    %v9020 = vpop.f32.mrf.mxu0
    %v9021 = vadd.f32 0.0, %v9020
    %v9022 = vpop.f32.mrf.mxu0
    %v9023 = vadd.f32 0.0, %v9022
    %v9024 = vpop.f32.mrf.mxu0
    %v9025 = vpop.f32.mrf.mxu0
    %9026 = vdwg.mxu0
    %v9027 = vadd.f32 %v8977, %v9021
    %v9028 = vadd.f32 %v8978, %v9023
    %v9029 = vtanh.pop %v9027
    %v9030 = vtanh.pop %v9028
    %v9031 = vxor.u32 %v9027, 2147483648
    %v9032 = vxor.u32 %v9028, 2147483648
    %v9033 = vmul.f32 %v9031, 1.442695
    %v9034 = vpow.pop %v9033
    %v9035 = vmul.f32 %v9032, 1.442695
    %v9036 = vpow.pop %v9035
    %v9037 = vadd.f32 %v9034, 1.0
    %v9038 = vadd.f32 %v9036, 1.0
    %v9039 = vrcp.pop %v9037
    %v9040 = vmul.f32 1.0, %v9039
    %v9041 = vrcp.pop %v9038
    %v9042 = vmul.f32 1.0, %v9041
    %v9043 = vsel %vm8012, %v9029, %v9040
    %v9044 = vsel %vm8013, %v9030, %v9042
    %v9045 = vmul.f32 %v9043, %v8968
    %v9046 = vmul.f32 %v9043, %v9044
    %9048 = vrot.lane.b32.xlu0 %v9046, 64
    %v9049 = vpop.permute.xlu0 %9048
    %v9051 = vadd.f32 %v9045, %v9049
    %v9052 = vtanh.pop %v9051
    %v9053 = vmul.f32 %v9044, %v9052
    %9055 = vrot.lane.b32.xlu0 %v9053, 64
    %v9056 = vpop.permute.xlu0 %9055
    %9058 = vst.msk [vmem:[#allocation2 + $0x18] sm:$0xff] %vm8308, %v9056
    %9059 = vst.msk [vmem:[#allocation2] sm:$0xff] %vm8310, %v9056
    %v9060 = vld [vmem:[%s4 + $0xc0] sm:$0xff]
    %v9061 = vld [vmem:[%s4 + $0xc8] sm:$0xff]
    %v9062 = vld [vmem:[%s4 + $0xd0] sm:$0xff]
    %v9063 = vld [vmem:[%s4 + $0xd8] sm:$0xff]
    %v9064 = vld [vmem:[%s4 + $0xe0] sm:$0xff]
    %v9065 = vld [vmem:[%s4 + $0xe8] sm:$0xff]
    %v9066 = vld [vmem:[%s4 + $0xf0] sm:$0xff]
    %v9067 = vld [vmem:[%s4 + $0xf8] sm:$0xff]
    %v9068 = vld [vmem:[%s5 + $0x80] sm:$0xff]
    %v9069 = vld [vmem:[%s5 + $0x88] sm:$0xff]
    %v9070 = vld [vmem:[%s5 + $0x90] sm:$0xff]
    %v9071 = vld [vmem:[%s5 + $0x98] sm:$0xff]
    %v9072 = vld [vmem:[%s5 + $0xa0] sm:$0xff]
    %v9073 = vld [vmem:[%s5 + $0xa8] sm:$0xff]
    %v9074 = vld [vmem:[%s5 + $0xb0] sm:$0xff]
    %v9075 = vld [vmem:[%s5 + $0xb8] sm:$0xff]
    %s9076 = scalar_lea.vmem %s1, 18
    %v9077 = vld [vmem:[%s9076] ss:$8 sm:$0x3]
    %v9078 = vld [vmem:[#allocation2] sm:$0xff]
    %v9079 = vld [vmem:[#allocation2 + $0x8] sm:$0xff]
    %v9080 = vld [vmem:[#allocation2 + $0x10] sm:$0xff]
    %v9081 = vld [vmem:[#allocation2 + $0x18] sm:$0xff]
    %v9082 = vpack.c.bf16 %v9079, %v9078
    %v9083 = vpack.c.bf16 %v9081, %v9080
    %v9085 = vlaneseq
    %v9086 = vshrl.u32 %v9085, 7
    %v9087 = vsub.s32 0, %v9086
    %v9088 = vrot.slane %v9077, %v9087
    %v9089 = vlaneseq
    %v9090 = vshrl.u32 %v9089, 7
    %v9091 = vsub.s32 1, %v9090
    %v9092 = vrot.slane %v9077, %v9091
    %v9103 = vunpack.c.l.b16 %v9060
    %v9104 = vunpack.c.h.b16 %v9060
    %v9105 = vunpack.c.l.b16 %v9061
    %v9106 = vunpack.c.h.b16 %v9061
    %v9107 = vunpack.c.l.b16 %v9062
    %v9108 = vunpack.c.h.b16 %v9062
    %v9109 = vunpack.c.l.b16 %v9063
    %v9110 = vunpack.c.h.b16 %v9063
    %v9111 = vunpack.c.l.b16 %v9064
    %v9112 = vunpack.c.h.b16 %v9064
    %v9113 = vunpack.c.l.b16 %v9065
    %v9114 = vunpack.c.h.b16 %v9065
    %v9115 = vunpack.c.l.b16 %v9066
    %v9116 = vunpack.c.h.b16 %v9066
    %v9117 = vunpack.c.l.b16 %v9067
    %v9118 = vunpack.c.h.b16 %v9067
    %v9119 = vpack.c.b16 %v9105, %v9103
    %v9120 = vpack.c.b16 %v9106, %v9104
    %v9121 = vpack.c.b16 %v9109, %v9107
    %v9122 = vpack.c.b16 %v9110, %v9108
    %v9123 = vpack.c.b16 %v9113, %v9111
    %v9124 = vpack.c.b16 %v9114, %v9112
    %v9125 = vpack.c.b16 %v9117, %v9115
    %v9126 = vpack.c.b16 %v9118, %v9116
    %v9136 = vsel %vm8232, %v9082, 0
    %v9139 = vsel %vm8232, %v9083, 0
    %9141 = vmatprep.subr.bf16.mxu0 0
    %9142 = vmatpush1.bf16.msra.mxu0 0
    %9143 = vmatprep.subr.bf16.mxu0 0
    %9144 = vmatpush1.bf16.msra.mxu0 0
    %9145 = vmatprep.subr.bf16.mxu0 0
    %9146 = vmatpush1.bf16.msra.mxu0 0
    %9147 = vmatprep.subr.bf16.mxu0 0
    %9148 = vmatpush1.bf16.msra.mxu0 0
    %9149 = vmatprep.subr.bf16.mxu0 %v9126
    %9150 = vmatpush1.bf16.msra.mxu0 %v9125
    %9151 = vmatprep.subr.bf16.mxu0 %v9124
    %9152 = vmatpush1.bf16.msra.mxu0 %v9123
    %9153 = vmatprep.subr.bf16.mxu0 %v9122
    %9154 = vmatpush1.bf16.msra.mxu0 %v9121
    %9155 = vmatprep.subr.bf16.mxu0 %v9120
    %9156 = vmatpush1.bf16.msra.mxu0 %v9119
    %9157 = vmatprep.subr.bf16.mxu0 0
    %9158 = vmatpush2.bf16.msra.mxu0 0
    %9159 = vmatprep.subr.bf16.mxu0 0
    %9160 = vmatpush2.bf16.msra.mxu0 0
    %9161 = vmatprep.subr.bf16.mxu0 0
    %9162 = vmatpush2.bf16.msra.mxu0 0
    %9163 = vmatprep.subr.bf16.mxu0 0
    %9164 = vmatpush2.bf16.msra.mxu0 0
    %9165 = vmatprep.subr.bf16.mxu0 0
    %9166 = vmatpush2.bf16.msra.mxu0 0
    %9167 = vmatprep.subr.bf16.mxu0 0
    %9168 = vmatpush2.bf16.msra.mxu0 0
    %9169 = vmatprep.subr.bf16.mxu0 0
    %9170 = vmatpush2.bf16.msra.mxu0 0
    %9171 = vmatprep.subr.bf16.mxu0 0
    %9172 = vmatpush2.bf16.msra.mxu0 0
    %9173 = vmatprep.mubr.bf16.mxu0 0
    %9174 = vmatmul.mubr.bf16.gmra.mxu0 %v9136
    %v9175 = vpop.f32.mrf.mxu0
    %v9176 = vadd.f32 %v9088, %v9175
    %v9177 = vpop.f32.mrf.mxu0
    %v9178 = vadd.f32 %v9092, %v9177
    %v9179 = vpop.f32.mrf.mxu0
    %v9180 = vadd.f32 %v9088, %v9179
    %v9181 = vpop.f32.mrf.mxu0
    %v9182 = vadd.f32 %v9092, %v9181
    %9183 = vmatprep.mubr.bf16.mxu0 0
    %9184 = vmatmul.mubr.bf16.gmra.mxu0 %v9139
    %v9185 = vpop.f32.mrf.mxu0
    %v9186 = vadd.f32 %v9088, %v9185
    %v9187 = vpop.f32.mrf.mxu0
    %v9188 = vadd.f32 %v9092, %v9187
    %v9189 = vpop.f32.mrf.mxu0
    %v9190 = vadd.f32 %v9088, %v9189
    %v9191 = vpop.f32.mrf.mxu0
    %v9192 = vadd.f32 %v9092, %v9191
    %9193 = vdwg.mxu0
    %v9194 = vsel %vm8006, %v9176, %v9190
    %v9195 = vsel %vm8007, %v9178, %v9192
    %v9204 = vunpack.c.l.b16 %v9068
    %v9205 = vunpack.c.h.b16 %v9068
    %v9206 = vunpack.c.l.b16 %v9069
    %v9207 = vunpack.c.h.b16 %v9069
    %v9208 = vunpack.c.l.b16 %v9070
    %v9209 = vunpack.c.h.b16 %v9070
    %v9210 = vunpack.c.l.b16 %v9071
    %v9211 = vunpack.c.h.b16 %v9071
    %v9212 = vunpack.c.l.b16 %v9072
    %v9213 = vunpack.c.h.b16 %v9072
    %v9214 = vunpack.c.l.b16 %v9073
    %v9215 = vunpack.c.h.b16 %v9073
    %v9216 = vunpack.c.l.b16 %v9074
    %v9217 = vunpack.c.h.b16 %v9074
    %v9218 = vunpack.c.l.b16 %v9075
    %v9219 = vunpack.c.h.b16 %v9075
    %v9220 = vpack.c.b16 %v9206, %v9204
    %v9221 = vpack.c.b16 %v9207, %v9205
    %v9222 = vpack.c.b16 %v9210, %v9208
    %v9223 = vpack.c.b16 %v9211, %v9209
    %v9224 = vpack.c.b16 %v9214, %v9212
    %v9225 = vpack.c.b16 %v9215, %v9213
    %v9226 = vpack.c.b16 %v9218, %v9216
    %v9227 = vpack.c.b16 %v9219, %v9217
    %9236 = vmatprep.subr.bf16.mxu0 0
    %9237 = vmatpush1.bf16.msra.mxu0 0
    %9238 = vmatprep.subr.bf16.mxu0 0
    %9239 = vmatpush1.bf16.msra.mxu0 0
    %9240 = vmatprep.subr.bf16.mxu0 0
    %9241 = vmatpush1.bf16.msra.mxu0 0
    %9242 = vmatprep.subr.bf16.mxu0 0
    %9243 = vmatpush1.bf16.msra.mxu0 0
    %9244 = vmatprep.subr.bf16.mxu0 %v9227
    %9245 = vmatpush1.bf16.msra.mxu0 %v9226
    %9246 = vmatprep.subr.bf16.mxu0 %v9225
    %9247 = vmatpush1.bf16.msra.mxu0 %v9224
    %9248 = vmatprep.subr.bf16.mxu0 %v9223
    %9249 = vmatpush1.bf16.msra.mxu0 %v9222
    %9250 = vmatprep.subr.bf16.mxu0 %v9221
    %9251 = vmatpush1.bf16.msra.mxu0 %v9220
    %9252 = vmatprep.subr.bf16.mxu0 0
    %9253 = vmatpush2.bf16.msra.mxu0 0
    %9254 = vmatprep.subr.bf16.mxu0 0
    %9255 = vmatpush2.bf16.msra.mxu0 0
    %9256 = vmatprep.subr.bf16.mxu0 0
    %9257 = vmatpush2.bf16.msra.mxu0 0
    %9258 = vmatprep.subr.bf16.mxu0 0
    %9259 = vmatpush2.bf16.msra.mxu0 0
    %9260 = vmatprep.subr.bf16.mxu0 0
    %9261 = vmatpush2.bf16.msra.mxu0 0
    %9262 = vmatprep.subr.bf16.mxu0 0
    %9263 = vmatpush2.bf16.msra.mxu0 0
    %9264 = vmatprep.subr.bf16.mxu0 0
    %9265 = vmatpush2.bf16.msra.mxu0 0
    %9266 = vmatprep.subr.bf16.mxu0 0
    %9267 = vmatpush2.bf16.msra.mxu0 0
    %9268 = vmatprep.mubr.bf16.mxu0 0
    %9269 = vmatmul.mubr.bf16.gmra.mxu0 %v8234
    %v9270 = vpop.f32.mrf.mxu0
    %v9271 = vadd.f32 0.0, %v9270
    %v9272 = vpop.f32.mrf.mxu0
    %v9273 = vadd.f32 0.0, %v9272
    %v9274 = vpop.f32.mrf.mxu0
    %v9275 = vpop.f32.mrf.mxu0
    %9276 = vdwg.mxu0
    %v9277 = vadd.f32 %v9194, %v9271
    %v9278 = vadd.f32 %v9195, %v9273
    %v9279 = vtanh.pop %v9277
    %v9280 = vtanh.pop %v9278
    %v9281 = vxor.u32 %v9277, 2147483648
    %v9282 = vxor.u32 %v9278, 2147483648
    %v9283 = vmul.f32 %v9281, 1.442695
    %v9284 = vpow.pop %v9283
    %v9285 = vmul.f32 %v9282, 1.442695
    %v9286 = vpow.pop %v9285
    %v9287 = vadd.f32 %v9284, 1.0
    %v9288 = vadd.f32 %v9286, 1.0
    %v9289 = vrcp.pop %v9287
    %v9290 = vmul.f32 1.0, %v9289
    %v9291 = vrcp.pop %v9288
    %v9292 = vmul.f32 1.0, %v9291
    %v9293 = vsel %vm8012, %v9279, %v9290
    %v9294 = vsel %vm8013, %v9280, %v9292
    %v9295 = vmul.f32 %v9293, 0.0
    %v9296 = vmul.f32 %v9293, %v9294
    %9298 = vrot.lane.b32.xlu0 %v9296, 64
    %v9299 = vpop.permute.xlu0 %9298
    %v9301 = vadd.f32 %v9295, %v9299
    %v9302 = vtanh.pop %v9301
    %v9303 = vmul.f32 %v9294, %v9302
    %v9304 = vsel %vm8006, %v9180, %v9186
    %v9305 = vsel %vm8007, %v9182, %v9188
    %v9306 = vpack.c.bf16 %v9303, %v9303
    %9308 = vrot.lane.b32.xlu0 %v9306, 64
    %v9309 = vpop.permute.xlu0 %9308
    %v9311 = vsel %vm8232, %v9309, 0
    %9313 = vmatprep.subr.bf16.mxu0 0
    %9314 = vmatpush1.bf16.msra.mxu0 0
    %9315 = vmatprep.subr.bf16.mxu0 0
    %9316 = vmatpush1.bf16.msra.mxu0 0
    %9317 = vmatprep.subr.bf16.mxu0 0
    %9318 = vmatpush1.bf16.msra.mxu0 0
    %9319 = vmatprep.subr.bf16.mxu0 0
    %9320 = vmatpush1.bf16.msra.mxu0 0
    %9321 = vmatprep.subr.bf16.mxu0 %v9227
    %9322 = vmatpush1.bf16.msra.mxu0 %v9226
    %9323 = vmatprep.subr.bf16.mxu0 %v9225
    %9324 = vmatpush1.bf16.msra.mxu0 %v9224
    %9325 = vmatprep.subr.bf16.mxu0 %v9223
    %9326 = vmatpush1.bf16.msra.mxu0 %v9222
    %9327 = vmatprep.subr.bf16.mxu0 %v9221
    %9328 = vmatpush1.bf16.msra.mxu0 %v9220
    %9329 = vmatprep.subr.bf16.mxu0 0
    %9330 = vmatpush2.bf16.msra.mxu0 0
    %9331 = vmatprep.subr.bf16.mxu0 0
    %9332 = vmatpush2.bf16.msra.mxu0 0
    %9333 = vmatprep.subr.bf16.mxu0 0
    %9334 = vmatpush2.bf16.msra.mxu0 0
    %9335 = vmatprep.subr.bf16.mxu0 0
    %9336 = vmatpush2.bf16.msra.mxu0 0
    %9337 = vmatprep.subr.bf16.mxu0 0
    %9338 = vmatpush2.bf16.msra.mxu0 0
    %9339 = vmatprep.subr.bf16.mxu0 0
    %9340 = vmatpush2.bf16.msra.mxu0 0
    %9341 = vmatprep.subr.bf16.mxu0 0
    %9342 = vmatpush2.bf16.msra.mxu0 0
    %9343 = vmatprep.subr.bf16.mxu0 0
    %9344 = vmatpush2.bf16.msra.mxu0 0
    %9345 = vmatprep.mubr.bf16.mxu0 0
    %9346 = vmatmul.mubr.bf16.gmra.mxu0 %v9311
    %v9347 = vpop.f32.mrf.mxu0
    %v9348 = vadd.f32 0.0, %v9347
    %v9349 = vpop.f32.mrf.mxu0
    %v9350 = vadd.f32 0.0, %v9349
    %v9351 = vpop.f32.mrf.mxu0
    %v9352 = vpop.f32.mrf.mxu0
    %9353 = vdwg.mxu0
    %v9354 = vadd.f32 %v9304, %v9348
    %v9355 = vadd.f32 %v9305, %v9350
    %v9356 = vtanh.pop %v9354
    %v9357 = vtanh.pop %v9355
    %v9358 = vxor.u32 %v9354, 2147483648
    %v9359 = vxor.u32 %v9355, 2147483648
    %v9360 = vmul.f32 %v9358, 1.442695
    %v9361 = vpow.pop %v9360
    %v9362 = vmul.f32 %v9359, 1.442695
    %v9363 = vpow.pop %v9362
    %v9364 = vadd.f32 %v9361, 1.0
    %v9365 = vadd.f32 %v9363, 1.0
    %v9366 = vrcp.pop %v9364
    %v9367 = vmul.f32 1.0, %v9366
    %v9368 = vrcp.pop %v9365
    %v9369 = vmul.f32 1.0, %v9368
    %v9370 = vsel %vm8012, %v9356, %v9367
    %v9371 = vsel %vm8013, %v9357, %v9369
    %v9372 = vmul.f32 %v9370, %v9301
    %v9373 = vmul.f32 %v9370, %v9371
    %9375 = vrot.lane.b32.xlu0 %v9373, 64
    %v9376 = vpop.permute.xlu0 %9375
    %v9378 = vadd.f32 %v9372, %v9376
    %v9379 = vtanh.pop %v9378
    %v9380 = vmul.f32 %v9371, %v9379
    %v9381 = vsel %vm8006, %v9186, %v9180
    %v9382 = vsel %vm8007, %v9188, %v9182
    %v9383 = vpack.c.bf16 %v9380, %v9380
    %9385 = vrot.lane.b32.xlu0 %v9383, 64
    %v9386 = vpop.permute.xlu0 %9385
    %v9388 = vsel %vm8232, %v9386, 0
    %9390 = vmatprep.subr.bf16.mxu0 0
    %9391 = vmatpush1.bf16.msra.mxu0 0
    %9392 = vmatprep.subr.bf16.mxu0 0
    %9393 = vmatpush1.bf16.msra.mxu0 0
    %9394 = vmatprep.subr.bf16.mxu0 0
    %9395 = vmatpush1.bf16.msra.mxu0 0
    %9396 = vmatprep.subr.bf16.mxu0 0
    %9397 = vmatpush1.bf16.msra.mxu0 0
    %9398 = vmatprep.subr.bf16.mxu0 %v9227
    %9399 = vmatpush1.bf16.msra.mxu0 %v9226
    %9400 = vmatprep.subr.bf16.mxu0 %v9225
    %9401 = vmatpush1.bf16.msra.mxu0 %v9224
    %9402 = vmatprep.subr.bf16.mxu0 %v9223
    %9403 = vmatpush1.bf16.msra.mxu0 %v9222
    %9404 = vmatprep.subr.bf16.mxu0 %v9221
    %9405 = vmatpush1.bf16.msra.mxu0 %v9220
    %9406 = vmatprep.subr.bf16.mxu0 0
    %9407 = vmatpush2.bf16.msra.mxu0 0
    %9408 = vmatprep.subr.bf16.mxu0 0
    %9409 = vmatpush2.bf16.msra.mxu0 0
    %9410 = vmatprep.subr.bf16.mxu0 0
    %9411 = vmatpush2.bf16.msra.mxu0 0
    %9412 = vmatprep.subr.bf16.mxu0 0
    %9413 = vmatpush2.bf16.msra.mxu0 0
    %9414 = vmatprep.subr.bf16.mxu0 0
    %9415 = vmatpush2.bf16.msra.mxu0 0
    %9416 = vmatprep.subr.bf16.mxu0 0
    %9417 = vmatpush2.bf16.msra.mxu0 0
    %9418 = vmatprep.subr.bf16.mxu0 0
    %9419 = vmatpush2.bf16.msra.mxu0 0
    %9420 = vmatprep.subr.bf16.mxu0 0
    %9421 = vmatpush2.bf16.msra.mxu0 0
    %9422 = vmatprep.mubr.bf16.mxu0 0
    %9423 = vmatmul.mubr.bf16.gmra.mxu0 %v9388
    %v9424 = vpop.f32.mrf.mxu0
    %v9425 = vadd.f32 0.0, %v9424
    %v9426 = vpop.f32.mrf.mxu0
    %v9427 = vadd.f32 0.0, %v9426
    %v9428 = vpop.f32.mrf.mxu0
    %v9429 = vpop.f32.mrf.mxu0
    %9430 = vdwg.mxu0
    %v9431 = vadd.f32 %v9381, %v9425
    %v9432 = vadd.f32 %v9382, %v9427
    %v9433 = vtanh.pop %v9431
    %v9434 = vtanh.pop %v9432
    %v9435 = vxor.u32 %v9431, 2147483648
    %v9436 = vxor.u32 %v9432, 2147483648
    %v9437 = vmul.f32 %v9435, 1.442695
    %v9438 = vpow.pop %v9437
    %v9439 = vmul.f32 %v9436, 1.442695
    %v9440 = vpow.pop %v9439
    %v9441 = vadd.f32 %v9438, 1.0
    %v9442 = vadd.f32 %v9440, 1.0
    %v9443 = vrcp.pop %v9441
    %v9444 = vmul.f32 1.0, %v9443
    %v9445 = vrcp.pop %v9442
    %v9446 = vmul.f32 1.0, %v9445
    %v9447 = vsel %vm8012, %v9433, %v9444
    %v9448 = vsel %vm8013, %v9434, %v9446
    %v9449 = vmul.f32 %v9447, %v9378
    %v9450 = vmul.f32 %v9447, %v9448
    %9452 = vrot.lane.b32.xlu0 %v9450, 64
    %v9453 = vpop.permute.xlu0 %9452
    %v9455 = vadd.f32 %v9449, %v9453
    %v9456 = vtanh.pop %v9455
    %v9457 = vmul.f32 %v9448, %v9456
    %v9458 = vsel %vm8006, %v9190, %v9176
    %v9459 = vsel %vm8007, %v9192, %v9178
    %v9460 = vpack.c.bf16 %v9457, %v9457
    %9462 = vrot.lane.b32.xlu0 %v9460, 64
    %v9463 = vpop.permute.xlu0 %9462
    %v9465 = vsel %vm8232, %v9463, 0
    %9467 = vmatprep.subr.bf16.mxu0 0
    %9468 = vmatpush1.bf16.msra.mxu0 0
    %9469 = vmatprep.subr.bf16.mxu0 0
    %9470 = vmatpush1.bf16.msra.mxu0 0
    %9471 = vmatprep.subr.bf16.mxu0 0
    %9472 = vmatpush1.bf16.msra.mxu0 0
    %9473 = vmatprep.subr.bf16.mxu0 0
    %9474 = vmatpush1.bf16.msra.mxu0 0
    %9475 = vmatprep.subr.bf16.mxu0 %v9227
    %9476 = vmatpush1.bf16.msra.mxu0 %v9226
    %9477 = vmatprep.subr.bf16.mxu0 %v9225
    %9478 = vmatpush1.bf16.msra.mxu0 %v9224
    %9479 = vmatprep.subr.bf16.mxu0 %v9223
    %9480 = vmatpush1.bf16.msra.mxu0 %v9222
    %9481 = vmatprep.subr.bf16.mxu0 %v9221
    %9482 = vmatpush1.bf16.msra.mxu0 %v9220
    %9483 = vmatprep.subr.bf16.mxu0 0
    %9484 = vmatpush2.bf16.msra.mxu0 0
    %9485 = vmatprep.subr.bf16.mxu0 0
    %9486 = vmatpush2.bf16.msra.mxu0 0
    %9487 = vmatprep.subr.bf16.mxu0 0
    %9488 = vmatpush2.bf16.msra.mxu0 0
    %9489 = vmatprep.subr.bf16.mxu0 0
    %9490 = vmatpush2.bf16.msra.mxu0 0
    %9491 = vmatprep.subr.bf16.mxu0 0
    %9492 = vmatpush2.bf16.msra.mxu0 0
    %9493 = vmatprep.subr.bf16.mxu0 0
    %9494 = vmatpush2.bf16.msra.mxu0 0
    %9495 = vmatprep.subr.bf16.mxu0 0
    %9496 = vmatpush2.bf16.msra.mxu0 0
    %9497 = vmatprep.subr.bf16.mxu0 0
    %9498 = vmatpush2.bf16.msra.mxu0 0
    %9499 = vmatprep.mubr.bf16.mxu0 0
    %9500 = vmatmul.mubr.bf16.gmra.mxu0 %v9465
    %v9501 = vpop.f32.mrf.mxu0
    %v9502 = vadd.f32 0.0, %v9501
    %v9503 = vpop.f32.mrf.mxu0
    %v9504 = vadd.f32 0.0, %v9503
    %v9505 = vpop.f32.mrf.mxu0
    %v9506 = vpop.f32.mrf.mxu0
    %9507 = vdwg.mxu0
    %v9508 = vadd.f32 %v9458, %v9502
    %v9509 = vadd.f32 %v9459, %v9504
    %v9510 = vtanh.pop %v9508
    %v9511 = vtanh.pop %v9509
    %v9512 = vxor.u32 %v9508, 2147483648
    %v9513 = vxor.u32 %v9509, 2147483648
    %v9514 = vmul.f32 %v9512, 1.442695
    %v9515 = vpow.pop %v9514
    %v9516 = vmul.f32 %v9513, 1.442695
    %v9517 = vpow.pop %v9516
    %v9518 = vadd.f32 %v9515, 1.0
    %v9519 = vadd.f32 %v9517, 1.0
    %v9520 = vrcp.pop %v9518
    %v9521 = vmul.f32 1.0, %v9520
    %v9522 = vrcp.pop %v9519
    %v9523 = vmul.f32 1.0, %v9522
    %v9524 = vsel %vm8012, %v9510, %v9521
    %v9525 = vsel %vm8013, %v9511, %v9523
    %v9526 = vmul.f32 %v9524, %v9455
    %v9527 = vmul.f32 %v9524, %v9525
    %9529 = vrot.lane.b32.xlu0 %v9527, 64
    %v9530 = vpop.permute.xlu0 %9529
    %v9532 = vadd.f32 %v9526, %v9530
    %v9533 = vtanh.pop %v9532
    %v9534 = vmul.f32 %v9525, %v9533
    %v9535 = vld [vmem:[%s1 + $0x13] ss:$0 sm:$0xff]
    %v9536 = vld [vmem:[%s1 + $0x14] ss:$0 sm:$0xff]
    %9538 = vrot.lane.b32.xlu0 %v9535, 64
    %v9539 = vpop.permute.xlu0 %9538
    %v9541 = vmul.f32 %v9534, %v9539
    %9543 = vrot.lane.b32.xlu0 %v9541, 64
    %v9544 = vpop.permute.xlu0 %9543
    %v9546 = vsel %vm8232, %v9544, 0.0
    %9547 = vadd.xlane.f32.xlu0 %v9546
    %v9548 = vpop.xlane.xlu0 %9547
    %v9549 = vadd.f32 %v9548, %v9536
    %vm9550 = vcmask 7168
    %9551 = vst.msk [vmem:[%s6] sm:$0xff] %vm9550, %v9549
    // Predicated region
    $region30: #{net_forward.1} parent=1 // pred_check
      _
    $region31: #{net_forward.1} parent=1 // pred_check_branch
      %9553 = sbr.rel (0) target = $region33
    $region32: #{net_forward.1} parent=1 // pred_region
      _
    $region33: #{net_forward.1} parent=1 // pred_fallthru
      _
    // Predicated region
    $region34: #{net_forward.1} parent=1 // pred_check
      _
    $region35: #{net_forward.1} parent=1 // pred_check_branch
      %9555 = sbr.rel (0) target = $region37
    $region36: #{net_forward.1} parent=1 // pred_region
      _
    $region37: #{net_forward.1} parent=1 // pred_fallthru
      _
    %9556 = vsyncpa [#allocation4], 1

</llo_original>
